<compile_context>
chip_gen: v5e
topology: v5e:2x2
jax: 0.10.0
libtpu: 0.0.40
codegen_flags: <defaults>
</compile_context>

<pallas_src>
import functools
import math

import jax
import jax.numpy as jnp
import numpy as np
from jax.experimental import pallas as pl
from jax.experimental.pallas import tpu as pltpu


# ------------------------------- helpers ------------------------------------ #

def _layernorm(x, gamma, beta, eps=1e-5):
    mu = jnp.mean(x, axis=-1, keepdims=True)
    var = jnp.mean((x - mu) ** 2, axis=-1, keepdims=True)   # biased, like nn.LayerNorm
    return (x - mu) * jax.lax.rsqrt(var + eps) * gamma + beta


# ----------------------------- Pallas kernel -------------------------------- #

def transformer_kernel(x_ref,       # (Rb, D)         token rows of this block
                       vec_ref,     # (depth, 6, D)   [ln1_g, ln1_b, b_out, ln2_g, ln2_b, b2]
                       b1_ref,      # (depth, 1, mlp) FF hidden bias
                       wqkv_ref,    # (depth, D, 3*inner)   to_qkv weight (q|k|v, head, dh)
                       wout_ref,    # (depth, inner, D)     to_out weight
                       w1_ref,      # (depth, D, mlp)
                       w2_ref,      # (depth, mlp, D)
                       o_ref,       # (Rb, D)
                       *, N, H, dh):
    R, D = x_ref.shape
    gb = R // N                      # token groups in this block
    depth = wqkv_ref.shape[0]
    inner = H * dh
    scale = dh ** (-0.5)
    mxu_dt = w1_ref.dtype            # bf16 (or f32) MXU operand dtype

    # Residual stream stays resident in VMEM / vregs, in f32, across all layers.
    x = x_ref[...].astype(jnp.float32)                     # (R, D)

    for layer in range(depth):       # depth is small -> static unroll
        vec = vec_ref[layer].astype(jnp.float32)           # (6, D)
        ln1_g, ln1_b, b_out = vec[0:1], vec[1:2], vec[2:3]
        ln2_g, ln2_b, b2 = vec[3:4], vec[4:5], vec[5:6]
        b1 = b1_ref[layer].astype(jnp.float32)              # (1, mlp)

        # ---------- PreNorm + multi-head self-attention ----------
        xn = _layernorm(x, ln1_g, ln1_b).astype(mxu_dt)      # (R, D)

        # One lane-dense matmul for q, k and v of all heads.
        qkv = jnp.dot(xn, wqkv_ref[layer],
                      preferred_element_type=jnp.float32)    # (R, 3*inner)
        # Pull (q|k|v, head) out of the lane dim into a leading batch dim.
        qkv = pltpu.einshape("rjd->jrd", qkv.reshape(R, 3 * H, dh))   # (3H, R, dh)
        q = qkv[0 * H:1 * H].reshape(H * gb, N, dh).astype(mxu_dt)
        k = qkv[1 * H:2 * H].reshape(H * gb, N, dh).astype(mxu_dt)
        v = qkv[2 * H:3 * H].reshape(H * gb, N, dh).astype(mxu_dt)

        # Batched (head x group) attention, softmax in f32.
        s = jnp.einsum('bnd,bmd->bnm', q, k,
                       preferred_element_type=jnp.float32) * scale    # (H*gb, N, N)
        s = s - jnp.max(s, axis=-1, keepdims=True)
        e = jnp.exp(s)
        p = e * pl.reciprocal(jnp.sum(e, axis=-1, keepdims=True), approx=True)
        ctx = jnp.einsum('bnm,bmd->bnd', p.astype(mxu_dt), v,
                         preferred_element_type=jnp.float32)          # (H*gb, N, dh)

        # Merge heads back into the lane dim -> single output projection matmul.
        ctx = pltpu.einshape("hrd->rhd", ctx.reshape(H, R, dh))       # (R, H, dh)
        attn_out = jnp.dot(ctx.reshape(R, inner).astype(mxu_dt),
                           wout_ref[layer],
                           preferred_element_type=jnp.float32) + b_out
        x = x + attn_out                                    # residual (f32)

        # ---------- PreNorm + FeedForward (Linear -> SiLU -> Linear) ----------
        xn2 = _layernorm(x, ln2_g, ln2_b).astype(mxu_dt)
        h1 = jnp.dot(xn2, w1_ref[layer],
                     preferred_element_type=jnp.float32) + b1          # (R, mlp)
        h1 = h1 * jax.nn.sigmoid(h1)                        # SiLU in f32 (EUP)
        h2 = jnp.dot(h1.astype(mxu_dt), w2_ref[layer],
                     preferred_element_type=jnp.float32) + b2
        x = x + h2                                          # residual (f32)

    o_ref[...] = x.astype(o_ref.dtype)


# ------------------------------ JAX wrapper --------------------------------- #

def _const_spec(p):
    nd = p.ndim
    return pl.BlockSpec(p.shape, lambda i, _nd=nd: (0,) * _nd)


def _pick_group_block(G, N):
    # Split across the two TensorCores (megacore) only if each block still
    # feeds the MXU with >= 64 token rows and stays 8-row (sublane) aligned.
    if G % 2 == 0:
        gb = G // 2
        if gb * N >= 64 and (gb * N) % 8 == 0:
            return gb
    return G


def transformer_forward(x, params, heads, dim_head, use_bf16=True):
    """x: (B, P, N, D); params: list of per-layer dicts (PyTorch layout)."""
    B, P, N, D = x.shape
    G = B * P
    depth = len(params)

    # ---- stack per-layer params over depth (weights already in matmul layout)
    vecs = jnp.stack([jnp.stack([p["ln1_g"], p["ln1_b"], p["b_out"],
                                 p["ln2_g"], p["ln2_b"], p["b2"]], axis=0)
                      for p in params], axis=0)                        # (depth, 6, D)
    b1v = jnp.stack([p["b1"] for p in params], axis=0)[:, None, :]     # (depth, 1, mlp)
    wqkv = jnp.stack([p["w_qkv"] for p in params], axis=0)             # (depth, D, 3*inner)
    wout = jnp.stack([p["w_out"] for p in params], axis=0)             # (depth, inner, D)
    w1 = jnp.stack([p["w1"] for p in params], axis=0)                  # (depth, D, mlp)
    w2 = jnp.stack([p["w2"] for p in params], axis=0)                  # (depth, mlp, D)

    if use_bf16:   # bf16 MXU operands; vector-unit math / biases stay f32
        wqkv, wout, w1, w2 = (w.astype(jnp.bfloat16) for w in (wqkv, wout, w1, w2))

    plist = [vecs, b1v, wqkv, wout, w1, w2]

    gb = _pick_group_block(G, N)
    grid = (G // gb,)
    Rb = gb * N

    xf = x.reshape(G * N, D)
    kernel = functools.partial(transformer_kernel, N=N, H=heads, dh=dim_head)
    out = pl.pallas_call(
        kernel,
        out_shape=jax.ShapeDtypeStruct((G * N, D), x.dtype),
        grid=grid,
        in_specs=[pl.BlockSpec((Rb, D), lambda i: (i, 0))]
                 + [_const_spec(p) for p in plist],
        out_specs=pl.BlockSpec((Rb, D), lambda i: (i, 0)),
        compiler_params=pltpu.CompilerParams(
            dimension_semantics=("parallel",),
            vmem_limit_bytes=32 * 1024 * 1024),
    )(xf, *plist)
    return out.reshape(B, P, N, D)


# ------------------------- parameter initialization ------------------------- #

def init_params(key, dim, depth, heads, dim_head, mlp_dim, dtype=jnp.float32):
    inner = heads * dim_head
    params = []
    for _ in range(depth):
        keys = jax.random.split(key, 6)
        key = keys[0]

        def lin(k, fan_in, fan_out):
            bound = 1.0 / math.sqrt(fan_in)
            return jax.random.uniform(k, (fan_in, fan_out), dtype,
                                      minval=-bound, maxval=bound)

        layer = dict(
            ln1_g=jnp.ones((dim,), dtype),
            ln1_b=jnp.zeros((dim,), dtype),
            w_qkv=lin(keys[1], dim, 3 * inner),          # to_qkv (bias=False)
            w_out=lin(keys[2], inner, dim),              # to_out Linear
            b_out=jnp.zeros((dim,), dtype),
            ln2_g=jnp.ones((dim,), dtype),
            ln2_b=jnp.zeros((dim,), dtype),
            w1=lin(keys[3], dim, mlp_dim),
            b1=0.01 * jax.random.normal(keys[4], (mlp_dim,), dtype),
            w2=lin(keys[5], mlp_dim, dim),
            b2=jnp.zeros((dim,), dtype),
        )
        params.append(layer)
    return params


# --------------------------- pure-JAX reference ------------------------------ #

def reference_forward(x, params, heads, dim_head):
    B, P, N, D = x.shape
    inner = heads * dim_head
    scale = dim_head ** (-0.5)
    for lp in params:
        xn = _layernorm(x, lp["ln1_g"], lp["ln1_b"])
        qkv = xn @ lp["w_qkv"]                                    # (B,P,N,3*inner)
        q, k, v = jnp.split(qkv, 3, axis=-1)

        def split_heads(t):
            return t.reshape(B, P, N, heads, dim_head).transpose(0, 1, 3, 2, 4)
        q, k, v = map(split_heads, (q, k, v))                      # (B,P,H,N,dh)
        dots = jnp.einsum("bphnd,bphmd->bphnm", q, k) * scale
        attn = jax.nn.softmax(dots, axis=-1)
        out = jnp.einsum("bphnm,bphmd->bphnd", attn, v)
        out = out.transpose(0, 1, 3, 2, 4).reshape(B, P, N, inner)
        out = out @ lp["w_out"] + lp["b_out"]
        x = x + out
        xn2 = _layernorm(x, lp["ln2_g"], lp["ln2_b"])
        h1 = xn2 @ lp["w1"] + lp["b1"]
        h1 = h1 * jax.nn.sigmoid(h1)
        x = x + (h1 @ lp["w2"] + lp["b2"])
    return x


# ---------------------------------- main ------------------------------------ #

if __name__ == "__main__":
    # Small shapes consistent with the module:
    #   dim=32, depth=2, heads=4, dim_head=8, mlp_dim=64
    #   input x: (B=2, P=4, N=8, dim=32)   ('b p n d')
    dim, depth, heads, dim_head, mlp_dim = 32, 2, 4, 8, 64
    B, P, N = 2, 4, 8

    key = jax.random.PRNGKey(0)
    kx, kp = jax.random.split(key)
    x = jax.random.normal(kx, (B, P, N, dim), jnp.float32)
    params = init_params(kp, dim, depth, heads, dim_head, mlp_dim)

    # TODO(synk): nn.Dropout (p=0.0 / inference) is a no-op and is omitted.
    out = transformer_forward(x, params, heads, dim_head, use_bf16=True)
    out = jax.block_until_ready(out)

    ref = reference_forward(x, params, heads, dim_head)
    np.testing.assert_allclose(np.asarray(out), np.asarray(ref), rtol=5e-2, atol=5e-2)

    print("KERNEL_OK")
</pallas_src>

<mosaic_0001>
module attributes {stable_mosaic.version = 11 : i64} {
  func.func @transformer_kernel(%arg0: i32, %arg1: memref<64x32xf32, #tpu.memory_space<vmem>>, %arg2: memref<2x6x32xf32, #tpu.memory_space<vmem>>, %arg3: memref<2x1x64xf32, #tpu.memory_space<vmem>>, %arg4: memref<2x32x96xbf16, #tpu.memory_space<vmem>>, %arg5: memref<2x32x32xbf16, #tpu.memory_space<vmem>>, %arg6: memref<2x32x64xbf16, #tpu.memory_space<vmem>>, %arg7: memref<2x64x32xbf16, #tpu.memory_space<vmem>>, %arg8: memref<64x32xf32, #tpu.memory_space<vmem>>) attributes {dimension_semantics = [#tpu.dimension_semantics<parallel>], iteration_bounds = array<i64: 1>, scalar_prefetch = 0 : i64, scratch_operands = 0 : i64, tpu.core_type = #tpu.core_type<tc>, window_params = [{transform_indices = @transform_0, window_bounds = array<i64: 64, 32>}, {pipeline_mode = #tpu.pipeline_mode<synchronous>, transform_indices = @transform_1, window_bounds = array<i64: 2, 6, 32>}, {pipeline_mode = #tpu.pipeline_mode<synchronous>, transform_indices = @transform_2, window_bounds = array<i64: 2, 1, 64>}, {pipeline_mode = #tpu.pipeline_mode<synchronous>, transform_indices = @transform_3, window_bounds = array<i64: 2, 32, 96>}, {pipeline_mode = #tpu.pipeline_mode<synchronous>, transform_indices = @transform_4, window_bounds = array<i64: 2, 32, 32>}, {pipeline_mode = #tpu.pipeline_mode<synchronous>, transform_indices = @transform_5, window_bounds = array<i64: 2, 32, 64>}, {pipeline_mode = #tpu.pipeline_mode<synchronous>, transform_indices = @transform_6, window_bounds = array<i64: 2, 64, 32>}, {transform_indices = @transform_7, window_bounds = array<i64: 64, 32>}]} {
    %c0 = arith.constant 0 : index
    %c0_0 = arith.constant 0 : index
    %0 = vector.load %arg1[%c0, %c0_0] : memref<64x32xf32, #tpu.memory_space<vmem>>, vector<64x32xf32>
    %c0_1 = arith.constant 0 : index
    %c0_2 = arith.constant 0 : index
    %c0_3 = arith.constant 0 : index
    %1 = vector.load %arg2[%c0_1, %c0_2, %c0_3] : memref<2x6x32xf32, #tpu.memory_space<vmem>>, vector<1x6x32xf32>
    %2 = vector.shape_cast %1 : vector<1x6x32xf32> to vector<6x32xf32>
    %3 = vector.extract_strided_slice %2 {offsets = [0, 0], sizes = [1, 32], strides = [1, 1]} : vector<6x32xf32> to vector<1x32xf32>
    %4 = vector.extract_strided_slice %2 {offsets = [1, 0], sizes = [1, 32], strides = [1, 1]} : vector<6x32xf32> to vector<1x32xf32>
    %5 = vector.extract_strided_slice %2 {offsets = [2, 0], sizes = [1, 32], strides = [1, 1]} : vector<6x32xf32> to vector<1x32xf32>
    %6 = vector.extract_strided_slice %2 {offsets = [3, 0], sizes = [1, 32], strides = [1, 1]} : vector<6x32xf32> to vector<1x32xf32>
    %7 = vector.extract_strided_slice %2 {offsets = [4, 0], sizes = [1, 32], strides = [1, 1]} : vector<6x32xf32> to vector<1x32xf32>
    %8 = vector.extract_strided_slice %2 {offsets = [5, 0], sizes = [1, 32], strides = [1, 1]} : vector<6x32xf32> to vector<1x32xf32>
    %c0_4 = arith.constant 0 : index
    %c0_5 = arith.constant 0 : index
    %c0_6 = arith.constant 0 : index
    %9 = vector.load %arg3[%c0_4, %c0_5, %c0_6] : memref<2x1x64xf32, #tpu.memory_space<vmem>>, vector<1x1x64xf32>
    %10 = vector.shape_cast %9 : vector<1x1x64xf32> to vector<1x64xf32>
    %cst = arith.constant dense<0.000000e+00> : vector<64xf32>
    %11 = vector.multi_reduction <add>, %0, %cst [1] : vector<64x32xf32> to vector<64xf32>
    %12 = vector.shape_cast %11 : vector<64xf32> to vector<64x1xf32>
    %cst_7 = arith.constant 3.200000e+01 : f32
    %13 = vector.broadcast %cst_7 : f32 to vector<64x1xf32>
    %14 = arith.divf %12, %13 : vector<64x1xf32>
    %15 = vector.broadcast %14 : vector<64x1xf32> to vector<64x32xf32>
    %16 = arith.subf %0, %15 : vector<64x32xf32>
    %17 = arith.mulf %16, %16 : vector<64x32xf32>
    %cst_8 = arith.constant dense<0.000000e+00> : vector<64xf32>
    %18 = vector.multi_reduction <add>, %17, %cst_8 [1] : vector<64x32xf32> to vector<64xf32>
    %19 = vector.shape_cast %18 : vector<64xf32> to vector<64x1xf32>
    %cst_9 = arith.constant 3.200000e+01 : f32
    %20 = vector.broadcast %cst_9 : f32 to vector<64x1xf32>
    %21 = arith.divf %19, %20 : vector<64x1xf32>
    %22 = vector.broadcast %14 : vector<64x1xf32> to vector<64x32xf32>
    %23 = arith.subf %0, %22 : vector<64x32xf32>
    %cst_10 = arith.constant 9.99999974E-6 : f32
    %24 = vector.broadcast %cst_10 : f32 to vector<64x1xf32>
    %25 = arith.addf %21, %24 : vector<64x1xf32>
    %26 = math.rsqrt %25 : vector<64x1xf32>
    %27 = vector.broadcast %26 : vector<64x1xf32> to vector<64x32xf32>
    %28 = arith.mulf %23, %27 : vector<64x32xf32>
    %29 = vector.broadcast %3 : vector<1x32xf32> to vector<64x32xf32>
    %30 = arith.mulf %28, %29 : vector<64x32xf32>
    %31 = vector.broadcast %4 : vector<1x32xf32> to vector<64x32xf32>
    %32 = arith.addf %30, %31 : vector<64x32xf32>
    %33 = arith.truncf %32 : vector<64x32xf32> to vector<64x32xbf16>
    %c0_11 = arith.constant 0 : index
    %c0_12 = arith.constant 0 : index
    %c0_13 = arith.constant 0 : index
    %34 = vector.load %arg4[%c0_11, %c0_12, %c0_13] : memref<2x32x96xbf16, #tpu.memory_space<vmem>>, vector<1x32x96xbf16>
    %35 = vector.shape_cast %34 : vector<1x32x96xbf16> to vector<32x96xbf16>
    %cst_14 = arith.constant dense<0.000000e+00> : vector<64x96xf32>
    %36 = tpu.matmul %33, %35, %cst_14 {dimension_numbers = #tpu.dot_dimension_numbers<[1], [0], [0], [1], [0, 0, 1, 1], [], []>} : vector<64x32xbf16>, vector<32x96xbf16>, vector<64x96xf32> -> vector<64x96xf32>
    %37 = vector.shape_cast %36 : vector<64x96xf32> to vector<64x12x8xf32>
    %38 = tpu.transpose %37, [1, 0, 2] : vector<64x12x8xf32> -> vector<12x64x8xf32>
    %39 = vector.extract_strided_slice %38 {offsets = [0, 0, 0], sizes = [4, 64, 8], strides = [1, 1, 1]} : vector<12x64x8xf32> to vector<4x64x8xf32>
    %40 = vector.shape_cast %39 : vector<4x64x8xf32> to vector<32x8x8xf32>
    %41 = arith.truncf %40 : vector<32x8x8xf32> to vector<32x8x8xbf16>
    %42 = vector.extract_strided_slice %38 {offsets = [4, 0, 0], sizes = [4, 64, 8], strides = [1, 1, 1]} : vector<12x64x8xf32> to vector<4x64x8xf32>
    %43 = vector.shape_cast %42 : vector<4x64x8xf32> to vector<32x8x8xf32>
    %44 = arith.truncf %43 : vector<32x8x8xf32> to vector<32x8x8xbf16>
    %45 = vector.extract_strided_slice %38 {offsets = [8, 0, 0], sizes = [4, 64, 8], strides = [1, 1, 1]} : vector<12x64x8xf32> to vector<4x64x8xf32>
    %46 = vector.shape_cast %45 : vector<4x64x8xf32> to vector<32x8x8xf32>
    %47 = arith.truncf %46 : vector<32x8x8xf32> to vector<32x8x8xbf16>
    "tpu.trace_start"() <{level = 10 : i32, message = "bnd,bmd->bnm"}> : () -> ()
    %cst_15 = arith.constant dense<0.000000e+00> : vector<32x8x8xf32>
    %48 = tpu.matmul %41, %44, %cst_15 {dimension_numbers = #tpu.dot_dimension_numbers<[2], [2], [1], [1], [0, 0, 0, 1, 1, 1], [0], [0]>} : vector<32x8x8xbf16>, vector<32x8x8xbf16>, vector<32x8x8xf32> -> vector<32x8x8xf32>
    "tpu.trace_stop"() : () -> ()
    %cst_16 = arith.constant 0.353553385 : f32
    %49 = vector.broadcast %cst_16 : f32 to vector<32x8x8xf32>
    %50 = arith.mulf %48, %49 : vector<32x8x8xf32>
    %cst_17 = arith.constant dense<0xFF800000> : vector<32x8xf32>
    %51 = vector.multi_reduction <maximumf>, %50, %cst_17 [2] : vector<32x8x8xf32> to vector<32x8xf32>
    %52 = vector.shape_cast %51 : vector<32x8xf32> to vector<32x8x1xf32>
    %53 = vector.broadcast %52 : vector<32x8x1xf32> to vector<32x8x8xf32>
    %54 = arith.subf %50, %53 : vector<32x8x8xf32>
    %55 = math.exp %54 : vector<32x8x8xf32>
    %cst_18 = arith.constant dense<0.000000e+00> : vector<32x8xf32>
    %56 = vector.multi_reduction <add>, %55, %cst_18 [2] : vector<32x8x8xf32> to vector<32x8xf32>
    %57 = vector.shape_cast %56 : vector<32x8xf32> to vector<32x8x1xf32>
    %58 = tpu.reciprocal %57 {approx = true} : vector<32x8x1xf32> -> vector<32x8x1xf32>
    %59 = vector.broadcast %58 : vector<32x8x1xf32> to vector<32x8x8xf32>
    %60 = arith.mulf %55, %59 : vector<32x8x8xf32>
    %61 = arith.truncf %60 : vector<32x8x8xf32> to vector<32x8x8xbf16>
    "tpu.trace_start"() <{level = 10 : i32, message = "bnm,bmd->bnd"}> : () -> ()
    %cst_19 = arith.constant dense<0.000000e+00> : vector<32x8x8xf32>
    %62 = tpu.matmul %61, %47, %cst_19 {dimension_numbers = #tpu.dot_dimension_numbers<[2], [1], [1], [2], [0, 0, 0, 1, 1, 2], [0], [0]>} : vector<32x8x8xbf16>, vector<32x8x8xbf16>, vector<32x8x8xf32> -> vector<32x8x8xf32>
    "tpu.trace_stop"() : () -> ()
    %63 = vector.shape_cast %62 : vector<32x8x8xf32> to vector<4x64x8xf32>
    %64 = tpu.transpose %63, [1, 0, 2] : vector<4x64x8xf32> -> vector<64x4x8xf32>
    %65 = vector.shape_cast %64 : vector<64x4x8xf32> to vector<64x32xf32>
    %66 = arith.truncf %65 : vector<64x32xf32> to vector<64x32xbf16>
    %c0_20 = arith.constant 0 : index
    %c0_21 = arith.constant 0 : index
    %c0_22 = arith.constant 0 : index
    %67 = vector.load %arg5[%c0_20, %c0_21, %c0_22] : memref<2x32x32xbf16, #tpu.memory_space<vmem>>, vector<1x32x32xbf16>
    %68 = vector.shape_cast %67 : vector<1x32x32xbf16> to vector<32x32xbf16>
    %cst_23 = arith.constant dense<0.000000e+00> : vector<64x32xf32>
    %69 = tpu.matmul %66, %68, %cst_23 {dimension_numbers = #tpu.dot_dimension_numbers<[1], [0], [0], [1], [0, 0, 1, 1], [], []>} : vector<64x32xbf16>, vector<32x32xbf16>, vector<64x32xf32> -> vector<64x32xf32>
    %70 = vector.broadcast %5 : vector<1x32xf32> to vector<64x32xf32>
    %71 = arith.addf %69, %70 : vector<64x32xf32>
    %72 = arith.addf %0, %71 : vector<64x32xf32>
    %cst_24 = arith.constant dense<0.000000e+00> : vector<64xf32>
    %73 = vector.multi_reduction <add>, %72, %cst_24 [1] : vector<64x32xf32> to vector<64xf32>
    %74 = vector.shape_cast %73 : vector<64xf32> to vector<64x1xf32>
    %cst_25 = arith.constant 3.200000e+01 : f32
    %75 = vector.broadcast %cst_25 : f32 to vector<64x1xf32>
    %76 = arith.divf %74, %75 : vector<64x1xf32>
    %77 = vector.broadcast %76 : vector<64x1xf32> to vector<64x32xf32>
    %78 = arith.subf %72, %77 : vector<64x32xf32>
    %79 = arith.mulf %78, %78 : vector<64x32xf32>
    %cst_26 = arith.constant dense<0.000000e+00> : vector<64xf32>
    %80 = vector.multi_reduction <add>, %79, %cst_26 [1] : vector<64x32xf32> to vector<64xf32>
    %81 = vector.shape_cast %80 : vector<64xf32> to vector<64x1xf32>
    %cst_27 = arith.constant 3.200000e+01 : f32
    %82 = vector.broadcast %cst_27 : f32 to vector<64x1xf32>
    %83 = arith.divf %81, %82 : vector<64x1xf32>
    %84 = vector.broadcast %76 : vector<64x1xf32> to vector<64x32xf32>
    %85 = arith.subf %72, %84 : vector<64x32xf32>
    %cst_28 = arith.constant 9.99999974E-6 : f32
    %86 = vector.broadcast %cst_28 : f32 to vector<64x1xf32>
    %87 = arith.addf %83, %86 : vector<64x1xf32>
    %88 = math.rsqrt %87 : vector<64x1xf32>
    %89 = vector.broadcast %88 : vector<64x1xf32> to vector<64x32xf32>
    %90 = arith.mulf %85, %89 : vector<64x32xf32>
    %91 = vector.broadcast %6 : vector<1x32xf32> to vector<64x32xf32>
    %92 = arith.mulf %90, %91 : vector<64x32xf32>
    %93 = vector.broadcast %7 : vector<1x32xf32> to vector<64x32xf32>
    %94 = arith.addf %92, %93 : vector<64x32xf32>
    %95 = arith.truncf %94 : vector<64x32xf32> to vector<64x32xbf16>
    %c0_29 = arith.constant 0 : index
    %c0_30 = arith.constant 0 : index
    %c0_31 = arith.constant 0 : index
    %96 = vector.load %arg6[%c0_29, %c0_30, %c0_31] : memref<2x32x64xbf16, #tpu.memory_space<vmem>>, vector<1x32x64xbf16>
    %97 = vector.shape_cast %96 : vector<1x32x64xbf16> to vector<32x64xbf16>
    %cst_32 = arith.constant dense<0.000000e+00> : vector<64x64xf32>
    %98 = tpu.matmul %95, %97, %cst_32 {dimension_numbers = #tpu.dot_dimension_numbers<[1], [0], [0], [1], [0, 0, 1, 1], [], []>} : vector<64x32xbf16>, vector<32x64xbf16>, vector<64x64xf32> -> vector<64x64xf32>
    %99 = vector.broadcast %10 : vector<1x64xf32> to vector<64x64xf32>
    %100 = arith.addf %98, %99 : vector<64x64xf32>
    %101 = arith.negf %100 : vector<64x64xf32>
    %102 = math.exp %101 : vector<64x64xf32>
    %cst_33 = arith.constant 1.000000e+00 : f32
    %103 = vector.broadcast %cst_33 : f32 to vector<64x64xf32>
    %104 = arith.addf %103, %102 : vector<64x64xf32>
    %105 = arith.divf %103, %104 : vector<64x64xf32>
    %106 = arith.mulf %100, %105 : vector<64x64xf32>
    %107 = arith.truncf %106 : vector<64x64xf32> to vector<64x64xbf16>
    %c0_34 = arith.constant 0 : index
    %c0_35 = arith.constant 0 : index
    %c0_36 = arith.constant 0 : index
    %108 = vector.load %arg7[%c0_34, %c0_35, %c0_36] : memref<2x64x32xbf16, #tpu.memory_space<vmem>>, vector<1x64x32xbf16>
    %109 = vector.shape_cast %108 : vector<1x64x32xbf16> to vector<64x32xbf16>
    %cst_37 = arith.constant dense<0.000000e+00> : vector<64x32xf32>
    %110 = tpu.matmul %107, %109, %cst_37 {dimension_numbers = #tpu.dot_dimension_numbers<[1], [0], [0], [1], [0, 0, 1, 1], [], []>} : vector<64x64xbf16>, vector<64x32xbf16>, vector<64x32xf32> -> vector<64x32xf32>
    %111 = vector.broadcast %8 : vector<1x32xf32> to vector<64x32xf32>
    %112 = arith.addf %110, %111 : vector<64x32xf32>
    %113 = arith.addf %72, %112 : vector<64x32xf32>
    %c1 = arith.constant 1 : index
    %c0_38 = arith.constant 0 : index
    %c0_39 = arith.constant 0 : index
    %114 = vector.load %arg2[%c1, %c0_38, %c0_39] : memref<2x6x32xf32, #tpu.memory_space<vmem>>, vector<1x6x32xf32>
    %115 = vector.shape_cast %114 : vector<1x6x32xf32> to vector<6x32xf32>
    %116 = vector.extract_strided_slice %115 {offsets = [0, 0], sizes = [1, 32], strides = [1, 1]} : vector<6x32xf32> to vector<1x32xf32>
    %117 = vector.extract_strided_slice %115 {offsets = [1, 0], sizes = [1, 32], strides = [1, 1]} : vector<6x32xf32> to vector<1x32xf32>
    %118 = vector.extract_strided_slice %115 {offsets = [2, 0], sizes = [1, 32], strides = [1, 1]} : vector<6x32xf32> to vector<1x32xf32>
    %119 = vector.extract_strided_slice %115 {offsets = [3, 0], sizes = [1, 32], strides = [1, 1]} : vector<6x32xf32> to vector<1x32xf32>
    %120 = vector.extract_strided_slice %115 {offsets = [4, 0], sizes = [1, 32], strides = [1, 1]} : vector<6x32xf32> to vector<1x32xf32>
    %121 = vector.extract_strided_slice %115 {offsets = [5, 0], sizes = [1, 32], strides = [1, 1]} : vector<6x32xf32> to vector<1x32xf32>
    %c1_40 = arith.constant 1 : index
    %c0_41 = arith.constant 0 : index
    %c0_42 = arith.constant 0 : index
    %122 = vector.load %arg3[%c1_40, %c0_41, %c0_42] : memref<2x1x64xf32, #tpu.memory_space<vmem>>, vector<1x1x64xf32>
    %123 = vector.shape_cast %122 : vector<1x1x64xf32> to vector<1x64xf32>
    %cst_43 = arith.constant dense<0.000000e+00> : vector<64xf32>
    %124 = vector.multi_reduction <add>, %113, %cst_43 [1] : vector<64x32xf32> to vector<64xf32>
    %125 = vector.shape_cast %124 : vector<64xf32> to vector<64x1xf32>
    %cst_44 = arith.constant 3.200000e+01 : f32
    %126 = vector.broadcast %cst_44 : f32 to vector<64x1xf32>
    %127 = arith.divf %125, %126 : vector<64x1xf32>
    %128 = vector.broadcast %127 : vector<64x1xf32> to vector<64x32xf32>
    %129 = arith.subf %113, %128 : vector<64x32xf32>
    %130 = arith.mulf %129, %129 : vector<64x32xf32>
    %cst_45 = arith.constant dense<0.000000e+00> : vector<64xf32>
    %131 = vector.multi_reduction <add>, %130, %cst_45 [1] : vector<64x32xf32> to vector<64xf32>
    %132 = vector.shape_cast %131 : vector<64xf32> to vector<64x1xf32>
    %cst_46 = arith.constant 3.200000e+01 : f32
    %133 = vector.broadcast %cst_46 : f32 to vector<64x1xf32>
    %134 = arith.divf %132, %133 : vector<64x1xf32>
    %135 = vector.broadcast %127 : vector<64x1xf32> to vector<64x32xf32>
    %136 = arith.subf %113, %135 : vector<64x32xf32>
    %cst_47 = arith.constant 9.99999974E-6 : f32
    %137 = vector.broadcast %cst_47 : f32 to vector<64x1xf32>
    %138 = arith.addf %134, %137 : vector<64x1xf32>
    %139 = math.rsqrt %138 : vector<64x1xf32>
    %140 = vector.broadcast %139 : vector<64x1xf32> to vector<64x32xf32>
    %141 = arith.mulf %136, %140 : vector<64x32xf32>
    %142 = vector.broadcast %116 : vector<1x32xf32> to vector<64x32xf32>
    %143 = arith.mulf %141, %142 : vector<64x32xf32>
    %144 = vector.broadcast %117 : vector<1x32xf32> to vector<64x32xf32>
    %145 = arith.addf %143, %144 : vector<64x32xf32>
    %146 = arith.truncf %145 : vector<64x32xf32> to vector<64x32xbf16>
    %c1_48 = arith.constant 1 : index
    %c0_49 = arith.constant 0 : index
    %c0_50 = arith.constant 0 : index
    %147 = vector.load %arg4[%c1_48, %c0_49, %c0_50] : memref<2x32x96xbf16, #tpu.memory_space<vmem>>, vector<1x32x96xbf16>
    %148 = vector.shape_cast %147 : vector<1x32x96xbf16> to vector<32x96xbf16>
    %cst_51 = arith.constant dense<0.000000e+00> : vector<64x96xf32>
    %149 = tpu.matmul %146, %148, %cst_51 {dimension_numbers = #tpu.dot_dimension_numbers<[1], [0], [0], [1], [0, 0, 1, 1], [], []>} : vector<64x32xbf16>, vector<32x96xbf16>, vector<64x96xf32> -> vector<64x96xf32>
    %150 = vector.shape_cast %149 : vector<64x96xf32> to vector<64x12x8xf32>
    %151 = tpu.transpose %150, [1, 0, 2] : vector<64x12x8xf32> -> vector<12x64x8xf32>
    %152 = vector.extract_strided_slice %151 {offsets = [0, 0, 0], sizes = [4, 64, 8], strides = [1, 1, 1]} : vector<12x64x8xf32> to vector<4x64x8xf32>
    %153 = vector.shape_cast %152 : vector<4x64x8xf32> to vector<32x8x8xf32>
    %154 = arith.truncf %153 : vector<32x8x8xf32> to vector<32x8x8xbf16>
    %155 = vector.extract_strided_slice %151 {offsets = [4, 0, 0], sizes = [4, 64, 8], strides = [1, 1, 1]} : vector<12x64x8xf32> to vector<4x64x8xf32>
    %156 = vector.shape_cast %155 : vector<4x64x8xf32> to vector<32x8x8xf32>
    %157 = arith.truncf %156 : vector<32x8x8xf32> to vector<32x8x8xbf16>
    %158 = vector.extract_strided_slice %151 {offsets = [8, 0, 0], sizes = [4, 64, 8], strides = [1, 1, 1]} : vector<12x64x8xf32> to vector<4x64x8xf32>
    %159 = vector.shape_cast %158 : vector<4x64x8xf32> to vector<32x8x8xf32>
    %160 = arith.truncf %159 : vector<32x8x8xf32> to vector<32x8x8xbf16>
    "tpu.trace_start"() <{level = 10 : i32, message = "bnd,bmd->bnm"}> : () -> ()
    %cst_52 = arith.constant dense<0.000000e+00> : vector<32x8x8xf32>
    %161 = tpu.matmul %154, %157, %cst_52 {dimension_numbers = #tpu.dot_dimension_numbers<[2], [2], [1], [1], [0, 0, 0, 1, 1, 1], [0], [0]>} : vector<32x8x8xbf16>, vector<32x8x8xbf16>, vector<32x8x8xf32> -> vector<32x8x8xf32>
    "tpu.trace_stop"() : () -> ()
    %cst_53 = arith.constant 0.353553385 : f32
    %162 = vector.broadcast %cst_53 : f32 to vector<32x8x8xf32>
    %163 = arith.mulf %161, %162 : vector<32x8x8xf32>
    %cst_54 = arith.constant dense<0xFF800000> : vector<32x8xf32>
    %164 = vector.multi_reduction <maximumf>, %163, %cst_54 [2] : vector<32x8x8xf32> to vector<32x8xf32>
    %165 = vector.shape_cast %164 : vector<32x8xf32> to vector<32x8x1xf32>
    %166 = vector.broadcast %165 : vector<32x8x1xf32> to vector<32x8x8xf32>
    %167 = arith.subf %163, %166 : vector<32x8x8xf32>
    %168 = math.exp %167 : vector<32x8x8xf32>
    %cst_55 = arith.constant dense<0.000000e+00> : vector<32x8xf32>
    %169 = vector.multi_reduction <add>, %168, %cst_55 [2] : vector<32x8x8xf32> to vector<32x8xf32>
    %170 = vector.shape_cast %169 : vector<32x8xf32> to vector<32x8x1xf32>
    %171 = tpu.reciprocal %170 {approx = true} : vector<32x8x1xf32> -> vector<32x8x1xf32>
    %172 = vector.broadcast %171 : vector<32x8x1xf32> to vector<32x8x8xf32>
    %173 = arith.mulf %168, %172 : vector<32x8x8xf32>
    %174 = arith.truncf %173 : vector<32x8x8xf32> to vector<32x8x8xbf16>
    "tpu.trace_start"() <{level = 10 : i32, message = "bnm,bmd->bnd"}> : () -> ()
    %cst_56 = arith.constant dense<0.000000e+00> : vector<32x8x8xf32>
    %175 = tpu.matmul %174, %160, %cst_56 {dimension_numbers = #tpu.dot_dimension_numbers<[2], [1], [1], [2], [0, 0, 0, 1, 1, 2], [0], [0]>} : vector<32x8x8xbf16>, vector<32x8x8xbf16>, vector<32x8x8xf32> -> vector<32x8x8xf32>
    "tpu.trace_stop"() : () -> ()
    %176 = vector.shape_cast %175 : vector<32x8x8xf32> to vector<4x64x8xf32>
    %177 = tpu.transpose %176, [1, 0, 2] : vector<4x64x8xf32> -> vector<64x4x8xf32>
    %178 = vector.shape_cast %177 : vector<64x4x8xf32> to vector<64x32xf32>
    %179 = arith.truncf %178 : vector<64x32xf32> to vector<64x32xbf16>
    %c1_57 = arith.constant 1 : index
    %c0_58 = arith.constant 0 : index
    %c0_59 = arith.constant 0 : index
    %180 = vector.load %arg5[%c1_57, %c0_58, %c0_59] : memref<2x32x32xbf16, #tpu.memory_space<vmem>>, vector<1x32x32xbf16>
    %181 = vector.shape_cast %180 : vector<1x32x32xbf16> to vector<32x32xbf16>
    %cst_60 = arith.constant dense<0.000000e+00> : vector<64x32xf32>
    %182 = tpu.matmul %179, %181, %cst_60 {dimension_numbers = #tpu.dot_dimension_numbers<[1], [0], [0], [1], [0, 0, 1, 1], [], []>} : vector<64x32xbf16>, vector<32x32xbf16>, vector<64x32xf32> -> vector<64x32xf32>
    %183 = vector.broadcast %118 : vector<1x32xf32> to vector<64x32xf32>
    %184 = arith.addf %182, %183 : vector<64x32xf32>
    %185 = arith.addf %113, %184 : vector<64x32xf32>
    %cst_61 = arith.constant dense<0.000000e+00> : vector<64xf32>
    %186 = vector.multi_reduction <add>, %185, %cst_61 [1] : vector<64x32xf32> to vector<64xf32>
    %187 = vector.shape_cast %186 : vector<64xf32> to vector<64x1xf32>
    %cst_62 = arith.constant 3.200000e+01 : f32
    %188 = vector.broadcast %cst_62 : f32 to vector<64x1xf32>
    %189 = arith.divf %187, %188 : vector<64x1xf32>
    %190 = vector.broadcast %189 : vector<64x1xf32> to vector<64x32xf32>
    %191 = arith.subf %185, %190 : vector<64x32xf32>
    %192 = arith.mulf %191, %191 : vector<64x32xf32>
    %cst_63 = arith.constant dense<0.000000e+00> : vector<64xf32>
    %193 = vector.multi_reduction <add>, %192, %cst_63 [1] : vector<64x32xf32> to vector<64xf32>
    %194 = vector.shape_cast %193 : vector<64xf32> to vector<64x1xf32>
    %cst_64 = arith.constant 3.200000e+01 : f32
    %195 = vector.broadcast %cst_64 : f32 to vector<64x1xf32>
    %196 = arith.divf %194, %195 : vector<64x1xf32>
    %197 = vector.broadcast %189 : vector<64x1xf32> to vector<64x32xf32>
    %198 = arith.subf %185, %197 : vector<64x32xf32>
    %cst_65 = arith.constant 9.99999974E-6 : f32
    %199 = vector.broadcast %cst_65 : f32 to vector<64x1xf32>
    %200 = arith.addf %196, %199 : vector<64x1xf32>
    %201 = math.rsqrt %200 : vector<64x1xf32>
    %202 = vector.broadcast %201 : vector<64x1xf32> to vector<64x32xf32>
    %203 = arith.mulf %198, %202 : vector<64x32xf32>
    %204 = vector.broadcast %119 : vector<1x32xf32> to vector<64x32xf32>
    %205 = arith.mulf %203, %204 : vector<64x32xf32>
    %206 = vector.broadcast %120 : vector<1x32xf32> to vector<64x32xf32>
    %207 = arith.addf %205, %206 : vector<64x32xf32>
    %208 = arith.truncf %207 : vector<64x32xf32> to vector<64x32xbf16>
    %c1_66 = arith.constant 1 : index
    %c0_67 = arith.constant 0 : index
    %c0_68 = arith.constant 0 : index
    %209 = vector.load %arg6[%c1_66, %c0_67, %c0_68] : memref<2x32x64xbf16, #tpu.memory_space<vmem>>, vector<1x32x64xbf16>
    %210 = vector.shape_cast %209 : vector<1x32x64xbf16> to vector<32x64xbf16>
    %cst_69 = arith.constant dense<0.000000e+00> : vector<64x64xf32>
    %211 = tpu.matmul %208, %210, %cst_69 {dimension_numbers = #tpu.dot_dimension_numbers<[1], [0], [0], [1], [0, 0, 1, 1], [], []>} : vector<64x32xbf16>, vector<32x64xbf16>, vector<64x64xf32> -> vector<64x64xf32>
    %212 = vector.broadcast %123 : vector<1x64xf32> to vector<64x64xf32>
    %213 = arith.addf %211, %212 : vector<64x64xf32>
    %214 = arith.negf %213 : vector<64x64xf32>
    %215 = math.exp %214 : vector<64x64xf32>
    %cst_70 = arith.constant 1.000000e+00 : f32
    %216 = vector.broadcast %cst_70 : f32 to vector<64x64xf32>
    %217 = arith.addf %216, %215 : vector<64x64xf32>
    %218 = arith.divf %216, %217 : vector<64x64xf32>
    %219 = arith.mulf %213, %218 : vector<64x64xf32>
    %220 = arith.truncf %219 : vector<64x64xf32> to vector<64x64xbf16>
    %c1_71 = arith.constant 1 : index
    %c0_72 = arith.constant 0 : index
    %c0_73 = arith.constant 0 : index
    %221 = vector.load %arg7[%c1_71, %c0_72, %c0_73] : memref<2x64x32xbf16, #tpu.memory_space<vmem>>, vector<1x64x32xbf16>
    %222 = vector.shape_cast %221 : vector<1x64x32xbf16> to vector<64x32xbf16>
    %cst_74 = arith.constant dense<0.000000e+00> : vector<64x32xf32>
    %223 = tpu.matmul %220, %222, %cst_74 {dimension_numbers = #tpu.dot_dimension_numbers<[1], [0], [0], [1], [0, 0, 1, 1], [], []>} : vector<64x64xbf16>, vector<64x32xbf16>, vector<64x32xf32> -> vector<64x32xf32>
    %224 = vector.broadcast %121 : vector<1x32xf32> to vector<64x32xf32>
    %225 = arith.addf %223, %224 : vector<64x32xf32>
    %226 = arith.addf %185, %225 : vector<64x32xf32>
    %c0_75 = arith.constant 0 : index
    %c0_76 = arith.constant 0 : index
    %227 = vector.load %arg8[%c0_75, %c0_76] : memref<64x32xf32, #tpu.memory_space<vmem>>, vector<64x32xf32>
    tpu.vector_store %arg8[%c0_75, %c0_76], %226 {strides = array<i32>} : memref<64x32xf32, #tpu.memory_space<vmem>>, vector<64x32xf32>,
    return
  }
  func.func @transform_0(%arg0: i32) -> (i32, i32) {
    %c0_i32 = arith.constant 0 : i32
    %c0_i32_0 = arith.constant 0 : i32
    return %arg0, %c0_i32 : i32, i32
  }
  func.func @transform_1(%arg0: i32) -> (i32, i32, i32) {
    %c0_i32 = arith.constant 0 : i32
    %c0_i32_0 = arith.constant 0 : i32
    %c0_i32_1 = arith.constant 0 : i32
    %c0_i32_2 = arith.constant 0 : i32
    return %c0_i32, %c0_i32_0, %c0_i32_1 : i32, i32, i32
  }
  func.func @transform_2(%arg0: i32) -> (i32, i32, i32) {
    %c0_i32 = arith.constant 0 : i32
    %c0_i32_0 = arith.constant 0 : i32
    %c0_i32_1 = arith.constant 0 : i32
    %c0_i32_2 = arith.constant 0 : i32
    return %c0_i32, %c0_i32_0, %c0_i32_1 : i32, i32, i32
  }
  func.func @transform_3(%arg0: i32) -> (i32, i32, i32) {
    %c0_i32 = arith.constant 0 : i32
    %c0_i32_0 = arith.constant 0 : i32
    %c0_i32_1 = arith.constant 0 : i32
    %c0_i32_2 = arith.constant 0 : i32
    return %c0_i32, %c0_i32_0, %c0_i32_1 : i32, i32, i32
  }
  func.func @transform_4(%arg0: i32) -> (i32, i32, i32) {
    %c0_i32 = arith.constant 0 : i32
    %c0_i32_0 = arith.constant 0 : i32
    %c0_i32_1 = arith.constant 0 : i32
    %c0_i32_2 = arith.constant 0 : i32
    return %c0_i32, %c0_i32_0, %c0_i32_1 : i32, i32, i32
  }
  func.func @transform_5(%arg0: i32) -> (i32, i32, i32) {
    %c0_i32 = arith.constant 0 : i32
    %c0_i32_0 = arith.constant 0 : i32
    %c0_i32_1 = arith.constant 0 : i32
    %c0_i32_2 = arith.constant 0 : i32
    return %c0_i32, %c0_i32_0, %c0_i32_1 : i32, i32, i32
  }
  func.func @transform_6(%arg0: i32) -> (i32, i32, i32) {
    %c0_i32 = arith.constant 0 : i32
    %c0_i32_0 = arith.constant 0 : i32
    %c0_i32_1 = arith.constant 0 : i32
    %c0_i32_2 = arith.constant 0 : i32
    return %c0_i32, %c0_i32_0, %c0_i32_1 : i32, i32, i32
  }
  func.func @transform_7(%arg0: i32) -> (i32, i32) {
    %c0_i32 = arith.constant 0 : i32
    %c0_i32_0 = arith.constant 0 : i32
    return %arg0, %c0_i32 : i32, i32
  }
}

</mosaic_0001>

<llo_original>
// kernel: tpu_custom_call.1
$region0: #{tpu_custom_call.1}
  #allocation0 [shape = 'u32[]', space=smem, size = 0x4, offset = 0x4, fixed_abs, tag = 'smem constant byte address 0x4 - core index']
  #allocation1 [shape = 'u32[72,128]{1,0:T(1,128)}', space=vmem, size = 0x9000, scoped, tag = 'internal scratch']
  %s0 = inlined_call_operand.vmem [shape: f32[64,32], index: 0, kind: input, shape index: {}]
  %s1 = inlined_call_operand.vmem [shape: f32[2,6,32], index: 1, kind: input, shape index: {}]
  %s2 = inlined_call_operand.vmem [shape: f32[2,1,64], index: 2, kind: input, shape index: {}]
  %s3 = inlined_call_operand.vmem [shape: bf16[2,32,96], index: 3, kind: input, shape index: {}]
  %s4 = inlined_call_operand.vmem [shape: bf16[2,32,32], index: 4, kind: input, shape index: {}]
  %s5 = inlined_call_operand.vmem [shape: bf16[2,32,64], index: 5, kind: input, shape index: {}]
  %s6 = inlined_call_operand.vmem [shape: bf16[2,64,32], index: 6, kind: input, shape index: {}]
  %s7 = inlined_call_operand.vmem [shape: f32[64,32], index: 7, kind: output, shape index: {}]
  %s8 = sld [smem:[#allocation0]]
  $region38: #{tpu_custom_call.1} parent=0
    _
  %s10 = ssub.s32 1, %s8
  %s11 = scalar_select 0, %s10, %s8
  // Predicated region
  $region2: #{tpu_custom_call.1} parent=0 // pred_check
    _
  $region3: #{tpu_custom_call.1} parent=0 // pred_check_branch
    %13 = sbr.rel (0) target = $region5
  $region4: #{tpu_custom_call.1} parent=0 // pred_region
    _
  $region5: #{tpu_custom_call.1} parent=0 // pred_fallthru
    _
  // Predicated region
  $region6: #{tpu_custom_call.1} parent=0 // pred_check
    _
  $region7: #{tpu_custom_call.1} parent=0 // pred_check_branch
    %15 = sbr.rel (0) target = $region9
  $region8: #{tpu_custom_call.1} parent=0 // pred_region
    _
  $region9: #{tpu_custom_call.1} parent=0 // pred_fallthru
    _
  // Predicated region
  $region10: #{tpu_custom_call.1} parent=0 // pred_check
    _
  $region11: #{tpu_custom_call.1} parent=0 // pred_check_branch
    %17 = sbr.rel (0) target = $region13
  $region12: #{tpu_custom_call.1} parent=0 // pred_region
    _
  $region13: #{tpu_custom_call.1} parent=0 // pred_fallthru
    _
  // Predicated region
  $region14: #{tpu_custom_call.1} parent=0 // pred_check
    _
  $region15: #{tpu_custom_call.1} parent=0 // pred_check_branch
    %19 = sbr.rel (0) target = $region17
  $region16: #{tpu_custom_call.1} parent=0 // pred_region
    _
  $region17: #{tpu_custom_call.1} parent=0 // pred_fallthru
    _
  // Predicated region
  $region18: #{tpu_custom_call.1} parent=0 // pred_check
    _
  $region19: #{tpu_custom_call.1} parent=0 // pred_check_branch
    %21 = sbr.rel (0) target = $region21
  $region20: #{tpu_custom_call.1} parent=0 // pred_region
    _
  $region21: #{tpu_custom_call.1} parent=0 // pred_fallthru
    _
  // Predicated region
  $region22: #{tpu_custom_call.1} parent=0 // pred_check
    _
  $region23: #{tpu_custom_call.1} parent=0 // pred_check_branch
    %23 = sbr.rel (0) target = $region25
  $region24: #{tpu_custom_call.1} parent=0 // pred_region
    _
  $region25: #{tpu_custom_call.1} parent=0 // pred_fallthru
    _
  // Predicated region
  $region26: #{tpu_custom_call.1} parent=0 // pred_check
    _
  $region27: #{tpu_custom_call.1} parent=0 // pred_check_branch
    %25 = sbr.rel (0) target = $region29
  $region28: #{tpu_custom_call.1} parent=0 // pred_region
    _
  $region29: #{tpu_custom_call.1} parent=0 // pred_fallthru
    _
  %v27 = vld [vmem:[%s0] sm:$0xff]
  %v28 = vld [vmem:[%s0 + $0x8] sm:$0xff]
  %v29 = vld [vmem:[%s0 + $0x10] sm:$0xff]
  %v30 = vld [vmem:[%s0 + $0x18] sm:$0xff]
  %v31 = vld [vmem:[%s0 + $0x20] sm:$0xff]
  %v32 = vld [vmem:[%s0 + $0x28] sm:$0xff]
  %v33 = vld [vmem:[%s0 + $0x30] sm:$0xff]
  %v34 = vld [vmem:[%s0 + $0x38] sm:$0xff]
  %v35 = vld [vmem:[%s1] sm:$0x3f]
  %v36 = vld [vmem:[%s2] sm:$0x1]
  %vm37 = vcmask 261120
  %v38 = vsel %vm37, %v27, 0.0
  %39 = vadd.xlane.f32.xlu0 %v38
  %v40 = vpop.xlane.xlu0 %39
  %v41 = vsel %vm37, %v28, 0.0
  %42 = vadd.xlane.f32.xlu0 %v41
  %v43 = vpop.xlane.xlu0 %42
  %v44 = vsel %vm37, %v29, 0.0
  %45 = vadd.xlane.f32.xlu0 %v44
  %v46 = vpop.xlane.xlu0 %45
  %v47 = vsel %vm37, %v30, 0.0
  %48 = vadd.xlane.f32.xlu0 %v47
  %v49 = vpop.xlane.xlu0 %48
  %v50 = vsel %vm37, %v31, 0.0
  %51 = vadd.xlane.f32.xlu0 %v50
  %v52 = vpop.xlane.xlu0 %51
  %v53 = vsel %vm37, %v32, 0.0
  %54 = vadd.xlane.f32.xlu0 %v53
  %v55 = vpop.xlane.xlu0 %54
  %v56 = vsel %vm37, %v33, 0.0
  %57 = vadd.xlane.f32.xlu0 %v56
  %v58 = vpop.xlane.xlu0 %57
  %v59 = vsel %vm37, %v34, 0.0
  %60 = vadd.xlane.f32.xlu0 %v59
  %v61 = vpop.xlane.xlu0 %60
  %v62 = vrcp.pop 32.0
  %v63 = vmul.f32 32.0, %v62
  %v64 = vsub.f32 1.0, %v63
  %v65 = vmul.f32 %v62, %v64
  %v66 = vadd.f32 %v62, %v65
  %vm67 = vweird.f32 %v62
  %v68 = vsel %vm67, %v62, %v66
  %v69 = vmul.f32 %v40, %v68
  %v70 = vmul.f32 %v43, %v68
  %v71 = vmul.f32 %v46, %v68
  %v72 = vmul.f32 %v49, %v68
  %v73 = vmul.f32 %v52, %v68
  %v74 = vmul.f32 %v55, %v68
  %v75 = vmul.f32 %v58, %v68
  %v76 = vmul.f32 %v61, %v68
  %v77 = vsub.f32 %v27, %v69
  %v78 = vsub.f32 %v28, %v70
  %v79 = vsub.f32 %v29, %v71
  %v80 = vsub.f32 %v30, %v72
  %v81 = vsub.f32 %v31, %v73
  %v82 = vsub.f32 %v32, %v74
  %v83 = vsub.f32 %v33, %v75
  %v84 = vsub.f32 %v34, %v76
  %v85 = vmul.f32 %v77, %v77
  %v86 = vmul.f32 %v78, %v78
  %v87 = vmul.f32 %v79, %v79
  %v88 = vmul.f32 %v80, %v80
  %v89 = vmul.f32 %v81, %v81
  %v90 = vmul.f32 %v82, %v82
  %v91 = vmul.f32 %v83, %v83
  %v92 = vmul.f32 %v84, %v84
  %v93 = vsel %vm37, %v85, 0.0
  %94 = vadd.xlane.f32.xlu0 %v93
  %v95 = vpop.xlane.xlu0 %94
  %v96 = vsel %vm37, %v86, 0.0
  %97 = vadd.xlane.f32.xlu0 %v96
  %v98 = vpop.xlane.xlu0 %97
  %v99 = vsel %vm37, %v87, 0.0
  %100 = vadd.xlane.f32.xlu0 %v99
  %v101 = vpop.xlane.xlu0 %100
  %v102 = vsel %vm37, %v88, 0.0
  %103 = vadd.xlane.f32.xlu0 %v102
  %v104 = vpop.xlane.xlu0 %103
  %v105 = vsel %vm37, %v89, 0.0
  %106 = vadd.xlane.f32.xlu0 %v105
  %v107 = vpop.xlane.xlu0 %106
  %v108 = vsel %vm37, %v90, 0.0
  %109 = vadd.xlane.f32.xlu0 %v108
  %v110 = vpop.xlane.xlu0 %109
  %v111 = vsel %vm37, %v91, 0.0
  %112 = vadd.xlane.f32.xlu0 %v111
  %v113 = vpop.xlane.xlu0 %112
  %v114 = vsel %vm37, %v92, 0.0
  %115 = vadd.xlane.f32.xlu0 %v114
  %v116 = vpop.xlane.xlu0 %115
  %v117 = vmul.f32 %v95, %v68
  %v118 = vmul.f32 %v98, %v68
  %v119 = vmul.f32 %v101, %v68
  %v120 = vmul.f32 %v104, %v68
  %v121 = vmul.f32 %v107, %v68
  %v122 = vmul.f32 %v110, %v68
  %v123 = vmul.f32 %v113, %v68
  %v124 = vmul.f32 %v116, %v68
  %v125 = vadd.f32 %v117, 1e-05
  %v126 = vadd.f32 %v118, 1e-05
  %v127 = vadd.f32 %v119, 1e-05
  %v128 = vadd.f32 %v120, 1e-05
  %v129 = vadd.f32 %v121, 1e-05
  %v130 = vadd.f32 %v122, 1e-05
  %v131 = vadd.f32 %v123, 1e-05
  %v132 = vadd.f32 %v124, 1e-05
  %v133 = vrsqrt.pop %v125
  %v134 = vmul.f32 %v133, %v125
  %v135 = vmul.f32 %v134, %v133
  %v136 = vmul.f32 0.5, %v135
  %v137 = vsub.f32 1.5, %v136
  %v138 = vmul.f32 %v133, %v137
  %vm139 = vweird.f32 %v125
  %vm140 = vweird.f32 %v133
  %vm141 = vmor %vm139, %vm140
  %v142 = vsel %vm141, %v133, %v138
  %v143 = vrsqrt.pop %v126
  %v144 = vmul.f32 %v143, %v126
  %v145 = vmul.f32 %v144, %v143
  %v146 = vmul.f32 0.5, %v145
  %v147 = vsub.f32 1.5, %v146
  %v148 = vmul.f32 %v143, %v147
  %vm149 = vweird.f32 %v126
  %vm150 = vweird.f32 %v143
  %vm151 = vmor %vm149, %vm150
  %v152 = vsel %vm151, %v143, %v148
  %v153 = vrsqrt.pop %v127
  %v154 = vmul.f32 %v153, %v127
  %v155 = vmul.f32 %v154, %v153
  %v156 = vmul.f32 0.5, %v155
  %v157 = vsub.f32 1.5, %v156
  %v158 = vmul.f32 %v153, %v157
  %vm159 = vweird.f32 %v127
  %vm160 = vweird.f32 %v153
  %vm161 = vmor %vm159, %vm160
  %v162 = vsel %vm161, %v153, %v158
  %v163 = vrsqrt.pop %v128
  %v164 = vmul.f32 %v163, %v128
  %v165 = vmul.f32 %v164, %v163
  %v166 = vmul.f32 0.5, %v165
  %v167 = vsub.f32 1.5, %v166
  %v168 = vmul.f32 %v163, %v167
  %vm169 = vweird.f32 %v128
  %vm170 = vweird.f32 %v163
  %vm171 = vmor %vm169, %vm170
  %v172 = vsel %vm171, %v163, %v168
  %v173 = vrsqrt.pop %v129
  %v174 = vmul.f32 %v173, %v129
  %v175 = vmul.f32 %v174, %v173
  %v176 = vmul.f32 0.5, %v175
  %v177 = vsub.f32 1.5, %v176
  %v178 = vmul.f32 %v173, %v177
  %vm179 = vweird.f32 %v129
  %vm180 = vweird.f32 %v173
  %vm181 = vmor %vm179, %vm180
  %v182 = vsel %vm181, %v173, %v178
  %v183 = vrsqrt.pop %v130
  %v184 = vmul.f32 %v183, %v130
  %v185 = vmul.f32 %v184, %v183
  %v186 = vmul.f32 0.5, %v185
  %v187 = vsub.f32 1.5, %v186
  %v188 = vmul.f32 %v183, %v187
  %vm189 = vweird.f32 %v130
  %vm190 = vweird.f32 %v183
  %vm191 = vmor %vm189, %vm190
  %v192 = vsel %vm191, %v183, %v188
  %v193 = vrsqrt.pop %v131
  %v194 = vmul.f32 %v193, %v131
  %v195 = vmul.f32 %v194, %v193
  %v196 = vmul.f32 0.5, %v195
  %v197 = vsub.f32 1.5, %v196
  %v198 = vmul.f32 %v193, %v197
  %vm199 = vweird.f32 %v131
  %vm200 = vweird.f32 %v193
  %vm201 = vmor %vm199, %vm200
  %v202 = vsel %vm201, %v193, %v198
  %v203 = vrsqrt.pop %v132
  %v204 = vmul.f32 %v203, %v132
  %v205 = vmul.f32 %v204, %v203
  %v206 = vmul.f32 0.5, %v205
  %v207 = vsub.f32 1.5, %v206
  %v208 = vmul.f32 %v203, %v207
  %vm209 = vweird.f32 %v132
  %vm210 = vweird.f32 %v203
  %vm211 = vmor %vm209, %vm210
  %v212 = vsel %vm211, %v203, %v208
  %v213 = vmul.f32 %v77, %v142
  %v214 = vmul.f32 %v78, %v152
  %v215 = vmul.f32 %v79, %v162
  %v216 = vmul.f32 %v80, %v172
  %v217 = vmul.f32 %v81, %v182
  %v218 = vmul.f32 %v82, %v192
  %v219 = vmul.f32 %v83, %v202
  %v220 = vmul.f32 %v84, %v212
  %v221 = vperm.slane %v35, 0
  %v222 = vmul.f32 %v213, %v221
  %v223 = vmul.f32 %v214, %v221
  %v224 = vmul.f32 %v215, %v221
  %v225 = vmul.f32 %v216, %v221
  %v226 = vmul.f32 %v217, %v221
  %v227 = vmul.f32 %v218, %v221
  %v228 = vmul.f32 %v219, %v221
  %v229 = vmul.f32 %v220, %v221
  %v230 = vperm.slane %v35, 1
  %v231 = vadd.f32 %v222, %v230
  %v232 = vadd.f32 %v223, %v230
  %v233 = vadd.f32 %v224, %v230
  %v234 = vadd.f32 %v225, %v230
  %v235 = vadd.f32 %v226, %v230
  %v236 = vadd.f32 %v227, %v230
  %v237 = vadd.f32 %v228, %v230
  %v238 = vadd.f32 %v229, %v230
  %v239 = vpack.c.bf16 %v232, %v231
  %v240 = vpack.c.bf16 %v234, %v233
  %v241 = vpack.c.bf16 %v236, %v235
  %v242 = vpack.c.bf16 %v238, %v237
  %v243 = vld [vmem:[%s3] sm:$0xf]
  %v244 = vld [vmem:[%s3 + $0x4] sm:$0xf]
  %v245 = vld [vmem:[%s3 + $0x8] sm:$0xf]
  %v246 = vld [vmem:[%s3 + $0xc] sm:$0xf]
  %v251 = vunpack.c.l.b16 %v243
  %v252 = vunpack.c.l.b16 %v244
  %v253 = vunpack.c.l.b16 %v245
  %v254 = vunpack.c.l.b16 %v246
  %v255 = vpack.c.b16 %v252, %v251
  %v256 = vpack.c.b16 %v254, %v253
  %v260 = vsel %vm37, %v239, 0
  %v263 = vsel %vm37, %v240, 0
  %v266 = vsel %vm37, %v241, 0
  %v269 = vsel %vm37, %v242, 0
  %271 = vmatpush.bf16.msra.mxu0 0
  %272 = vmatpush.bf16.msra.mxu0 0
  %273 = vmatpush.bf16.msra.mxu0 0
  %274 = vmatpush.bf16.msra.mxu0 0
  %275 = vmatpush.bf16.msra.mxu0 0
  %276 = vmatpush.bf16.msra.mxu0 0
  %277 = vmatpush.bf16.msra.mxu0 %v256
  %278 = vmatpush.bf16.msra.mxu0 %v255
  %279 = vmatmul.bf16.gmra.mxu0 %v260
  %v280 = vpop.f32.mrf.mxu0
  %v281 = vadd.f32 0.0, %v280
  %v282 = vpop.f32.mrf.mxu0
  %v283 = vadd.f32 0.0, %v282
  %284 = vmatmul.bf16.gmra.mxu0 %v263
  %v285 = vpop.f32.mrf.mxu0
  %v286 = vadd.f32 0.0, %v285
  %v287 = vpop.f32.mrf.mxu0
  %v288 = vadd.f32 0.0, %v287
  %289 = vmatmul.bf16.gmra.mxu0 %v266
  %v290 = vpop.f32.mrf.mxu0
  %v291 = vadd.f32 0.0, %v290
  %v292 = vpop.f32.mrf.mxu0
  %v293 = vadd.f32 0.0, %v292
  %294 = vmatmul.bf16.gmra.mxu0 %v269
  %v295 = vpop.f32.mrf.mxu0
  %v296 = vadd.f32 0.0, %v295
  %v297 = vpop.f32.mrf.mxu0
  %v298 = vadd.f32 0.0, %v297
  %299 = vdwg.mxu0
  %308 = vrot.lane.b32.xlu0 %v281, 120
  %v309 = vpop.permute.xlu0 %308
  %310 = vrot.lane.b32.xlu0 %v283, 120
  %v311 = vpop.permute.xlu0 %310
  %312 = vrot.lane.b32.xlu0 %v286, 120
  %v313 = vpop.permute.xlu0 %312
  %314 = vrot.lane.b32.xlu0 %v288, 120
  %v315 = vpop.permute.xlu0 %314
  %316 = vrot.lane.b32.xlu0 %v291, 120
  %v317 = vpop.permute.xlu0 %316
  %318 = vrot.lane.b32.xlu0 %v293, 120
  %v319 = vpop.permute.xlu0 %318
  %320 = vrot.lane.b32.xlu0 %v296, 120
  %v321 = vpop.permute.xlu0 %320
  %322 = vrot.lane.b32.xlu0 %v298, 120
  %v323 = vpop.permute.xlu0 %322
  %332 = vrot.lane.b32.xlu0 %v281, 112
  %v333 = vpop.permute.xlu0 %332
  %334 = vrot.lane.b32.xlu0 %v283, 112
  %v335 = vpop.permute.xlu0 %334
  %336 = vrot.lane.b32.xlu0 %v286, 112
  %v337 = vpop.permute.xlu0 %336
  %338 = vrot.lane.b32.xlu0 %v288, 112
  %v339 = vpop.permute.xlu0 %338
  %340 = vrot.lane.b32.xlu0 %v291, 112
  %v341 = vpop.permute.xlu0 %340
  %342 = vrot.lane.b32.xlu0 %v293, 112
  %v343 = vpop.permute.xlu0 %342
  %344 = vrot.lane.b32.xlu0 %v296, 112
  %v345 = vpop.permute.xlu0 %344
  %346 = vrot.lane.b32.xlu0 %v298, 112
  %v347 = vpop.permute.xlu0 %346
  %356 = vrot.lane.b32.xlu0 %v281, 104
  %v357 = vpop.permute.xlu0 %356
  %358 = vrot.lane.b32.xlu0 %v283, 104
  %v359 = vpop.permute.xlu0 %358
  %360 = vrot.lane.b32.xlu0 %v286, 104
  %v361 = vpop.permute.xlu0 %360
  %362 = vrot.lane.b32.xlu0 %v288, 104
  %v363 = vpop.permute.xlu0 %362
  %364 = vrot.lane.b32.xlu0 %v291, 104
  %v365 = vpop.permute.xlu0 %364
  %366 = vrot.lane.b32.xlu0 %v293, 104
  %v367 = vpop.permute.xlu0 %366
  %368 = vrot.lane.b32.xlu0 %v296, 104
  %v369 = vpop.permute.xlu0 %368
  %370 = vrot.lane.b32.xlu0 %v298, 104
  %v371 = vpop.permute.xlu0 %370
  %380 = vrot.lane.b32.xlu0 %v281, 96
  %v381 = vpop.permute.xlu0 %380
  %382 = vrot.lane.b32.xlu0 %v283, 96
  %v383 = vpop.permute.xlu0 %382
  %384 = vrot.lane.b32.xlu0 %v286, 96
  %v385 = vpop.permute.xlu0 %384
  %386 = vrot.lane.b32.xlu0 %v288, 96
  %v387 = vpop.permute.xlu0 %386
  %388 = vrot.lane.b32.xlu0 %v291, 96
  %v389 = vpop.permute.xlu0 %388
  %390 = vrot.lane.b32.xlu0 %v293, 96
  %v391 = vpop.permute.xlu0 %390
  %392 = vrot.lane.b32.xlu0 %v296, 96
  %v393 = vpop.permute.xlu0 %392
  %394 = vrot.lane.b32.xlu0 %v298, 96
  %v395 = vpop.permute.xlu0 %394
  %404 = vrot.lane.b32.xlu0 %v281, 88
  %v405 = vpop.permute.xlu0 %404
  %406 = vrot.lane.b32.xlu0 %v283, 88
  %v407 = vpop.permute.xlu0 %406
  %408 = vrot.lane.b32.xlu0 %v286, 88
  %v409 = vpop.permute.xlu0 %408
  %410 = vrot.lane.b32.xlu0 %v288, 88
  %v411 = vpop.permute.xlu0 %410
  %412 = vrot.lane.b32.xlu0 %v291, 88
  %v413 = vpop.permute.xlu0 %412
  %414 = vrot.lane.b32.xlu0 %v293, 88
  %v415 = vpop.permute.xlu0 %414
  %416 = vrot.lane.b32.xlu0 %v296, 88
  %v417 = vpop.permute.xlu0 %416
  %418 = vrot.lane.b32.xlu0 %v298, 88
  %v419 = vpop.permute.xlu0 %418
  %428 = vrot.lane.b32.xlu0 %v281, 80
  %v429 = vpop.permute.xlu0 %428
  %430 = vrot.lane.b32.xlu0 %v283, 80
  %v431 = vpop.permute.xlu0 %430
  %432 = vrot.lane.b32.xlu0 %v286, 80
  %v433 = vpop.permute.xlu0 %432
  %434 = vrot.lane.b32.xlu0 %v288, 80
  %v435 = vpop.permute.xlu0 %434
  %436 = vrot.lane.b32.xlu0 %v291, 80
  %v437 = vpop.permute.xlu0 %436
  %438 = vrot.lane.b32.xlu0 %v293, 80
  %v439 = vpop.permute.xlu0 %438
  %440 = vrot.lane.b32.xlu0 %v296, 80
  %v441 = vpop.permute.xlu0 %440
  %442 = vrot.lane.b32.xlu0 %v298, 80
  %v443 = vpop.permute.xlu0 %442
  %452 = vrot.lane.b32.xlu0 %v281, 72
  %v453 = vpop.permute.xlu0 %452
  %454 = vrot.lane.b32.xlu0 %v283, 72
  %v455 = vpop.permute.xlu0 %454
  %456 = vrot.lane.b32.xlu0 %v286, 72
  %v457 = vpop.permute.xlu0 %456
  %458 = vrot.lane.b32.xlu0 %v288, 72
  %v459 = vpop.permute.xlu0 %458
  %460 = vrot.lane.b32.xlu0 %v291, 72
  %v461 = vpop.permute.xlu0 %460
  %462 = vrot.lane.b32.xlu0 %v293, 72
  %v463 = vpop.permute.xlu0 %462
  %464 = vrot.lane.b32.xlu0 %v296, 72
  %v465 = vpop.permute.xlu0 %464
  %466 = vrot.lane.b32.xlu0 %v298, 72
  %v467 = vpop.permute.xlu0 %466
  %476 = vrot.lane.b32.xlu0 %v281, 64
  %v477 = vpop.permute.xlu0 %476
  %478 = vrot.lane.b32.xlu0 %v283, 64
  %v479 = vpop.permute.xlu0 %478
  %480 = vrot.lane.b32.xlu0 %v286, 64
  %v481 = vpop.permute.xlu0 %480
  %482 = vrot.lane.b32.xlu0 %v288, 64
  %v483 = vpop.permute.xlu0 %482
  %484 = vrot.lane.b32.xlu0 %v291, 64
  %v485 = vpop.permute.xlu0 %484
  %486 = vrot.lane.b32.xlu0 %v293, 64
  %v487 = vpop.permute.xlu0 %486
  %488 = vrot.lane.b32.xlu0 %v296, 64
  %v489 = vpop.permute.xlu0 %488
  %490 = vrot.lane.b32.xlu0 %v298, 64
  %v491 = vpop.permute.xlu0 %490
  %500 = vrot.lane.b32.xlu0 %v281, 56
  %v501 = vpop.permute.xlu0 %500
  %502 = vrot.lane.b32.xlu0 %v283, 56
  %v503 = vpop.permute.xlu0 %502
  %504 = vrot.lane.b32.xlu0 %v286, 56
  %v505 = vpop.permute.xlu0 %504
  %506 = vrot.lane.b32.xlu0 %v288, 56
  %v507 = vpop.permute.xlu0 %506
  %508 = vrot.lane.b32.xlu0 %v291, 56
  %v509 = vpop.permute.xlu0 %508
  %510 = vrot.lane.b32.xlu0 %v293, 56
  %v511 = vpop.permute.xlu0 %510
  %512 = vrot.lane.b32.xlu0 %v296, 56
  %v513 = vpop.permute.xlu0 %512
  %514 = vrot.lane.b32.xlu0 %v298, 56
  %v515 = vpop.permute.xlu0 %514
  %524 = vrot.lane.b32.xlu0 %v281, 48
  %v525 = vpop.permute.xlu0 %524
  %526 = vrot.lane.b32.xlu0 %v283, 48
  %v527 = vpop.permute.xlu0 %526
  %528 = vrot.lane.b32.xlu0 %v286, 48
  %v529 = vpop.permute.xlu0 %528
  %530 = vrot.lane.b32.xlu0 %v288, 48
  %v531 = vpop.permute.xlu0 %530
  %532 = vrot.lane.b32.xlu0 %v291, 48
  %v533 = vpop.permute.xlu0 %532
  %534 = vrot.lane.b32.xlu0 %v293, 48
  %v535 = vpop.permute.xlu0 %534
  %536 = vrot.lane.b32.xlu0 %v296, 48
  %v537 = vpop.permute.xlu0 %536
  %538 = vrot.lane.b32.xlu0 %v298, 48
  %v539 = vpop.permute.xlu0 %538
  %548 = vrot.lane.b32.xlu0 %v281, 40
  %v549 = vpop.permute.xlu0 %548
  %550 = vrot.lane.b32.xlu0 %v283, 40
  %v551 = vpop.permute.xlu0 %550
  %552 = vrot.lane.b32.xlu0 %v286, 40
  %v553 = vpop.permute.xlu0 %552
  %554 = vrot.lane.b32.xlu0 %v288, 40
  %v555 = vpop.permute.xlu0 %554
  %556 = vrot.lane.b32.xlu0 %v291, 40
  %v557 = vpop.permute.xlu0 %556
  %558 = vrot.lane.b32.xlu0 %v293, 40
  %v559 = vpop.permute.xlu0 %558
  %560 = vrot.lane.b32.xlu0 %v296, 40
  %v561 = vpop.permute.xlu0 %560
  %562 = vrot.lane.b32.xlu0 %v298, 40
  %v563 = vpop.permute.xlu0 %562
  %v572 = vrot.slane %v333, 4
  %vm573 = vcmask 1047556
  %v574 = vsel %vm573, %v572, %v281
  %v575 = vrot.slane %v281, 4
  %v576 = vsel %vm573, %v333, %v575
  %v578 = vunpack.c.l.s4 1983009808
  %v579 = vunpack.c.0.s8 %v578
  %v580 = vperm.slane %v574, %v579
  %v582 = vunpack.c.l.s4 1983009808
  %v583 = vunpack.c.0.s8 %v582
  %v584 = vperm.slane %v576, %v583
  %v585 = vrot.slane %v357, 4
  %v586 = vsel %vm573, %v585, %v309
  %v587 = vrot.slane %v309, 4
  %v588 = vsel %vm573, %v357, %v587
  %v590 = vunpack.c.l.s4 1983009808
  %v591 = vunpack.c.0.s8 %v590
  %v592 = vperm.slane %v586, %v591
  %v594 = vunpack.c.l.s4 1983009808
  %v595 = vunpack.c.0.s8 %v594
  %v596 = vperm.slane %v588, %v595
  %v597 = vrot.slane %v429, 4
  %v598 = vsel %vm573, %v597, %v381
  %v599 = vrot.slane %v381, 4
  %v600 = vsel %vm573, %v429, %v599
  %v602 = vunpack.c.l.s4 1983009808
  %v603 = vunpack.c.0.s8 %v602
  %v604 = vperm.slane %v598, %v603
  %v606 = vunpack.c.l.s4 1983009808
  %v607 = vunpack.c.0.s8 %v606
  %v608 = vperm.slane %v600, %v607
  %v609 = vrot.slane %v453, 4
  %v610 = vsel %vm573, %v609, %v405
  %v611 = vrot.slane %v405, 4
  %v612 = vsel %vm573, %v453, %v611
  %v614 = vunpack.c.l.s4 1983009808
  %v615 = vunpack.c.0.s8 %v614
  %v616 = vperm.slane %v610, %v615
  %v618 = vunpack.c.l.s4 1983009808
  %v619 = vunpack.c.0.s8 %v618
  %v620 = vperm.slane %v612, %v619
  %v621 = vrot.slane %v592, 4
  %v622 = vsel %vm573, %v621, %v580
  %v623 = vrot.slane %v580, 4
  %v624 = vsel %vm573, %v592, %v623
  %v626 = vunpack.c.l.s4 1934713408
  %v627 = vunpack.c.0.s8 %v626
  %v628 = vperm.slane %v622, %v627
  %v630 = vunpack.c.l.s4 1934713408
  %v631 = vunpack.c.0.s8 %v630
  %v632 = vperm.slane %v624, %v631
  %v633 = vrot.slane %v596, 4
  %v634 = vsel %vm573, %v633, %v584
  %v635 = vrot.slane %v584, 4
  %v636 = vsel %vm573, %v596, %v635
  %v638 = vunpack.c.l.s4 1934713408
  %v639 = vunpack.c.0.s8 %v638
  %v640 = vperm.slane %v634, %v639
  %v642 = vunpack.c.l.s4 1934713408
  %v643 = vunpack.c.0.s8 %v642
  %v644 = vperm.slane %v636, %v643
  %v645 = vrot.slane %v616, 4
  %v646 = vsel %vm573, %v645, %v604
  %v647 = vrot.slane %v604, 4
  %v648 = vsel %vm573, %v616, %v647
  %v650 = vunpack.c.l.s4 1934713408
  %v651 = vunpack.c.0.s8 %v650
  %v652 = vperm.slane %v646, %v651
  %v654 = vunpack.c.l.s4 1934713408
  %v655 = vunpack.c.0.s8 %v654
  %v656 = vperm.slane %v648, %v655
  %v657 = vrot.slane %v620, 4
  %v658 = vsel %vm573, %v657, %v608
  %v659 = vrot.slane %v608, 4
  %v660 = vsel %vm573, %v620, %v659
  %v662 = vunpack.c.l.s4 1934713408
  %v663 = vunpack.c.0.s8 %v662
  %v664 = vperm.slane %v658, %v663
  %v666 = vunpack.c.l.s4 1934713408
  %v667 = vunpack.c.0.s8 %v666
  %v668 = vperm.slane %v660, %v667
  %v669 = vrot.slane %v652, 4
  %v670 = vsel %vm573, %v669, %v628
  %v671 = vrot.slane %v628, 4
  %v672 = vsel %vm573, %v652, %v671
  %v673 = vrot.slane %v656, 4
  %v674 = vsel %vm573, %v673, %v632
  %v675 = vrot.slane %v632, 4
  %v676 = vsel %vm573, %v656, %v675
  %v677 = vrot.slane %v664, 4
  %v678 = vsel %vm573, %v677, %v640
  %v679 = vrot.slane %v640, 4
  %v680 = vsel %vm573, %v664, %v679
  %v681 = vrot.slane %v668, 4
  %v682 = vsel %vm573, %v681, %v644
  %v683 = vrot.slane %v644, 4
  %v684 = vsel %vm573, %v668, %v683
  %v685 = vrot.slane %v525, 4
  %v686 = vsel %vm573, %v685, %v477
  %v687 = vrot.slane %v477, 4
  %v688 = vsel %vm573, %v525, %v687
  %v690 = vunpack.c.l.s4 1983009808
  %v691 = vunpack.c.0.s8 %v690
  %v692 = vperm.slane %v686, %v691
  %v694 = vunpack.c.l.s4 1983009808
  %v695 = vunpack.c.0.s8 %v694
  %v696 = vperm.slane %v688, %v695
  %v697 = vrot.slane %v549, 4
  %v698 = vsel %vm573, %v697, %v501
  %v699 = vrot.slane %v501, 4
  %v700 = vsel %vm573, %v549, %v699
  %v702 = vunpack.c.l.s4 1983009808
  %v703 = vunpack.c.0.s8 %v702
  %v704 = vperm.slane %v698, %v703
  %v706 = vunpack.c.l.s4 1983009808
  %v707 = vunpack.c.0.s8 %v706
  %v708 = vperm.slane %v700, %v707
  %v709 = vrot.slane %v704, 4
  %v710 = vsel %vm573, %v709, %v692
  %v711 = vrot.slane %v692, 4
  %v712 = vsel %vm573, %v704, %v711
  %v714 = vunpack.c.l.s4 1934713408
  %v715 = vunpack.c.0.s8 %v714
  %v716 = vperm.slane %v710, %v715
  %v718 = vunpack.c.l.s4 1934713408
  %v719 = vunpack.c.0.s8 %v718
  %v720 = vperm.slane %v712, %v719
  %v721 = vrot.slane %v708, 4
  %v722 = vsel %vm573, %v721, %v696
  %v723 = vrot.slane %v696, 4
  %v724 = vsel %vm573, %v708, %v723
  %v726 = vunpack.c.l.s4 1934713408
  %v727 = vunpack.c.0.s8 %v726
  %v728 = vperm.slane %v722, %v727
  %v730 = vunpack.c.l.s4 1934713408
  %v731 = vunpack.c.0.s8 %v730
  %v732 = vperm.slane %v724, %v731
  %v733 = vrot.slane %v716, 4
  %v734 = vsel %vm573, 0.0, %v733
  %v735 = vrot.slane %v720, 4
  %v736 = vsel %vm573, 0.0, %v735
  %v737 = vrot.slane %v728, 4
  %v738 = vsel %vm573, 0.0, %v737
  %v739 = vrot.slane %v732, 4
  %v740 = vsel %vm573, 0.0, %v739
  %v741 = vrot.slane %v335, 4
  %v742 = vsel %vm573, %v741, %v283
  %v743 = vrot.slane %v283, 4
  %v744 = vsel %vm573, %v335, %v743
  %v746 = vunpack.c.l.s4 1983009808
  %v747 = vunpack.c.0.s8 %v746
  %v748 = vperm.slane %v742, %v747
  %v750 = vunpack.c.l.s4 1983009808
  %v751 = vunpack.c.0.s8 %v750
  %v752 = vperm.slane %v744, %v751
  %v753 = vrot.slane %v359, 4
  %v754 = vsel %vm573, %v753, %v311
  %v755 = vrot.slane %v311, 4
  %v756 = vsel %vm573, %v359, %v755
  %v758 = vunpack.c.l.s4 1983009808
  %v759 = vunpack.c.0.s8 %v758
  %v760 = vperm.slane %v754, %v759
  %v762 = vunpack.c.l.s4 1983009808
  %v763 = vunpack.c.0.s8 %v762
  %v764 = vperm.slane %v756, %v763
  %v765 = vrot.slane %v431, 4
  %v766 = vsel %vm573, %v765, %v383
  %v767 = vrot.slane %v383, 4
  %v768 = vsel %vm573, %v431, %v767
  %v770 = vunpack.c.l.s4 1983009808
  %v771 = vunpack.c.0.s8 %v770
  %v772 = vperm.slane %v766, %v771
  %v774 = vunpack.c.l.s4 1983009808
  %v775 = vunpack.c.0.s8 %v774
  %v776 = vperm.slane %v768, %v775
  %v777 = vrot.slane %v455, 4
  %v778 = vsel %vm573, %v777, %v407
  %v779 = vrot.slane %v407, 4
  %v780 = vsel %vm573, %v455, %v779
  %v782 = vunpack.c.l.s4 1983009808
  %v783 = vunpack.c.0.s8 %v782
  %v784 = vperm.slane %v778, %v783
  %v786 = vunpack.c.l.s4 1983009808
  %v787 = vunpack.c.0.s8 %v786
  %v788 = vperm.slane %v780, %v787
  %v789 = vrot.slane %v760, 4
  %v790 = vsel %vm573, %v789, %v748
  %v791 = vrot.slane %v748, 4
  %v792 = vsel %vm573, %v760, %v791
  %v794 = vunpack.c.l.s4 1934713408
  %v795 = vunpack.c.0.s8 %v794
  %v796 = vperm.slane %v790, %v795
  %v798 = vunpack.c.l.s4 1934713408
  %v799 = vunpack.c.0.s8 %v798
  %v800 = vperm.slane %v792, %v799
  %v801 = vrot.slane %v764, 4
  %v802 = vsel %vm573, %v801, %v752
  %v803 = vrot.slane %v752, 4
  %v804 = vsel %vm573, %v764, %v803
  %v806 = vunpack.c.l.s4 1934713408
  %v807 = vunpack.c.0.s8 %v806
  %v808 = vperm.slane %v802, %v807
  %v810 = vunpack.c.l.s4 1934713408
  %v811 = vunpack.c.0.s8 %v810
  %v812 = vperm.slane %v804, %v811
  %v813 = vrot.slane %v784, 4
  %v814 = vsel %vm573, %v813, %v772
  %v815 = vrot.slane %v772, 4
  %v816 = vsel %vm573, %v784, %v815
  %v818 = vunpack.c.l.s4 1934713408
  %v819 = vunpack.c.0.s8 %v818
  %v820 = vperm.slane %v814, %v819
  %v822 = vunpack.c.l.s4 1934713408
  %v823 = vunpack.c.0.s8 %v822
  %v824 = vperm.slane %v816, %v823
  %v825 = vrot.slane %v788, 4
  %v826 = vsel %vm573, %v825, %v776
  %v827 = vrot.slane %v776, 4
  %v828 = vsel %vm573, %v788, %v827
  %v830 = vunpack.c.l.s4 1934713408
  %v831 = vunpack.c.0.s8 %v830
  %v832 = vperm.slane %v826, %v831
  %v834 = vunpack.c.l.s4 1934713408
  %v835 = vunpack.c.0.s8 %v834
  %v836 = vperm.slane %v828, %v835
  %v837 = vrot.slane %v820, 4
  %v838 = vsel %vm573, %v837, %v796
  %v839 = vrot.slane %v796, 4
  %v840 = vsel %vm573, %v820, %v839
  %v841 = vrot.slane %v824, 4
  %v842 = vsel %vm573, %v841, %v800
  %v843 = vrot.slane %v800, 4
  %v844 = vsel %vm573, %v824, %v843
  %v845 = vrot.slane %v832, 4
  %v846 = vsel %vm573, %v845, %v808
  %v847 = vrot.slane %v808, 4
  %v848 = vsel %vm573, %v832, %v847
  %v849 = vrot.slane %v836, 4
  %v850 = vsel %vm573, %v849, %v812
  %v851 = vrot.slane %v812, 4
  %v852 = vsel %vm573, %v836, %v851
  %v853 = vrot.slane %v527, 4
  %v854 = vsel %vm573, %v853, %v479
  %v855 = vrot.slane %v479, 4
  %v856 = vsel %vm573, %v527, %v855
  %v858 = vunpack.c.l.s4 1983009808
  %v859 = vunpack.c.0.s8 %v858
  %v860 = vperm.slane %v854, %v859
  %v862 = vunpack.c.l.s4 1983009808
  %v863 = vunpack.c.0.s8 %v862
  %v864 = vperm.slane %v856, %v863
  %v865 = vrot.slane %v551, 4
  %v866 = vsel %vm573, %v865, %v503
  %v867 = vrot.slane %v503, 4
  %v868 = vsel %vm573, %v551, %v867
  %v870 = vunpack.c.l.s4 1983009808
  %v871 = vunpack.c.0.s8 %v870
  %v872 = vperm.slane %v866, %v871
  %v874 = vunpack.c.l.s4 1983009808
  %v875 = vunpack.c.0.s8 %v874
  %v876 = vperm.slane %v868, %v875
  %v877 = vrot.slane %v872, 4
  %v878 = vsel %vm573, %v877, %v860
  %v879 = vrot.slane %v860, 4
  %v880 = vsel %vm573, %v872, %v879
  %v882 = vunpack.c.l.s4 1934713408
  %v883 = vunpack.c.0.s8 %v882
  %v884 = vperm.slane %v878, %v883
  %v886 = vunpack.c.l.s4 1934713408
  %v887 = vunpack.c.0.s8 %v886
  %v888 = vperm.slane %v880, %v887
  %v889 = vrot.slane %v876, 4
  %v890 = vsel %vm573, %v889, %v864
  %v891 = vrot.slane %v864, 4
  %v892 = vsel %vm573, %v876, %v891
  %v894 = vunpack.c.l.s4 1934713408
  %v895 = vunpack.c.0.s8 %v894
  %v896 = vperm.slane %v890, %v895
  %v898 = vunpack.c.l.s4 1934713408
  %v899 = vunpack.c.0.s8 %v898
  %v900 = vperm.slane %v892, %v899
  %v901 = vrot.slane %v884, 4
  %v902 = vsel %vm573, 0.0, %v901
  %v903 = vrot.slane %v888, 4
  %v904 = vsel %vm573, 0.0, %v903
  %v905 = vrot.slane %v896, 4
  %v906 = vsel %vm573, 0.0, %v905
  %v907 = vrot.slane %v900, 4
  %v908 = vsel %vm573, 0.0, %v907
  %v909 = vrot.slane %v337, 4
  %v910 = vsel %vm573, %v909, %v286
  %v911 = vrot.slane %v286, 4
  %v912 = vsel %vm573, %v337, %v911
  %v914 = vunpack.c.l.s4 1983009808
  %v915 = vunpack.c.0.s8 %v914
  %v916 = vperm.slane %v910, %v915
  %v918 = vunpack.c.l.s4 1983009808
  %v919 = vunpack.c.0.s8 %v918
  %v920 = vperm.slane %v912, %v919
  %v921 = vrot.slane %v361, 4
  %v922 = vsel %vm573, %v921, %v313
  %v923 = vrot.slane %v313, 4
  %v924 = vsel %vm573, %v361, %v923
  %v926 = vunpack.c.l.s4 1983009808
  %v927 = vunpack.c.0.s8 %v926
  %v928 = vperm.slane %v922, %v927
  %v930 = vunpack.c.l.s4 1983009808
  %v931 = vunpack.c.0.s8 %v930
  %v932 = vperm.slane %v924, %v931
  %v933 = vrot.slane %v433, 4
  %v934 = vsel %vm573, %v933, %v385
  %v935 = vrot.slane %v385, 4
  %v936 = vsel %vm573, %v433, %v935
  %v938 = vunpack.c.l.s4 1983009808
  %v939 = vunpack.c.0.s8 %v938
  %v940 = vperm.slane %v934, %v939
  %v942 = vunpack.c.l.s4 1983009808
  %v943 = vunpack.c.0.s8 %v942
  %v944 = vperm.slane %v936, %v943
  %v945 = vrot.slane %v457, 4
  %v946 = vsel %vm573, %v945, %v409
  %v947 = vrot.slane %v409, 4
  %v948 = vsel %vm573, %v457, %v947
  %v950 = vunpack.c.l.s4 1983009808
  %v951 = vunpack.c.0.s8 %v950
  %v952 = vperm.slane %v946, %v951
  %v954 = vunpack.c.l.s4 1983009808
  %v955 = vunpack.c.0.s8 %v954
  %v956 = vperm.slane %v948, %v955
  %v957 = vrot.slane %v928, 4
  %v958 = vsel %vm573, %v957, %v916
  %v959 = vrot.slane %v916, 4
  %v960 = vsel %vm573, %v928, %v959
  %v962 = vunpack.c.l.s4 1934713408
  %v963 = vunpack.c.0.s8 %v962
  %v964 = vperm.slane %v958, %v963
  %v966 = vunpack.c.l.s4 1934713408
  %v967 = vunpack.c.0.s8 %v966
  %v968 = vperm.slane %v960, %v967
  %v969 = vrot.slane %v932, 4
  %v970 = vsel %vm573, %v969, %v920
  %v971 = vrot.slane %v920, 4
  %v972 = vsel %vm573, %v932, %v971
  %v974 = vunpack.c.l.s4 1934713408
  %v975 = vunpack.c.0.s8 %v974
  %v976 = vperm.slane %v970, %v975
  %v978 = vunpack.c.l.s4 1934713408
  %v979 = vunpack.c.0.s8 %v978
  %v980 = vperm.slane %v972, %v979
  %v981 = vrot.slane %v952, 4
  %v982 = vsel %vm573, %v981, %v940
  %v983 = vrot.slane %v940, 4
  %v984 = vsel %vm573, %v952, %v983
  %v986 = vunpack.c.l.s4 1934713408
  %v987 = vunpack.c.0.s8 %v986
  %v988 = vperm.slane %v982, %v987
  %v990 = vunpack.c.l.s4 1934713408
  %v991 = vunpack.c.0.s8 %v990
  %v992 = vperm.slane %v984, %v991
  %v993 = vrot.slane %v956, 4
  %v994 = vsel %vm573, %v993, %v944
  %v995 = vrot.slane %v944, 4
  %v996 = vsel %vm573, %v956, %v995
  %v998 = vunpack.c.l.s4 1934713408
  %v999 = vunpack.c.0.s8 %v998
  %v1000 = vperm.slane %v994, %v999
  %v1002 = vunpack.c.l.s4 1934713408
  %v1003 = vunpack.c.0.s8 %v1002
  %v1004 = vperm.slane %v996, %v1003
  %v1005 = vrot.slane %v988, 4
  %v1006 = vsel %vm573, %v1005, %v964
  %v1007 = vrot.slane %v964, 4
  %v1008 = vsel %vm573, %v988, %v1007
  %v1009 = vrot.slane %v992, 4
  %v1010 = vsel %vm573, %v1009, %v968
  %v1011 = vrot.slane %v968, 4
  %v1012 = vsel %vm573, %v992, %v1011
  %v1013 = vrot.slane %v1000, 4
  %v1014 = vsel %vm573, %v1013, %v976
  %v1015 = vrot.slane %v976, 4
  %v1016 = vsel %vm573, %v1000, %v1015
  %v1017 = vrot.slane %v1004, 4
  %v1018 = vsel %vm573, %v1017, %v980
  %v1019 = vrot.slane %v980, 4
  %v1020 = vsel %vm573, %v1004, %v1019
  %v1021 = vrot.slane %v529, 4
  %v1022 = vsel %vm573, %v1021, %v481
  %v1023 = vrot.slane %v481, 4
  %v1024 = vsel %vm573, %v529, %v1023
  %v1026 = vunpack.c.l.s4 1983009808
  %v1027 = vunpack.c.0.s8 %v1026
  %v1028 = vperm.slane %v1022, %v1027
  %v1030 = vunpack.c.l.s4 1983009808
  %v1031 = vunpack.c.0.s8 %v1030
  %v1032 = vperm.slane %v1024, %v1031
  %v1033 = vrot.slane %v553, 4
  %v1034 = vsel %vm573, %v1033, %v505
  %v1035 = vrot.slane %v505, 4
  %v1036 = vsel %vm573, %v553, %v1035
  %v1038 = vunpack.c.l.s4 1983009808
  %v1039 = vunpack.c.0.s8 %v1038
  %v1040 = vperm.slane %v1034, %v1039
  %v1042 = vunpack.c.l.s4 1983009808
  %v1043 = vunpack.c.0.s8 %v1042
  %v1044 = vperm.slane %v1036, %v1043
  %v1045 = vrot.slane %v1040, 4
  %v1046 = vsel %vm573, %v1045, %v1028
  %v1047 = vrot.slane %v1028, 4
  %v1048 = vsel %vm573, %v1040, %v1047
  %v1050 = vunpack.c.l.s4 1934713408
  %v1051 = vunpack.c.0.s8 %v1050
  %v1052 = vperm.slane %v1046, %v1051
  %v1054 = vunpack.c.l.s4 1934713408
  %v1055 = vunpack.c.0.s8 %v1054
  %v1056 = vperm.slane %v1048, %v1055
  %v1057 = vrot.slane %v1044, 4
  %v1058 = vsel %vm573, %v1057, %v1032
  %v1059 = vrot.slane %v1032, 4
  %v1060 = vsel %vm573, %v1044, %v1059
  %v1062 = vunpack.c.l.s4 1934713408
  %v1063 = vunpack.c.0.s8 %v1062
  %v1064 = vperm.slane %v1058, %v1063
  %v1066 = vunpack.c.l.s4 1934713408
  %v1067 = vunpack.c.0.s8 %v1066
  %v1068 = vperm.slane %v1060, %v1067
  %v1069 = vrot.slane %v1052, 4
  %v1070 = vsel %vm573, 0.0, %v1069
  %v1071 = vrot.slane %v1056, 4
  %v1072 = vsel %vm573, 0.0, %v1071
  %v1073 = vrot.slane %v1064, 4
  %v1074 = vsel %vm573, 0.0, %v1073
  %v1075 = vrot.slane %v1068, 4
  %v1076 = vsel %vm573, 0.0, %v1075
  %v1077 = vrot.slane %v339, 4
  %v1078 = vsel %vm573, %v1077, %v288
  %v1079 = vrot.slane %v288, 4
  %v1080 = vsel %vm573, %v339, %v1079
  %v1082 = vunpack.c.l.s4 1983009808
  %v1083 = vunpack.c.0.s8 %v1082
  %v1084 = vperm.slane %v1078, %v1083
  %v1086 = vunpack.c.l.s4 1983009808
  %v1087 = vunpack.c.0.s8 %v1086
  %v1088 = vperm.slane %v1080, %v1087
  %v1089 = vrot.slane %v363, 4
  %v1090 = vsel %vm573, %v1089, %v315
  %v1091 = vrot.slane %v315, 4
  %v1092 = vsel %vm573, %v363, %v1091
  %v1094 = vunpack.c.l.s4 1983009808
  %v1095 = vunpack.c.0.s8 %v1094
  %v1096 = vperm.slane %v1090, %v1095
  %v1098 = vunpack.c.l.s4 1983009808
  %v1099 = vunpack.c.0.s8 %v1098
  %v1100 = vperm.slane %v1092, %v1099
  %v1101 = vrot.slane %v435, 4
  %v1102 = vsel %vm573, %v1101, %v387
  %v1103 = vrot.slane %v387, 4
  %v1104 = vsel %vm573, %v435, %v1103
  %v1106 = vunpack.c.l.s4 1983009808
  %v1107 = vunpack.c.0.s8 %v1106
  %v1108 = vperm.slane %v1102, %v1107
  %v1110 = vunpack.c.l.s4 1983009808
  %v1111 = vunpack.c.0.s8 %v1110
  %v1112 = vperm.slane %v1104, %v1111
  %v1113 = vrot.slane %v459, 4
  %v1114 = vsel %vm573, %v1113, %v411
  %v1115 = vrot.slane %v411, 4
  %v1116 = vsel %vm573, %v459, %v1115
  %v1118 = vunpack.c.l.s4 1983009808
  %v1119 = vunpack.c.0.s8 %v1118
  %v1120 = vperm.slane %v1114, %v1119
  %v1122 = vunpack.c.l.s4 1983009808
  %v1123 = vunpack.c.0.s8 %v1122
  %v1124 = vperm.slane %v1116, %v1123
  %v1125 = vrot.slane %v1096, 4
  %v1126 = vsel %vm573, %v1125, %v1084
  %v1127 = vrot.slane %v1084, 4
  %v1128 = vsel %vm573, %v1096, %v1127
  %v1130 = vunpack.c.l.s4 1934713408
  %v1131 = vunpack.c.0.s8 %v1130
  %v1132 = vperm.slane %v1126, %v1131
  %v1134 = vunpack.c.l.s4 1934713408
  %v1135 = vunpack.c.0.s8 %v1134
  %v1136 = vperm.slane %v1128, %v1135
  %v1137 = vrot.slane %v1100, 4
  %v1138 = vsel %vm573, %v1137, %v1088
  %v1139 = vrot.slane %v1088, 4
  %v1140 = vsel %vm573, %v1100, %v1139
  %v1142 = vunpack.c.l.s4 1934713408
  %v1143 = vunpack.c.0.s8 %v1142
  %v1144 = vperm.slane %v1138, %v1143
  %v1146 = vunpack.c.l.s4 1934713408
  %v1147 = vunpack.c.0.s8 %v1146
  %v1148 = vperm.slane %v1140, %v1147
  %v1149 = vrot.slane %v1120, 4
  %v1150 = vsel %vm573, %v1149, %v1108
  %v1151 = vrot.slane %v1108, 4
  %v1152 = vsel %vm573, %v1120, %v1151
  %v1154 = vunpack.c.l.s4 1934713408
  %v1155 = vunpack.c.0.s8 %v1154
  %v1156 = vperm.slane %v1150, %v1155
  %v1158 = vunpack.c.l.s4 1934713408
  %v1159 = vunpack.c.0.s8 %v1158
  %v1160 = vperm.slane %v1152, %v1159
  %v1161 = vrot.slane %v1124, 4
  %v1162 = vsel %vm573, %v1161, %v1112
  %v1163 = vrot.slane %v1112, 4
  %v1164 = vsel %vm573, %v1124, %v1163
  %v1166 = vunpack.c.l.s4 1934713408
  %v1167 = vunpack.c.0.s8 %v1166
  %v1168 = vperm.slane %v1162, %v1167
  %v1170 = vunpack.c.l.s4 1934713408
  %v1171 = vunpack.c.0.s8 %v1170
  %v1172 = vperm.slane %v1164, %v1171
  %v1173 = vrot.slane %v1156, 4
  %v1174 = vsel %vm573, %v1173, %v1132
  %v1175 = vrot.slane %v1132, 4
  %v1176 = vsel %vm573, %v1156, %v1175
  %v1177 = vrot.slane %v1160, 4
  %v1178 = vsel %vm573, %v1177, %v1136
  %v1179 = vrot.slane %v1136, 4
  %v1180 = vsel %vm573, %v1160, %v1179
  %v1181 = vrot.slane %v1168, 4
  %v1182 = vsel %vm573, %v1181, %v1144
  %v1183 = vrot.slane %v1144, 4
  %v1184 = vsel %vm573, %v1168, %v1183
  %v1185 = vrot.slane %v1172, 4
  %v1186 = vsel %vm573, %v1185, %v1148
  %v1187 = vrot.slane %v1148, 4
  %v1188 = vsel %vm573, %v1172, %v1187
  %v1189 = vrot.slane %v531, 4
  %v1190 = vsel %vm573, %v1189, %v483
  %v1191 = vrot.slane %v483, 4
  %v1192 = vsel %vm573, %v531, %v1191
  %v1194 = vunpack.c.l.s4 1983009808
  %v1195 = vunpack.c.0.s8 %v1194
  %v1196 = vperm.slane %v1190, %v1195
  %v1198 = vunpack.c.l.s4 1983009808
  %v1199 = vunpack.c.0.s8 %v1198
  %v1200 = vperm.slane %v1192, %v1199
  %v1201 = vrot.slane %v555, 4
  %v1202 = vsel %vm573, %v1201, %v507
  %v1203 = vrot.slane %v507, 4
  %v1204 = vsel %vm573, %v555, %v1203
  %v1206 = vunpack.c.l.s4 1983009808
  %v1207 = vunpack.c.0.s8 %v1206
  %v1208 = vperm.slane %v1202, %v1207
  %v1210 = vunpack.c.l.s4 1983009808
  %v1211 = vunpack.c.0.s8 %v1210
  %v1212 = vperm.slane %v1204, %v1211
  %v1213 = vrot.slane %v1208, 4
  %v1214 = vsel %vm573, %v1213, %v1196
  %v1215 = vrot.slane %v1196, 4
  %v1216 = vsel %vm573, %v1208, %v1215
  %v1218 = vunpack.c.l.s4 1934713408
  %v1219 = vunpack.c.0.s8 %v1218
  %v1220 = vperm.slane %v1214, %v1219
  %v1222 = vunpack.c.l.s4 1934713408
  %v1223 = vunpack.c.0.s8 %v1222
  %v1224 = vperm.slane %v1216, %v1223
  %v1225 = vrot.slane %v1212, 4
  %v1226 = vsel %vm573, %v1225, %v1200
  %v1227 = vrot.slane %v1200, 4
  %v1228 = vsel %vm573, %v1212, %v1227
  %v1230 = vunpack.c.l.s4 1934713408
  %v1231 = vunpack.c.0.s8 %v1230
  %v1232 = vperm.slane %v1226, %v1231
  %v1234 = vunpack.c.l.s4 1934713408
  %v1235 = vunpack.c.0.s8 %v1234
  %v1236 = vperm.slane %v1228, %v1235
  %v1237 = vrot.slane %v1220, 4
  %v1238 = vsel %vm573, 0.0, %v1237
  %v1239 = vrot.slane %v1224, 4
  %v1240 = vsel %vm573, 0.0, %v1239
  %v1241 = vrot.slane %v1232, 4
  %v1242 = vsel %vm573, 0.0, %v1241
  %v1243 = vrot.slane %v1236, 4
  %v1244 = vsel %vm573, 0.0, %v1243
  %v1245 = vrot.slane %v341, 4
  %v1246 = vsel %vm573, %v1245, %v291
  %v1247 = vrot.slane %v291, 4
  %v1248 = vsel %vm573, %v341, %v1247
  %v1250 = vunpack.c.l.s4 1983009808
  %v1251 = vunpack.c.0.s8 %v1250
  %v1252 = vperm.slane %v1246, %v1251
  %v1254 = vunpack.c.l.s4 1983009808
  %v1255 = vunpack.c.0.s8 %v1254
  %v1256 = vperm.slane %v1248, %v1255
  %v1257 = vrot.slane %v365, 4
  %v1258 = vsel %vm573, %v1257, %v317
  %v1259 = vrot.slane %v317, 4
  %v1260 = vsel %vm573, %v365, %v1259
  %v1262 = vunpack.c.l.s4 1983009808
  %v1263 = vunpack.c.0.s8 %v1262
  %v1264 = vperm.slane %v1258, %v1263
  %v1266 = vunpack.c.l.s4 1983009808
  %v1267 = vunpack.c.0.s8 %v1266
  %v1268 = vperm.slane %v1260, %v1267
  %v1269 = vrot.slane %v437, 4
  %v1270 = vsel %vm573, %v1269, %v389
  %v1271 = vrot.slane %v389, 4
  %v1272 = vsel %vm573, %v437, %v1271
  %v1274 = vunpack.c.l.s4 1983009808
  %v1275 = vunpack.c.0.s8 %v1274
  %v1276 = vperm.slane %v1270, %v1275
  %v1278 = vunpack.c.l.s4 1983009808
  %v1279 = vunpack.c.0.s8 %v1278
  %v1280 = vperm.slane %v1272, %v1279
  %v1281 = vrot.slane %v461, 4
  %v1282 = vsel %vm573, %v1281, %v413
  %v1283 = vrot.slane %v413, 4
  %v1284 = vsel %vm573, %v461, %v1283
  %v1286 = vunpack.c.l.s4 1983009808
  %v1287 = vunpack.c.0.s8 %v1286
  %v1288 = vperm.slane %v1282, %v1287
  %v1290 = vunpack.c.l.s4 1983009808
  %v1291 = vunpack.c.0.s8 %v1290
  %v1292 = vperm.slane %v1284, %v1291
  %v1293 = vrot.slane %v1264, 4
  %v1294 = vsel %vm573, %v1293, %v1252
  %v1295 = vrot.slane %v1252, 4
  %v1296 = vsel %vm573, %v1264, %v1295
  %v1298 = vunpack.c.l.s4 1934713408
  %v1299 = vunpack.c.0.s8 %v1298
  %v1300 = vperm.slane %v1294, %v1299
  %v1302 = vunpack.c.l.s4 1934713408
  %v1303 = vunpack.c.0.s8 %v1302
  %v1304 = vperm.slane %v1296, %v1303
  %v1305 = vrot.slane %v1268, 4
  %v1306 = vsel %vm573, %v1305, %v1256
  %v1307 = vrot.slane %v1256, 4
  %v1308 = vsel %vm573, %v1268, %v1307
  %v1310 = vunpack.c.l.s4 1934713408
  %v1311 = vunpack.c.0.s8 %v1310
  %v1312 = vperm.slane %v1306, %v1311
  %v1314 = vunpack.c.l.s4 1934713408
  %v1315 = vunpack.c.0.s8 %v1314
  %v1316 = vperm.slane %v1308, %v1315
  %v1317 = vrot.slane %v1288, 4
  %v1318 = vsel %vm573, %v1317, %v1276
  %v1319 = vrot.slane %v1276, 4
  %v1320 = vsel %vm573, %v1288, %v1319
  %v1322 = vunpack.c.l.s4 1934713408
  %v1323 = vunpack.c.0.s8 %v1322
  %v1324 = vperm.slane %v1318, %v1323
  %v1326 = vunpack.c.l.s4 1934713408
  %v1327 = vunpack.c.0.s8 %v1326
  %v1328 = vperm.slane %v1320, %v1327
  %v1329 = vrot.slane %v1292, 4
  %v1330 = vsel %vm573, %v1329, %v1280
  %v1331 = vrot.slane %v1280, 4
  %v1332 = vsel %vm573, %v1292, %v1331
  %v1334 = vunpack.c.l.s4 1934713408
  %v1335 = vunpack.c.0.s8 %v1334
  %v1336 = vperm.slane %v1330, %v1335
  %v1338 = vunpack.c.l.s4 1934713408
  %v1339 = vunpack.c.0.s8 %v1338
  %v1340 = vperm.slane %v1332, %v1339
  %v1341 = vrot.slane %v1324, 4
  %v1342 = vsel %vm573, %v1341, %v1300
  %v1343 = vrot.slane %v1300, 4
  %v1344 = vsel %vm573, %v1324, %v1343
  %v1345 = vrot.slane %v1328, 4
  %v1346 = vsel %vm573, %v1345, %v1304
  %v1347 = vrot.slane %v1304, 4
  %v1348 = vsel %vm573, %v1328, %v1347
  %v1349 = vrot.slane %v1336, 4
  %v1350 = vsel %vm573, %v1349, %v1312
  %v1351 = vrot.slane %v1312, 4
  %v1352 = vsel %vm573, %v1336, %v1351
  %v1353 = vrot.slane %v1340, 4
  %v1354 = vsel %vm573, %v1353, %v1316
  %v1355 = vrot.slane %v1316, 4
  %v1356 = vsel %vm573, %v1340, %v1355
  %v1357 = vrot.slane %v533, 4
  %v1358 = vsel %vm573, %v1357, %v485
  %v1359 = vrot.slane %v485, 4
  %v1360 = vsel %vm573, %v533, %v1359
  %v1362 = vunpack.c.l.s4 1983009808
  %v1363 = vunpack.c.0.s8 %v1362
  %v1364 = vperm.slane %v1358, %v1363
  %v1366 = vunpack.c.l.s4 1983009808
  %v1367 = vunpack.c.0.s8 %v1366
  %v1368 = vperm.slane %v1360, %v1367
  %v1369 = vrot.slane %v557, 4
  %v1370 = vsel %vm573, %v1369, %v509
  %v1371 = vrot.slane %v509, 4
  %v1372 = vsel %vm573, %v557, %v1371
  %v1374 = vunpack.c.l.s4 1983009808
  %v1375 = vunpack.c.0.s8 %v1374
  %v1376 = vperm.slane %v1370, %v1375
  %v1378 = vunpack.c.l.s4 1983009808
  %v1379 = vunpack.c.0.s8 %v1378
  %v1380 = vperm.slane %v1372, %v1379
  %v1381 = vrot.slane %v1376, 4
  %v1382 = vsel %vm573, %v1381, %v1364
  %v1383 = vrot.slane %v1364, 4
  %v1384 = vsel %vm573, %v1376, %v1383
  %v1386 = vunpack.c.l.s4 1934713408
  %v1387 = vunpack.c.0.s8 %v1386
  %v1388 = vperm.slane %v1382, %v1387
  %v1390 = vunpack.c.l.s4 1934713408
  %v1391 = vunpack.c.0.s8 %v1390
  %v1392 = vperm.slane %v1384, %v1391
  %v1393 = vrot.slane %v1380, 4
  %v1394 = vsel %vm573, %v1393, %v1368
  %v1395 = vrot.slane %v1368, 4
  %v1396 = vsel %vm573, %v1380, %v1395
  %v1398 = vunpack.c.l.s4 1934713408
  %v1399 = vunpack.c.0.s8 %v1398
  %v1400 = vperm.slane %v1394, %v1399
  %v1402 = vunpack.c.l.s4 1934713408
  %v1403 = vunpack.c.0.s8 %v1402
  %v1404 = vperm.slane %v1396, %v1403
  %v1405 = vrot.slane %v1388, 4
  %v1406 = vsel %vm573, 0.0, %v1405
  %v1407 = vrot.slane %v1392, 4
  %v1408 = vsel %vm573, 0.0, %v1407
  %v1409 = vrot.slane %v1400, 4
  %v1410 = vsel %vm573, 0.0, %v1409
  %v1411 = vrot.slane %v1404, 4
  %v1412 = vsel %vm573, 0.0, %v1411
  %v1413 = vrot.slane %v343, 4
  %v1414 = vsel %vm573, %v1413, %v293
  %v1415 = vrot.slane %v293, 4
  %v1416 = vsel %vm573, %v343, %v1415
  %v1418 = vunpack.c.l.s4 1983009808
  %v1419 = vunpack.c.0.s8 %v1418
  %v1420 = vperm.slane %v1414, %v1419
  %v1422 = vunpack.c.l.s4 1983009808
  %v1423 = vunpack.c.0.s8 %v1422
  %v1424 = vperm.slane %v1416, %v1423
  %v1425 = vrot.slane %v367, 4
  %v1426 = vsel %vm573, %v1425, %v319
  %v1427 = vrot.slane %v319, 4
  %v1428 = vsel %vm573, %v367, %v1427
  %v1430 = vunpack.c.l.s4 1983009808
  %v1431 = vunpack.c.0.s8 %v1430
  %v1432 = vperm.slane %v1426, %v1431
  %v1434 = vunpack.c.l.s4 1983009808
  %v1435 = vunpack.c.0.s8 %v1434
  %v1436 = vperm.slane %v1428, %v1435
  %v1437 = vrot.slane %v439, 4
  %v1438 = vsel %vm573, %v1437, %v391
  %v1439 = vrot.slane %v391, 4
  %v1440 = vsel %vm573, %v439, %v1439
  %v1442 = vunpack.c.l.s4 1983009808
  %v1443 = vunpack.c.0.s8 %v1442
  %v1444 = vperm.slane %v1438, %v1443
  %v1446 = vunpack.c.l.s4 1983009808
  %v1447 = vunpack.c.0.s8 %v1446
  %v1448 = vperm.slane %v1440, %v1447
  %v1449 = vrot.slane %v463, 4
  %v1450 = vsel %vm573, %v1449, %v415
  %v1451 = vrot.slane %v415, 4
  %v1452 = vsel %vm573, %v463, %v1451
  %v1454 = vunpack.c.l.s4 1983009808
  %v1455 = vunpack.c.0.s8 %v1454
  %v1456 = vperm.slane %v1450, %v1455
  %v1458 = vunpack.c.l.s4 1983009808
  %v1459 = vunpack.c.0.s8 %v1458
  %v1460 = vperm.slane %v1452, %v1459
  %v1461 = vrot.slane %v1432, 4
  %v1462 = vsel %vm573, %v1461, %v1420
  %v1463 = vrot.slane %v1420, 4
  %v1464 = vsel %vm573, %v1432, %v1463
  %v1466 = vunpack.c.l.s4 1934713408
  %v1467 = vunpack.c.0.s8 %v1466
  %v1468 = vperm.slane %v1462, %v1467
  %v1470 = vunpack.c.l.s4 1934713408
  %v1471 = vunpack.c.0.s8 %v1470
  %v1472 = vperm.slane %v1464, %v1471
  %v1473 = vrot.slane %v1436, 4
  %v1474 = vsel %vm573, %v1473, %v1424
  %v1475 = vrot.slane %v1424, 4
  %v1476 = vsel %vm573, %v1436, %v1475
  %v1478 = vunpack.c.l.s4 1934713408
  %v1479 = vunpack.c.0.s8 %v1478
  %v1480 = vperm.slane %v1474, %v1479
  %v1482 = vunpack.c.l.s4 1934713408
  %v1483 = vunpack.c.0.s8 %v1482
  %v1484 = vperm.slane %v1476, %v1483
  %v1485 = vrot.slane %v1456, 4
  %v1486 = vsel %vm573, %v1485, %v1444
  %v1487 = vrot.slane %v1444, 4
  %v1488 = vsel %vm573, %v1456, %v1487
  %v1490 = vunpack.c.l.s4 1934713408
  %v1491 = vunpack.c.0.s8 %v1490
  %v1492 = vperm.slane %v1486, %v1491
  %v1494 = vunpack.c.l.s4 1934713408
  %v1495 = vunpack.c.0.s8 %v1494
  %v1496 = vperm.slane %v1488, %v1495
  %v1497 = vrot.slane %v1460, 4
  %v1498 = vsel %vm573, %v1497, %v1448
  %v1499 = vrot.slane %v1448, 4
  %v1500 = vsel %vm573, %v1460, %v1499
  %v1502 = vunpack.c.l.s4 1934713408
  %v1503 = vunpack.c.0.s8 %v1502
  %v1504 = vperm.slane %v1498, %v1503
  %v1506 = vunpack.c.l.s4 1934713408
  %v1507 = vunpack.c.0.s8 %v1506
  %v1508 = vperm.slane %v1500, %v1507
  %v1509 = vrot.slane %v1492, 4
  %v1510 = vsel %vm573, %v1509, %v1468
  %v1511 = vrot.slane %v1468, 4
  %v1512 = vsel %vm573, %v1492, %v1511
  %v1513 = vrot.slane %v1496, 4
  %v1514 = vsel %vm573, %v1513, %v1472
  %v1515 = vrot.slane %v1472, 4
  %v1516 = vsel %vm573, %v1496, %v1515
  %v1517 = vrot.slane %v1504, 4
  %v1518 = vsel %vm573, %v1517, %v1480
  %v1519 = vrot.slane %v1480, 4
  %v1520 = vsel %vm573, %v1504, %v1519
  %v1521 = vrot.slane %v1508, 4
  %v1522 = vsel %vm573, %v1521, %v1484
  %v1523 = vrot.slane %v1484, 4
  %v1524 = vsel %vm573, %v1508, %v1523
  %v1525 = vrot.slane %v535, 4
  %v1526 = vsel %vm573, %v1525, %v487
  %v1527 = vrot.slane %v487, 4
  %v1528 = vsel %vm573, %v535, %v1527
  %v1530 = vunpack.c.l.s4 1983009808
  %v1531 = vunpack.c.0.s8 %v1530
  %v1532 = vperm.slane %v1526, %v1531
  %v1534 = vunpack.c.l.s4 1983009808
  %v1535 = vunpack.c.0.s8 %v1534
  %v1536 = vperm.slane %v1528, %v1535
  %v1537 = vrot.slane %v559, 4
  %v1538 = vsel %vm573, %v1537, %v511
  %v1539 = vrot.slane %v511, 4
  %v1540 = vsel %vm573, %v559, %v1539
  %v1542 = vunpack.c.l.s4 1983009808
  %v1543 = vunpack.c.0.s8 %v1542
  %v1544 = vperm.slane %v1538, %v1543
  %v1546 = vunpack.c.l.s4 1983009808
  %v1547 = vunpack.c.0.s8 %v1546
  %v1548 = vperm.slane %v1540, %v1547
  %v1549 = vrot.slane %v1544, 4
  %v1550 = vsel %vm573, %v1549, %v1532
  %v1551 = vrot.slane %v1532, 4
  %v1552 = vsel %vm573, %v1544, %v1551
  %v1554 = vunpack.c.l.s4 1934713408
  %v1555 = vunpack.c.0.s8 %v1554
  %v1556 = vperm.slane %v1550, %v1555
  %v1558 = vunpack.c.l.s4 1934713408
  %v1559 = vunpack.c.0.s8 %v1558
  %v1560 = vperm.slane %v1552, %v1559
  %v1561 = vrot.slane %v1548, 4
  %v1562 = vsel %vm573, %v1561, %v1536
  %v1563 = vrot.slane %v1536, 4
  %v1564 = vsel %vm573, %v1548, %v1563
  %v1566 = vunpack.c.l.s4 1934713408
  %v1567 = vunpack.c.0.s8 %v1566
  %v1568 = vperm.slane %v1562, %v1567
  %v1570 = vunpack.c.l.s4 1934713408
  %v1571 = vunpack.c.0.s8 %v1570
  %v1572 = vperm.slane %v1564, %v1571
  %v1573 = vrot.slane %v1556, 4
  %v1574 = vsel %vm573, 0.0, %v1573
  %v1575 = vrot.slane %v1560, 4
  %v1576 = vsel %vm573, 0.0, %v1575
  %v1577 = vrot.slane %v1568, 4
  %v1578 = vsel %vm573, 0.0, %v1577
  %v1579 = vrot.slane %v1572, 4
  %v1580 = vsel %vm573, 0.0, %v1579
  %v1581 = vrot.slane %v345, 4
  %v1582 = vsel %vm573, %v1581, %v296
  %v1583 = vrot.slane %v296, 4
  %v1584 = vsel %vm573, %v345, %v1583
  %v1586 = vunpack.c.l.s4 1983009808
  %v1587 = vunpack.c.0.s8 %v1586
  %v1588 = vperm.slane %v1582, %v1587
  %v1590 = vunpack.c.l.s4 1983009808
  %v1591 = vunpack.c.0.s8 %v1590
  %v1592 = vperm.slane %v1584, %v1591
  %v1593 = vrot.slane %v369, 4
  %v1594 = vsel %vm573, %v1593, %v321
  %v1595 = vrot.slane %v321, 4
  %v1596 = vsel %vm573, %v369, %v1595
  %v1598 = vunpack.c.l.s4 1983009808
  %v1599 = vunpack.c.0.s8 %v1598
  %v1600 = vperm.slane %v1594, %v1599
  %v1602 = vunpack.c.l.s4 1983009808
  %v1603 = vunpack.c.0.s8 %v1602
  %v1604 = vperm.slane %v1596, %v1603
  %v1605 = vrot.slane %v441, 4
  %v1606 = vsel %vm573, %v1605, %v393
  %v1607 = vrot.slane %v393, 4
  %v1608 = vsel %vm573, %v441, %v1607
  %v1610 = vunpack.c.l.s4 1983009808
  %v1611 = vunpack.c.0.s8 %v1610
  %v1612 = vperm.slane %v1606, %v1611
  %v1614 = vunpack.c.l.s4 1983009808
  %v1615 = vunpack.c.0.s8 %v1614
  %v1616 = vperm.slane %v1608, %v1615
  %v1617 = vrot.slane %v465, 4
  %v1618 = vsel %vm573, %v1617, %v417
  %v1619 = vrot.slane %v417, 4
  %v1620 = vsel %vm573, %v465, %v1619
  %v1622 = vunpack.c.l.s4 1983009808
  %v1623 = vunpack.c.0.s8 %v1622
  %v1624 = vperm.slane %v1618, %v1623
  %v1626 = vunpack.c.l.s4 1983009808
  %v1627 = vunpack.c.0.s8 %v1626
  %v1628 = vperm.slane %v1620, %v1627
  %v1629 = vrot.slane %v1600, 4
  %v1630 = vsel %vm573, %v1629, %v1588
  %v1631 = vrot.slane %v1588, 4
  %v1632 = vsel %vm573, %v1600, %v1631
  %v1634 = vunpack.c.l.s4 1934713408
  %v1635 = vunpack.c.0.s8 %v1634
  %v1636 = vperm.slane %v1630, %v1635
  %v1638 = vunpack.c.l.s4 1934713408
  %v1639 = vunpack.c.0.s8 %v1638
  %v1640 = vperm.slane %v1632, %v1639
  %v1641 = vrot.slane %v1604, 4
  %v1642 = vsel %vm573, %v1641, %v1592
  %v1643 = vrot.slane %v1592, 4
  %v1644 = vsel %vm573, %v1604, %v1643
  %v1646 = vunpack.c.l.s4 1934713408
  %v1647 = vunpack.c.0.s8 %v1646
  %v1648 = vperm.slane %v1642, %v1647
  %v1650 = vunpack.c.l.s4 1934713408
  %v1651 = vunpack.c.0.s8 %v1650
  %v1652 = vperm.slane %v1644, %v1651
  %v1653 = vrot.slane %v1624, 4
  %v1654 = vsel %vm573, %v1653, %v1612
  %v1655 = vrot.slane %v1612, 4
  %v1656 = vsel %vm573, %v1624, %v1655
  %v1658 = vunpack.c.l.s4 1934713408
  %v1659 = vunpack.c.0.s8 %v1658
  %v1660 = vperm.slane %v1654, %v1659
  %v1662 = vunpack.c.l.s4 1934713408
  %v1663 = vunpack.c.0.s8 %v1662
  %v1664 = vperm.slane %v1656, %v1663
  %v1665 = vrot.slane %v1628, 4
  %v1666 = vsel %vm573, %v1665, %v1616
  %v1667 = vrot.slane %v1616, 4
  %v1668 = vsel %vm573, %v1628, %v1667
  %v1670 = vunpack.c.l.s4 1934713408
  %v1671 = vunpack.c.0.s8 %v1670
  %v1672 = vperm.slane %v1666, %v1671
  %v1674 = vunpack.c.l.s4 1934713408
  %v1675 = vunpack.c.0.s8 %v1674
  %v1676 = vperm.slane %v1668, %v1675
  %v1677 = vrot.slane %v1660, 4
  %v1678 = vsel %vm573, %v1677, %v1636
  %v1679 = vrot.slane %v1636, 4
  %v1680 = vsel %vm573, %v1660, %v1679
  %v1681 = vrot.slane %v1664, 4
  %v1682 = vsel %vm573, %v1681, %v1640
  %v1683 = vrot.slane %v1640, 4
  %v1684 = vsel %vm573, %v1664, %v1683
  %v1685 = vrot.slane %v1672, 4
  %v1686 = vsel %vm573, %v1685, %v1648
  %v1687 = vrot.slane %v1648, 4
  %v1688 = vsel %vm573, %v1672, %v1687
  %v1689 = vrot.slane %v1676, 4
  %v1690 = vsel %vm573, %v1689, %v1652
  %v1691 = vrot.slane %v1652, 4
  %v1692 = vsel %vm573, %v1676, %v1691
  %v1693 = vrot.slane %v537, 4
  %v1694 = vsel %vm573, %v1693, %v489
  %v1695 = vrot.slane %v489, 4
  %v1696 = vsel %vm573, %v537, %v1695
  %v1698 = vunpack.c.l.s4 1983009808
  %v1699 = vunpack.c.0.s8 %v1698
  %v1700 = vperm.slane %v1694, %v1699
  %v1702 = vunpack.c.l.s4 1983009808
  %v1703 = vunpack.c.0.s8 %v1702
  %v1704 = vperm.slane %v1696, %v1703
  %v1705 = vrot.slane %v561, 4
  %v1706 = vsel %vm573, %v1705, %v513
  %v1707 = vrot.slane %v513, 4
  %v1708 = vsel %vm573, %v561, %v1707
  %v1710 = vunpack.c.l.s4 1983009808
  %v1711 = vunpack.c.0.s8 %v1710
  %v1712 = vperm.slane %v1706, %v1711
  %v1714 = vunpack.c.l.s4 1983009808
  %v1715 = vunpack.c.0.s8 %v1714
  %v1716 = vperm.slane %v1708, %v1715
  %v1717 = vrot.slane %v1712, 4
  %v1718 = vsel %vm573, %v1717, %v1700
  %v1719 = vrot.slane %v1700, 4
  %v1720 = vsel %vm573, %v1712, %v1719
  %v1722 = vunpack.c.l.s4 1934713408
  %v1723 = vunpack.c.0.s8 %v1722
  %v1724 = vperm.slane %v1718, %v1723
  %v1726 = vunpack.c.l.s4 1934713408
  %v1727 = vunpack.c.0.s8 %v1726
  %v1728 = vperm.slane %v1720, %v1727
  %v1729 = vrot.slane %v1716, 4
  %v1730 = vsel %vm573, %v1729, %v1704
  %v1731 = vrot.slane %v1704, 4
  %v1732 = vsel %vm573, %v1716, %v1731
  %v1734 = vunpack.c.l.s4 1934713408
  %v1735 = vunpack.c.0.s8 %v1734
  %v1736 = vperm.slane %v1730, %v1735
  %v1738 = vunpack.c.l.s4 1934713408
  %v1739 = vunpack.c.0.s8 %v1738
  %v1740 = vperm.slane %v1732, %v1739
  %v1741 = vrot.slane %v1724, 4
  %v1742 = vsel %vm573, 0.0, %v1741
  %v1743 = vrot.slane %v1728, 4
  %v1744 = vsel %vm573, 0.0, %v1743
  %v1745 = vrot.slane %v1736, 4
  %v1746 = vsel %vm573, 0.0, %v1745
  %v1747 = vrot.slane %v1740, 4
  %v1748 = vsel %vm573, 0.0, %v1747
  %v1749 = vrot.slane %v347, 4
  %v1750 = vsel %vm573, %v1749, %v298
  %v1751 = vrot.slane %v298, 4
  %v1752 = vsel %vm573, %v347, %v1751
  %v1754 = vunpack.c.l.s4 1983009808
  %v1755 = vunpack.c.0.s8 %v1754
  %v1756 = vperm.slane %v1750, %v1755
  %v1758 = vunpack.c.l.s4 1983009808
  %v1759 = vunpack.c.0.s8 %v1758
  %v1760 = vperm.slane %v1752, %v1759
  %v1761 = vrot.slane %v371, 4
  %v1762 = vsel %vm573, %v1761, %v323
  %v1763 = vrot.slane %v323, 4
  %v1764 = vsel %vm573, %v371, %v1763
  %v1766 = vunpack.c.l.s4 1983009808
  %v1767 = vunpack.c.0.s8 %v1766
  %v1768 = vperm.slane %v1762, %v1767
  %v1770 = vunpack.c.l.s4 1983009808
  %v1771 = vunpack.c.0.s8 %v1770
  %v1772 = vperm.slane %v1764, %v1771
  %v1773 = vrot.slane %v443, 4
  %v1774 = vsel %vm573, %v1773, %v395
  %v1775 = vrot.slane %v395, 4
  %v1776 = vsel %vm573, %v443, %v1775
  %v1778 = vunpack.c.l.s4 1983009808
  %v1779 = vunpack.c.0.s8 %v1778
  %v1780 = vperm.slane %v1774, %v1779
  %v1782 = vunpack.c.l.s4 1983009808
  %v1783 = vunpack.c.0.s8 %v1782
  %v1784 = vperm.slane %v1776, %v1783
  %v1785 = vrot.slane %v467, 4
  %v1786 = vsel %vm573, %v1785, %v419
  %v1787 = vrot.slane %v419, 4
  %v1788 = vsel %vm573, %v467, %v1787
  %v1790 = vunpack.c.l.s4 1983009808
  %v1791 = vunpack.c.0.s8 %v1790
  %v1792 = vperm.slane %v1786, %v1791
  %v1794 = vunpack.c.l.s4 1983009808
  %v1795 = vunpack.c.0.s8 %v1794
  %v1796 = vperm.slane %v1788, %v1795
  %v1797 = vrot.slane %v1768, 4
  %v1798 = vsel %vm573, %v1797, %v1756
  %v1799 = vrot.slane %v1756, 4
  %v1800 = vsel %vm573, %v1768, %v1799
  %v1802 = vunpack.c.l.s4 1934713408
  %v1803 = vunpack.c.0.s8 %v1802
  %v1804 = vperm.slane %v1798, %v1803
  %v1806 = vunpack.c.l.s4 1934713408
  %v1807 = vunpack.c.0.s8 %v1806
  %v1808 = vperm.slane %v1800, %v1807
  %v1809 = vrot.slane %v1772, 4
  %v1810 = vsel %vm573, %v1809, %v1760
  %v1811 = vrot.slane %v1760, 4
  %v1812 = vsel %vm573, %v1772, %v1811
  %v1814 = vunpack.c.l.s4 1934713408
  %v1815 = vunpack.c.0.s8 %v1814
  %v1816 = vperm.slane %v1810, %v1815
  %v1818 = vunpack.c.l.s4 1934713408
  %v1819 = vunpack.c.0.s8 %v1818
  %v1820 = vperm.slane %v1812, %v1819
  %v1821 = vrot.slane %v1792, 4
  %v1822 = vsel %vm573, %v1821, %v1780
  %v1823 = vrot.slane %v1780, 4
  %v1824 = vsel %vm573, %v1792, %v1823
  %v1826 = vunpack.c.l.s4 1934713408
  %v1827 = vunpack.c.0.s8 %v1826
  %v1828 = vperm.slane %v1822, %v1827
  %v1830 = vunpack.c.l.s4 1934713408
  %v1831 = vunpack.c.0.s8 %v1830
  %v1832 = vperm.slane %v1824, %v1831
  %v1833 = vrot.slane %v1796, 4
  %v1834 = vsel %vm573, %v1833, %v1784
  %v1835 = vrot.slane %v1784, 4
  %v1836 = vsel %vm573, %v1796, %v1835
  %v1838 = vunpack.c.l.s4 1934713408
  %v1839 = vunpack.c.0.s8 %v1838
  %v1840 = vperm.slane %v1834, %v1839
  %v1842 = vunpack.c.l.s4 1934713408
  %v1843 = vunpack.c.0.s8 %v1842
  %v1844 = vperm.slane %v1836, %v1843
  %v1845 = vrot.slane %v1828, 4
  %v1846 = vsel %vm573, %v1845, %v1804
  %v1847 = vrot.slane %v1804, 4
  %v1848 = vsel %vm573, %v1828, %v1847
  %v1849 = vrot.slane %v1832, 4
  %v1850 = vsel %vm573, %v1849, %v1808
  %v1851 = vrot.slane %v1808, 4
  %v1852 = vsel %vm573, %v1832, %v1851
  %v1853 = vrot.slane %v1840, 4
  %v1854 = vsel %vm573, %v1853, %v1816
  %v1855 = vrot.slane %v1816, 4
  %v1856 = vsel %vm573, %v1840, %v1855
  %v1857 = vrot.slane %v1844, 4
  %v1858 = vsel %vm573, %v1857, %v1820
  %v1859 = vrot.slane %v1820, 4
  %v1860 = vsel %vm573, %v1844, %v1859
  %v1861 = vrot.slane %v539, 4
  %v1862 = vsel %vm573, %v1861, %v491
  %v1863 = vrot.slane %v491, 4
  %v1864 = vsel %vm573, %v539, %v1863
  %v1866 = vunpack.c.l.s4 1983009808
  %v1867 = vunpack.c.0.s8 %v1866
  %v1868 = vperm.slane %v1862, %v1867
  %v1870 = vunpack.c.l.s4 1983009808
  %v1871 = vunpack.c.0.s8 %v1870
  %v1872 = vperm.slane %v1864, %v1871
  %v1873 = vrot.slane %v563, 4
  %v1874 = vsel %vm573, %v1873, %v515
  %v1875 = vrot.slane %v515, 4
  %v1876 = vsel %vm573, %v563, %v1875
  %v1878 = vunpack.c.l.s4 1983009808
  %v1879 = vunpack.c.0.s8 %v1878
  %v1880 = vperm.slane %v1874, %v1879
  %v1882 = vunpack.c.l.s4 1983009808
  %v1883 = vunpack.c.0.s8 %v1882
  %v1884 = vperm.slane %v1876, %v1883
  %v1885 = vrot.slane %v1880, 4
  %v1886 = vsel %vm573, %v1885, %v1868
  %v1887 = vrot.slane %v1868, 4
  %v1888 = vsel %vm573, %v1880, %v1887
  %v1890 = vunpack.c.l.s4 1934713408
  %v1891 = vunpack.c.0.s8 %v1890
  %v1892 = vperm.slane %v1886, %v1891
  %v1894 = vunpack.c.l.s4 1934713408
  %v1895 = vunpack.c.0.s8 %v1894
  %v1896 = vperm.slane %v1888, %v1895
  %v1897 = vrot.slane %v1884, 4
  %v1898 = vsel %vm573, %v1897, %v1872
  %v1899 = vrot.slane %v1872, 4
  %v1900 = vsel %vm573, %v1884, %v1899
  %v1902 = vunpack.c.l.s4 1934713408
  %v1903 = vunpack.c.0.s8 %v1902
  %v1904 = vperm.slane %v1898, %v1903
  %v1906 = vunpack.c.l.s4 1934713408
  %v1907 = vunpack.c.0.s8 %v1906
  %v1908 = vperm.slane %v1900, %v1907
  %v1909 = vrot.slane %v1892, 4
  %v1910 = vsel %vm573, 0.0, %v1909
  %v1911 = vrot.slane %v1896, 4
  %v1912 = vsel %vm573, 0.0, %v1911
  %v1913 = vrot.slane %v1904, 4
  %v1914 = vsel %vm573, 0.0, %v1913
  %v1915 = vrot.slane %v1908, 4
  %v1916 = vsel %vm573, 0.0, %v1915
  %v1917 = vrot.slane %v674, 4
  %v1918 = vsel %vm573, %v1917, %v670
  %v1919 = vrot.slane %v670, 4
  %v1920 = vsel %vm573, %v674, %v1919
  %v1922 = vunpack.c.l.s4 1983009808
  %v1923 = vunpack.c.0.s8 %v1922
  %v1924 = vperm.slane %v1918, %v1923
  %v1926 = vunpack.c.l.s4 1983009808
  %v1927 = vunpack.c.0.s8 %v1926
  %v1928 = vperm.slane %v1920, %v1927
  %v1929 = vrot.slane %v676, 4
  %v1930 = vsel %vm573, %v1929, %v672
  %v1931 = vrot.slane %v672, 4
  %v1932 = vsel %vm573, %v676, %v1931
  %v1934 = vunpack.c.l.s4 1983009808
  %v1935 = vunpack.c.0.s8 %v1934
  %v1936 = vperm.slane %v1930, %v1935
  %v1938 = vunpack.c.l.s4 1983009808
  %v1939 = vunpack.c.0.s8 %v1938
  %v1940 = vperm.slane %v1932, %v1939
  %v1941 = vrot.slane %v682, 4
  %v1942 = vsel %vm573, %v1941, %v678
  %v1943 = vrot.slane %v678, 4
  %v1944 = vsel %vm573, %v682, %v1943
  %v1946 = vunpack.c.l.s4 1983009808
  %v1947 = vunpack.c.0.s8 %v1946
  %v1948 = vperm.slane %v1942, %v1947
  %v1950 = vunpack.c.l.s4 1983009808
  %v1951 = vunpack.c.0.s8 %v1950
  %v1952 = vperm.slane %v1944, %v1951
  %v1953 = vrot.slane %v684, 4
  %v1954 = vsel %vm573, %v1953, %v680
  %v1955 = vrot.slane %v680, 4
  %v1956 = vsel %vm573, %v684, %v1955
  %v1958 = vunpack.c.l.s4 1983009808
  %v1959 = vunpack.c.0.s8 %v1958
  %v1960 = vperm.slane %v1954, %v1959
  %v1962 = vunpack.c.l.s4 1983009808
  %v1963 = vunpack.c.0.s8 %v1962
  %v1964 = vperm.slane %v1956, %v1963
  %v1965 = vrot.slane %v1936, 4
  %v1966 = vsel %vm573, %v1965, %v1924
  %v1967 = vrot.slane %v1924, 4
  %v1968 = vsel %vm573, %v1936, %v1967
  %v1970 = vunpack.c.l.s4 1934713408
  %v1971 = vunpack.c.0.s8 %v1970
  %v1972 = vperm.slane %v1966, %v1971
  %v1974 = vunpack.c.l.s4 1934713408
  %v1975 = vunpack.c.0.s8 %v1974
  %v1976 = vperm.slane %v1968, %v1975
  %v1977 = vrot.slane %v1940, 4
  %v1978 = vsel %vm573, %v1977, %v1928
  %v1979 = vrot.slane %v1928, 4
  %v1980 = vsel %vm573, %v1940, %v1979
  %v1982 = vunpack.c.l.s4 1934713408
  %v1983 = vunpack.c.0.s8 %v1982
  %v1984 = vperm.slane %v1978, %v1983
  %v1986 = vunpack.c.l.s4 1934713408
  %v1987 = vunpack.c.0.s8 %v1986
  %v1988 = vperm.slane %v1980, %v1987
  %v1989 = vrot.slane %v1960, 4
  %v1990 = vsel %vm573, %v1989, %v1948
  %v1991 = vrot.slane %v1948, 4
  %v1992 = vsel %vm573, %v1960, %v1991
  %v1994 = vunpack.c.l.s4 1934713408
  %v1995 = vunpack.c.0.s8 %v1994
  %v1996 = vperm.slane %v1990, %v1995
  %v1998 = vunpack.c.l.s4 1934713408
  %v1999 = vunpack.c.0.s8 %v1998
  %v2000 = vperm.slane %v1992, %v1999
  %v2001 = vrot.slane %v1964, 4
  %v2002 = vsel %vm573, %v2001, %v1952
  %v2003 = vrot.slane %v1952, 4
  %v2004 = vsel %vm573, %v1964, %v2003
  %v2006 = vunpack.c.l.s4 1934713408
  %v2007 = vunpack.c.0.s8 %v2006
  %v2008 = vperm.slane %v2002, %v2007
  %v2010 = vunpack.c.l.s4 1934713408
  %v2011 = vunpack.c.0.s8 %v2010
  %v2012 = vperm.slane %v2004, %v2011
  %v2013 = vrot.slane %v1996, 4
  %v2014 = vsel %vm573, %v2013, %v1972
  %v2015 = vrot.slane %v1972, 4
  %v2016 = vsel %vm573, %v1996, %v2015
  %v2017 = vrot.slane %v2000, 4
  %v2018 = vsel %vm573, %v2017, %v1976
  %v2019 = vrot.slane %v1976, 4
  %v2020 = vsel %vm573, %v2000, %v2019
  %v2021 = vrot.slane %v2008, 4
  %v2022 = vsel %vm573, %v2021, %v1984
  %v2023 = vrot.slane %v1984, 4
  %v2024 = vsel %vm573, %v2008, %v2023
  %v2025 = vrot.slane %v2012, 4
  %v2026 = vsel %vm573, %v2025, %v1988
  %v2027 = vrot.slane %v1988, 4
  %v2028 = vsel %vm573, %v2012, %v2027
  %v2029 = vrot.slane %v842, 4
  %v2030 = vsel %vm573, %v2029, %v838
  %v2031 = vrot.slane %v838, 4
  %v2032 = vsel %vm573, %v842, %v2031
  %v2034 = vunpack.c.l.s4 1983009808
  %v2035 = vunpack.c.0.s8 %v2034
  %v2036 = vperm.slane %v2030, %v2035
  %v2038 = vunpack.c.l.s4 1983009808
  %v2039 = vunpack.c.0.s8 %v2038
  %v2040 = vperm.slane %v2032, %v2039
  %v2041 = vrot.slane %v844, 4
  %v2042 = vsel %vm573, %v2041, %v840
  %v2043 = vrot.slane %v840, 4
  %v2044 = vsel %vm573, %v844, %v2043
  %v2046 = vunpack.c.l.s4 1983009808
  %v2047 = vunpack.c.0.s8 %v2046
  %v2048 = vperm.slane %v2042, %v2047
  %v2050 = vunpack.c.l.s4 1983009808
  %v2051 = vunpack.c.0.s8 %v2050
  %v2052 = vperm.slane %v2044, %v2051
  %v2053 = vrot.slane %v850, 4
  %v2054 = vsel %vm573, %v2053, %v846
  %v2055 = vrot.slane %v846, 4
  %v2056 = vsel %vm573, %v850, %v2055
  %v2058 = vunpack.c.l.s4 1983009808
  %v2059 = vunpack.c.0.s8 %v2058
  %v2060 = vperm.slane %v2054, %v2059
  %v2062 = vunpack.c.l.s4 1983009808
  %v2063 = vunpack.c.0.s8 %v2062
  %v2064 = vperm.slane %v2056, %v2063
  %v2065 = vrot.slane %v852, 4
  %v2066 = vsel %vm573, %v2065, %v848
  %v2067 = vrot.slane %v848, 4
  %v2068 = vsel %vm573, %v852, %v2067
  %v2070 = vunpack.c.l.s4 1983009808
  %v2071 = vunpack.c.0.s8 %v2070
  %v2072 = vperm.slane %v2066, %v2071
  %v2074 = vunpack.c.l.s4 1983009808
  %v2075 = vunpack.c.0.s8 %v2074
  %v2076 = vperm.slane %v2068, %v2075
  %v2077 = vrot.slane %v2048, 4
  %v2078 = vsel %vm573, %v2077, %v2036
  %v2079 = vrot.slane %v2036, 4
  %v2080 = vsel %vm573, %v2048, %v2079
  %v2082 = vunpack.c.l.s4 1934713408
  %v2083 = vunpack.c.0.s8 %v2082
  %v2084 = vperm.slane %v2078, %v2083
  %v2086 = vunpack.c.l.s4 1934713408
  %v2087 = vunpack.c.0.s8 %v2086
  %v2088 = vperm.slane %v2080, %v2087
  %v2089 = vrot.slane %v2052, 4
  %v2090 = vsel %vm573, %v2089, %v2040
  %v2091 = vrot.slane %v2040, 4
  %v2092 = vsel %vm573, %v2052, %v2091
  %v2094 = vunpack.c.l.s4 1934713408
  %v2095 = vunpack.c.0.s8 %v2094
  %v2096 = vperm.slane %v2090, %v2095
  %v2098 = vunpack.c.l.s4 1934713408
  %v2099 = vunpack.c.0.s8 %v2098
  %v2100 = vperm.slane %v2092, %v2099
  %v2101 = vrot.slane %v2072, 4
  %v2102 = vsel %vm573, %v2101, %v2060
  %v2103 = vrot.slane %v2060, 4
  %v2104 = vsel %vm573, %v2072, %v2103
  %v2106 = vunpack.c.l.s4 1934713408
  %v2107 = vunpack.c.0.s8 %v2106
  %v2108 = vperm.slane %v2102, %v2107
  %v2110 = vunpack.c.l.s4 1934713408
  %v2111 = vunpack.c.0.s8 %v2110
  %v2112 = vperm.slane %v2104, %v2111
  %v2113 = vrot.slane %v2076, 4
  %v2114 = vsel %vm573, %v2113, %v2064
  %v2115 = vrot.slane %v2064, 4
  %v2116 = vsel %vm573, %v2076, %v2115
  %v2118 = vunpack.c.l.s4 1934713408
  %v2119 = vunpack.c.0.s8 %v2118
  %v2120 = vperm.slane %v2114, %v2119
  %v2122 = vunpack.c.l.s4 1934713408
  %v2123 = vunpack.c.0.s8 %v2122
  %v2124 = vperm.slane %v2116, %v2123
  %v2125 = vrot.slane %v2108, 4
  %v2126 = vsel %vm573, %v2125, %v2084
  %v2127 = vrot.slane %v2084, 4
  %v2128 = vsel %vm573, %v2108, %v2127
  %v2129 = vrot.slane %v2112, 4
  %v2130 = vsel %vm573, %v2129, %v2088
  %v2131 = vrot.slane %v2088, 4
  %v2132 = vsel %vm573, %v2112, %v2131
  %v2133 = vrot.slane %v2120, 4
  %v2134 = vsel %vm573, %v2133, %v2096
  %v2135 = vrot.slane %v2096, 4
  %v2136 = vsel %vm573, %v2120, %v2135
  %v2137 = vrot.slane %v2124, 4
  %v2138 = vsel %vm573, %v2137, %v2100
  %v2139 = vrot.slane %v2100, 4
  %v2140 = vsel %vm573, %v2124, %v2139
  %v2141 = vrot.slane %v1010, 4
  %v2142 = vsel %vm573, %v2141, %v1006
  %v2143 = vrot.slane %v1006, 4
  %v2144 = vsel %vm573, %v1010, %v2143
  %v2146 = vunpack.c.l.s4 1983009808
  %v2147 = vunpack.c.0.s8 %v2146
  %v2148 = vperm.slane %v2142, %v2147
  %v2150 = vunpack.c.l.s4 1983009808
  %v2151 = vunpack.c.0.s8 %v2150
  %v2152 = vperm.slane %v2144, %v2151
  %v2153 = vrot.slane %v1012, 4
  %v2154 = vsel %vm573, %v2153, %v1008
  %v2155 = vrot.slane %v1008, 4
  %v2156 = vsel %vm573, %v1012, %v2155
  %v2158 = vunpack.c.l.s4 1983009808
  %v2159 = vunpack.c.0.s8 %v2158
  %v2160 = vperm.slane %v2154, %v2159
  %v2162 = vunpack.c.l.s4 1983009808
  %v2163 = vunpack.c.0.s8 %v2162
  %v2164 = vperm.slane %v2156, %v2163
  %v2165 = vrot.slane %v1018, 4
  %v2166 = vsel %vm573, %v2165, %v1014
  %v2167 = vrot.slane %v1014, 4
  %v2168 = vsel %vm573, %v1018, %v2167
  %v2170 = vunpack.c.l.s4 1983009808
  %v2171 = vunpack.c.0.s8 %v2170
  %v2172 = vperm.slane %v2166, %v2171
  %v2174 = vunpack.c.l.s4 1983009808
  %v2175 = vunpack.c.0.s8 %v2174
  %v2176 = vperm.slane %v2168, %v2175
  %v2177 = vrot.slane %v1020, 4
  %v2178 = vsel %vm573, %v2177, %v1016
  %v2179 = vrot.slane %v1016, 4
  %v2180 = vsel %vm573, %v1020, %v2179
  %v2182 = vunpack.c.l.s4 1983009808
  %v2183 = vunpack.c.0.s8 %v2182
  %v2184 = vperm.slane %v2178, %v2183
  %v2186 = vunpack.c.l.s4 1983009808
  %v2187 = vunpack.c.0.s8 %v2186
  %v2188 = vperm.slane %v2180, %v2187
  %v2189 = vrot.slane %v2160, 4
  %v2190 = vsel %vm573, %v2189, %v2148
  %v2191 = vrot.slane %v2148, 4
  %v2192 = vsel %vm573, %v2160, %v2191
  %v2194 = vunpack.c.l.s4 1934713408
  %v2195 = vunpack.c.0.s8 %v2194
  %v2196 = vperm.slane %v2190, %v2195
  %v2198 = vunpack.c.l.s4 1934713408
  %v2199 = vunpack.c.0.s8 %v2198
  %v2200 = vperm.slane %v2192, %v2199
  %v2201 = vrot.slane %v2164, 4
  %v2202 = vsel %vm573, %v2201, %v2152
  %v2203 = vrot.slane %v2152, 4
  %v2204 = vsel %vm573, %v2164, %v2203
  %v2206 = vunpack.c.l.s4 1934713408
  %v2207 = vunpack.c.0.s8 %v2206
  %v2208 = vperm.slane %v2202, %v2207
  %v2210 = vunpack.c.l.s4 1934713408
  %v2211 = vunpack.c.0.s8 %v2210
  %v2212 = vperm.slane %v2204, %v2211
  %v2213 = vrot.slane %v2184, 4
  %v2214 = vsel %vm573, %v2213, %v2172
  %v2215 = vrot.slane %v2172, 4
  %v2216 = vsel %vm573, %v2184, %v2215
  %v2218 = vunpack.c.l.s4 1934713408
  %v2219 = vunpack.c.0.s8 %v2218
  %v2220 = vperm.slane %v2214, %v2219
  %v2222 = vunpack.c.l.s4 1934713408
  %v2223 = vunpack.c.0.s8 %v2222
  %v2224 = vperm.slane %v2216, %v2223
  %v2225 = vrot.slane %v2188, 4
  %v2226 = vsel %vm573, %v2225, %v2176
  %v2227 = vrot.slane %v2176, 4
  %v2228 = vsel %vm573, %v2188, %v2227
  %v2230 = vunpack.c.l.s4 1934713408
  %v2231 = vunpack.c.0.s8 %v2230
  %v2232 = vperm.slane %v2226, %v2231
  %v2234 = vunpack.c.l.s4 1934713408
  %v2235 = vunpack.c.0.s8 %v2234
  %v2236 = vperm.slane %v2228, %v2235
  %v2237 = vrot.slane %v2220, 4
  %v2238 = vsel %vm573, %v2237, %v2196
  %v2239 = vrot.slane %v2196, 4
  %v2240 = vsel %vm573, %v2220, %v2239
  %v2241 = vrot.slane %v2224, 4
  %v2242 = vsel %vm573, %v2241, %v2200
  %v2243 = vrot.slane %v2200, 4
  %v2244 = vsel %vm573, %v2224, %v2243
  %v2245 = vrot.slane %v2232, 4
  %v2246 = vsel %vm573, %v2245, %v2208
  %v2247 = vrot.slane %v2208, 4
  %v2248 = vsel %vm573, %v2232, %v2247
  %v2249 = vrot.slane %v2236, 4
  %v2250 = vsel %vm573, %v2249, %v2212
  %v2251 = vrot.slane %v2212, 4
  %v2252 = vsel %vm573, %v2236, %v2251
  %v2253 = vrot.slane %v1178, 4
  %v2254 = vsel %vm573, %v2253, %v1174
  %v2255 = vrot.slane %v1174, 4
  %v2256 = vsel %vm573, %v1178, %v2255
  %v2258 = vunpack.c.l.s4 1983009808
  %v2259 = vunpack.c.0.s8 %v2258
  %v2260 = vperm.slane %v2254, %v2259
  %v2262 = vunpack.c.l.s4 1983009808
  %v2263 = vunpack.c.0.s8 %v2262
  %v2264 = vperm.slane %v2256, %v2263
  %v2265 = vrot.slane %v1180, 4
  %v2266 = vsel %vm573, %v2265, %v1176
  %v2267 = vrot.slane %v1176, 4
  %v2268 = vsel %vm573, %v1180, %v2267
  %v2270 = vunpack.c.l.s4 1983009808
  %v2271 = vunpack.c.0.s8 %v2270
  %v2272 = vperm.slane %v2266, %v2271
  %v2274 = vunpack.c.l.s4 1983009808
  %v2275 = vunpack.c.0.s8 %v2274
  %v2276 = vperm.slane %v2268, %v2275
  %v2277 = vrot.slane %v1186, 4
  %v2278 = vsel %vm573, %v2277, %v1182
  %v2279 = vrot.slane %v1182, 4
  %v2280 = vsel %vm573, %v1186, %v2279
  %v2282 = vunpack.c.l.s4 1983009808
  %v2283 = vunpack.c.0.s8 %v2282
  %v2284 = vperm.slane %v2278, %v2283
  %v2286 = vunpack.c.l.s4 1983009808
  %v2287 = vunpack.c.0.s8 %v2286
  %v2288 = vperm.slane %v2280, %v2287
  %v2289 = vrot.slane %v1188, 4
  %v2290 = vsel %vm573, %v2289, %v1184
  %v2291 = vrot.slane %v1184, 4
  %v2292 = vsel %vm573, %v1188, %v2291
  %v2294 = vunpack.c.l.s4 1983009808
  %v2295 = vunpack.c.0.s8 %v2294
  %v2296 = vperm.slane %v2290, %v2295
  %v2298 = vunpack.c.l.s4 1983009808
  %v2299 = vunpack.c.0.s8 %v2298
  %v2300 = vperm.slane %v2292, %v2299
  %v2301 = vrot.slane %v2272, 4
  %v2302 = vsel %vm573, %v2301, %v2260
  %v2303 = vrot.slane %v2260, 4
  %v2304 = vsel %vm573, %v2272, %v2303
  %v2306 = vunpack.c.l.s4 1934713408
  %v2307 = vunpack.c.0.s8 %v2306
  %v2308 = vperm.slane %v2302, %v2307
  %v2310 = vunpack.c.l.s4 1934713408
  %v2311 = vunpack.c.0.s8 %v2310
  %v2312 = vperm.slane %v2304, %v2311
  %v2313 = vrot.slane %v2276, 4
  %v2314 = vsel %vm573, %v2313, %v2264
  %v2315 = vrot.slane %v2264, 4
  %v2316 = vsel %vm573, %v2276, %v2315
  %v2318 = vunpack.c.l.s4 1934713408
  %v2319 = vunpack.c.0.s8 %v2318
  %v2320 = vperm.slane %v2314, %v2319
  %v2322 = vunpack.c.l.s4 1934713408
  %v2323 = vunpack.c.0.s8 %v2322
  %v2324 = vperm.slane %v2316, %v2323
  %v2325 = vrot.slane %v2296, 4
  %v2326 = vsel %vm573, %v2325, %v2284
  %v2327 = vrot.slane %v2284, 4
  %v2328 = vsel %vm573, %v2296, %v2327
  %v2330 = vunpack.c.l.s4 1934713408
  %v2331 = vunpack.c.0.s8 %v2330
  %v2332 = vperm.slane %v2326, %v2331
  %v2334 = vunpack.c.l.s4 1934713408
  %v2335 = vunpack.c.0.s8 %v2334
  %v2336 = vperm.slane %v2328, %v2335
  %v2337 = vrot.slane %v2300, 4
  %v2338 = vsel %vm573, %v2337, %v2288
  %v2339 = vrot.slane %v2288, 4
  %v2340 = vsel %vm573, %v2300, %v2339
  %v2342 = vunpack.c.l.s4 1934713408
  %v2343 = vunpack.c.0.s8 %v2342
  %v2344 = vperm.slane %v2338, %v2343
  %v2346 = vunpack.c.l.s4 1934713408
  %v2347 = vunpack.c.0.s8 %v2346
  %v2348 = vperm.slane %v2340, %v2347
  %v2349 = vrot.slane %v2332, 4
  %v2350 = vsel %vm573, %v2349, %v2308
  %v2351 = vrot.slane %v2308, 4
  %v2352 = vsel %vm573, %v2332, %v2351
  %v2353 = vrot.slane %v2336, 4
  %v2354 = vsel %vm573, %v2353, %v2312
  %v2355 = vrot.slane %v2312, 4
  %v2356 = vsel %vm573, %v2336, %v2355
  %v2357 = vrot.slane %v2344, 4
  %v2358 = vsel %vm573, %v2357, %v2320
  %v2359 = vrot.slane %v2320, 4
  %v2360 = vsel %vm573, %v2344, %v2359
  %v2361 = vrot.slane %v2348, 4
  %v2362 = vsel %vm573, %v2361, %v2324
  %v2363 = vrot.slane %v2324, 4
  %v2364 = vsel %vm573, %v2348, %v2363
  %v2365 = vrot.slane %v1346, 4
  %v2366 = vsel %vm573, %v2365, %v1342
  %v2367 = vrot.slane %v1342, 4
  %v2368 = vsel %vm573, %v1346, %v2367
  %v2370 = vunpack.c.l.s4 1983009808
  %v2371 = vunpack.c.0.s8 %v2370
  %v2372 = vperm.slane %v2366, %v2371
  %v2374 = vunpack.c.l.s4 1983009808
  %v2375 = vunpack.c.0.s8 %v2374
  %v2376 = vperm.slane %v2368, %v2375
  %v2377 = vrot.slane %v1348, 4
  %v2378 = vsel %vm573, %v2377, %v1344
  %v2379 = vrot.slane %v1344, 4
  %v2380 = vsel %vm573, %v1348, %v2379
  %v2382 = vunpack.c.l.s4 1983009808
  %v2383 = vunpack.c.0.s8 %v2382
  %v2384 = vperm.slane %v2378, %v2383
  %v2386 = vunpack.c.l.s4 1983009808
  %v2387 = vunpack.c.0.s8 %v2386
  %v2388 = vperm.slane %v2380, %v2387
  %v2389 = vrot.slane %v1354, 4
  %v2390 = vsel %vm573, %v2389, %v1350
  %v2391 = vrot.slane %v1350, 4
  %v2392 = vsel %vm573, %v1354, %v2391
  %v2394 = vunpack.c.l.s4 1983009808
  %v2395 = vunpack.c.0.s8 %v2394
  %v2396 = vperm.slane %v2390, %v2395
  %v2398 = vunpack.c.l.s4 1983009808
  %v2399 = vunpack.c.0.s8 %v2398
  %v2400 = vperm.slane %v2392, %v2399
  %v2401 = vrot.slane %v1356, 4
  %v2402 = vsel %vm573, %v2401, %v1352
  %v2403 = vrot.slane %v1352, 4
  %v2404 = vsel %vm573, %v1356, %v2403
  %v2406 = vunpack.c.l.s4 1983009808
  %v2407 = vunpack.c.0.s8 %v2406
  %v2408 = vperm.slane %v2402, %v2407
  %v2410 = vunpack.c.l.s4 1983009808
  %v2411 = vunpack.c.0.s8 %v2410
  %v2412 = vperm.slane %v2404, %v2411
  %v2413 = vrot.slane %v2384, 4
  %v2414 = vsel %vm573, %v2413, %v2372
  %v2415 = vrot.slane %v2372, 4
  %v2416 = vsel %vm573, %v2384, %v2415
  %v2418 = vunpack.c.l.s4 1934713408
  %v2419 = vunpack.c.0.s8 %v2418
  %v2420 = vperm.slane %v2414, %v2419
  %v2422 = vunpack.c.l.s4 1934713408
  %v2423 = vunpack.c.0.s8 %v2422
  %v2424 = vperm.slane %v2416, %v2423
  %v2425 = vrot.slane %v2388, 4
  %v2426 = vsel %vm573, %v2425, %v2376
  %v2427 = vrot.slane %v2376, 4
  %v2428 = vsel %vm573, %v2388, %v2427
  %v2430 = vunpack.c.l.s4 1934713408
  %v2431 = vunpack.c.0.s8 %v2430
  %v2432 = vperm.slane %v2426, %v2431
  %v2434 = vunpack.c.l.s4 1934713408
  %v2435 = vunpack.c.0.s8 %v2434
  %v2436 = vperm.slane %v2428, %v2435
  %v2437 = vrot.slane %v2408, 4
  %v2438 = vsel %vm573, %v2437, %v2396
  %v2439 = vrot.slane %v2396, 4
  %v2440 = vsel %vm573, %v2408, %v2439
  %v2442 = vunpack.c.l.s4 1934713408
  %v2443 = vunpack.c.0.s8 %v2442
  %v2444 = vperm.slane %v2438, %v2443
  %v2446 = vunpack.c.l.s4 1934713408
  %v2447 = vunpack.c.0.s8 %v2446
  %v2448 = vperm.slane %v2440, %v2447
  %v2449 = vrot.slane %v2412, 4
  %v2450 = vsel %vm573, %v2449, %v2400
  %v2451 = vrot.slane %v2400, 4
  %v2452 = vsel %vm573, %v2412, %v2451
  %v2454 = vunpack.c.l.s4 1934713408
  %v2455 = vunpack.c.0.s8 %v2454
  %v2456 = vperm.slane %v2450, %v2455
  %v2458 = vunpack.c.l.s4 1934713408
  %v2459 = vunpack.c.0.s8 %v2458
  %v2460 = vperm.slane %v2452, %v2459
  %v2461 = vrot.slane %v2444, 4
  %v2462 = vsel %vm573, %v2461, %v2420
  %v2463 = vrot.slane %v2420, 4
  %v2464 = vsel %vm573, %v2444, %v2463
  %v2465 = vrot.slane %v2448, 4
  %v2466 = vsel %vm573, %v2465, %v2424
  %v2467 = vrot.slane %v2424, 4
  %v2468 = vsel %vm573, %v2448, %v2467
  %v2469 = vrot.slane %v2456, 4
  %v2470 = vsel %vm573, %v2469, %v2432
  %v2471 = vrot.slane %v2432, 4
  %v2472 = vsel %vm573, %v2456, %v2471
  %v2473 = vrot.slane %v2460, 4
  %v2474 = vsel %vm573, %v2473, %v2436
  %v2475 = vrot.slane %v2436, 4
  %v2476 = vsel %vm573, %v2460, %v2475
  %v2477 = vrot.slane %v1514, 4
  %v2478 = vsel %vm573, %v2477, %v1510
  %v2479 = vrot.slane %v1510, 4
  %v2480 = vsel %vm573, %v1514, %v2479
  %v2482 = vunpack.c.l.s4 1983009808
  %v2483 = vunpack.c.0.s8 %v2482
  %v2484 = vperm.slane %v2478, %v2483
  %v2486 = vunpack.c.l.s4 1983009808
  %v2487 = vunpack.c.0.s8 %v2486
  %v2488 = vperm.slane %v2480, %v2487
  %v2489 = vrot.slane %v1516, 4
  %v2490 = vsel %vm573, %v2489, %v1512
  %v2491 = vrot.slane %v1512, 4
  %v2492 = vsel %vm573, %v1516, %v2491
  %v2494 = vunpack.c.l.s4 1983009808
  %v2495 = vunpack.c.0.s8 %v2494
  %v2496 = vperm.slane %v2490, %v2495
  %v2498 = vunpack.c.l.s4 1983009808
  %v2499 = vunpack.c.0.s8 %v2498
  %v2500 = vperm.slane %v2492, %v2499
  %v2501 = vrot.slane %v1522, 4
  %v2502 = vsel %vm573, %v2501, %v1518
  %v2503 = vrot.slane %v1518, 4
  %v2504 = vsel %vm573, %v1522, %v2503
  %v2506 = vunpack.c.l.s4 1983009808
  %v2507 = vunpack.c.0.s8 %v2506
  %v2508 = vperm.slane %v2502, %v2507
  %v2510 = vunpack.c.l.s4 1983009808
  %v2511 = vunpack.c.0.s8 %v2510
  %v2512 = vperm.slane %v2504, %v2511
  %v2513 = vrot.slane %v1524, 4
  %v2514 = vsel %vm573, %v2513, %v1520
  %v2515 = vrot.slane %v1520, 4
  %v2516 = vsel %vm573, %v1524, %v2515
  %v2518 = vunpack.c.l.s4 1983009808
  %v2519 = vunpack.c.0.s8 %v2518
  %v2520 = vperm.slane %v2514, %v2519
  %v2522 = vunpack.c.l.s4 1983009808
  %v2523 = vunpack.c.0.s8 %v2522
  %v2524 = vperm.slane %v2516, %v2523
  %v2525 = vrot.slane %v2496, 4
  %v2526 = vsel %vm573, %v2525, %v2484
  %v2527 = vrot.slane %v2484, 4
  %v2528 = vsel %vm573, %v2496, %v2527
  %v2530 = vunpack.c.l.s4 1934713408
  %v2531 = vunpack.c.0.s8 %v2530
  %v2532 = vperm.slane %v2526, %v2531
  %v2534 = vunpack.c.l.s4 1934713408
  %v2535 = vunpack.c.0.s8 %v2534
  %v2536 = vperm.slane %v2528, %v2535
  %v2537 = vrot.slane %v2500, 4
  %v2538 = vsel %vm573, %v2537, %v2488
  %v2539 = vrot.slane %v2488, 4
  %v2540 = vsel %vm573, %v2500, %v2539
  %v2542 = vunpack.c.l.s4 1934713408
  %v2543 = vunpack.c.0.s8 %v2542
  %v2544 = vperm.slane %v2538, %v2543
  %v2546 = vunpack.c.l.s4 1934713408
  %v2547 = vunpack.c.0.s8 %v2546
  %v2548 = vperm.slane %v2540, %v2547
  %v2549 = vrot.slane %v2520, 4
  %v2550 = vsel %vm573, %v2549, %v2508
  %v2551 = vrot.slane %v2508, 4
  %v2552 = vsel %vm573, %v2520, %v2551
  %v2554 = vunpack.c.l.s4 1934713408
  %v2555 = vunpack.c.0.s8 %v2554
  %v2556 = vperm.slane %v2550, %v2555
  %v2558 = vunpack.c.l.s4 1934713408
  %v2559 = vunpack.c.0.s8 %v2558
  %v2560 = vperm.slane %v2552, %v2559
  %v2561 = vrot.slane %v2524, 4
  %v2562 = vsel %vm573, %v2561, %v2512
  %v2563 = vrot.slane %v2512, 4
  %v2564 = vsel %vm573, %v2524, %v2563
  %v2566 = vunpack.c.l.s4 1934713408
  %v2567 = vunpack.c.0.s8 %v2566
  %v2568 = vperm.slane %v2562, %v2567
  %v2570 = vunpack.c.l.s4 1934713408
  %v2571 = vunpack.c.0.s8 %v2570
  %v2572 = vperm.slane %v2564, %v2571
  %v2573 = vrot.slane %v2556, 4
  %v2574 = vsel %vm573, %v2573, %v2532
  %v2575 = vrot.slane %v2532, 4
  %v2576 = vsel %vm573, %v2556, %v2575
  %v2577 = vrot.slane %v2560, 4
  %v2578 = vsel %vm573, %v2577, %v2536
  %v2579 = vrot.slane %v2536, 4
  %v2580 = vsel %vm573, %v2560, %v2579
  %v2581 = vrot.slane %v2568, 4
  %v2582 = vsel %vm573, %v2581, %v2544
  %v2583 = vrot.slane %v2544, 4
  %v2584 = vsel %vm573, %v2568, %v2583
  %v2585 = vrot.slane %v2572, 4
  %v2586 = vsel %vm573, %v2585, %v2548
  %v2587 = vrot.slane %v2548, 4
  %v2588 = vsel %vm573, %v2572, %v2587
  %v2589 = vrot.slane %v1682, 4
  %v2590 = vsel %vm573, %v2589, %v1678
  %v2591 = vrot.slane %v1678, 4
  %v2592 = vsel %vm573, %v1682, %v2591
  %v2594 = vunpack.c.l.s4 1983009808
  %v2595 = vunpack.c.0.s8 %v2594
  %v2596 = vperm.slane %v2590, %v2595
  %v2598 = vunpack.c.l.s4 1983009808
  %v2599 = vunpack.c.0.s8 %v2598
  %v2600 = vperm.slane %v2592, %v2599
  %v2601 = vrot.slane %v1684, 4
  %v2602 = vsel %vm573, %v2601, %v1680
  %v2603 = vrot.slane %v1680, 4
  %v2604 = vsel %vm573, %v1684, %v2603
  %v2606 = vunpack.c.l.s4 1983009808
  %v2607 = vunpack.c.0.s8 %v2606
  %v2608 = vperm.slane %v2602, %v2607
  %v2610 = vunpack.c.l.s4 1983009808
  %v2611 = vunpack.c.0.s8 %v2610
  %v2612 = vperm.slane %v2604, %v2611
  %v2613 = vrot.slane %v1690, 4
  %v2614 = vsel %vm573, %v2613, %v1686
  %v2615 = vrot.slane %v1686, 4
  %v2616 = vsel %vm573, %v1690, %v2615
  %v2618 = vunpack.c.l.s4 1983009808
  %v2619 = vunpack.c.0.s8 %v2618
  %v2620 = vperm.slane %v2614, %v2619
  %v2622 = vunpack.c.l.s4 1983009808
  %v2623 = vunpack.c.0.s8 %v2622
  %v2624 = vperm.slane %v2616, %v2623
  %v2625 = vrot.slane %v1692, 4
  %v2626 = vsel %vm573, %v2625, %v1688
  %v2627 = vrot.slane %v1688, 4
  %v2628 = vsel %vm573, %v1692, %v2627
  %v2630 = vunpack.c.l.s4 1983009808
  %v2631 = vunpack.c.0.s8 %v2630
  %v2632 = vperm.slane %v2626, %v2631
  %v2634 = vunpack.c.l.s4 1983009808
  %v2635 = vunpack.c.0.s8 %v2634
  %v2636 = vperm.slane %v2628, %v2635
  %v2637 = vrot.slane %v2608, 4
  %v2638 = vsel %vm573, %v2637, %v2596
  %v2639 = vrot.slane %v2596, 4
  %v2640 = vsel %vm573, %v2608, %v2639
  %v2642 = vunpack.c.l.s4 1934713408
  %v2643 = vunpack.c.0.s8 %v2642
  %v2644 = vperm.slane %v2638, %v2643
  %v2646 = vunpack.c.l.s4 1934713408
  %v2647 = vunpack.c.0.s8 %v2646
  %v2648 = vperm.slane %v2640, %v2647
  %v2649 = vrot.slane %v2612, 4
  %v2650 = vsel %vm573, %v2649, %v2600
  %v2651 = vrot.slane %v2600, 4
  %v2652 = vsel %vm573, %v2612, %v2651
  %v2654 = vunpack.c.l.s4 1934713408
  %v2655 = vunpack.c.0.s8 %v2654
  %v2656 = vperm.slane %v2650, %v2655
  %v2658 = vunpack.c.l.s4 1934713408
  %v2659 = vunpack.c.0.s8 %v2658
  %v2660 = vperm.slane %v2652, %v2659
  %v2661 = vrot.slane %v2632, 4
  %v2662 = vsel %vm573, %v2661, %v2620
  %v2663 = vrot.slane %v2620, 4
  %v2664 = vsel %vm573, %v2632, %v2663
  %v2666 = vunpack.c.l.s4 1934713408
  %v2667 = vunpack.c.0.s8 %v2666
  %v2668 = vperm.slane %v2662, %v2667
  %v2670 = vunpack.c.l.s4 1934713408
  %v2671 = vunpack.c.0.s8 %v2670
  %v2672 = vperm.slane %v2664, %v2671
  %v2673 = vrot.slane %v2636, 4
  %v2674 = vsel %vm573, %v2673, %v2624
  %v2675 = vrot.slane %v2624, 4
  %v2676 = vsel %vm573, %v2636, %v2675
  %v2678 = vunpack.c.l.s4 1934713408
  %v2679 = vunpack.c.0.s8 %v2678
  %v2680 = vperm.slane %v2674, %v2679
  %v2682 = vunpack.c.l.s4 1934713408
  %v2683 = vunpack.c.0.s8 %v2682
  %v2684 = vperm.slane %v2676, %v2683
  %v2685 = vrot.slane %v2668, 4
  %v2686 = vsel %vm573, %v2685, %v2644
  %v2687 = vrot.slane %v2644, 4
  %v2688 = vsel %vm573, %v2668, %v2687
  %v2689 = vrot.slane %v2672, 4
  %v2690 = vsel %vm573, %v2689, %v2648
  %v2691 = vrot.slane %v2648, 4
  %v2692 = vsel %vm573, %v2672, %v2691
  %v2693 = vrot.slane %v2680, 4
  %v2694 = vsel %vm573, %v2693, %v2656
  %v2695 = vrot.slane %v2656, 4
  %v2696 = vsel %vm573, %v2680, %v2695
  %v2697 = vrot.slane %v2684, 4
  %v2698 = vsel %vm573, %v2697, %v2660
  %v2699 = vrot.slane %v2660, 4
  %v2700 = vsel %vm573, %v2684, %v2699
  %v2701 = vrot.slane %v1850, 4
  %v2702 = vsel %vm573, %v2701, %v1846
  %v2703 = vrot.slane %v1846, 4
  %v2704 = vsel %vm573, %v1850, %v2703
  %v2706 = vunpack.c.l.s4 1983009808
  %v2707 = vunpack.c.0.s8 %v2706
  %v2708 = vperm.slane %v2702, %v2707
  %v2710 = vunpack.c.l.s4 1983009808
  %v2711 = vunpack.c.0.s8 %v2710
  %v2712 = vperm.slane %v2704, %v2711
  %v2713 = vrot.slane %v1852, 4
  %v2714 = vsel %vm573, %v2713, %v1848
  %v2715 = vrot.slane %v1848, 4
  %v2716 = vsel %vm573, %v1852, %v2715
  %v2718 = vunpack.c.l.s4 1983009808
  %v2719 = vunpack.c.0.s8 %v2718
  %v2720 = vperm.slane %v2714, %v2719
  %v2722 = vunpack.c.l.s4 1983009808
  %v2723 = vunpack.c.0.s8 %v2722
  %v2724 = vperm.slane %v2716, %v2723
  %v2725 = vrot.slane %v1858, 4
  %v2726 = vsel %vm573, %v2725, %v1854
  %v2727 = vrot.slane %v1854, 4
  %v2728 = vsel %vm573, %v1858, %v2727
  %v2730 = vunpack.c.l.s4 1983009808
  %v2731 = vunpack.c.0.s8 %v2730
  %v2732 = vperm.slane %v2726, %v2731
  %v2734 = vunpack.c.l.s4 1983009808
  %v2735 = vunpack.c.0.s8 %v2734
  %v2736 = vperm.slane %v2728, %v2735
  %v2737 = vrot.slane %v1860, 4
  %v2738 = vsel %vm573, %v2737, %v1856
  %v2739 = vrot.slane %v1856, 4
  %v2740 = vsel %vm573, %v1860, %v2739
  %v2742 = vunpack.c.l.s4 1983009808
  %v2743 = vunpack.c.0.s8 %v2742
  %v2744 = vperm.slane %v2738, %v2743
  %v2746 = vunpack.c.l.s4 1983009808
  %v2747 = vunpack.c.0.s8 %v2746
  %v2748 = vperm.slane %v2740, %v2747
  %v2749 = vrot.slane %v2720, 4
  %v2750 = vsel %vm573, %v2749, %v2708
  %v2751 = vrot.slane %v2708, 4
  %v2752 = vsel %vm573, %v2720, %v2751
  %v2754 = vunpack.c.l.s4 1934713408
  %v2755 = vunpack.c.0.s8 %v2754
  %v2756 = vperm.slane %v2750, %v2755
  %v2758 = vunpack.c.l.s4 1934713408
  %v2759 = vunpack.c.0.s8 %v2758
  %v2760 = vperm.slane %v2752, %v2759
  %v2761 = vrot.slane %v2724, 4
  %v2762 = vsel %vm573, %v2761, %v2712
  %v2763 = vrot.slane %v2712, 4
  %v2764 = vsel %vm573, %v2724, %v2763
  %v2766 = vunpack.c.l.s4 1934713408
  %v2767 = vunpack.c.0.s8 %v2766
  %v2768 = vperm.slane %v2762, %v2767
  %v2770 = vunpack.c.l.s4 1934713408
  %v2771 = vunpack.c.0.s8 %v2770
  %v2772 = vperm.slane %v2764, %v2771
  %v2773 = vrot.slane %v2744, 4
  %v2774 = vsel %vm573, %v2773, %v2732
  %v2775 = vrot.slane %v2732, 4
  %v2776 = vsel %vm573, %v2744, %v2775
  %v2778 = vunpack.c.l.s4 1934713408
  %v2779 = vunpack.c.0.s8 %v2778
  %v2780 = vperm.slane %v2774, %v2779
  %v2782 = vunpack.c.l.s4 1934713408
  %v2783 = vunpack.c.0.s8 %v2782
  %v2784 = vperm.slane %v2776, %v2783
  %v2785 = vrot.slane %v2748, 4
  %v2786 = vsel %vm573, %v2785, %v2736
  %v2787 = vrot.slane %v2736, 4
  %v2788 = vsel %vm573, %v2748, %v2787
  %v2790 = vunpack.c.l.s4 1934713408
  %v2791 = vunpack.c.0.s8 %v2790
  %v2792 = vperm.slane %v2786, %v2791
  %v2794 = vunpack.c.l.s4 1934713408
  %v2795 = vunpack.c.0.s8 %v2794
  %v2796 = vperm.slane %v2788, %v2795
  %v2797 = vrot.slane %v2780, 4
  %v2798 = vsel %vm573, %v2797, %v2756
  %v2799 = vrot.slane %v2756, 4
  %v2800 = vsel %vm573, %v2780, %v2799
  %v2801 = vrot.slane %v2784, 4
  %v2802 = vsel %vm573, %v2801, %v2760
  %v2803 = vrot.slane %v2760, 4
  %v2804 = vsel %vm573, %v2784, %v2803
  %v2805 = vrot.slane %v2792, 4
  %v2806 = vsel %vm573, %v2805, %v2768
  %v2807 = vrot.slane %v2768, 4
  %v2808 = vsel %vm573, %v2792, %v2807
  %v2809 = vrot.slane %v2796, 4
  %v2810 = vsel %vm573, %v2809, %v2772
  %v2811 = vrot.slane %v2772, 4
  %v2812 = vsel %vm573, %v2796, %v2811
  %v2813 = vsel %vm573, %v735, %v716
  %v2815 = vunpack.c.l.s4 1983009808
  %v2816 = vunpack.c.0.s8 %v2815
  %v2817 = vperm.slane %v2813, %v2816
  %v2818 = vrot.slane %v736, 4
  %v2819 = vsel %vm573, %v2818, %v734
  %v2821 = vunpack.c.l.s4 1983009808
  %v2822 = vunpack.c.0.s8 %v2821
  %v2823 = vperm.slane %v2819, %v2822
  %v2824 = vsel %vm573, %v739, %v728
  %v2826 = vunpack.c.l.s4 1983009808
  %v2827 = vunpack.c.0.s8 %v2826
  %v2828 = vperm.slane %v2824, %v2827
  %v2829 = vrot.slane %v740, 4
  %v2830 = vsel %vm573, %v2829, %v738
  %v2832 = vunpack.c.l.s4 1983009808
  %v2833 = vunpack.c.0.s8 %v2832
  %v2834 = vperm.slane %v2830, %v2833
  %v2835 = vrot.slane %v2823, 4
  %v2836 = vsel %vm573, %v2835, %v2817
  %v2837 = vrot.slane %v2817, 4
  %v2838 = vsel %vm573, %v2823, %v2837
  %v2840 = vunpack.c.l.s4 1934713408
  %v2841 = vunpack.c.0.s8 %v2840
  %v2842 = vperm.slane %v2836, %v2841
  %v2844 = vunpack.c.l.s4 1934713408
  %v2845 = vunpack.c.0.s8 %v2844
  %v2846 = vperm.slane %v2838, %v2845
  %v2847 = vrot.slane %v2834, 4
  %v2848 = vsel %vm573, %v2847, %v2828
  %v2849 = vrot.slane %v2828, 4
  %v2850 = vsel %vm573, %v2834, %v2849
  %v2852 = vunpack.c.l.s4 1934713408
  %v2853 = vunpack.c.0.s8 %v2852
  %v2854 = vperm.slane %v2848, %v2853
  %v2856 = vunpack.c.l.s4 1934713408
  %v2857 = vunpack.c.0.s8 %v2856
  %v2858 = vperm.slane %v2850, %v2857
  %v2859 = vrot.slane %v2854, 4
  %v2860 = vsel %vm573, %v2859, %v2842
  %v2861 = vrot.slane %v2842, 4
  %v2862 = vsel %vm573, %v2854, %v2861
  %v2863 = vrot.slane %v2858, 4
  %v2864 = vsel %vm573, %v2863, %v2846
  %v2865 = vrot.slane %v2846, 4
  %v2866 = vsel %vm573, %v2858, %v2865
  %v2867 = vsel %vm573, %v903, %v884
  %v2869 = vunpack.c.l.s4 1983009808
  %v2870 = vunpack.c.0.s8 %v2869
  %v2871 = vperm.slane %v2867, %v2870
  %v2872 = vrot.slane %v904, 4
  %v2873 = vsel %vm573, %v2872, %v902
  %v2875 = vunpack.c.l.s4 1983009808
  %v2876 = vunpack.c.0.s8 %v2875
  %v2877 = vperm.slane %v2873, %v2876
  %v2878 = vsel %vm573, %v907, %v896
  %v2880 = vunpack.c.l.s4 1983009808
  %v2881 = vunpack.c.0.s8 %v2880
  %v2882 = vperm.slane %v2878, %v2881
  %v2883 = vrot.slane %v908, 4
  %v2884 = vsel %vm573, %v2883, %v906
  %v2886 = vunpack.c.l.s4 1983009808
  %v2887 = vunpack.c.0.s8 %v2886
  %v2888 = vperm.slane %v2884, %v2887
  %v2889 = vrot.slane %v2877, 4
  %v2890 = vsel %vm573, %v2889, %v2871
  %v2891 = vrot.slane %v2871, 4
  %v2892 = vsel %vm573, %v2877, %v2891
  %v2894 = vunpack.c.l.s4 1934713408
  %v2895 = vunpack.c.0.s8 %v2894
  %v2896 = vperm.slane %v2890, %v2895
  %v2898 = vunpack.c.l.s4 1934713408
  %v2899 = vunpack.c.0.s8 %v2898
  %v2900 = vperm.slane %v2892, %v2899
  %v2901 = vrot.slane %v2888, 4
  %v2902 = vsel %vm573, %v2901, %v2882
  %v2903 = vrot.slane %v2882, 4
  %v2904 = vsel %vm573, %v2888, %v2903
  %v2906 = vunpack.c.l.s4 1934713408
  %v2907 = vunpack.c.0.s8 %v2906
  %v2908 = vperm.slane %v2902, %v2907
  %v2910 = vunpack.c.l.s4 1934713408
  %v2911 = vunpack.c.0.s8 %v2910
  %v2912 = vperm.slane %v2904, %v2911
  %v2913 = vrot.slane %v2908, 4
  %v2914 = vsel %vm573, %v2913, %v2896
  %v2915 = vrot.slane %v2896, 4
  %v2916 = vsel %vm573, %v2908, %v2915
  %v2917 = vrot.slane %v2912, 4
  %v2918 = vsel %vm573, %v2917, %v2900
  %v2919 = vrot.slane %v2900, 4
  %v2920 = vsel %vm573, %v2912, %v2919
  %v2921 = vsel %vm573, %v1071, %v1052
  %v2923 = vunpack.c.l.s4 1983009808
  %v2924 = vunpack.c.0.s8 %v2923
  %v2925 = vperm.slane %v2921, %v2924
  %v2926 = vrot.slane %v1072, 4
  %v2927 = vsel %vm573, %v2926, %v1070
  %v2929 = vunpack.c.l.s4 1983009808
  %v2930 = vunpack.c.0.s8 %v2929
  %v2931 = vperm.slane %v2927, %v2930
  %v2932 = vsel %vm573, %v1075, %v1064
  %v2934 = vunpack.c.l.s4 1983009808
  %v2935 = vunpack.c.0.s8 %v2934
  %v2936 = vperm.slane %v2932, %v2935
  %v2937 = vrot.slane %v1076, 4
  %v2938 = vsel %vm573, %v2937, %v1074
  %v2940 = vunpack.c.l.s4 1983009808
  %v2941 = vunpack.c.0.s8 %v2940
  %v2942 = vperm.slane %v2938, %v2941
  %v2943 = vrot.slane %v2931, 4
  %v2944 = vsel %vm573, %v2943, %v2925
  %v2945 = vrot.slane %v2925, 4
  %v2946 = vsel %vm573, %v2931, %v2945
  %v2948 = vunpack.c.l.s4 1934713408
  %v2949 = vunpack.c.0.s8 %v2948
  %v2950 = vperm.slane %v2944, %v2949
  %v2952 = vunpack.c.l.s4 1934713408
  %v2953 = vunpack.c.0.s8 %v2952
  %v2954 = vperm.slane %v2946, %v2953
  %v2955 = vrot.slane %v2942, 4
  %v2956 = vsel %vm573, %v2955, %v2936
  %v2957 = vrot.slane %v2936, 4
  %v2958 = vsel %vm573, %v2942, %v2957
  %v2960 = vunpack.c.l.s4 1934713408
  %v2961 = vunpack.c.0.s8 %v2960
  %v2962 = vperm.slane %v2956, %v2961
  %v2964 = vunpack.c.l.s4 1934713408
  %v2965 = vunpack.c.0.s8 %v2964
  %v2966 = vperm.slane %v2958, %v2965
  %v2967 = vrot.slane %v2962, 4
  %v2968 = vsel %vm573, %v2967, %v2950
  %v2969 = vrot.slane %v2950, 4
  %v2970 = vsel %vm573, %v2962, %v2969
  %v2971 = vrot.slane %v2966, 4
  %v2972 = vsel %vm573, %v2971, %v2954
  %v2973 = vrot.slane %v2954, 4
  %v2974 = vsel %vm573, %v2966, %v2973
  %v2975 = vsel %vm573, %v1239, %v1220
  %v2977 = vunpack.c.l.s4 1983009808
  %v2978 = vunpack.c.0.s8 %v2977
  %v2979 = vperm.slane %v2975, %v2978
  %v2980 = vrot.slane %v1240, 4
  %v2981 = vsel %vm573, %v2980, %v1238
  %v2983 = vunpack.c.l.s4 1983009808
  %v2984 = vunpack.c.0.s8 %v2983
  %v2985 = vperm.slane %v2981, %v2984
  %v2986 = vsel %vm573, %v1243, %v1232
  %v2988 = vunpack.c.l.s4 1983009808
  %v2989 = vunpack.c.0.s8 %v2988
  %v2990 = vperm.slane %v2986, %v2989
  %v2991 = vrot.slane %v1244, 4
  %v2992 = vsel %vm573, %v2991, %v1242
  %v2994 = vunpack.c.l.s4 1983009808
  %v2995 = vunpack.c.0.s8 %v2994
  %v2996 = vperm.slane %v2992, %v2995
  %v2997 = vrot.slane %v2985, 4
  %v2998 = vsel %vm573, %v2997, %v2979
  %v2999 = vrot.slane %v2979, 4
  %v3000 = vsel %vm573, %v2985, %v2999
  %v3002 = vunpack.c.l.s4 1934713408
  %v3003 = vunpack.c.0.s8 %v3002
  %v3004 = vperm.slane %v2998, %v3003
  %v3006 = vunpack.c.l.s4 1934713408
  %v3007 = vunpack.c.0.s8 %v3006
  %v3008 = vperm.slane %v3000, %v3007
  %v3009 = vrot.slane %v2996, 4
  %v3010 = vsel %vm573, %v3009, %v2990
  %v3011 = vrot.slane %v2990, 4
  %v3012 = vsel %vm573, %v2996, %v3011
  %v3014 = vunpack.c.l.s4 1934713408
  %v3015 = vunpack.c.0.s8 %v3014
  %v3016 = vperm.slane %v3010, %v3015
  %v3018 = vunpack.c.l.s4 1934713408
  %v3019 = vunpack.c.0.s8 %v3018
  %v3020 = vperm.slane %v3012, %v3019
  %v3021 = vrot.slane %v3016, 4
  %v3022 = vsel %vm573, %v3021, %v3004
  %v3023 = vrot.slane %v3004, 4
  %v3024 = vsel %vm573, %v3016, %v3023
  %v3025 = vrot.slane %v3020, 4
  %v3026 = vsel %vm573, %v3025, %v3008
  %v3027 = vrot.slane %v3008, 4
  %v3028 = vsel %vm573, %v3020, %v3027
  %v3029 = vsel %vm573, %v1407, %v1388
  %v3031 = vunpack.c.l.s4 1983009808
  %v3032 = vunpack.c.0.s8 %v3031
  %v3033 = vperm.slane %v3029, %v3032
  %v3034 = vrot.slane %v1408, 4
  %v3035 = vsel %vm573, %v3034, %v1406
  %v3037 = vunpack.c.l.s4 1983009808
  %v3038 = vunpack.c.0.s8 %v3037
  %v3039 = vperm.slane %v3035, %v3038
  %v3040 = vsel %vm573, %v1411, %v1400
  %v3042 = vunpack.c.l.s4 1983009808
  %v3043 = vunpack.c.0.s8 %v3042
  %v3044 = vperm.slane %v3040, %v3043
  %v3045 = vrot.slane %v1412, 4
  %v3046 = vsel %vm573, %v3045, %v1410
  %v3048 = vunpack.c.l.s4 1983009808
  %v3049 = vunpack.c.0.s8 %v3048
  %v3050 = vperm.slane %v3046, %v3049
  %v3051 = vrot.slane %v3039, 4
  %v3052 = vsel %vm573, %v3051, %v3033
  %v3053 = vrot.slane %v3033, 4
  %v3054 = vsel %vm573, %v3039, %v3053
  %v3056 = vunpack.c.l.s4 1934713408
  %v3057 = vunpack.c.0.s8 %v3056
  %v3058 = vperm.slane %v3052, %v3057
  %v3060 = vunpack.c.l.s4 1934713408
  %v3061 = vunpack.c.0.s8 %v3060
  %v3062 = vperm.slane %v3054, %v3061
  %v3063 = vrot.slane %v3050, 4
  %v3064 = vsel %vm573, %v3063, %v3044
  %v3065 = vrot.slane %v3044, 4
  %v3066 = vsel %vm573, %v3050, %v3065
  %v3068 = vunpack.c.l.s4 1934713408
  %v3069 = vunpack.c.0.s8 %v3068
  %v3070 = vperm.slane %v3064, %v3069
  %v3072 = vunpack.c.l.s4 1934713408
  %v3073 = vunpack.c.0.s8 %v3072
  %v3074 = vperm.slane %v3066, %v3073
  %v3075 = vrot.slane %v3070, 4
  %v3076 = vsel %vm573, %v3075, %v3058
  %v3077 = vrot.slane %v3058, 4
  %v3078 = vsel %vm573, %v3070, %v3077
  %v3079 = vrot.slane %v3074, 4
  %v3080 = vsel %vm573, %v3079, %v3062
  %v3081 = vrot.slane %v3062, 4
  %v3082 = vsel %vm573, %v3074, %v3081
  %v3083 = vsel %vm573, %v1575, %v1556
  %v3085 = vunpack.c.l.s4 1983009808
  %v3086 = vunpack.c.0.s8 %v3085
  %v3087 = vperm.slane %v3083, %v3086
  %v3088 = vrot.slane %v1576, 4
  %v3089 = vsel %vm573, %v3088, %v1574
  %v3091 = vunpack.c.l.s4 1983009808
  %v3092 = vunpack.c.0.s8 %v3091
  %v3093 = vperm.slane %v3089, %v3092
  %v3094 = vsel %vm573, %v1579, %v1568
  %v3096 = vunpack.c.l.s4 1983009808
  %v3097 = vunpack.c.0.s8 %v3096
  %v3098 = vperm.slane %v3094, %v3097
  %v3099 = vrot.slane %v1580, 4
  %v3100 = vsel %vm573, %v3099, %v1578
  %v3102 = vunpack.c.l.s4 1983009808
  %v3103 = vunpack.c.0.s8 %v3102
  %v3104 = vperm.slane %v3100, %v3103
  %v3105 = vrot.slane %v3093, 4
  %v3106 = vsel %vm573, %v3105, %v3087
  %v3107 = vrot.slane %v3087, 4
  %v3108 = vsel %vm573, %v3093, %v3107
  %v3110 = vunpack.c.l.s4 1934713408
  %v3111 = vunpack.c.0.s8 %v3110
  %v3112 = vperm.slane %v3106, %v3111
  %v3114 = vunpack.c.l.s4 1934713408
  %v3115 = vunpack.c.0.s8 %v3114
  %v3116 = vperm.slane %v3108, %v3115
  %v3117 = vrot.slane %v3104, 4
  %v3118 = vsel %vm573, %v3117, %v3098
  %v3119 = vrot.slane %v3098, 4
  %v3120 = vsel %vm573, %v3104, %v3119
  %v3122 = vunpack.c.l.s4 1934713408
  %v3123 = vunpack.c.0.s8 %v3122
  %v3124 = vperm.slane %v3118, %v3123
  %v3126 = vunpack.c.l.s4 1934713408
  %v3127 = vunpack.c.0.s8 %v3126
  %v3128 = vperm.slane %v3120, %v3127
  %v3129 = vrot.slane %v3124, 4
  %v3130 = vsel %vm573, %v3129, %v3112
  %v3131 = vrot.slane %v3112, 4
  %v3132 = vsel %vm573, %v3124, %v3131
  %v3133 = vrot.slane %v3128, 4
  %v3134 = vsel %vm573, %v3133, %v3116
  %v3135 = vrot.slane %v3116, 4
  %v3136 = vsel %vm573, %v3128, %v3135
  %v3137 = vsel %vm573, %v1743, %v1724
  %v3139 = vunpack.c.l.s4 1983009808
  %v3140 = vunpack.c.0.s8 %v3139
  %v3141 = vperm.slane %v3137, %v3140
  %v3142 = vrot.slane %v1744, 4
  %v3143 = vsel %vm573, %v3142, %v1742
  %v3145 = vunpack.c.l.s4 1983009808
  %v3146 = vunpack.c.0.s8 %v3145
  %v3147 = vperm.slane %v3143, %v3146
  %v3148 = vsel %vm573, %v1747, %v1736
  %v3150 = vunpack.c.l.s4 1983009808
  %v3151 = vunpack.c.0.s8 %v3150
  %v3152 = vperm.slane %v3148, %v3151
  %v3153 = vrot.slane %v1748, 4
  %v3154 = vsel %vm573, %v3153, %v1746
  %v3156 = vunpack.c.l.s4 1983009808
  %v3157 = vunpack.c.0.s8 %v3156
  %v3158 = vperm.slane %v3154, %v3157
  %v3159 = vrot.slane %v3147, 4
  %v3160 = vsel %vm573, %v3159, %v3141
  %v3161 = vrot.slane %v3141, 4
  %v3162 = vsel %vm573, %v3147, %v3161
  %v3164 = vunpack.c.l.s4 1934713408
  %v3165 = vunpack.c.0.s8 %v3164
  %v3166 = vperm.slane %v3160, %v3165
  %v3168 = vunpack.c.l.s4 1934713408
  %v3169 = vunpack.c.0.s8 %v3168
  %v3170 = vperm.slane %v3162, %v3169
  %v3171 = vrot.slane %v3158, 4
  %v3172 = vsel %vm573, %v3171, %v3152
  %v3173 = vrot.slane %v3152, 4
  %v3174 = vsel %vm573, %v3158, %v3173
  %v3176 = vunpack.c.l.s4 1934713408
  %v3177 = vunpack.c.0.s8 %v3176
  %v3178 = vperm.slane %v3172, %v3177
  %v3180 = vunpack.c.l.s4 1934713408
  %v3181 = vunpack.c.0.s8 %v3180
  %v3182 = vperm.slane %v3174, %v3181
  %v3183 = vrot.slane %v3178, 4
  %v3184 = vsel %vm573, %v3183, %v3166
  %v3185 = vrot.slane %v3166, 4
  %v3186 = vsel %vm573, %v3178, %v3185
  %v3187 = vrot.slane %v3182, 4
  %v3188 = vsel %vm573, %v3187, %v3170
  %v3189 = vrot.slane %v3170, 4
  %v3190 = vsel %vm573, %v3182, %v3189
  %v3191 = vsel %vm573, %v1911, %v1892
  %v3193 = vunpack.c.l.s4 1983009808
  %v3194 = vunpack.c.0.s8 %v3193
  %v3195 = vperm.slane %v3191, %v3194
  %v3196 = vrot.slane %v1912, 4
  %v3197 = vsel %vm573, %v3196, %v1910
  %v3199 = vunpack.c.l.s4 1983009808
  %v3200 = vunpack.c.0.s8 %v3199
  %v3201 = vperm.slane %v3197, %v3200
  %v3202 = vsel %vm573, %v1915, %v1904
  %v3204 = vunpack.c.l.s4 1983009808
  %v3205 = vunpack.c.0.s8 %v3204
  %v3206 = vperm.slane %v3202, %v3205
  %v3207 = vrot.slane %v1916, 4
  %v3208 = vsel %vm573, %v3207, %v1914
  %v3210 = vunpack.c.l.s4 1983009808
  %v3211 = vunpack.c.0.s8 %v3210
  %v3212 = vperm.slane %v3208, %v3211
  %v3213 = vrot.slane %v3201, 4
  %v3214 = vsel %vm573, %v3213, %v3195
  %v3215 = vrot.slane %v3195, 4
  %v3216 = vsel %vm573, %v3201, %v3215
  %v3218 = vunpack.c.l.s4 1934713408
  %v3219 = vunpack.c.0.s8 %v3218
  %v3220 = vperm.slane %v3214, %v3219
  %v3222 = vunpack.c.l.s4 1934713408
  %v3223 = vunpack.c.0.s8 %v3222
  %v3224 = vperm.slane %v3216, %v3223
  %v3225 = vrot.slane %v3212, 4
  %v3226 = vsel %vm573, %v3225, %v3206
  %v3227 = vrot.slane %v3206, 4
  %v3228 = vsel %vm573, %v3212, %v3227
  %v3230 = vunpack.c.l.s4 1934713408
  %v3231 = vunpack.c.0.s8 %v3230
  %v3232 = vperm.slane %v3226, %v3231
  %v3234 = vunpack.c.l.s4 1934713408
  %v3235 = vunpack.c.0.s8 %v3234
  %v3236 = vperm.slane %v3228, %v3235
  %v3237 = vrot.slane %v3232, 4
  %v3238 = vsel %vm573, %v3237, %v3220
  %v3239 = vrot.slane %v3220, 4
  %v3240 = vsel %vm573, %v3232, %v3239
  %v3241 = vrot.slane %v3236, 4
  %v3242 = vsel %vm573, %v3241, %v3224
  %v3243 = vrot.slane %v3224, 4
  %v3244 = vsel %vm573, %v3236, %v3243
  %v3245 = vpack.c.bf16 %v2014, %v2014
  %v3246 = vpack.c.bf16 %v2126, %v2126
  %v3247 = vpack.c.bf16 %v2238, %v2238
  %v3248 = vpack.c.bf16 %v2350, %v2350
  %v3249 = vpack.c.bf16 %v2462, %v2462
  %v3250 = vpack.c.bf16 %v2574, %v2574
  %v3251 = vpack.c.bf16 %v2686, %v2686
  %v3252 = vpack.c.bf16 %v2798, %v2798
  %v3253 = vpack.c.bf16 %v2016, %v2016
  %v3254 = vpack.c.bf16 %v2128, %v2128
  %v3255 = vpack.c.bf16 %v2240, %v2240
  %v3256 = vpack.c.bf16 %v2352, %v2352
  %v3257 = vpack.c.bf16 %v2464, %v2464
  %v3258 = vpack.c.bf16 %v2576, %v2576
  %v3259 = vpack.c.bf16 %v2688, %v2688
  %v3260 = vpack.c.bf16 %v2800, %v2800
  %v3261 = vpack.c.bf16 %v2018, %v2018
  %v3262 = vpack.c.bf16 %v2130, %v2130
  %v3263 = vpack.c.bf16 %v2242, %v2242
  %v3264 = vpack.c.bf16 %v2354, %v2354
  %v3265 = vpack.c.bf16 %v2466, %v2466
  %v3266 = vpack.c.bf16 %v2578, %v2578
  %v3267 = vpack.c.bf16 %v2690, %v2690
  %v3268 = vpack.c.bf16 %v2802, %v2802
  %v3269 = vpack.c.bf16 %v2020, %v2020
  %v3270 = vpack.c.bf16 %v2132, %v2132
  %v3271 = vpack.c.bf16 %v2244, %v2244
  %v3272 = vpack.c.bf16 %v2356, %v2356
  %v3273 = vpack.c.bf16 %v2468, %v2468
  %v3274 = vpack.c.bf16 %v2580, %v2580
  %v3275 = vpack.c.bf16 %v2692, %v2692
  %v3276 = vpack.c.bf16 %v2804, %v2804
  %v3277 = vpack.c.bf16 %v2022, %v2022
  %v3278 = vpack.c.bf16 %v2134, %v2134
  %v3279 = vpack.c.bf16 %v2246, %v2246
  %v3280 = vpack.c.bf16 %v2358, %v2358
  %v3281 = vpack.c.bf16 %v2470, %v2470
  %v3282 = vpack.c.bf16 %v2582, %v2582
  %v3283 = vpack.c.bf16 %v2694, %v2694
  %v3284 = vpack.c.bf16 %v2806, %v2806
  %v3285 = vpack.c.bf16 %v2024, %v2024
  %v3286 = vpack.c.bf16 %v2136, %v2136
  %v3287 = vpack.c.bf16 %v2248, %v2248
  %v3288 = vpack.c.bf16 %v2360, %v2360
  %v3289 = vpack.c.bf16 %v2472, %v2472
  %v3290 = vpack.c.bf16 %v2584, %v2584
  %v3291 = vpack.c.bf16 %v2696, %v2696
  %v3292 = vpack.c.bf16 %v2808, %v2808
  %v3293 = vpack.c.bf16 %v2026, %v2026
  %v3294 = vpack.c.bf16 %v2138, %v2138
  %v3295 = vpack.c.bf16 %v2250, %v2250
  %v3296 = vpack.c.bf16 %v2362, %v2362
  %v3297 = vpack.c.bf16 %v2474, %v2474
  %v3298 = vpack.c.bf16 %v2586, %v2586
  %v3299 = vpack.c.bf16 %v2698, %v2698
  %v3300 = vpack.c.bf16 %v2810, %v2810
  %v3301 = vpack.c.bf16 %v2028, %v2028
  %v3302 = vpack.c.bf16 %v2140, %v2140
  %v3303 = vpack.c.bf16 %v2252, %v2252
  %v3304 = vpack.c.bf16 %v2364, %v2364
  %v3305 = vpack.c.bf16 %v2476, %v2476
  %v3306 = vpack.c.bf16 %v2588, %v2588
  %v3307 = vpack.c.bf16 %v2700, %v2700
  %v3308 = vpack.c.bf16 %v2812, %v2812
  %v3309 = vpack.c.bf16 %v2860, %v2860
  %v3310 = vpack.c.bf16 %v2914, %v2914
  %v3311 = vpack.c.bf16 %v2968, %v2968
  %v3312 = vpack.c.bf16 %v3022, %v3022
  %v3313 = vpack.c.bf16 %v3076, %v3076
  %v3314 = vpack.c.bf16 %v3130, %v3130
  %v3315 = vpack.c.bf16 %v3184, %v3184
  %v3316 = vpack.c.bf16 %v3238, %v3238
  %v3317 = vpack.c.bf16 %v2862, %v2862
  %v3318 = vpack.c.bf16 %v2916, %v2916
  %v3319 = vpack.c.bf16 %v2970, %v2970
  %v3320 = vpack.c.bf16 %v3024, %v3024
  %v3321 = vpack.c.bf16 %v3078, %v3078
  %v3322 = vpack.c.bf16 %v3132, %v3132
  %v3323 = vpack.c.bf16 %v3186, %v3186
  %v3324 = vpack.c.bf16 %v3240, %v3240
  %v3325 = vpack.c.bf16 %v2864, %v2864
  %v3326 = vpack.c.bf16 %v2918, %v2918
  %v3327 = vpack.c.bf16 %v2972, %v2972
  %v3328 = vpack.c.bf16 %v3026, %v3026
  %v3329 = vpack.c.bf16 %v3080, %v3080
  %v3330 = vpack.c.bf16 %v3134, %v3134
  %v3331 = vpack.c.bf16 %v3188, %v3188
  %v3332 = vpack.c.bf16 %v3242, %v3242
  %v3333 = vpack.c.bf16 %v2866, %v2866
  %v3334 = vpack.c.bf16 %v2920, %v2920
  %v3335 = vpack.c.bf16 %v2974, %v2974
  %v3336 = vpack.c.bf16 %v3028, %v3028
  %v3337 = vpack.c.bf16 %v3082, %v3082
  %v3338 = vpack.c.bf16 %v3136, %v3136
  %v3339 = vpack.c.bf16 %v3190, %v3190
  %v3340 = vpack.c.bf16 %v3244, %v3244
  %vm3341 = vcmask 64512
  %v3343 = vsel %vm3341, %v3245, 0
  %v3346 = vsel %vm3341, %v3277, 0
  %3348 = vmatpush.bf16.xpose.msra.mxu0 0
  %3349 = vmatpush.bf16.xpose.msra.mxu0 0
  %3350 = vmatpush.bf16.xpose.msra.mxu0 0
  %3351 = vmatpush.bf16.xpose.msra.mxu0 0
  %3352 = vmatpush.bf16.xpose.msra.mxu0 0
  %3353 = vmatpush.bf16.xpose.msra.mxu0 0
  %3354 = vmatpush.bf16.xpose.msra.mxu0 0
  %3355 = vmatpush.bf16.xpose.msra.mxu0 %v3346
  %3356 = vmatmul.bf16.gmra.mxu0 %v3343
  %v3357 = vpop.f32.mrf.mxu0
  %v3358 = vadd.f32 0.0, %v3357
  %v3359 = vpop.f32.mrf.mxu0
  %3360 = vdwg.mxu0
  %v3362 = vsel %vm3341, %v3246, 0
  %v3365 = vsel %vm3341, %v3278, 0
  %3367 = vmatpush.bf16.xpose.msra.mxu0 0
  %3368 = vmatpush.bf16.xpose.msra.mxu0 0
  %3369 = vmatpush.bf16.xpose.msra.mxu0 0
  %3370 = vmatpush.bf16.xpose.msra.mxu0 0
  %3371 = vmatpush.bf16.xpose.msra.mxu0 0
  %3372 = vmatpush.bf16.xpose.msra.mxu0 0
  %3373 = vmatpush.bf16.xpose.msra.mxu0 0
  %3374 = vmatpush.bf16.xpose.msra.mxu0 %v3365
  %3375 = vmatmul.bf16.gmra.mxu0 %v3362
  %v3376 = vpop.f32.mrf.mxu0
  %v3377 = vadd.f32 0.0, %v3376
  %v3378 = vpop.f32.mrf.mxu0
  %3379 = vdwg.mxu0
  %v3381 = vsel %vm3341, %v3247, 0
  %v3384 = vsel %vm3341, %v3279, 0
  %3386 = vmatpush.bf16.xpose.msra.mxu0 0
  %3387 = vmatpush.bf16.xpose.msra.mxu0 0
  %3388 = vmatpush.bf16.xpose.msra.mxu0 0
  %3389 = vmatpush.bf16.xpose.msra.mxu0 0
  %3390 = vmatpush.bf16.xpose.msra.mxu0 0
  %3391 = vmatpush.bf16.xpose.msra.mxu0 0
  %3392 = vmatpush.bf16.xpose.msra.mxu0 0
  %3393 = vmatpush.bf16.xpose.msra.mxu0 %v3384
  %3394 = vmatmul.bf16.gmra.mxu0 %v3381
  %v3395 = vpop.f32.mrf.mxu0
  %v3396 = vadd.f32 0.0, %v3395
  %v3397 = vpop.f32.mrf.mxu0
  %3398 = vdwg.mxu0
  %v3400 = vsel %vm3341, %v3248, 0
  %v3403 = vsel %vm3341, %v3280, 0
  %3405 = vmatpush.bf16.xpose.msra.mxu0 0
  %3406 = vmatpush.bf16.xpose.msra.mxu0 0
  %3407 = vmatpush.bf16.xpose.msra.mxu0 0
  %3408 = vmatpush.bf16.xpose.msra.mxu0 0
  %3409 = vmatpush.bf16.xpose.msra.mxu0 0
  %3410 = vmatpush.bf16.xpose.msra.mxu0 0
  %3411 = vmatpush.bf16.xpose.msra.mxu0 0
  %3412 = vmatpush.bf16.xpose.msra.mxu0 %v3403
  %3413 = vmatmul.bf16.gmra.mxu0 %v3400
  %v3414 = vpop.f32.mrf.mxu0
  %v3415 = vadd.f32 0.0, %v3414
  %v3416 = vpop.f32.mrf.mxu0
  %3417 = vdwg.mxu0
  %v3419 = vsel %vm3341, %v3249, 0
  %v3422 = vsel %vm3341, %v3281, 0
  %3424 = vmatpush.bf16.xpose.msra.mxu0 0
  %3425 = vmatpush.bf16.xpose.msra.mxu0 0
  %3426 = vmatpush.bf16.xpose.msra.mxu0 0
  %3427 = vmatpush.bf16.xpose.msra.mxu0 0
  %3428 = vmatpush.bf16.xpose.msra.mxu0 0
  %3429 = vmatpush.bf16.xpose.msra.mxu0 0
  %3430 = vmatpush.bf16.xpose.msra.mxu0 0
  %3431 = vmatpush.bf16.xpose.msra.mxu0 %v3422
  %3432 = vmatmul.bf16.gmra.mxu0 %v3419
  %v3433 = vpop.f32.mrf.mxu0
  %v3434 = vadd.f32 0.0, %v3433
  %v3435 = vpop.f32.mrf.mxu0
  %3436 = vdwg.mxu0
  %v3438 = vsel %vm3341, %v3250, 0
  %v3441 = vsel %vm3341, %v3282, 0
  %3443 = vmatpush.bf16.xpose.msra.mxu0 0
  %3444 = vmatpush.bf16.xpose.msra.mxu0 0
  %3445 = vmatpush.bf16.xpose.msra.mxu0 0
  %3446 = vmatpush.bf16.xpose.msra.mxu0 0
  %3447 = vmatpush.bf16.xpose.msra.mxu0 0
  %3448 = vmatpush.bf16.xpose.msra.mxu0 0
  %3449 = vmatpush.bf16.xpose.msra.mxu0 0
  %3450 = vmatpush.bf16.xpose.msra.mxu0 %v3441
  %3451 = vmatmul.bf16.gmra.mxu0 %v3438
  %v3452 = vpop.f32.mrf.mxu0
  %v3453 = vadd.f32 0.0, %v3452
  %v3454 = vpop.f32.mrf.mxu0
  %3455 = vdwg.mxu0
  %v3457 = vsel %vm3341, %v3251, 0
  %v3460 = vsel %vm3341, %v3283, 0
  %3462 = vmatpush.bf16.xpose.msra.mxu0 0
  %3463 = vmatpush.bf16.xpose.msra.mxu0 0
  %3464 = vmatpush.bf16.xpose.msra.mxu0 0
  %3465 = vmatpush.bf16.xpose.msra.mxu0 0
  %3466 = vmatpush.bf16.xpose.msra.mxu0 0
  %3467 = vmatpush.bf16.xpose.msra.mxu0 0
  %3468 = vmatpush.bf16.xpose.msra.mxu0 0
  %3469 = vmatpush.bf16.xpose.msra.mxu0 %v3460
  %3470 = vmatmul.bf16.gmra.mxu0 %v3457
  %v3471 = vpop.f32.mrf.mxu0
  %v3472 = vadd.f32 0.0, %v3471
  %v3473 = vpop.f32.mrf.mxu0
  %3474 = vdwg.mxu0
  %v3476 = vsel %vm3341, %v3252, 0
  %v3479 = vsel %vm3341, %v3284, 0
  %3481 = vmatpush.bf16.xpose.msra.mxu0 0
  %3482 = vmatpush.bf16.xpose.msra.mxu0 0
  %3483 = vmatpush.bf16.xpose.msra.mxu0 0
  %3484 = vmatpush.bf16.xpose.msra.mxu0 0
  %3485 = vmatpush.bf16.xpose.msra.mxu0 0
  %3486 = vmatpush.bf16.xpose.msra.mxu0 0
  %3487 = vmatpush.bf16.xpose.msra.mxu0 0
  %3488 = vmatpush.bf16.xpose.msra.mxu0 %v3479
  %3489 = vmatmul.bf16.gmra.mxu0 %v3476
  %v3490 = vpop.f32.mrf.mxu0
  %v3491 = vadd.f32 0.0, %v3490
  %v3492 = vpop.f32.mrf.mxu0
  %3493 = vdwg.mxu0
  %v3495 = vsel %vm3341, %v3253, 0
  %v3498 = vsel %vm3341, %v3285, 0
  %3500 = vmatpush.bf16.xpose.msra.mxu0 0
  %3501 = vmatpush.bf16.xpose.msra.mxu0 0
  %3502 = vmatpush.bf16.xpose.msra.mxu0 0
  %3503 = vmatpush.bf16.xpose.msra.mxu0 0
  %3504 = vmatpush.bf16.xpose.msra.mxu0 0
  %3505 = vmatpush.bf16.xpose.msra.mxu0 0
  %3506 = vmatpush.bf16.xpose.msra.mxu0 0
  %3507 = vmatpush.bf16.xpose.msra.mxu0 %v3498
  %3508 = vmatmul.bf16.gmra.mxu0 %v3495
  %v3509 = vpop.f32.mrf.mxu0
  %v3510 = vadd.f32 0.0, %v3509
  %v3511 = vpop.f32.mrf.mxu0
  %3512 = vdwg.mxu0
  %v3514 = vsel %vm3341, %v3254, 0
  %v3517 = vsel %vm3341, %v3286, 0
  %3519 = vmatpush.bf16.xpose.msra.mxu0 0
  %3520 = vmatpush.bf16.xpose.msra.mxu0 0
  %3521 = vmatpush.bf16.xpose.msra.mxu0 0
  %3522 = vmatpush.bf16.xpose.msra.mxu0 0
  %3523 = vmatpush.bf16.xpose.msra.mxu0 0
  %3524 = vmatpush.bf16.xpose.msra.mxu0 0
  %3525 = vmatpush.bf16.xpose.msra.mxu0 0
  %3526 = vmatpush.bf16.xpose.msra.mxu0 %v3517
  %3527 = vmatmul.bf16.gmra.mxu0 %v3514
  %v3528 = vpop.f32.mrf.mxu0
  %v3529 = vadd.f32 0.0, %v3528
  %v3530 = vpop.f32.mrf.mxu0
  %3531 = vdwg.mxu0
  %v3533 = vsel %vm3341, %v3255, 0
  %v3536 = vsel %vm3341, %v3287, 0
  %3538 = vmatpush.bf16.xpose.msra.mxu0 0
  %3539 = vmatpush.bf16.xpose.msra.mxu0 0
  %3540 = vmatpush.bf16.xpose.msra.mxu0 0
  %3541 = vmatpush.bf16.xpose.msra.mxu0 0
  %3542 = vmatpush.bf16.xpose.msra.mxu0 0
  %3543 = vmatpush.bf16.xpose.msra.mxu0 0
  %3544 = vmatpush.bf16.xpose.msra.mxu0 0
  %3545 = vmatpush.bf16.xpose.msra.mxu0 %v3536
  %3546 = vmatmul.bf16.gmra.mxu0 %v3533
  %v3547 = vpop.f32.mrf.mxu0
  %v3548 = vadd.f32 0.0, %v3547
  %v3549 = vpop.f32.mrf.mxu0
  %3550 = vdwg.mxu0
  %v3552 = vsel %vm3341, %v3256, 0
  %v3555 = vsel %vm3341, %v3288, 0
  %3557 = vmatpush.bf16.xpose.msra.mxu0 0
  %3558 = vmatpush.bf16.xpose.msra.mxu0 0
  %3559 = vmatpush.bf16.xpose.msra.mxu0 0
  %3560 = vmatpush.bf16.xpose.msra.mxu0 0
  %3561 = vmatpush.bf16.xpose.msra.mxu0 0
  %3562 = vmatpush.bf16.xpose.msra.mxu0 0
  %3563 = vmatpush.bf16.xpose.msra.mxu0 0
  %3564 = vmatpush.bf16.xpose.msra.mxu0 %v3555
  %3565 = vmatmul.bf16.gmra.mxu0 %v3552
  %v3566 = vpop.f32.mrf.mxu0
  %v3567 = vadd.f32 0.0, %v3566
  %v3568 = vpop.f32.mrf.mxu0
  %3569 = vdwg.mxu0
  %v3571 = vsel %vm3341, %v3257, 0
  %v3574 = vsel %vm3341, %v3289, 0
  %3576 = vmatpush.bf16.xpose.msra.mxu0 0
  %3577 = vmatpush.bf16.xpose.msra.mxu0 0
  %3578 = vmatpush.bf16.xpose.msra.mxu0 0
  %3579 = vmatpush.bf16.xpose.msra.mxu0 0
  %3580 = vmatpush.bf16.xpose.msra.mxu0 0
  %3581 = vmatpush.bf16.xpose.msra.mxu0 0
  %3582 = vmatpush.bf16.xpose.msra.mxu0 0
  %3583 = vmatpush.bf16.xpose.msra.mxu0 %v3574
  %3584 = vmatmul.bf16.gmra.mxu0 %v3571
  %v3585 = vpop.f32.mrf.mxu0
  %v3586 = vadd.f32 0.0, %v3585
  %v3587 = vpop.f32.mrf.mxu0
  %3588 = vdwg.mxu0
  %v3590 = vsel %vm3341, %v3258, 0
  %v3593 = vsel %vm3341, %v3290, 0
  %3595 = vmatpush.bf16.xpose.msra.mxu0 0
  %3596 = vmatpush.bf16.xpose.msra.mxu0 0
  %3597 = vmatpush.bf16.xpose.msra.mxu0 0
  %3598 = vmatpush.bf16.xpose.msra.mxu0 0
  %3599 = vmatpush.bf16.xpose.msra.mxu0 0
  %3600 = vmatpush.bf16.xpose.msra.mxu0 0
  %3601 = vmatpush.bf16.xpose.msra.mxu0 0
  %3602 = vmatpush.bf16.xpose.msra.mxu0 %v3593
  %3603 = vmatmul.bf16.gmra.mxu0 %v3590
  %v3604 = vpop.f32.mrf.mxu0
  %v3605 = vadd.f32 0.0, %v3604
  %v3606 = vpop.f32.mrf.mxu0
  %3607 = vdwg.mxu0
  %v3609 = vsel %vm3341, %v3259, 0
  %v3612 = vsel %vm3341, %v3291, 0
  %3614 = vmatpush.bf16.xpose.msra.mxu0 0
  %3615 = vmatpush.bf16.xpose.msra.mxu0 0
  %3616 = vmatpush.bf16.xpose.msra.mxu0 0
  %3617 = vmatpush.bf16.xpose.msra.mxu0 0
  %3618 = vmatpush.bf16.xpose.msra.mxu0 0
  %3619 = vmatpush.bf16.xpose.msra.mxu0 0
  %3620 = vmatpush.bf16.xpose.msra.mxu0 0
  %3621 = vmatpush.bf16.xpose.msra.mxu0 %v3612
  %3622 = vmatmul.bf16.gmra.mxu0 %v3609
  %v3623 = vpop.f32.mrf.mxu0
  %v3624 = vadd.f32 0.0, %v3623
  %v3625 = vpop.f32.mrf.mxu0
  %3626 = vdwg.mxu0
  %v3628 = vsel %vm3341, %v3260, 0
  %v3631 = vsel %vm3341, %v3292, 0
  %3633 = vmatpush.bf16.xpose.msra.mxu0 0
  %3634 = vmatpush.bf16.xpose.msra.mxu0 0
  %3635 = vmatpush.bf16.xpose.msra.mxu0 0
  %3636 = vmatpush.bf16.xpose.msra.mxu0 0
  %3637 = vmatpush.bf16.xpose.msra.mxu0 0
  %3638 = vmatpush.bf16.xpose.msra.mxu0 0
  %3639 = vmatpush.bf16.xpose.msra.mxu0 0
  %3640 = vmatpush.bf16.xpose.msra.mxu0 %v3631
  %3641 = vmatmul.bf16.gmra.mxu0 %v3628
  %v3642 = vpop.f32.mrf.mxu0
  %v3643 = vadd.f32 0.0, %v3642
  %v3644 = vpop.f32.mrf.mxu0
  %3645 = vdwg.mxu0
  %v3647 = vsel %vm3341, %v3261, 0
  %v3650 = vsel %vm3341, %v3293, 0
  %3652 = vmatpush.bf16.xpose.msra.mxu0 0
  %3653 = vmatpush.bf16.xpose.msra.mxu0 0
  %3654 = vmatpush.bf16.xpose.msra.mxu0 0
  %3655 = vmatpush.bf16.xpose.msra.mxu0 0
  %3656 = vmatpush.bf16.xpose.msra.mxu0 0
  %3657 = vmatpush.bf16.xpose.msra.mxu0 0
  %3658 = vmatpush.bf16.xpose.msra.mxu0 0
  %3659 = vmatpush.bf16.xpose.msra.mxu0 %v3650
  %3660 = vmatmul.bf16.gmra.mxu0 %v3647
  %v3661 = vpop.f32.mrf.mxu0
  %v3662 = vadd.f32 0.0, %v3661
  %v3663 = vpop.f32.mrf.mxu0
  %3664 = vdwg.mxu0
  %v3666 = vsel %vm3341, %v3262, 0
  %v3669 = vsel %vm3341, %v3294, 0
  %3671 = vmatpush.bf16.xpose.msra.mxu0 0
  %3672 = vmatpush.bf16.xpose.msra.mxu0 0
  %3673 = vmatpush.bf16.xpose.msra.mxu0 0
  %3674 = vmatpush.bf16.xpose.msra.mxu0 0
  %3675 = vmatpush.bf16.xpose.msra.mxu0 0
  %3676 = vmatpush.bf16.xpose.msra.mxu0 0
  %3677 = vmatpush.bf16.xpose.msra.mxu0 0
  %3678 = vmatpush.bf16.xpose.msra.mxu0 %v3669
  %3679 = vmatmul.bf16.gmra.mxu0 %v3666
  %v3680 = vpop.f32.mrf.mxu0
  %v3681 = vadd.f32 0.0, %v3680
  %v3682 = vpop.f32.mrf.mxu0
  %3683 = vdwg.mxu0
  %v3685 = vsel %vm3341, %v3263, 0
  %v3688 = vsel %vm3341, %v3295, 0
  %3690 = vmatpush.bf16.xpose.msra.mxu0 0
  %3691 = vmatpush.bf16.xpose.msra.mxu0 0
  %3692 = vmatpush.bf16.xpose.msra.mxu0 0
  %3693 = vmatpush.bf16.xpose.msra.mxu0 0
  %3694 = vmatpush.bf16.xpose.msra.mxu0 0
  %3695 = vmatpush.bf16.xpose.msra.mxu0 0
  %3696 = vmatpush.bf16.xpose.msra.mxu0 0
  %3697 = vmatpush.bf16.xpose.msra.mxu0 %v3688
  %3698 = vmatmul.bf16.gmra.mxu0 %v3685
  %v3699 = vpop.f32.mrf.mxu0
  %v3700 = vadd.f32 0.0, %v3699
  %v3701 = vpop.f32.mrf.mxu0
  %3702 = vdwg.mxu0
  %v3704 = vsel %vm3341, %v3264, 0
  %v3707 = vsel %vm3341, %v3296, 0
  %3709 = vmatpush.bf16.xpose.msra.mxu0 0
  %3710 = vmatpush.bf16.xpose.msra.mxu0 0
  %3711 = vmatpush.bf16.xpose.msra.mxu0 0
  %3712 = vmatpush.bf16.xpose.msra.mxu0 0
  %3713 = vmatpush.bf16.xpose.msra.mxu0 0
  %3714 = vmatpush.bf16.xpose.msra.mxu0 0
  %3715 = vmatpush.bf16.xpose.msra.mxu0 0
  %3716 = vmatpush.bf16.xpose.msra.mxu0 %v3707
  %3717 = vmatmul.bf16.gmra.mxu0 %v3704
  %v3718 = vpop.f32.mrf.mxu0
  %v3719 = vadd.f32 0.0, %v3718
  %v3720 = vpop.f32.mrf.mxu0
  %3721 = vdwg.mxu0
  %v3723 = vsel %vm3341, %v3265, 0
  %v3726 = vsel %vm3341, %v3297, 0
  %3728 = vmatpush.bf16.xpose.msra.mxu0 0
  %3729 = vmatpush.bf16.xpose.msra.mxu0 0
  %3730 = vmatpush.bf16.xpose.msra.mxu0 0
  %3731 = vmatpush.bf16.xpose.msra.mxu0 0
  %3732 = vmatpush.bf16.xpose.msra.mxu0 0
  %3733 = vmatpush.bf16.xpose.msra.mxu0 0
  %3734 = vmatpush.bf16.xpose.msra.mxu0 0
  %3735 = vmatpush.bf16.xpose.msra.mxu0 %v3726
  %3736 = vmatmul.bf16.gmra.mxu0 %v3723
  %v3737 = vpop.f32.mrf.mxu0
  %v3738 = vadd.f32 0.0, %v3737
  %v3739 = vpop.f32.mrf.mxu0
  %3740 = vdwg.mxu0
  %v3742 = vsel %vm3341, %v3266, 0
  %v3745 = vsel %vm3341, %v3298, 0
  %3747 = vmatpush.bf16.xpose.msra.mxu0 0
  %3748 = vmatpush.bf16.xpose.msra.mxu0 0
  %3749 = vmatpush.bf16.xpose.msra.mxu0 0
  %3750 = vmatpush.bf16.xpose.msra.mxu0 0
  %3751 = vmatpush.bf16.xpose.msra.mxu0 0
  %3752 = vmatpush.bf16.xpose.msra.mxu0 0
  %3753 = vmatpush.bf16.xpose.msra.mxu0 0
  %3754 = vmatpush.bf16.xpose.msra.mxu0 %v3745
  %3755 = vmatmul.bf16.gmra.mxu0 %v3742
  %v3756 = vpop.f32.mrf.mxu0
  %v3757 = vadd.f32 0.0, %v3756
  %v3758 = vpop.f32.mrf.mxu0
  %3759 = vdwg.mxu0
  %v3761 = vsel %vm3341, %v3267, 0
  %v3764 = vsel %vm3341, %v3299, 0
  %3766 = vmatpush.bf16.xpose.msra.mxu0 0
  %3767 = vmatpush.bf16.xpose.msra.mxu0 0
  %3768 = vmatpush.bf16.xpose.msra.mxu0 0
  %3769 = vmatpush.bf16.xpose.msra.mxu0 0
  %3770 = vmatpush.bf16.xpose.msra.mxu0 0
  %3771 = vmatpush.bf16.xpose.msra.mxu0 0
  %3772 = vmatpush.bf16.xpose.msra.mxu0 0
  %3773 = vmatpush.bf16.xpose.msra.mxu0 %v3764
  %3774 = vmatmul.bf16.gmra.mxu0 %v3761
  %v3775 = vpop.f32.mrf.mxu0
  %v3776 = vadd.f32 0.0, %v3775
  %v3777 = vpop.f32.mrf.mxu0
  %3778 = vdwg.mxu0
  %v3780 = vsel %vm3341, %v3268, 0
  %v3783 = vsel %vm3341, %v3300, 0
  %3785 = vmatpush.bf16.xpose.msra.mxu0 0
  %3786 = vmatpush.bf16.xpose.msra.mxu0 0
  %3787 = vmatpush.bf16.xpose.msra.mxu0 0
  %3788 = vmatpush.bf16.xpose.msra.mxu0 0
  %3789 = vmatpush.bf16.xpose.msra.mxu0 0
  %3790 = vmatpush.bf16.xpose.msra.mxu0 0
  %3791 = vmatpush.bf16.xpose.msra.mxu0 0
  %3792 = vmatpush.bf16.xpose.msra.mxu0 %v3783
  %3793 = vmatmul.bf16.gmra.mxu0 %v3780
  %v3794 = vpop.f32.mrf.mxu0
  %v3795 = vadd.f32 0.0, %v3794
  %v3796 = vpop.f32.mrf.mxu0
  %3797 = vdwg.mxu0
  %v3799 = vsel %vm3341, %v3269, 0
  %v3802 = vsel %vm3341, %v3301, 0
  %3804 = vmatpush.bf16.xpose.msra.mxu0 0
  %3805 = vmatpush.bf16.xpose.msra.mxu0 0
  %3806 = vmatpush.bf16.xpose.msra.mxu0 0
  %3807 = vmatpush.bf16.xpose.msra.mxu0 0
  %3808 = vmatpush.bf16.xpose.msra.mxu0 0
  %3809 = vmatpush.bf16.xpose.msra.mxu0 0
  %3810 = vmatpush.bf16.xpose.msra.mxu0 0
  %3811 = vmatpush.bf16.xpose.msra.mxu0 %v3802
  %3812 = vmatmul.bf16.gmra.mxu0 %v3799
  %v3813 = vpop.f32.mrf.mxu0
  %v3814 = vadd.f32 0.0, %v3813
  %v3815 = vpop.f32.mrf.mxu0
  %3816 = vdwg.mxu0
  %v3818 = vsel %vm3341, %v3270, 0
  %v3821 = vsel %vm3341, %v3302, 0
  %3823 = vmatpush.bf16.xpose.msra.mxu0 0
  %3824 = vmatpush.bf16.xpose.msra.mxu0 0
  %3825 = vmatpush.bf16.xpose.msra.mxu0 0
  %3826 = vmatpush.bf16.xpose.msra.mxu0 0
  %3827 = vmatpush.bf16.xpose.msra.mxu0 0
  %3828 = vmatpush.bf16.xpose.msra.mxu0 0
  %3829 = vmatpush.bf16.xpose.msra.mxu0 0
  %3830 = vmatpush.bf16.xpose.msra.mxu0 %v3821
  %3831 = vmatmul.bf16.gmra.mxu0 %v3818
  %v3832 = vpop.f32.mrf.mxu0
  %v3833 = vadd.f32 0.0, %v3832
  %v3834 = vpop.f32.mrf.mxu0
  %3835 = vdwg.mxu0
  %v3837 = vsel %vm3341, %v3271, 0
  %v3840 = vsel %vm3341, %v3303, 0
  %3842 = vmatpush.bf16.xpose.msra.mxu0 0
  %3843 = vmatpush.bf16.xpose.msra.mxu0 0
  %3844 = vmatpush.bf16.xpose.msra.mxu0 0
  %3845 = vmatpush.bf16.xpose.msra.mxu0 0
  %3846 = vmatpush.bf16.xpose.msra.mxu0 0
  %3847 = vmatpush.bf16.xpose.msra.mxu0 0
  %3848 = vmatpush.bf16.xpose.msra.mxu0 0
  %3849 = vmatpush.bf16.xpose.msra.mxu0 %v3840
  %3850 = vmatmul.bf16.gmra.mxu0 %v3837
  %v3851 = vpop.f32.mrf.mxu0
  %v3852 = vadd.f32 0.0, %v3851
  %v3853 = vpop.f32.mrf.mxu0
  %3854 = vdwg.mxu0
  %v3856 = vsel %vm3341, %v3272, 0
  %v3859 = vsel %vm3341, %v3304, 0
  %3861 = vmatpush.bf16.xpose.msra.mxu0 0
  %3862 = vmatpush.bf16.xpose.msra.mxu0 0
  %3863 = vmatpush.bf16.xpose.msra.mxu0 0
  %3864 = vmatpush.bf16.xpose.msra.mxu0 0
  %3865 = vmatpush.bf16.xpose.msra.mxu0 0
  %3866 = vmatpush.bf16.xpose.msra.mxu0 0
  %3867 = vmatpush.bf16.xpose.msra.mxu0 0
  %3868 = vmatpush.bf16.xpose.msra.mxu0 %v3859
  %3869 = vmatmul.bf16.gmra.mxu0 %v3856
  %v3870 = vpop.f32.mrf.mxu0
  %v3871 = vadd.f32 0.0, %v3870
  %v3872 = vpop.f32.mrf.mxu0
  %3873 = vdwg.mxu0
  %v3875 = vsel %vm3341, %v3273, 0
  %v3878 = vsel %vm3341, %v3305, 0
  %3880 = vmatpush.bf16.xpose.msra.mxu0 0
  %3881 = vmatpush.bf16.xpose.msra.mxu0 0
  %3882 = vmatpush.bf16.xpose.msra.mxu0 0
  %3883 = vmatpush.bf16.xpose.msra.mxu0 0
  %3884 = vmatpush.bf16.xpose.msra.mxu0 0
  %3885 = vmatpush.bf16.xpose.msra.mxu0 0
  %3886 = vmatpush.bf16.xpose.msra.mxu0 0
  %3887 = vmatpush.bf16.xpose.msra.mxu0 %v3878
  %3888 = vmatmul.bf16.gmra.mxu0 %v3875
  %v3889 = vpop.f32.mrf.mxu0
  %v3890 = vadd.f32 0.0, %v3889
  %v3891 = vpop.f32.mrf.mxu0
  %3892 = vdwg.mxu0
  %v3894 = vsel %vm3341, %v3274, 0
  %v3897 = vsel %vm3341, %v3306, 0
  %3899 = vmatpush.bf16.xpose.msra.mxu0 0
  %3900 = vmatpush.bf16.xpose.msra.mxu0 0
  %3901 = vmatpush.bf16.xpose.msra.mxu0 0
  %3902 = vmatpush.bf16.xpose.msra.mxu0 0
  %3903 = vmatpush.bf16.xpose.msra.mxu0 0
  %3904 = vmatpush.bf16.xpose.msra.mxu0 0
  %3905 = vmatpush.bf16.xpose.msra.mxu0 0
  %3906 = vmatpush.bf16.xpose.msra.mxu0 %v3897
  %3907 = vmatmul.bf16.gmra.mxu0 %v3894
  %v3908 = vpop.f32.mrf.mxu0
  %v3909 = vadd.f32 0.0, %v3908
  %v3910 = vpop.f32.mrf.mxu0
  %3911 = vdwg.mxu0
  %v3913 = vsel %vm3341, %v3275, 0
  %v3916 = vsel %vm3341, %v3307, 0
  %3918 = vmatpush.bf16.xpose.msra.mxu0 0
  %3919 = vmatpush.bf16.xpose.msra.mxu0 0
  %3920 = vmatpush.bf16.xpose.msra.mxu0 0
  %3921 = vmatpush.bf16.xpose.msra.mxu0 0
  %3922 = vmatpush.bf16.xpose.msra.mxu0 0
  %3923 = vmatpush.bf16.xpose.msra.mxu0 0
  %3924 = vmatpush.bf16.xpose.msra.mxu0 0
  %3925 = vmatpush.bf16.xpose.msra.mxu0 %v3916
  %3926 = vmatmul.bf16.gmra.mxu0 %v3913
  %v3927 = vpop.f32.mrf.mxu0
  %v3928 = vadd.f32 0.0, %v3927
  %v3929 = vpop.f32.mrf.mxu0
  %3930 = vdwg.mxu0
  %v3932 = vsel %vm3341, %v3276, 0
  %v3935 = vsel %vm3341, %v3308, 0
  %3937 = vmatpush.bf16.xpose.msra.mxu0 0
  %3938 = vmatpush.bf16.xpose.msra.mxu0 0
  %3939 = vmatpush.bf16.xpose.msra.mxu0 0
  %3940 = vmatpush.bf16.xpose.msra.mxu0 0
  %3941 = vmatpush.bf16.xpose.msra.mxu0 0
  %3942 = vmatpush.bf16.xpose.msra.mxu0 0
  %3943 = vmatpush.bf16.xpose.msra.mxu0 0
  %3944 = vmatpush.bf16.xpose.msra.mxu0 %v3935
  %3945 = vmatmul.bf16.gmra.mxu0 %v3932
  %v3946 = vpop.f32.mrf.mxu0
  %v3947 = vadd.f32 0.0, %v3946
  %v3948 = vpop.f32.mrf.mxu0
  %3949 = vdwg.mxu0
  %v3950 = vmul.f32 %v3358, 0.35355338
  %v3951 = vmul.f32 %v3377, 0.35355338
  %v3952 = vmul.f32 %v3396, 0.35355338
  %v3953 = vmul.f32 %v3415, 0.35355338
  %v3954 = vmul.f32 %v3434, 0.35355338
  %v3955 = vmul.f32 %v3453, 0.35355338
  %v3956 = vmul.f32 %v3472, 0.35355338
  %v3957 = vmul.f32 %v3491, 0.35355338
  %v3958 = vmul.f32 %v3510, 0.35355338
  %v3959 = vmul.f32 %v3529, 0.35355338
  %v3960 = vmul.f32 %v3548, 0.35355338
  %v3961 = vmul.f32 %v3567, 0.35355338
  %v3962 = vmul.f32 %v3586, 0.35355338
  %v3963 = vmul.f32 %v3605, 0.35355338
  %v3964 = vmul.f32 %v3624, 0.35355338
  %v3965 = vmul.f32 %v3643, 0.35355338
  %v3966 = vmul.f32 %v3662, 0.35355338
  %v3967 = vmul.f32 %v3681, 0.35355338
  %v3968 = vmul.f32 %v3700, 0.35355338
  %v3969 = vmul.f32 %v3719, 0.35355338
  %v3970 = vmul.f32 %v3738, 0.35355338
  %v3971 = vmul.f32 %v3757, 0.35355338
  %v3972 = vmul.f32 %v3776, 0.35355338
  %v3973 = vmul.f32 %v3795, 0.35355338
  %v3974 = vmul.f32 %v3814, 0.35355338
  %v3975 = vmul.f32 %v3833, 0.35355338
  %v3976 = vmul.f32 %v3852, 0.35355338
  %v3977 = vmul.f32 %v3871, 0.35355338
  %v3978 = vmul.f32 %v3890, 0.35355338
  %v3979 = vmul.f32 %v3909, 0.35355338
  %v3980 = vmul.f32 %v3928, 0.35355338
  %v3981 = vmul.f32 %v3947, 0.35355338
  %v3982 = vsel %vm3341, %v3950, -inf
  %3983 = vmax.xlane.f32.xlu0 %v3982
  %v3984 = vpop.xlane.xlu0 %3983
  %v3985 = vsel %vm3341, %v3951, -inf
  %3986 = vmax.xlane.f32.xlu0 %v3985
  %v3987 = vpop.xlane.xlu0 %3986
  %v3988 = vsel %vm3341, %v3952, -inf
  %3989 = vmax.xlane.f32.xlu0 %v3988
  %v3990 = vpop.xlane.xlu0 %3989
  %v3991 = vsel %vm3341, %v3953, -inf
  %3992 = vmax.xlane.f32.xlu0 %v3991
  %v3993 = vpop.xlane.xlu0 %3992
  %v3994 = vsel %vm3341, %v3954, -inf
  %3995 = vmax.xlane.f32.xlu0 %v3994
  %v3996 = vpop.xlane.xlu0 %3995
  %v3997 = vsel %vm3341, %v3955, -inf
  %3998 = vmax.xlane.f32.xlu0 %v3997
  %v3999 = vpop.xlane.xlu0 %3998
  %v4000 = vsel %vm3341, %v3956, -inf
  %4001 = vmax.xlane.f32.xlu0 %v4000
  %v4002 = vpop.xlane.xlu0 %4001
  %v4003 = vsel %vm3341, %v3957, -inf
  %4004 = vmax.xlane.f32.xlu0 %v4003
  %v4005 = vpop.xlane.xlu0 %4004
  %v4006 = vsel %vm3341, %v3958, -inf
  %4007 = vmax.xlane.f32.xlu0 %v4006
  %v4008 = vpop.xlane.xlu0 %4007
  %v4009 = vsel %vm3341, %v3959, -inf
  %4010 = vmax.xlane.f32.xlu0 %v4009
  %v4011 = vpop.xlane.xlu0 %4010
  %v4012 = vsel %vm3341, %v3960, -inf
  %4013 = vmax.xlane.f32.xlu0 %v4012
  %v4014 = vpop.xlane.xlu0 %4013
  %v4015 = vsel %vm3341, %v3961, -inf
  %4016 = vmax.xlane.f32.xlu0 %v4015
  %v4017 = vpop.xlane.xlu0 %4016
  %v4018 = vsel %vm3341, %v3962, -inf
  %4019 = vmax.xlane.f32.xlu0 %v4018
  %v4020 = vpop.xlane.xlu0 %4019
  %v4021 = vsel %vm3341, %v3963, -inf
  %4022 = vmax.xlane.f32.xlu0 %v4021
  %v4023 = vpop.xlane.xlu0 %4022
  %v4024 = vsel %vm3341, %v3964, -inf
  %4025 = vmax.xlane.f32.xlu0 %v4024
  %v4026 = vpop.xlane.xlu0 %4025
  %v4027 = vsel %vm3341, %v3965, -inf
  %4028 = vmax.xlane.f32.xlu0 %v4027
  %v4029 = vpop.xlane.xlu0 %4028
  %v4030 = vsel %vm3341, %v3966, -inf
  %4031 = vmax.xlane.f32.xlu0 %v4030
  %v4032 = vpop.xlane.xlu0 %4031
  %v4033 = vsel %vm3341, %v3967, -inf
  %4034 = vmax.xlane.f32.xlu0 %v4033
  %v4035 = vpop.xlane.xlu0 %4034
  %v4036 = vsel %vm3341, %v3968, -inf
  %4037 = vmax.xlane.f32.xlu0 %v4036
  %v4038 = vpop.xlane.xlu0 %4037
  %v4039 = vsel %vm3341, %v3969, -inf
  %4040 = vmax.xlane.f32.xlu0 %v4039
  %v4041 = vpop.xlane.xlu0 %4040
  %v4042 = vsel %vm3341, %v3970, -inf
  %4043 = vmax.xlane.f32.xlu0 %v4042
  %v4044 = vpop.xlane.xlu0 %4043
  %v4045 = vsel %vm3341, %v3971, -inf
  %4046 = vmax.xlane.f32.xlu0 %v4045
  %v4047 = vpop.xlane.xlu0 %4046
  %v4048 = vsel %vm3341, %v3972, -inf
  %4049 = vmax.xlane.f32.xlu0 %v4048
  %v4050 = vpop.xlane.xlu0 %4049
  %v4051 = vsel %vm3341, %v3973, -inf
  %4052 = vmax.xlane.f32.xlu0 %v4051
  %v4053 = vpop.xlane.xlu0 %4052
  %v4054 = vsel %vm3341, %v3974, -inf
  %4055 = vmax.xlane.f32.xlu0 %v4054
  %v4056 = vpop.xlane.xlu0 %4055
  %v4057 = vsel %vm3341, %v3975, -inf
  %4058 = vmax.xlane.f32.xlu0 %v4057
  %v4059 = vpop.xlane.xlu0 %4058
  %v4060 = vsel %vm3341, %v3976, -inf
  %4061 = vmax.xlane.f32.xlu0 %v4060
  %v4062 = vpop.xlane.xlu0 %4061
  %v4063 = vsel %vm3341, %v3977, -inf
  %4064 = vmax.xlane.f32.xlu0 %v4063
  %v4065 = vpop.xlane.xlu0 %4064
  %v4066 = vsel %vm3341, %v3978, -inf
  %4067 = vmax.xlane.f32.xlu0 %v4066
  %v4068 = vpop.xlane.xlu0 %4067
  %v4069 = vsel %vm3341, %v3979, -inf
  %4070 = vmax.xlane.f32.xlu0 %v4069
  %v4071 = vpop.xlane.xlu0 %4070
  %v4072 = vsel %vm3341, %v3980, -inf
  %4073 = vmax.xlane.f32.xlu0 %v4072
  %v4074 = vpop.xlane.xlu0 %4073
  %v4075 = vsel %vm3341, %v3981, -inf
  %4076 = vmax.xlane.f32.xlu0 %v4075
  %v4077 = vpop.xlane.xlu0 %4076
  %v4078 = vsub.f32 %v3950, %v3984
  %v4079 = vsub.f32 %v3951, %v3987
  %v4080 = vsub.f32 %v3952, %v3990
  %v4081 = vsub.f32 %v3953, %v3993
  %v4082 = vsub.f32 %v3954, %v3996
  %v4083 = vsub.f32 %v3955, %v3999
  %v4084 = vsub.f32 %v3956, %v4002
  %v4085 = vsub.f32 %v3957, %v4005
  %v4086 = vsub.f32 %v3958, %v4008
  %v4087 = vsub.f32 %v3959, %v4011
  %v4088 = vsub.f32 %v3960, %v4014
  %v4089 = vsub.f32 %v3961, %v4017
  %v4090 = vsub.f32 %v3962, %v4020
  %v4091 = vsub.f32 %v3963, %v4023
  %v4092 = vsub.f32 %v3964, %v4026
  %v4093 = vsub.f32 %v3965, %v4029
  %v4094 = vsub.f32 %v3966, %v4032
  %v4095 = vsub.f32 %v3967, %v4035
  %v4096 = vsub.f32 %v3968, %v4038
  %v4097 = vsub.f32 %v3969, %v4041
  %v4098 = vsub.f32 %v3970, %v4044
  %v4099 = vsub.f32 %v3971, %v4047
  %v4100 = vsub.f32 %v3972, %v4050
  %v4101 = vsub.f32 %v3973, %v4053
  %v4102 = vsub.f32 %v3974, %v4056
  %v4103 = vsub.f32 %v3975, %v4059
  %v4104 = vsub.f32 %v3976, %v4062
  %v4105 = vsub.f32 %v3977, %v4065
  %v4106 = vsub.f32 %v3978, %v4068
  %v4107 = vsub.f32 %v3979, %v4071
  %v4108 = vsub.f32 %v3980, %v4074
  %v4109 = vsub.f32 %v3981, %v4077
  %v4110 = vmul.f32 %v4078, 1.442695
  %v4111 = vpow.pop %v4110
  %v4112 = vmul.f32 %v4079, 1.442695
  %v4113 = vpow.pop %v4112
  %v4114 = vmul.f32 %v4080, 1.442695
  %v4115 = vpow.pop %v4114
  %v4116 = vmul.f32 %v4081, 1.442695
  %v4117 = vpow.pop %v4116
  %v4118 = vmul.f32 %v4082, 1.442695
  %v4119 = vpow.pop %v4118
  %v4120 = vmul.f32 %v4083, 1.442695
  %v4121 = vpow.pop %v4120
  %v4122 = vmul.f32 %v4084, 1.442695
  %v4123 = vpow.pop %v4122
  %v4124 = vmul.f32 %v4085, 1.442695
  %v4125 = vpow.pop %v4124
  %v4126 = vmul.f32 %v4086, 1.442695
  %v4127 = vpow.pop %v4126
  %v4128 = vmul.f32 %v4087, 1.442695
  %v4129 = vpow.pop %v4128
  %v4130 = vmul.f32 %v4088, 1.442695
  %v4131 = vpow.pop %v4130
  %v4132 = vmul.f32 %v4089, 1.442695
  %v4133 = vpow.pop %v4132
  %v4134 = vmul.f32 %v4090, 1.442695
  %v4135 = vpow.pop %v4134
  %v4136 = vmul.f32 %v4091, 1.442695
  %v4137 = vpow.pop %v4136
  %v4138 = vmul.f32 %v4092, 1.442695
  %v4139 = vpow.pop %v4138
  %v4140 = vmul.f32 %v4093, 1.442695
  %v4141 = vpow.pop %v4140
  %v4142 = vmul.f32 %v4094, 1.442695
  %v4143 = vpow.pop %v4142
  %v4144 = vmul.f32 %v4095, 1.442695
  %v4145 = vpow.pop %v4144
  %v4146 = vmul.f32 %v4096, 1.442695
  %v4147 = vpow.pop %v4146
  %v4148 = vmul.f32 %v4097, 1.442695
  %v4149 = vpow.pop %v4148
  %v4150 = vmul.f32 %v4098, 1.442695
  %v4151 = vpow.pop %v4150
  %v4152 = vmul.f32 %v4099, 1.442695
  %v4153 = vpow.pop %v4152
  %v4154 = vmul.f32 %v4100, 1.442695
  %v4155 = vpow.pop %v4154
  %v4156 = vmul.f32 %v4101, 1.442695
  %v4157 = vpow.pop %v4156
  %v4158 = vmul.f32 %v4102, 1.442695
  %v4159 = vpow.pop %v4158
  %v4160 = vmul.f32 %v4103, 1.442695
  %v4161 = vpow.pop %v4160
  %v4162 = vmul.f32 %v4104, 1.442695
  %v4163 = vpow.pop %v4162
  %v4164 = vmul.f32 %v4105, 1.442695
  %v4165 = vpow.pop %v4164
  %v4166 = vmul.f32 %v4106, 1.442695
  %v4167 = vpow.pop %v4166
  %v4168 = vmul.f32 %v4107, 1.442695
  %v4169 = vpow.pop %v4168
  %v4170 = vmul.f32 %v4108, 1.442695
  %v4171 = vpow.pop %v4170
  %v4172 = vmul.f32 %v4109, 1.442695
  %v4173 = vpow.pop %v4172
  %v4174 = vsel %vm3341, %v4111, 0.0
  %4175 = vadd.xlane.f32.xlu0 %v4174
  %v4176 = vpop.xlane.xlu0 %4175
  %v4177 = vsel %vm3341, %v4113, 0.0
  %4178 = vadd.xlane.f32.xlu0 %v4177
  %v4179 = vpop.xlane.xlu0 %4178
  %v4180 = vsel %vm3341, %v4115, 0.0
  %4181 = vadd.xlane.f32.xlu0 %v4180
  %v4182 = vpop.xlane.xlu0 %4181
  %v4183 = vsel %vm3341, %v4117, 0.0
  %4184 = vadd.xlane.f32.xlu0 %v4183
  %v4185 = vpop.xlane.xlu0 %4184
  %v4186 = vsel %vm3341, %v4119, 0.0
  %4187 = vadd.xlane.f32.xlu0 %v4186
  %v4188 = vpop.xlane.xlu0 %4187
  %v4189 = vsel %vm3341, %v4121, 0.0
  %4190 = vadd.xlane.f32.xlu0 %v4189
  %v4191 = vpop.xlane.xlu0 %4190
  %v4192 = vsel %vm3341, %v4123, 0.0
  %4193 = vadd.xlane.f32.xlu0 %v4192
  %v4194 = vpop.xlane.xlu0 %4193
  %v4195 = vsel %vm3341, %v4125, 0.0
  %4196 = vadd.xlane.f32.xlu0 %v4195
  %v4197 = vpop.xlane.xlu0 %4196
  %v4198 = vsel %vm3341, %v4127, 0.0
  %4199 = vadd.xlane.f32.xlu0 %v4198
  %v4200 = vpop.xlane.xlu0 %4199
  %v4201 = vsel %vm3341, %v4129, 0.0
  %4202 = vadd.xlane.f32.xlu0 %v4201
  %v4203 = vpop.xlane.xlu0 %4202
  %v4204 = vsel %vm3341, %v4131, 0.0
  %4205 = vadd.xlane.f32.xlu0 %v4204
  %v4206 = vpop.xlane.xlu0 %4205
  %v4207 = vsel %vm3341, %v4133, 0.0
  %4208 = vadd.xlane.f32.xlu0 %v4207
  %v4209 = vpop.xlane.xlu0 %4208
  %v4210 = vsel %vm3341, %v4135, 0.0
  %4211 = vadd.xlane.f32.xlu0 %v4210
  %v4212 = vpop.xlane.xlu0 %4211
  %v4213 = vsel %vm3341, %v4137, 0.0
  %4214 = vadd.xlane.f32.xlu0 %v4213
  %v4215 = vpop.xlane.xlu0 %4214
  %v4216 = vsel %vm3341, %v4139, 0.0
  %4217 = vadd.xlane.f32.xlu0 %v4216
  %v4218 = vpop.xlane.xlu0 %4217
  %v4219 = vsel %vm3341, %v4141, 0.0
  %4220 = vadd.xlane.f32.xlu0 %v4219
  %v4221 = vpop.xlane.xlu0 %4220
  %v4222 = vsel %vm3341, %v4143, 0.0
  %4223 = vadd.xlane.f32.xlu0 %v4222
  %v4224 = vpop.xlane.xlu0 %4223
  %v4225 = vsel %vm3341, %v4145, 0.0
  %4226 = vadd.xlane.f32.xlu0 %v4225
  %v4227 = vpop.xlane.xlu0 %4226
  %v4228 = vsel %vm3341, %v4147, 0.0
  %4229 = vadd.xlane.f32.xlu0 %v4228
  %v4230 = vpop.xlane.xlu0 %4229
  %v4231 = vsel %vm3341, %v4149, 0.0
  %4232 = vadd.xlane.f32.xlu0 %v4231
  %v4233 = vpop.xlane.xlu0 %4232
  %v4234 = vsel %vm3341, %v4151, 0.0
  %4235 = vadd.xlane.f32.xlu0 %v4234
  %v4236 = vpop.xlane.xlu0 %4235
  %v4237 = vsel %vm3341, %v4153, 0.0
  %4238 = vadd.xlane.f32.xlu0 %v4237
  %v4239 = vpop.xlane.xlu0 %4238
  %v4240 = vsel %vm3341, %v4155, 0.0
  %4241 = vadd.xlane.f32.xlu0 %v4240
  %v4242 = vpop.xlane.xlu0 %4241
  %v4243 = vsel %vm3341, %v4157, 0.0
  %4244 = vadd.xlane.f32.xlu0 %v4243
  %v4245 = vpop.xlane.xlu0 %4244
  %v4246 = vsel %vm3341, %v4159, 0.0
  %4247 = vadd.xlane.f32.xlu0 %v4246
  %v4248 = vpop.xlane.xlu0 %4247
  %v4249 = vsel %vm3341, %v4161, 0.0
  %4250 = vadd.xlane.f32.xlu0 %v4249
  %v4251 = vpop.xlane.xlu0 %4250
  %v4252 = vsel %vm3341, %v4163, 0.0
  %4253 = vadd.xlane.f32.xlu0 %v4252
  %v4254 = vpop.xlane.xlu0 %4253
  %v4255 = vsel %vm3341, %v4165, 0.0
  %4256 = vadd.xlane.f32.xlu0 %v4255
  %v4257 = vpop.xlane.xlu0 %4256
  %v4258 = vsel %vm3341, %v4167, 0.0
  %4259 = vadd.xlane.f32.xlu0 %v4258
  %v4260 = vpop.xlane.xlu0 %4259
  %v4261 = vsel %vm3341, %v4169, 0.0
  %4262 = vadd.xlane.f32.xlu0 %v4261
  %v4263 = vpop.xlane.xlu0 %4262
  %v4264 = vsel %vm3341, %v4171, 0.0
  %4265 = vadd.xlane.f32.xlu0 %v4264
  %v4266 = vpop.xlane.xlu0 %4265
  %v4267 = vsel %vm3341, %v4173, 0.0
  %4268 = vadd.xlane.f32.xlu0 %v4267
  %v4269 = vpop.xlane.xlu0 %4268
  %v4270 = vrcp.pop %v4176
  %v4271 = vrcp.pop %v4179
  %v4272 = vrcp.pop %v4182
  %v4273 = vrcp.pop %v4185
  %v4274 = vrcp.pop %v4188
  %v4275 = vrcp.pop %v4191
  %v4276 = vrcp.pop %v4194
  %v4277 = vrcp.pop %v4197
  %v4278 = vrcp.pop %v4200
  %v4279 = vrcp.pop %v4203
  %v4280 = vrcp.pop %v4206
  %v4281 = vrcp.pop %v4209
  %v4282 = vrcp.pop %v4212
  %v4283 = vrcp.pop %v4215
  %v4284 = vrcp.pop %v4218
  %v4285 = vrcp.pop %v4221
  %v4286 = vrcp.pop %v4224
  %v4287 = vrcp.pop %v4227
  %v4288 = vrcp.pop %v4230
  %v4289 = vrcp.pop %v4233
  %v4290 = vrcp.pop %v4236
  %v4291 = vrcp.pop %v4239
  %v4292 = vrcp.pop %v4242
  %v4293 = vrcp.pop %v4245
  %v4294 = vrcp.pop %v4248
  %v4295 = vrcp.pop %v4251
  %v4296 = vrcp.pop %v4254
  %v4297 = vrcp.pop %v4257
  %v4298 = vrcp.pop %v4260
  %v4299 = vrcp.pop %v4263
  %v4300 = vrcp.pop %v4266
  %v4301 = vrcp.pop %v4269
  %v4302 = vmul.f32 %v4111, %v4270
  %v4303 = vmul.f32 %v4113, %v4271
  %v4304 = vmul.f32 %v4115, %v4272
  %v4305 = vmul.f32 %v4117, %v4273
  %v4306 = vmul.f32 %v4119, %v4274
  %v4307 = vmul.f32 %v4121, %v4275
  %v4308 = vmul.f32 %v4123, %v4276
  %v4309 = vmul.f32 %v4125, %v4277
  %v4310 = vmul.f32 %v4127, %v4278
  %v4311 = vmul.f32 %v4129, %v4279
  %v4312 = vmul.f32 %v4131, %v4280
  %v4313 = vmul.f32 %v4133, %v4281
  %v4314 = vmul.f32 %v4135, %v4282
  %v4315 = vmul.f32 %v4137, %v4283
  %v4316 = vmul.f32 %v4139, %v4284
  %v4317 = vmul.f32 %v4141, %v4285
  %v4318 = vmul.f32 %v4143, %v4286
  %v4319 = vmul.f32 %v4145, %v4287
  %v4320 = vmul.f32 %v4147, %v4288
  %v4321 = vmul.f32 %v4149, %v4289
  %v4322 = vmul.f32 %v4151, %v4290
  %v4323 = vmul.f32 %v4153, %v4291
  %v4324 = vmul.f32 %v4155, %v4292
  %v4325 = vmul.f32 %v4157, %v4293
  %v4326 = vmul.f32 %v4159, %v4294
  %v4327 = vmul.f32 %v4161, %v4295
  %v4328 = vmul.f32 %v4163, %v4296
  %v4329 = vmul.f32 %v4165, %v4297
  %v4330 = vmul.f32 %v4167, %v4298
  %v4331 = vmul.f32 %v4169, %v4299
  %v4332 = vmul.f32 %v4171, %v4300
  %v4333 = vmul.f32 %v4173, %v4301
  %v4334 = vpack.c.bf16 %v4302, %v4302
  %v4335 = vpack.c.bf16 %v4303, %v4303
  %v4336 = vpack.c.bf16 %v4304, %v4304
  %v4337 = vpack.c.bf16 %v4305, %v4305
  %v4338 = vpack.c.bf16 %v4306, %v4306
  %v4339 = vpack.c.bf16 %v4307, %v4307
  %v4340 = vpack.c.bf16 %v4308, %v4308
  %v4341 = vpack.c.bf16 %v4309, %v4309
  %v4342 = vpack.c.bf16 %v4310, %v4310
  %v4343 = vpack.c.bf16 %v4311, %v4311
  %v4344 = vpack.c.bf16 %v4312, %v4312
  %v4345 = vpack.c.bf16 %v4313, %v4313
  %v4346 = vpack.c.bf16 %v4314, %v4314
  %v4347 = vpack.c.bf16 %v4315, %v4315
  %v4348 = vpack.c.bf16 %v4316, %v4316
  %v4349 = vpack.c.bf16 %v4317, %v4317
  %v4350 = vpack.c.bf16 %v4318, %v4318
  %v4351 = vpack.c.bf16 %v4319, %v4319
  %v4352 = vpack.c.bf16 %v4320, %v4320
  %v4353 = vpack.c.bf16 %v4321, %v4321
  %v4354 = vpack.c.bf16 %v4322, %v4322
  %v4355 = vpack.c.bf16 %v4323, %v4323
  %v4356 = vpack.c.bf16 %v4324, %v4324
  %v4357 = vpack.c.bf16 %v4325, %v4325
  %v4358 = vpack.c.bf16 %v4326, %v4326
  %v4359 = vpack.c.bf16 %v4327, %v4327
  %v4360 = vpack.c.bf16 %v4328, %v4328
  %v4361 = vpack.c.bf16 %v4329, %v4329
  %v4362 = vpack.c.bf16 %v4330, %v4330
  %v4363 = vpack.c.bf16 %v4331, %v4331
  %v4364 = vpack.c.bf16 %v4332, %v4332
  %v4365 = vpack.c.bf16 %v4333, %v4333
  %v4367 = vsel %vm3341, %v4334, 0
  %vm4369 = vcmask 1043456
  %v4371 = vsel %vm4369, %v3309, 0
  %4373 = vmatpush.bf16.msra.mxu0 0
  %4374 = vmatpush.bf16.msra.mxu0 0
  %4375 = vmatpush.bf16.msra.mxu0 0
  %4376 = vmatpush.bf16.msra.mxu0 0
  %4377 = vmatpush.bf16.msra.mxu0 0
  %4378 = vmatpush.bf16.msra.mxu0 0
  %4379 = vmatpush.bf16.msra.mxu0 0
  %4380 = vmatpush.bf16.msra.mxu0 %v4371
  %4381 = vmatmul.bf16.gmra.mxu0 %v4367
  %v4382 = vpop.f32.mrf.mxu0
  %v4383 = vadd.f32 0.0, %v4382
  %v4384 = vpop.f32.mrf.mxu0
  %4385 = vdwg.mxu0
  %v4387 = vsel %vm3341, %v4335, 0
  %v4390 = vsel %vm4369, %v3310, 0
  %4392 = vmatpush.bf16.msra.mxu0 0
  %4393 = vmatpush.bf16.msra.mxu0 0
  %4394 = vmatpush.bf16.msra.mxu0 0
  %4395 = vmatpush.bf16.msra.mxu0 0
  %4396 = vmatpush.bf16.msra.mxu0 0
  %4397 = vmatpush.bf16.msra.mxu0 0
  %4398 = vmatpush.bf16.msra.mxu0 0
  %4399 = vmatpush.bf16.msra.mxu0 %v4390
  %4400 = vmatmul.bf16.gmra.mxu0 %v4387
  %v4401 = vpop.f32.mrf.mxu0
  %v4402 = vadd.f32 0.0, %v4401
  %v4403 = vpop.f32.mrf.mxu0
  %4404 = vdwg.mxu0
  %v4406 = vsel %vm3341, %v4336, 0
  %v4409 = vsel %vm4369, %v3311, 0
  %4411 = vmatpush.bf16.msra.mxu0 0
  %4412 = vmatpush.bf16.msra.mxu0 0
  %4413 = vmatpush.bf16.msra.mxu0 0
  %4414 = vmatpush.bf16.msra.mxu0 0
  %4415 = vmatpush.bf16.msra.mxu0 0
  %4416 = vmatpush.bf16.msra.mxu0 0
  %4417 = vmatpush.bf16.msra.mxu0 0
  %4418 = vmatpush.bf16.msra.mxu0 %v4409
  %4419 = vmatmul.bf16.gmra.mxu0 %v4406
  %v4420 = vpop.f32.mrf.mxu0
  %v4421 = vadd.f32 0.0, %v4420
  %v4422 = vpop.f32.mrf.mxu0
  %4423 = vdwg.mxu0
  %v4425 = vsel %vm3341, %v4337, 0
  %v4428 = vsel %vm4369, %v3312, 0
  %4430 = vmatpush.bf16.msra.mxu0 0
  %4431 = vmatpush.bf16.msra.mxu0 0
  %4432 = vmatpush.bf16.msra.mxu0 0
  %4433 = vmatpush.bf16.msra.mxu0 0
  %4434 = vmatpush.bf16.msra.mxu0 0
  %4435 = vmatpush.bf16.msra.mxu0 0
  %4436 = vmatpush.bf16.msra.mxu0 0
  %4437 = vmatpush.bf16.msra.mxu0 %v4428
  %4438 = vmatmul.bf16.gmra.mxu0 %v4425
  %v4439 = vpop.f32.mrf.mxu0
  %v4440 = vadd.f32 0.0, %v4439
  %v4441 = vpop.f32.mrf.mxu0
  %4442 = vdwg.mxu0
  %v4444 = vsel %vm3341, %v4338, 0
  %v4447 = vsel %vm4369, %v3313, 0
  %4449 = vmatpush.bf16.msra.mxu0 0
  %4450 = vmatpush.bf16.msra.mxu0 0
  %4451 = vmatpush.bf16.msra.mxu0 0
  %4452 = vmatpush.bf16.msra.mxu0 0
  %4453 = vmatpush.bf16.msra.mxu0 0
  %4454 = vmatpush.bf16.msra.mxu0 0
  %4455 = vmatpush.bf16.msra.mxu0 0
  %4456 = vmatpush.bf16.msra.mxu0 %v4447
  %4457 = vmatmul.bf16.gmra.mxu0 %v4444
  %v4458 = vpop.f32.mrf.mxu0
  %v4459 = vadd.f32 0.0, %v4458
  %v4460 = vpop.f32.mrf.mxu0
  %4461 = vdwg.mxu0
  %v4463 = vsel %vm3341, %v4339, 0
  %v4466 = vsel %vm4369, %v3314, 0
  %4468 = vmatpush.bf16.msra.mxu0 0
  %4469 = vmatpush.bf16.msra.mxu0 0
  %4470 = vmatpush.bf16.msra.mxu0 0
  %4471 = vmatpush.bf16.msra.mxu0 0
  %4472 = vmatpush.bf16.msra.mxu0 0
  %4473 = vmatpush.bf16.msra.mxu0 0
  %4474 = vmatpush.bf16.msra.mxu0 0
  %4475 = vmatpush.bf16.msra.mxu0 %v4466
  %4476 = vmatmul.bf16.gmra.mxu0 %v4463
  %v4477 = vpop.f32.mrf.mxu0
  %v4478 = vadd.f32 0.0, %v4477
  %v4479 = vpop.f32.mrf.mxu0
  %4480 = vdwg.mxu0
  %v4482 = vsel %vm3341, %v4340, 0
  %v4485 = vsel %vm4369, %v3315, 0
  %4487 = vmatpush.bf16.msra.mxu0 0
  %4488 = vmatpush.bf16.msra.mxu0 0
  %4489 = vmatpush.bf16.msra.mxu0 0
  %4490 = vmatpush.bf16.msra.mxu0 0
  %4491 = vmatpush.bf16.msra.mxu0 0
  %4492 = vmatpush.bf16.msra.mxu0 0
  %4493 = vmatpush.bf16.msra.mxu0 0
  %4494 = vmatpush.bf16.msra.mxu0 %v4485
  %4495 = vmatmul.bf16.gmra.mxu0 %v4482
  %v4496 = vpop.f32.mrf.mxu0
  %v4497 = vadd.f32 0.0, %v4496
  %v4498 = vpop.f32.mrf.mxu0
  %4499 = vdwg.mxu0
  %v4501 = vsel %vm3341, %v4341, 0
  %v4504 = vsel %vm4369, %v3316, 0
  %4506 = vmatpush.bf16.msra.mxu0 0
  %4507 = vmatpush.bf16.msra.mxu0 0
  %4508 = vmatpush.bf16.msra.mxu0 0
  %4509 = vmatpush.bf16.msra.mxu0 0
  %4510 = vmatpush.bf16.msra.mxu0 0
  %4511 = vmatpush.bf16.msra.mxu0 0
  %4512 = vmatpush.bf16.msra.mxu0 0
  %4513 = vmatpush.bf16.msra.mxu0 %v4504
  %4514 = vmatmul.bf16.gmra.mxu0 %v4501
  %v4515 = vpop.f32.mrf.mxu0
  %v4516 = vadd.f32 0.0, %v4515
  %v4517 = vpop.f32.mrf.mxu0
  %4518 = vdwg.mxu0
  %v4520 = vsel %vm3341, %v4342, 0
  %v4523 = vsel %vm4369, %v3317, 0
  %4525 = vmatpush.bf16.msra.mxu0 0
  %4526 = vmatpush.bf16.msra.mxu0 0
  %4527 = vmatpush.bf16.msra.mxu0 0
  %4528 = vmatpush.bf16.msra.mxu0 0
  %4529 = vmatpush.bf16.msra.mxu0 0
  %4530 = vmatpush.bf16.msra.mxu0 0
  %4531 = vmatpush.bf16.msra.mxu0 0
  %4532 = vmatpush.bf16.msra.mxu0 %v4523
  %4533 = vmatmul.bf16.gmra.mxu0 %v4520
  %v4534 = vpop.f32.mrf.mxu0
  %v4535 = vadd.f32 0.0, %v4534
  %v4536 = vpop.f32.mrf.mxu0
  %4537 = vdwg.mxu0
  %v4539 = vsel %vm3341, %v4343, 0
  %v4542 = vsel %vm4369, %v3318, 0
  %4544 = vmatpush.bf16.msra.mxu0 0
  %4545 = vmatpush.bf16.msra.mxu0 0
  %4546 = vmatpush.bf16.msra.mxu0 0
  %4547 = vmatpush.bf16.msra.mxu0 0
  %4548 = vmatpush.bf16.msra.mxu0 0
  %4549 = vmatpush.bf16.msra.mxu0 0
  %4550 = vmatpush.bf16.msra.mxu0 0
  %4551 = vmatpush.bf16.msra.mxu0 %v4542
  %4552 = vmatmul.bf16.gmra.mxu0 %v4539
  %v4553 = vpop.f32.mrf.mxu0
  %v4554 = vadd.f32 0.0, %v4553
  %v4555 = vpop.f32.mrf.mxu0
  %4556 = vdwg.mxu0
  %v4558 = vsel %vm3341, %v4344, 0
  %v4561 = vsel %vm4369, %v3319, 0
  %4563 = vmatpush.bf16.msra.mxu0 0
  %4564 = vmatpush.bf16.msra.mxu0 0
  %4565 = vmatpush.bf16.msra.mxu0 0
  %4566 = vmatpush.bf16.msra.mxu0 0
  %4567 = vmatpush.bf16.msra.mxu0 0
  %4568 = vmatpush.bf16.msra.mxu0 0
  %4569 = vmatpush.bf16.msra.mxu0 0
  %4570 = vmatpush.bf16.msra.mxu0 %v4561
  %4571 = vmatmul.bf16.gmra.mxu0 %v4558
  %v4572 = vpop.f32.mrf.mxu0
  %v4573 = vadd.f32 0.0, %v4572
  %v4574 = vpop.f32.mrf.mxu0
  %4575 = vdwg.mxu0
  %v4577 = vsel %vm3341, %v4345, 0
  %v4580 = vsel %vm4369, %v3320, 0
  %4582 = vmatpush.bf16.msra.mxu0 0
  %4583 = vmatpush.bf16.msra.mxu0 0
  %4584 = vmatpush.bf16.msra.mxu0 0
  %4585 = vmatpush.bf16.msra.mxu0 0
  %4586 = vmatpush.bf16.msra.mxu0 0
  %4587 = vmatpush.bf16.msra.mxu0 0
  %4588 = vmatpush.bf16.msra.mxu0 0
  %4589 = vmatpush.bf16.msra.mxu0 %v4580
  %4590 = vmatmul.bf16.gmra.mxu0 %v4577
  %v4591 = vpop.f32.mrf.mxu0
  %v4592 = vadd.f32 0.0, %v4591
  %v4593 = vpop.f32.mrf.mxu0
  %4594 = vdwg.mxu0
  %v4596 = vsel %vm3341, %v4346, 0
  %v4599 = vsel %vm4369, %v3321, 0
  %4601 = vmatpush.bf16.msra.mxu0 0
  %4602 = vmatpush.bf16.msra.mxu0 0
  %4603 = vmatpush.bf16.msra.mxu0 0
  %4604 = vmatpush.bf16.msra.mxu0 0
  %4605 = vmatpush.bf16.msra.mxu0 0
  %4606 = vmatpush.bf16.msra.mxu0 0
  %4607 = vmatpush.bf16.msra.mxu0 0
  %4608 = vmatpush.bf16.msra.mxu0 %v4599
  %4609 = vmatmul.bf16.gmra.mxu0 %v4596
  %v4610 = vpop.f32.mrf.mxu0
  %v4611 = vadd.f32 0.0, %v4610
  %v4612 = vpop.f32.mrf.mxu0
  %4613 = vdwg.mxu0
  %v4615 = vsel %vm3341, %v4347, 0
  %v4618 = vsel %vm4369, %v3322, 0
  %4620 = vmatpush.bf16.msra.mxu0 0
  %4621 = vmatpush.bf16.msra.mxu0 0
  %4622 = vmatpush.bf16.msra.mxu0 0
  %4623 = vmatpush.bf16.msra.mxu0 0
  %4624 = vmatpush.bf16.msra.mxu0 0
  %4625 = vmatpush.bf16.msra.mxu0 0
  %4626 = vmatpush.bf16.msra.mxu0 0
  %4627 = vmatpush.bf16.msra.mxu0 %v4618
  %4628 = vmatmul.bf16.gmra.mxu0 %v4615
  %v4629 = vpop.f32.mrf.mxu0
  %v4630 = vadd.f32 0.0, %v4629
  %v4631 = vpop.f32.mrf.mxu0
  %4632 = vdwg.mxu0
  %v4634 = vsel %vm3341, %v4348, 0
  %v4637 = vsel %vm4369, %v3323, 0
  %4639 = vmatpush.bf16.msra.mxu0 0
  %4640 = vmatpush.bf16.msra.mxu0 0
  %4641 = vmatpush.bf16.msra.mxu0 0
  %4642 = vmatpush.bf16.msra.mxu0 0
  %4643 = vmatpush.bf16.msra.mxu0 0
  %4644 = vmatpush.bf16.msra.mxu0 0
  %4645 = vmatpush.bf16.msra.mxu0 0
  %4646 = vmatpush.bf16.msra.mxu0 %v4637
  %4647 = vmatmul.bf16.gmra.mxu0 %v4634
  %v4648 = vpop.f32.mrf.mxu0
  %v4649 = vadd.f32 0.0, %v4648
  %v4650 = vpop.f32.mrf.mxu0
  %4651 = vdwg.mxu0
  %v4653 = vsel %vm3341, %v4349, 0
  %v4656 = vsel %vm4369, %v3324, 0
  %4658 = vmatpush.bf16.msra.mxu0 0
  %4659 = vmatpush.bf16.msra.mxu0 0
  %4660 = vmatpush.bf16.msra.mxu0 0
  %4661 = vmatpush.bf16.msra.mxu0 0
  %4662 = vmatpush.bf16.msra.mxu0 0
  %4663 = vmatpush.bf16.msra.mxu0 0
  %4664 = vmatpush.bf16.msra.mxu0 0
  %4665 = vmatpush.bf16.msra.mxu0 %v4656
  %4666 = vmatmul.bf16.gmra.mxu0 %v4653
  %v4667 = vpop.f32.mrf.mxu0
  %v4668 = vadd.f32 0.0, %v4667
  %v4669 = vpop.f32.mrf.mxu0
  %4670 = vdwg.mxu0
  %v4672 = vsel %vm3341, %v4350, 0
  %v4675 = vsel %vm4369, %v3325, 0
  %4677 = vmatpush.bf16.msra.mxu0 0
  %4678 = vmatpush.bf16.msra.mxu0 0
  %4679 = vmatpush.bf16.msra.mxu0 0
  %4680 = vmatpush.bf16.msra.mxu0 0
  %4681 = vmatpush.bf16.msra.mxu0 0
  %4682 = vmatpush.bf16.msra.mxu0 0
  %4683 = vmatpush.bf16.msra.mxu0 0
  %4684 = vmatpush.bf16.msra.mxu0 %v4675
  %4685 = vmatmul.bf16.gmra.mxu0 %v4672
  %v4686 = vpop.f32.mrf.mxu0
  %v4687 = vadd.f32 0.0, %v4686
  %v4688 = vpop.f32.mrf.mxu0
  %4689 = vdwg.mxu0
  %v4691 = vsel %vm3341, %v4351, 0
  %v4694 = vsel %vm4369, %v3326, 0
  %4696 = vmatpush.bf16.msra.mxu0 0
  %4697 = vmatpush.bf16.msra.mxu0 0
  %4698 = vmatpush.bf16.msra.mxu0 0
  %4699 = vmatpush.bf16.msra.mxu0 0
  %4700 = vmatpush.bf16.msra.mxu0 0
  %4701 = vmatpush.bf16.msra.mxu0 0
  %4702 = vmatpush.bf16.msra.mxu0 0
  %4703 = vmatpush.bf16.msra.mxu0 %v4694
  %4704 = vmatmul.bf16.gmra.mxu0 %v4691
  %v4705 = vpop.f32.mrf.mxu0
  %v4706 = vadd.f32 0.0, %v4705
  %v4707 = vpop.f32.mrf.mxu0
  %4708 = vdwg.mxu0
  %v4710 = vsel %vm3341, %v4352, 0
  %v4713 = vsel %vm4369, %v3327, 0
  %4715 = vmatpush.bf16.msra.mxu0 0
  %4716 = vmatpush.bf16.msra.mxu0 0
  %4717 = vmatpush.bf16.msra.mxu0 0
  %4718 = vmatpush.bf16.msra.mxu0 0
  %4719 = vmatpush.bf16.msra.mxu0 0
  %4720 = vmatpush.bf16.msra.mxu0 0
  %4721 = vmatpush.bf16.msra.mxu0 0
  %4722 = vmatpush.bf16.msra.mxu0 %v4713
  %4723 = vmatmul.bf16.gmra.mxu0 %v4710
  %v4724 = vpop.f32.mrf.mxu0
  %v4725 = vadd.f32 0.0, %v4724
  %v4726 = vpop.f32.mrf.mxu0
  %4727 = vdwg.mxu0
  %v4729 = vsel %vm3341, %v4353, 0
  %v4732 = vsel %vm4369, %v3328, 0
  %4734 = vmatpush.bf16.msra.mxu0 0
  %4735 = vmatpush.bf16.msra.mxu0 0
  %4736 = vmatpush.bf16.msra.mxu0 0
  %4737 = vmatpush.bf16.msra.mxu0 0
  %4738 = vmatpush.bf16.msra.mxu0 0
  %4739 = vmatpush.bf16.msra.mxu0 0
  %4740 = vmatpush.bf16.msra.mxu0 0
  %4741 = vmatpush.bf16.msra.mxu0 %v4732
  %4742 = vmatmul.bf16.gmra.mxu0 %v4729
  %v4743 = vpop.f32.mrf.mxu0
  %v4744 = vadd.f32 0.0, %v4743
  %v4745 = vpop.f32.mrf.mxu0
  %4746 = vdwg.mxu0
  %v4748 = vsel %vm3341, %v4354, 0
  %v4751 = vsel %vm4369, %v3329, 0
  %4753 = vmatpush.bf16.msra.mxu0 0
  %4754 = vmatpush.bf16.msra.mxu0 0
  %4755 = vmatpush.bf16.msra.mxu0 0
  %4756 = vmatpush.bf16.msra.mxu0 0
  %4757 = vmatpush.bf16.msra.mxu0 0
  %4758 = vmatpush.bf16.msra.mxu0 0
  %4759 = vmatpush.bf16.msra.mxu0 0
  %4760 = vmatpush.bf16.msra.mxu0 %v4751
  %4761 = vmatmul.bf16.gmra.mxu0 %v4748
  %v4762 = vpop.f32.mrf.mxu0
  %v4763 = vadd.f32 0.0, %v4762
  %v4764 = vpop.f32.mrf.mxu0
  %4765 = vdwg.mxu0
  %v4767 = vsel %vm3341, %v4355, 0
  %v4770 = vsel %vm4369, %v3330, 0
  %4772 = vmatpush.bf16.msra.mxu0 0
  %4773 = vmatpush.bf16.msra.mxu0 0
  %4774 = vmatpush.bf16.msra.mxu0 0
  %4775 = vmatpush.bf16.msra.mxu0 0
  %4776 = vmatpush.bf16.msra.mxu0 0
  %4777 = vmatpush.bf16.msra.mxu0 0
  %4778 = vmatpush.bf16.msra.mxu0 0
  %4779 = vmatpush.bf16.msra.mxu0 %v4770
  %4780 = vmatmul.bf16.gmra.mxu0 %v4767
  %v4781 = vpop.f32.mrf.mxu0
  %v4782 = vadd.f32 0.0, %v4781
  %v4783 = vpop.f32.mrf.mxu0
  %4784 = vdwg.mxu0
  %v4786 = vsel %vm3341, %v4356, 0
  %v4789 = vsel %vm4369, %v3331, 0
  %4791 = vmatpush.bf16.msra.mxu0 0
  %4792 = vmatpush.bf16.msra.mxu0 0
  %4793 = vmatpush.bf16.msra.mxu0 0
  %4794 = vmatpush.bf16.msra.mxu0 0
  %4795 = vmatpush.bf16.msra.mxu0 0
  %4796 = vmatpush.bf16.msra.mxu0 0
  %4797 = vmatpush.bf16.msra.mxu0 0
  %4798 = vmatpush.bf16.msra.mxu0 %v4789
  %4799 = vmatmul.bf16.gmra.mxu0 %v4786
  %v4800 = vpop.f32.mrf.mxu0
  %v4801 = vadd.f32 0.0, %v4800
  %v4802 = vpop.f32.mrf.mxu0
  %4803 = vdwg.mxu0
  %v4805 = vsel %vm3341, %v4357, 0
  %v4808 = vsel %vm4369, %v3332, 0
  %4810 = vmatpush.bf16.msra.mxu0 0
  %4811 = vmatpush.bf16.msra.mxu0 0
  %4812 = vmatpush.bf16.msra.mxu0 0
  %4813 = vmatpush.bf16.msra.mxu0 0
  %4814 = vmatpush.bf16.msra.mxu0 0
  %4815 = vmatpush.bf16.msra.mxu0 0
  %4816 = vmatpush.bf16.msra.mxu0 0
  %4817 = vmatpush.bf16.msra.mxu0 %v4808
  %4818 = vmatmul.bf16.gmra.mxu0 %v4805
  %v4819 = vpop.f32.mrf.mxu0
  %v4820 = vadd.f32 0.0, %v4819
  %v4821 = vpop.f32.mrf.mxu0
  %4822 = vdwg.mxu0
  %v4824 = vsel %vm3341, %v4358, 0
  %v4827 = vsel %vm4369, %v3333, 0
  %4829 = vmatpush.bf16.msra.mxu0 0
  %4830 = vmatpush.bf16.msra.mxu0 0
  %4831 = vmatpush.bf16.msra.mxu0 0
  %4832 = vmatpush.bf16.msra.mxu0 0
  %4833 = vmatpush.bf16.msra.mxu0 0
  %4834 = vmatpush.bf16.msra.mxu0 0
  %4835 = vmatpush.bf16.msra.mxu0 0
  %4836 = vmatpush.bf16.msra.mxu0 %v4827
  %4837 = vmatmul.bf16.gmra.mxu0 %v4824
  %v4838 = vpop.f32.mrf.mxu0
  %v4839 = vadd.f32 0.0, %v4838
  %v4840 = vpop.f32.mrf.mxu0
  %4841 = vdwg.mxu0
  %v4843 = vsel %vm3341, %v4359, 0
  %v4846 = vsel %vm4369, %v3334, 0
  %4848 = vmatpush.bf16.msra.mxu0 0
  %4849 = vmatpush.bf16.msra.mxu0 0
  %4850 = vmatpush.bf16.msra.mxu0 0
  %4851 = vmatpush.bf16.msra.mxu0 0
  %4852 = vmatpush.bf16.msra.mxu0 0
  %4853 = vmatpush.bf16.msra.mxu0 0
  %4854 = vmatpush.bf16.msra.mxu0 0
  %4855 = vmatpush.bf16.msra.mxu0 %v4846
  %4856 = vmatmul.bf16.gmra.mxu0 %v4843
  %v4857 = vpop.f32.mrf.mxu0
  %v4858 = vadd.f32 0.0, %v4857
  %v4859 = vpop.f32.mrf.mxu0
  %4860 = vdwg.mxu0
  %v4862 = vsel %vm3341, %v4360, 0
  %v4865 = vsel %vm4369, %v3335, 0
  %4867 = vmatpush.bf16.msra.mxu0 0
  %4868 = vmatpush.bf16.msra.mxu0 0
  %4869 = vmatpush.bf16.msra.mxu0 0
  %4870 = vmatpush.bf16.msra.mxu0 0
  %4871 = vmatpush.bf16.msra.mxu0 0
  %4872 = vmatpush.bf16.msra.mxu0 0
  %4873 = vmatpush.bf16.msra.mxu0 0
  %4874 = vmatpush.bf16.msra.mxu0 %v4865
  %4875 = vmatmul.bf16.gmra.mxu0 %v4862
  %v4876 = vpop.f32.mrf.mxu0
  %v4877 = vadd.f32 0.0, %v4876
  %v4878 = vpop.f32.mrf.mxu0
  %4879 = vdwg.mxu0
  %v4881 = vsel %vm3341, %v4361, 0
  %v4884 = vsel %vm4369, %v3336, 0
  %4886 = vmatpush.bf16.msra.mxu0 0
  %4887 = vmatpush.bf16.msra.mxu0 0
  %4888 = vmatpush.bf16.msra.mxu0 0
  %4889 = vmatpush.bf16.msra.mxu0 0
  %4890 = vmatpush.bf16.msra.mxu0 0
  %4891 = vmatpush.bf16.msra.mxu0 0
  %4892 = vmatpush.bf16.msra.mxu0 0
  %4893 = vmatpush.bf16.msra.mxu0 %v4884
  %4894 = vmatmul.bf16.gmra.mxu0 %v4881
  %v4895 = vpop.f32.mrf.mxu0
  %v4896 = vadd.f32 0.0, %v4895
  %v4897 = vpop.f32.mrf.mxu0
  %4898 = vdwg.mxu0
  %v4900 = vsel %vm3341, %v4362, 0
  %v4903 = vsel %vm4369, %v3337, 0
  %4905 = vmatpush.bf16.msra.mxu0 0
  %4906 = vmatpush.bf16.msra.mxu0 0
  %4907 = vmatpush.bf16.msra.mxu0 0
  %4908 = vmatpush.bf16.msra.mxu0 0
  %4909 = vmatpush.bf16.msra.mxu0 0
  %4910 = vmatpush.bf16.msra.mxu0 0
  %4911 = vmatpush.bf16.msra.mxu0 0
  %4912 = vmatpush.bf16.msra.mxu0 %v4903
  %4913 = vmatmul.bf16.gmra.mxu0 %v4900
  %v4914 = vpop.f32.mrf.mxu0
  %v4915 = vadd.f32 0.0, %v4914
  %v4916 = vpop.f32.mrf.mxu0
  %4917 = vdwg.mxu0
  %v4919 = vsel %vm3341, %v4363, 0
  %v4922 = vsel %vm4369, %v3338, 0
  %4924 = vmatpush.bf16.msra.mxu0 0
  %4925 = vmatpush.bf16.msra.mxu0 0
  %4926 = vmatpush.bf16.msra.mxu0 0
  %4927 = vmatpush.bf16.msra.mxu0 0
  %4928 = vmatpush.bf16.msra.mxu0 0
  %4929 = vmatpush.bf16.msra.mxu0 0
  %4930 = vmatpush.bf16.msra.mxu0 0
  %4931 = vmatpush.bf16.msra.mxu0 %v4922
  %4932 = vmatmul.bf16.gmra.mxu0 %v4919
  %v4933 = vpop.f32.mrf.mxu0
  %v4934 = vadd.f32 0.0, %v4933
  %v4935 = vpop.f32.mrf.mxu0
  %4936 = vdwg.mxu0
  %v4938 = vsel %vm3341, %v4364, 0
  %v4941 = vsel %vm4369, %v3339, 0
  %4943 = vmatpush.bf16.msra.mxu0 0
  %4944 = vmatpush.bf16.msra.mxu0 0
  %4945 = vmatpush.bf16.msra.mxu0 0
  %4946 = vmatpush.bf16.msra.mxu0 0
  %4947 = vmatpush.bf16.msra.mxu0 0
  %4948 = vmatpush.bf16.msra.mxu0 0
  %4949 = vmatpush.bf16.msra.mxu0 0
  %4950 = vmatpush.bf16.msra.mxu0 %v4941
  %4951 = vmatmul.bf16.gmra.mxu0 %v4938
  %v4952 = vpop.f32.mrf.mxu0
  %v4953 = vadd.f32 0.0, %v4952
  %v4954 = vpop.f32.mrf.mxu0
  %4955 = vdwg.mxu0
  %v4957 = vsel %vm3341, %v4365, 0
  %v4960 = vsel %vm4369, %v3340, 0
  %4962 = vmatpush.bf16.msra.mxu0 0
  %4963 = vmatpush.bf16.msra.mxu0 0
  %4964 = vmatpush.bf16.msra.mxu0 0
  %4965 = vmatpush.bf16.msra.mxu0 0
  %4966 = vmatpush.bf16.msra.mxu0 0
  %4967 = vmatpush.bf16.msra.mxu0 0
  %4968 = vmatpush.bf16.msra.mxu0 0
  %4969 = vmatpush.bf16.msra.mxu0 %v4960
  %4970 = vmatmul.bf16.gmra.mxu0 %v4957
  %v4971 = vpop.f32.mrf.mxu0
  %v4972 = vadd.f32 0.0, %v4971
  %v4973 = vpop.f32.mrf.mxu0
  %4974 = vdwg.mxu0
  %v4975 = vrot.slane %v4687, 4
  %v4976 = vsel %vm573, %v4975, %v4383
  %v4977 = vrot.slane %v4383, 4
  %v4978 = vsel %vm573, %v4687, %v4977
  %v4980 = vunpack.c.l.s4 1983009808
  %v4981 = vunpack.c.0.s8 %v4980
  %v4982 = vperm.slane %v4976, %v4981
  %v4984 = vunpack.c.l.s4 1983009808
  %v4985 = vunpack.c.0.s8 %v4984
  %v4986 = vperm.slane %v4978, %v4985
  %v4987 = vrot.slane %v4839, 4
  %v4988 = vsel %vm573, %v4987, %v4535
  %v4989 = vrot.slane %v4535, 4
  %v4990 = vsel %vm573, %v4839, %v4989
  %v4992 = vunpack.c.l.s4 1983009808
  %v4993 = vunpack.c.0.s8 %v4992
  %v4994 = vperm.slane %v4988, %v4993
  %v4996 = vunpack.c.l.s4 1983009808
  %v4997 = vunpack.c.0.s8 %v4996
  %v4998 = vperm.slane %v4990, %v4997
  %v4999 = vrot.slane %v4994, 4
  %v5000 = vsel %vm573, %v4999, %v4982
  %v5001 = vrot.slane %v4982, 4
  %v5002 = vsel %vm573, %v4994, %v5001
  %v5004 = vunpack.c.l.s4 1934713408
  %v5005 = vunpack.c.0.s8 %v5004
  %v5006 = vperm.slane %v5000, %v5005
  %v5008 = vunpack.c.l.s4 1934713408
  %v5009 = vunpack.c.0.s8 %v5008
  %v5010 = vperm.slane %v5002, %v5009
  %v5011 = vrot.slane %v4998, 4
  %v5012 = vsel %vm573, %v5011, %v4986
  %v5013 = vrot.slane %v4986, 4
  %v5014 = vsel %vm573, %v4998, %v5013
  %v5016 = vunpack.c.l.s4 1934713408
  %v5017 = vunpack.c.0.s8 %v5016
  %v5018 = vperm.slane %v5012, %v5017
  %v5020 = vunpack.c.l.s4 1934713408
  %v5021 = vunpack.c.0.s8 %v5020
  %v5022 = vperm.slane %v5014, %v5021
  %v5023 = vrot.slane %v5006, 4
  %v5024 = vsel %vm573, 0.0, %v5023
  %v5025 = vrot.slane %v5010, 4
  %v5026 = vsel %vm573, 0.0, %v5025
  %v5027 = vrot.slane %v5018, 4
  %v5028 = vsel %vm573, 0.0, %v5027
  %v5029 = vrot.slane %v5022, 4
  %v5030 = vsel %vm573, 0.0, %v5029
  %v5031 = vrot.slane %v4706, 4
  %v5032 = vsel %vm573, %v5031, %v4402
  %v5033 = vrot.slane %v4402, 4
  %v5034 = vsel %vm573, %v4706, %v5033
  %v5036 = vunpack.c.l.s4 1983009808
  %v5037 = vunpack.c.0.s8 %v5036
  %v5038 = vperm.slane %v5032, %v5037
  %v5040 = vunpack.c.l.s4 1983009808
  %v5041 = vunpack.c.0.s8 %v5040
  %v5042 = vperm.slane %v5034, %v5041
  %v5043 = vrot.slane %v4858, 4
  %v5044 = vsel %vm573, %v5043, %v4554
  %v5045 = vrot.slane %v4554, 4
  %v5046 = vsel %vm573, %v4858, %v5045
  %v5048 = vunpack.c.l.s4 1983009808
  %v5049 = vunpack.c.0.s8 %v5048
  %v5050 = vperm.slane %v5044, %v5049
  %v5052 = vunpack.c.l.s4 1983009808
  %v5053 = vunpack.c.0.s8 %v5052
  %v5054 = vperm.slane %v5046, %v5053
  %v5055 = vrot.slane %v5050, 4
  %v5056 = vsel %vm573, %v5055, %v5038
  %v5057 = vrot.slane %v5038, 4
  %v5058 = vsel %vm573, %v5050, %v5057
  %v5060 = vunpack.c.l.s4 1934713408
  %v5061 = vunpack.c.0.s8 %v5060
  %v5062 = vperm.slane %v5056, %v5061
  %v5064 = vunpack.c.l.s4 1934713408
  %v5065 = vunpack.c.0.s8 %v5064
  %v5066 = vperm.slane %v5058, %v5065
  %v5067 = vrot.slane %v5054, 4
  %v5068 = vsel %vm573, %v5067, %v5042
  %v5069 = vrot.slane %v5042, 4
  %v5070 = vsel %vm573, %v5054, %v5069
  %v5072 = vunpack.c.l.s4 1934713408
  %v5073 = vunpack.c.0.s8 %v5072
  %v5074 = vperm.slane %v5068, %v5073
  %v5076 = vunpack.c.l.s4 1934713408
  %v5077 = vunpack.c.0.s8 %v5076
  %v5078 = vperm.slane %v5070, %v5077
  %v5079 = vrot.slane %v5062, 4
  %v5080 = vsel %vm573, 0.0, %v5079
  %v5081 = vrot.slane %v5066, 4
  %v5082 = vsel %vm573, 0.0, %v5081
  %v5083 = vrot.slane %v5074, 4
  %v5084 = vsel %vm573, 0.0, %v5083
  %v5085 = vrot.slane %v5078, 4
  %v5086 = vsel %vm573, 0.0, %v5085
  %v5087 = vrot.slane %v4725, 4
  %v5088 = vsel %vm573, %v5087, %v4421
  %v5089 = vrot.slane %v4421, 4
  %v5090 = vsel %vm573, %v4725, %v5089
  %v5092 = vunpack.c.l.s4 1983009808
  %v5093 = vunpack.c.0.s8 %v5092
  %v5094 = vperm.slane %v5088, %v5093
  %v5096 = vunpack.c.l.s4 1983009808
  %v5097 = vunpack.c.0.s8 %v5096
  %v5098 = vperm.slane %v5090, %v5097
  %v5099 = vrot.slane %v4877, 4
  %v5100 = vsel %vm573, %v5099, %v4573
  %v5101 = vrot.slane %v4573, 4
  %v5102 = vsel %vm573, %v4877, %v5101
  %v5104 = vunpack.c.l.s4 1983009808
  %v5105 = vunpack.c.0.s8 %v5104
  %v5106 = vperm.slane %v5100, %v5105
  %v5108 = vunpack.c.l.s4 1983009808
  %v5109 = vunpack.c.0.s8 %v5108
  %v5110 = vperm.slane %v5102, %v5109
  %v5111 = vrot.slane %v5106, 4
  %v5112 = vsel %vm573, %v5111, %v5094
  %v5113 = vrot.slane %v5094, 4
  %v5114 = vsel %vm573, %v5106, %v5113
  %v5116 = vunpack.c.l.s4 1934713408
  %v5117 = vunpack.c.0.s8 %v5116
  %v5118 = vperm.slane %v5112, %v5117
  %v5120 = vunpack.c.l.s4 1934713408
  %v5121 = vunpack.c.0.s8 %v5120
  %v5122 = vperm.slane %v5114, %v5121
  %v5123 = vrot.slane %v5110, 4
  %v5124 = vsel %vm573, %v5123, %v5098
  %v5125 = vrot.slane %v5098, 4
  %v5126 = vsel %vm573, %v5110, %v5125
  %v5128 = vunpack.c.l.s4 1934713408
  %v5129 = vunpack.c.0.s8 %v5128
  %v5130 = vperm.slane %v5124, %v5129
  %v5132 = vunpack.c.l.s4 1934713408
  %v5133 = vunpack.c.0.s8 %v5132
  %v5134 = vperm.slane %v5126, %v5133
  %v5135 = vrot.slane %v5118, 4
  %v5136 = vsel %vm573, 0.0, %v5135
  %v5137 = vrot.slane %v5122, 4
  %v5138 = vsel %vm573, 0.0, %v5137
  %v5139 = vrot.slane %v5130, 4
  %v5140 = vsel %vm573, 0.0, %v5139
  %v5141 = vrot.slane %v5134, 4
  %v5142 = vsel %vm573, 0.0, %v5141
  %v5143 = vrot.slane %v4744, 4
  %v5144 = vsel %vm573, %v5143, %v4440
  %v5145 = vrot.slane %v4440, 4
  %v5146 = vsel %vm573, %v4744, %v5145
  %v5148 = vunpack.c.l.s4 1983009808
  %v5149 = vunpack.c.0.s8 %v5148
  %v5150 = vperm.slane %v5144, %v5149
  %v5152 = vunpack.c.l.s4 1983009808
  %v5153 = vunpack.c.0.s8 %v5152
  %v5154 = vperm.slane %v5146, %v5153
  %v5155 = vrot.slane %v4896, 4
  %v5156 = vsel %vm573, %v5155, %v4592
  %v5157 = vrot.slane %v4592, 4
  %v5158 = vsel %vm573, %v4896, %v5157
  %v5160 = vunpack.c.l.s4 1983009808
  %v5161 = vunpack.c.0.s8 %v5160
  %v5162 = vperm.slane %v5156, %v5161
  %v5164 = vunpack.c.l.s4 1983009808
  %v5165 = vunpack.c.0.s8 %v5164
  %v5166 = vperm.slane %v5158, %v5165
  %v5167 = vrot.slane %v5162, 4
  %v5168 = vsel %vm573, %v5167, %v5150
  %v5169 = vrot.slane %v5150, 4
  %v5170 = vsel %vm573, %v5162, %v5169
  %v5172 = vunpack.c.l.s4 1934713408
  %v5173 = vunpack.c.0.s8 %v5172
  %v5174 = vperm.slane %v5168, %v5173
  %v5176 = vunpack.c.l.s4 1934713408
  %v5177 = vunpack.c.0.s8 %v5176
  %v5178 = vperm.slane %v5170, %v5177
  %v5179 = vrot.slane %v5166, 4
  %v5180 = vsel %vm573, %v5179, %v5154
  %v5181 = vrot.slane %v5154, 4
  %v5182 = vsel %vm573, %v5166, %v5181
  %v5184 = vunpack.c.l.s4 1934713408
  %v5185 = vunpack.c.0.s8 %v5184
  %v5186 = vperm.slane %v5180, %v5185
  %v5188 = vunpack.c.l.s4 1934713408
  %v5189 = vunpack.c.0.s8 %v5188
  %v5190 = vperm.slane %v5182, %v5189
  %v5191 = vrot.slane %v5174, 4
  %v5192 = vsel %vm573, 0.0, %v5191
  %v5193 = vrot.slane %v5178, 4
  %v5194 = vsel %vm573, 0.0, %v5193
  %v5195 = vrot.slane %v5186, 4
  %v5196 = vsel %vm573, 0.0, %v5195
  %v5197 = vrot.slane %v5190, 4
  %v5198 = vsel %vm573, 0.0, %v5197
  %v5199 = vrot.slane %v4763, 4
  %v5200 = vsel %vm573, %v5199, %v4459
  %v5201 = vrot.slane %v4459, 4
  %v5202 = vsel %vm573, %v4763, %v5201
  %v5204 = vunpack.c.l.s4 1983009808
  %v5205 = vunpack.c.0.s8 %v5204
  %v5206 = vperm.slane %v5200, %v5205
  %v5208 = vunpack.c.l.s4 1983009808
  %v5209 = vunpack.c.0.s8 %v5208
  %v5210 = vperm.slane %v5202, %v5209
  %v5211 = vrot.slane %v4915, 4
  %v5212 = vsel %vm573, %v5211, %v4611
  %v5213 = vrot.slane %v4611, 4
  %v5214 = vsel %vm573, %v4915, %v5213
  %v5216 = vunpack.c.l.s4 1983009808
  %v5217 = vunpack.c.0.s8 %v5216
  %v5218 = vperm.slane %v5212, %v5217
  %v5220 = vunpack.c.l.s4 1983009808
  %v5221 = vunpack.c.0.s8 %v5220
  %v5222 = vperm.slane %v5214, %v5221
  %v5223 = vrot.slane %v5218, 4
  %v5224 = vsel %vm573, %v5223, %v5206
  %v5225 = vrot.slane %v5206, 4
  %v5226 = vsel %vm573, %v5218, %v5225
  %v5228 = vunpack.c.l.s4 1934713408
  %v5229 = vunpack.c.0.s8 %v5228
  %v5230 = vperm.slane %v5224, %v5229
  %v5232 = vunpack.c.l.s4 1934713408
  %v5233 = vunpack.c.0.s8 %v5232
  %v5234 = vperm.slane %v5226, %v5233
  %v5235 = vrot.slane %v5222, 4
  %v5236 = vsel %vm573, %v5235, %v5210
  %v5237 = vrot.slane %v5210, 4
  %v5238 = vsel %vm573, %v5222, %v5237
  %v5240 = vunpack.c.l.s4 1934713408
  %v5241 = vunpack.c.0.s8 %v5240
  %v5242 = vperm.slane %v5236, %v5241
  %v5244 = vunpack.c.l.s4 1934713408
  %v5245 = vunpack.c.0.s8 %v5244
  %v5246 = vperm.slane %v5238, %v5245
  %v5247 = vrot.slane %v5230, 4
  %v5248 = vsel %vm573, 0.0, %v5247
  %v5249 = vrot.slane %v5234, 4
  %v5250 = vsel %vm573, 0.0, %v5249
  %v5251 = vrot.slane %v5242, 4
  %v5252 = vsel %vm573, 0.0, %v5251
  %v5253 = vrot.slane %v5246, 4
  %v5254 = vsel %vm573, 0.0, %v5253
  %v5255 = vrot.slane %v4782, 4
  %v5256 = vsel %vm573, %v5255, %v4478
  %v5257 = vrot.slane %v4478, 4
  %v5258 = vsel %vm573, %v4782, %v5257
  %v5260 = vunpack.c.l.s4 1983009808
  %v5261 = vunpack.c.0.s8 %v5260
  %v5262 = vperm.slane %v5256, %v5261
  %v5264 = vunpack.c.l.s4 1983009808
  %v5265 = vunpack.c.0.s8 %v5264
  %v5266 = vperm.slane %v5258, %v5265
  %v5267 = vrot.slane %v4934, 4
  %v5268 = vsel %vm573, %v5267, %v4630
  %v5269 = vrot.slane %v4630, 4
  %v5270 = vsel %vm573, %v4934, %v5269
  %v5272 = vunpack.c.l.s4 1983009808
  %v5273 = vunpack.c.0.s8 %v5272
  %v5274 = vperm.slane %v5268, %v5273
  %v5276 = vunpack.c.l.s4 1983009808
  %v5277 = vunpack.c.0.s8 %v5276
  %v5278 = vperm.slane %v5270, %v5277
  %v5279 = vrot.slane %v5274, 4
  %v5280 = vsel %vm573, %v5279, %v5262
  %v5281 = vrot.slane %v5262, 4
  %v5282 = vsel %vm573, %v5274, %v5281
  %v5284 = vunpack.c.l.s4 1934713408
  %v5285 = vunpack.c.0.s8 %v5284
  %v5286 = vperm.slane %v5280, %v5285
  %v5288 = vunpack.c.l.s4 1934713408
  %v5289 = vunpack.c.0.s8 %v5288
  %v5290 = vperm.slane %v5282, %v5289
  %v5291 = vrot.slane %v5278, 4
  %v5292 = vsel %vm573, %v5291, %v5266
  %v5293 = vrot.slane %v5266, 4
  %v5294 = vsel %vm573, %v5278, %v5293
  %v5296 = vunpack.c.l.s4 1934713408
  %v5297 = vunpack.c.0.s8 %v5296
  %v5298 = vperm.slane %v5292, %v5297
  %v5300 = vunpack.c.l.s4 1934713408
  %v5301 = vunpack.c.0.s8 %v5300
  %v5302 = vperm.slane %v5294, %v5301
  %v5303 = vrot.slane %v5286, 4
  %v5304 = vsel %vm573, 0.0, %v5303
  %v5305 = vrot.slane %v5290, 4
  %v5306 = vsel %vm573, 0.0, %v5305
  %v5307 = vrot.slane %v5298, 4
  %v5308 = vsel %vm573, 0.0, %v5307
  %v5309 = vrot.slane %v5302, 4
  %v5310 = vsel %vm573, 0.0, %v5309
  %v5311 = vrot.slane %v4801, 4
  %v5312 = vsel %vm573, %v5311, %v4497
  %v5313 = vrot.slane %v4497, 4
  %v5314 = vsel %vm573, %v4801, %v5313
  %v5316 = vunpack.c.l.s4 1983009808
  %v5317 = vunpack.c.0.s8 %v5316
  %v5318 = vperm.slane %v5312, %v5317
  %v5320 = vunpack.c.l.s4 1983009808
  %v5321 = vunpack.c.0.s8 %v5320
  %v5322 = vperm.slane %v5314, %v5321
  %v5323 = vrot.slane %v4953, 4
  %v5324 = vsel %vm573, %v5323, %v4649
  %v5325 = vrot.slane %v4649, 4
  %v5326 = vsel %vm573, %v4953, %v5325
  %v5328 = vunpack.c.l.s4 1983009808
  %v5329 = vunpack.c.0.s8 %v5328
  %v5330 = vperm.slane %v5324, %v5329
  %v5332 = vunpack.c.l.s4 1983009808
  %v5333 = vunpack.c.0.s8 %v5332
  %v5334 = vperm.slane %v5326, %v5333
  %v5335 = vrot.slane %v5330, 4
  %v5336 = vsel %vm573, %v5335, %v5318
  %v5337 = vrot.slane %v5318, 4
  %v5338 = vsel %vm573, %v5330, %v5337
  %v5340 = vunpack.c.l.s4 1934713408
  %v5341 = vunpack.c.0.s8 %v5340
  %v5342 = vperm.slane %v5336, %v5341
  %v5344 = vunpack.c.l.s4 1934713408
  %v5345 = vunpack.c.0.s8 %v5344
  %v5346 = vperm.slane %v5338, %v5345
  %v5347 = vrot.slane %v5334, 4
  %v5348 = vsel %vm573, %v5347, %v5322
  %v5349 = vrot.slane %v5322, 4
  %v5350 = vsel %vm573, %v5334, %v5349
  %v5352 = vunpack.c.l.s4 1934713408
  %v5353 = vunpack.c.0.s8 %v5352
  %v5354 = vperm.slane %v5348, %v5353
  %v5356 = vunpack.c.l.s4 1934713408
  %v5357 = vunpack.c.0.s8 %v5356
  %v5358 = vperm.slane %v5350, %v5357
  %v5359 = vrot.slane %v5342, 4
  %v5360 = vsel %vm573, 0.0, %v5359
  %v5361 = vrot.slane %v5346, 4
  %v5362 = vsel %vm573, 0.0, %v5361
  %v5363 = vrot.slane %v5354, 4
  %v5364 = vsel %vm573, 0.0, %v5363
  %v5365 = vrot.slane %v5358, 4
  %v5366 = vsel %vm573, 0.0, %v5365
  %v5367 = vrot.slane %v4820, 4
  %v5368 = vsel %vm573, %v5367, %v4516
  %v5369 = vrot.slane %v4516, 4
  %v5370 = vsel %vm573, %v4820, %v5369
  %v5372 = vunpack.c.l.s4 1983009808
  %v5373 = vunpack.c.0.s8 %v5372
  %v5374 = vperm.slane %v5368, %v5373
  %v5376 = vunpack.c.l.s4 1983009808
  %v5377 = vunpack.c.0.s8 %v5376
  %v5378 = vperm.slane %v5370, %v5377
  %v5379 = vrot.slane %v4972, 4
  %v5380 = vsel %vm573, %v5379, %v4668
  %v5381 = vrot.slane %v4668, 4
  %v5382 = vsel %vm573, %v4972, %v5381
  %v5384 = vunpack.c.l.s4 1983009808
  %v5385 = vunpack.c.0.s8 %v5384
  %v5386 = vperm.slane %v5380, %v5385
  %v5388 = vunpack.c.l.s4 1983009808
  %v5389 = vunpack.c.0.s8 %v5388
  %v5390 = vperm.slane %v5382, %v5389
  %v5391 = vrot.slane %v5386, 4
  %v5392 = vsel %vm573, %v5391, %v5374
  %v5393 = vrot.slane %v5374, 4
  %v5394 = vsel %vm573, %v5386, %v5393
  %v5396 = vunpack.c.l.s4 1934713408
  %v5397 = vunpack.c.0.s8 %v5396
  %v5398 = vperm.slane %v5392, %v5397
  %v5400 = vunpack.c.l.s4 1934713408
  %v5401 = vunpack.c.0.s8 %v5400
  %v5402 = vperm.slane %v5394, %v5401
  %v5403 = vrot.slane %v5390, 4
  %v5404 = vsel %vm573, %v5403, %v5378
  %v5405 = vrot.slane %v5378, 4
  %v5406 = vsel %vm573, %v5390, %v5405
  %v5408 = vunpack.c.l.s4 1934713408
  %v5409 = vunpack.c.0.s8 %v5408
  %v5410 = vperm.slane %v5404, %v5409
  %v5412 = vunpack.c.l.s4 1934713408
  %v5413 = vunpack.c.0.s8 %v5412
  %v5414 = vperm.slane %v5406, %v5413
  %v5415 = vrot.slane %v5398, 4
  %v5416 = vsel %vm573, 0.0, %v5415
  %v5417 = vrot.slane %v5402, 4
  %v5418 = vsel %vm573, 0.0, %v5417
  %v5419 = vrot.slane %v5410, 4
  %v5420 = vsel %vm573, 0.0, %v5419
  %v5421 = vrot.slane %v5414, 4
  %v5422 = vsel %vm573, 0.0, %v5421
  %v5423 = vsel %vm573, %v5025, %v5006
  %v5425 = vunpack.c.l.s4 1983009808
  %v5426 = vunpack.c.0.s8 %v5425
  %v5427 = vperm.slane %v5423, %v5426
  %v5428 = vrot.slane %v5026, 4
  %v5429 = vsel %vm573, %v5428, %v5024
  %v5431 = vunpack.c.l.s4 1983009808
  %v5432 = vunpack.c.0.s8 %v5431
  %v5433 = vperm.slane %v5429, %v5432
  %v5434 = vsel %vm573, %v5029, %v5018
  %v5436 = vunpack.c.l.s4 1983009808
  %v5437 = vunpack.c.0.s8 %v5436
  %v5438 = vperm.slane %v5434, %v5437
  %v5439 = vrot.slane %v5030, 4
  %v5440 = vsel %vm573, %v5439, %v5028
  %v5442 = vunpack.c.l.s4 1983009808
  %v5443 = vunpack.c.0.s8 %v5442
  %v5444 = vperm.slane %v5440, %v5443
  %v5445 = vrot.slane %v5433, 4
  %v5446 = vsel %vm573, %v5445, %v5427
  %v5447 = vrot.slane %v5427, 4
  %v5448 = vsel %vm573, %v5433, %v5447
  %v5450 = vunpack.c.l.s4 1934713408
  %v5451 = vunpack.c.0.s8 %v5450
  %v5452 = vperm.slane %v5446, %v5451
  %v5454 = vunpack.c.l.s4 1934713408
  %v5455 = vunpack.c.0.s8 %v5454
  %v5456 = vperm.slane %v5448, %v5455
  %v5457 = vrot.slane %v5444, 4
  %v5458 = vsel %vm573, %v5457, %v5438
  %v5459 = vrot.slane %v5438, 4
  %v5460 = vsel %vm573, %v5444, %v5459
  %v5462 = vunpack.c.l.s4 1934713408
  %v5463 = vunpack.c.0.s8 %v5462
  %v5464 = vperm.slane %v5458, %v5463
  %v5466 = vunpack.c.l.s4 1934713408
  %v5467 = vunpack.c.0.s8 %v5466
  %v5468 = vperm.slane %v5460, %v5467
  %v5469 = vrot.slane %v5464, 4
  %v5470 = vsel %vm573, %v5469, %v5452
  %v5471 = vrot.slane %v5452, 4
  %v5472 = vsel %vm573, %v5464, %v5471
  %v5473 = vrot.slane %v5468, 4
  %v5474 = vsel %vm573, %v5473, %v5456
  %v5475 = vrot.slane %v5456, 4
  %v5476 = vsel %vm573, %v5468, %v5475
  %v5477 = vsel %vm573, %v5081, %v5062
  %v5479 = vunpack.c.l.s4 1983009808
  %v5480 = vunpack.c.0.s8 %v5479
  %v5481 = vperm.slane %v5477, %v5480
  %v5482 = vrot.slane %v5082, 4
  %v5483 = vsel %vm573, %v5482, %v5080
  %v5485 = vunpack.c.l.s4 1983009808
  %v5486 = vunpack.c.0.s8 %v5485
  %v5487 = vperm.slane %v5483, %v5486
  %v5488 = vsel %vm573, %v5085, %v5074
  %v5490 = vunpack.c.l.s4 1983009808
  %v5491 = vunpack.c.0.s8 %v5490
  %v5492 = vperm.slane %v5488, %v5491
  %v5493 = vrot.slane %v5086, 4
  %v5494 = vsel %vm573, %v5493, %v5084
  %v5496 = vunpack.c.l.s4 1983009808
  %v5497 = vunpack.c.0.s8 %v5496
  %v5498 = vperm.slane %v5494, %v5497
  %v5499 = vrot.slane %v5487, 4
  %v5500 = vsel %vm573, %v5499, %v5481
  %v5501 = vrot.slane %v5481, 4
  %v5502 = vsel %vm573, %v5487, %v5501
  %v5504 = vunpack.c.l.s4 1934713408
  %v5505 = vunpack.c.0.s8 %v5504
  %v5506 = vperm.slane %v5500, %v5505
  %v5508 = vunpack.c.l.s4 1934713408
  %v5509 = vunpack.c.0.s8 %v5508
  %v5510 = vperm.slane %v5502, %v5509
  %v5511 = vrot.slane %v5498, 4
  %v5512 = vsel %vm573, %v5511, %v5492
  %v5513 = vrot.slane %v5492, 4
  %v5514 = vsel %vm573, %v5498, %v5513
  %v5516 = vunpack.c.l.s4 1934713408
  %v5517 = vunpack.c.0.s8 %v5516
  %v5518 = vperm.slane %v5512, %v5517
  %v5520 = vunpack.c.l.s4 1934713408
  %v5521 = vunpack.c.0.s8 %v5520
  %v5522 = vperm.slane %v5514, %v5521
  %v5523 = vrot.slane %v5518, 4
  %v5524 = vsel %vm573, %v5523, %v5506
  %v5525 = vrot.slane %v5506, 4
  %v5526 = vsel %vm573, %v5518, %v5525
  %v5527 = vrot.slane %v5522, 4
  %v5528 = vsel %vm573, %v5527, %v5510
  %v5529 = vrot.slane %v5510, 4
  %v5530 = vsel %vm573, %v5522, %v5529
  %v5531 = vsel %vm573, %v5137, %v5118
  %v5533 = vunpack.c.l.s4 1983009808
  %v5534 = vunpack.c.0.s8 %v5533
  %v5535 = vperm.slane %v5531, %v5534
  %v5536 = vrot.slane %v5138, 4
  %v5537 = vsel %vm573, %v5536, %v5136
  %v5539 = vunpack.c.l.s4 1983009808
  %v5540 = vunpack.c.0.s8 %v5539
  %v5541 = vperm.slane %v5537, %v5540
  %v5542 = vsel %vm573, %v5141, %v5130
  %v5544 = vunpack.c.l.s4 1983009808
  %v5545 = vunpack.c.0.s8 %v5544
  %v5546 = vperm.slane %v5542, %v5545
  %v5547 = vrot.slane %v5142, 4
  %v5548 = vsel %vm573, %v5547, %v5140
  %v5550 = vunpack.c.l.s4 1983009808
  %v5551 = vunpack.c.0.s8 %v5550
  %v5552 = vperm.slane %v5548, %v5551
  %v5553 = vrot.slane %v5541, 4
  %v5554 = vsel %vm573, %v5553, %v5535
  %v5555 = vrot.slane %v5535, 4
  %v5556 = vsel %vm573, %v5541, %v5555
  %v5558 = vunpack.c.l.s4 1934713408
  %v5559 = vunpack.c.0.s8 %v5558
  %v5560 = vperm.slane %v5554, %v5559
  %v5562 = vunpack.c.l.s4 1934713408
  %v5563 = vunpack.c.0.s8 %v5562
  %v5564 = vperm.slane %v5556, %v5563
  %v5565 = vrot.slane %v5552, 4
  %v5566 = vsel %vm573, %v5565, %v5546
  %v5567 = vrot.slane %v5546, 4
  %v5568 = vsel %vm573, %v5552, %v5567
  %v5570 = vunpack.c.l.s4 1934713408
  %v5571 = vunpack.c.0.s8 %v5570
  %v5572 = vperm.slane %v5566, %v5571
  %v5574 = vunpack.c.l.s4 1934713408
  %v5575 = vunpack.c.0.s8 %v5574
  %v5576 = vperm.slane %v5568, %v5575
  %v5577 = vrot.slane %v5572, 4
  %v5578 = vsel %vm573, %v5577, %v5560
  %v5579 = vrot.slane %v5560, 4
  %v5580 = vsel %vm573, %v5572, %v5579
  %v5581 = vrot.slane %v5576, 4
  %v5582 = vsel %vm573, %v5581, %v5564
  %v5583 = vrot.slane %v5564, 4
  %v5584 = vsel %vm573, %v5576, %v5583
  %v5585 = vsel %vm573, %v5193, %v5174
  %v5587 = vunpack.c.l.s4 1983009808
  %v5588 = vunpack.c.0.s8 %v5587
  %v5589 = vperm.slane %v5585, %v5588
  %v5590 = vrot.slane %v5194, 4
  %v5591 = vsel %vm573, %v5590, %v5192
  %v5593 = vunpack.c.l.s4 1983009808
  %v5594 = vunpack.c.0.s8 %v5593
  %v5595 = vperm.slane %v5591, %v5594
  %v5596 = vsel %vm573, %v5197, %v5186
  %v5598 = vunpack.c.l.s4 1983009808
  %v5599 = vunpack.c.0.s8 %v5598
  %v5600 = vperm.slane %v5596, %v5599
  %v5601 = vrot.slane %v5198, 4
  %v5602 = vsel %vm573, %v5601, %v5196
  %v5604 = vunpack.c.l.s4 1983009808
  %v5605 = vunpack.c.0.s8 %v5604
  %v5606 = vperm.slane %v5602, %v5605
  %v5607 = vrot.slane %v5595, 4
  %v5608 = vsel %vm573, %v5607, %v5589
  %v5609 = vrot.slane %v5589, 4
  %v5610 = vsel %vm573, %v5595, %v5609
  %v5612 = vunpack.c.l.s4 1934713408
  %v5613 = vunpack.c.0.s8 %v5612
  %v5614 = vperm.slane %v5608, %v5613
  %v5616 = vunpack.c.l.s4 1934713408
  %v5617 = vunpack.c.0.s8 %v5616
  %v5618 = vperm.slane %v5610, %v5617
  %v5619 = vrot.slane %v5606, 4
  %v5620 = vsel %vm573, %v5619, %v5600
  %v5621 = vrot.slane %v5600, 4
  %v5622 = vsel %vm573, %v5606, %v5621
  %v5624 = vunpack.c.l.s4 1934713408
  %v5625 = vunpack.c.0.s8 %v5624
  %v5626 = vperm.slane %v5620, %v5625
  %v5628 = vunpack.c.l.s4 1934713408
  %v5629 = vunpack.c.0.s8 %v5628
  %v5630 = vperm.slane %v5622, %v5629
  %v5631 = vrot.slane %v5626, 4
  %v5632 = vsel %vm573, %v5631, %v5614
  %v5633 = vrot.slane %v5614, 4
  %v5634 = vsel %vm573, %v5626, %v5633
  %v5635 = vrot.slane %v5630, 4
  %v5636 = vsel %vm573, %v5635, %v5618
  %v5637 = vrot.slane %v5618, 4
  %v5638 = vsel %vm573, %v5630, %v5637
  %v5639 = vsel %vm573, %v5249, %v5230
  %v5641 = vunpack.c.l.s4 1983009808
  %v5642 = vunpack.c.0.s8 %v5641
  %v5643 = vperm.slane %v5639, %v5642
  %v5644 = vrot.slane %v5250, 4
  %v5645 = vsel %vm573, %v5644, %v5248
  %v5647 = vunpack.c.l.s4 1983009808
  %v5648 = vunpack.c.0.s8 %v5647
  %v5649 = vperm.slane %v5645, %v5648
  %v5650 = vsel %vm573, %v5253, %v5242
  %v5652 = vunpack.c.l.s4 1983009808
  %v5653 = vunpack.c.0.s8 %v5652
  %v5654 = vperm.slane %v5650, %v5653
  %v5655 = vrot.slane %v5254, 4
  %v5656 = vsel %vm573, %v5655, %v5252
  %v5658 = vunpack.c.l.s4 1983009808
  %v5659 = vunpack.c.0.s8 %v5658
  %v5660 = vperm.slane %v5656, %v5659
  %v5661 = vrot.slane %v5649, 4
  %v5662 = vsel %vm573, %v5661, %v5643
  %v5663 = vrot.slane %v5643, 4
  %v5664 = vsel %vm573, %v5649, %v5663
  %v5666 = vunpack.c.l.s4 1934713408
  %v5667 = vunpack.c.0.s8 %v5666
  %v5668 = vperm.slane %v5662, %v5667
  %v5670 = vunpack.c.l.s4 1934713408
  %v5671 = vunpack.c.0.s8 %v5670
  %v5672 = vperm.slane %v5664, %v5671
  %v5673 = vrot.slane %v5660, 4
  %v5674 = vsel %vm573, %v5673, %v5654
  %v5675 = vrot.slane %v5654, 4
  %v5676 = vsel %vm573, %v5660, %v5675
  %v5678 = vunpack.c.l.s4 1934713408
  %v5679 = vunpack.c.0.s8 %v5678
  %v5680 = vperm.slane %v5674, %v5679
  %v5682 = vunpack.c.l.s4 1934713408
  %v5683 = vunpack.c.0.s8 %v5682
  %v5684 = vperm.slane %v5676, %v5683
  %v5685 = vrot.slane %v5680, 4
  %v5686 = vsel %vm573, %v5685, %v5668
  %v5687 = vrot.slane %v5668, 4
  %v5688 = vsel %vm573, %v5680, %v5687
  %v5689 = vrot.slane %v5684, 4
  %v5690 = vsel %vm573, %v5689, %v5672
  %v5691 = vrot.slane %v5672, 4
  %v5692 = vsel %vm573, %v5684, %v5691
  %v5693 = vsel %vm573, %v5305, %v5286
  %v5695 = vunpack.c.l.s4 1983009808
  %v5696 = vunpack.c.0.s8 %v5695
  %v5697 = vperm.slane %v5693, %v5696
  %v5698 = vrot.slane %v5306, 4
  %v5699 = vsel %vm573, %v5698, %v5304
  %v5701 = vunpack.c.l.s4 1983009808
  %v5702 = vunpack.c.0.s8 %v5701
  %v5703 = vperm.slane %v5699, %v5702
  %v5704 = vsel %vm573, %v5309, %v5298
  %v5706 = vunpack.c.l.s4 1983009808
  %v5707 = vunpack.c.0.s8 %v5706
  %v5708 = vperm.slane %v5704, %v5707
  %v5709 = vrot.slane %v5310, 4
  %v5710 = vsel %vm573, %v5709, %v5308
  %v5712 = vunpack.c.l.s4 1983009808
  %v5713 = vunpack.c.0.s8 %v5712
  %v5714 = vperm.slane %v5710, %v5713
  %v5715 = vrot.slane %v5703, 4
  %v5716 = vsel %vm573, %v5715, %v5697
  %v5717 = vrot.slane %v5697, 4
  %v5718 = vsel %vm573, %v5703, %v5717
  %v5720 = vunpack.c.l.s4 1934713408
  %v5721 = vunpack.c.0.s8 %v5720
  %v5722 = vperm.slane %v5716, %v5721
  %v5724 = vunpack.c.l.s4 1934713408
  %v5725 = vunpack.c.0.s8 %v5724
  %v5726 = vperm.slane %v5718, %v5725
  %v5727 = vrot.slane %v5714, 4
  %v5728 = vsel %vm573, %v5727, %v5708
  %v5729 = vrot.slane %v5708, 4
  %v5730 = vsel %vm573, %v5714, %v5729
  %v5732 = vunpack.c.l.s4 1934713408
  %v5733 = vunpack.c.0.s8 %v5732
  %v5734 = vperm.slane %v5728, %v5733
  %v5736 = vunpack.c.l.s4 1934713408
  %v5737 = vunpack.c.0.s8 %v5736
  %v5738 = vperm.slane %v5730, %v5737
  %v5739 = vrot.slane %v5734, 4
  %v5740 = vsel %vm573, %v5739, %v5722
  %v5741 = vrot.slane %v5722, 4
  %v5742 = vsel %vm573, %v5734, %v5741
  %v5743 = vrot.slane %v5738, 4
  %v5744 = vsel %vm573, %v5743, %v5726
  %v5745 = vrot.slane %v5726, 4
  %v5746 = vsel %vm573, %v5738, %v5745
  %v5747 = vsel %vm573, %v5361, %v5342
  %v5749 = vunpack.c.l.s4 1983009808
  %v5750 = vunpack.c.0.s8 %v5749
  %v5751 = vperm.slane %v5747, %v5750
  %v5752 = vrot.slane %v5362, 4
  %v5753 = vsel %vm573, %v5752, %v5360
  %v5755 = vunpack.c.l.s4 1983009808
  %v5756 = vunpack.c.0.s8 %v5755
  %v5757 = vperm.slane %v5753, %v5756
  %v5758 = vsel %vm573, %v5365, %v5354
  %v5760 = vunpack.c.l.s4 1983009808
  %v5761 = vunpack.c.0.s8 %v5760
  %v5762 = vperm.slane %v5758, %v5761
  %v5763 = vrot.slane %v5366, 4
  %v5764 = vsel %vm573, %v5763, %v5364
  %v5766 = vunpack.c.l.s4 1983009808
  %v5767 = vunpack.c.0.s8 %v5766
  %v5768 = vperm.slane %v5764, %v5767
  %v5769 = vrot.slane %v5757, 4
  %v5770 = vsel %vm573, %v5769, %v5751
  %v5771 = vrot.slane %v5751, 4
  %v5772 = vsel %vm573, %v5757, %v5771
  %v5774 = vunpack.c.l.s4 1934713408
  %v5775 = vunpack.c.0.s8 %v5774
  %v5776 = vperm.slane %v5770, %v5775
  %v5778 = vunpack.c.l.s4 1934713408
  %v5779 = vunpack.c.0.s8 %v5778
  %v5780 = vperm.slane %v5772, %v5779
  %v5781 = vrot.slane %v5768, 4
  %v5782 = vsel %vm573, %v5781, %v5762
  %v5783 = vrot.slane %v5762, 4
  %v5784 = vsel %vm573, %v5768, %v5783
  %v5786 = vunpack.c.l.s4 1934713408
  %v5787 = vunpack.c.0.s8 %v5786
  %v5788 = vperm.slane %v5782, %v5787
  %v5790 = vunpack.c.l.s4 1934713408
  %v5791 = vunpack.c.0.s8 %v5790
  %v5792 = vperm.slane %v5784, %v5791
  %v5793 = vrot.slane %v5788, 4
  %v5794 = vsel %vm573, %v5793, %v5776
  %v5795 = vrot.slane %v5776, 4
  %v5796 = vsel %vm573, %v5788, %v5795
  %v5797 = vrot.slane %v5792, 4
  %v5798 = vsel %vm573, %v5797, %v5780
  %v5799 = vrot.slane %v5780, 4
  %v5800 = vsel %vm573, %v5792, %v5799
  %v5801 = vsel %vm573, %v5417, %v5398
  %v5803 = vunpack.c.l.s4 1983009808
  %v5804 = vunpack.c.0.s8 %v5803
  %v5805 = vperm.slane %v5801, %v5804
  %v5806 = vrot.slane %v5418, 4
  %v5807 = vsel %vm573, %v5806, %v5416
  %v5809 = vunpack.c.l.s4 1983009808
  %v5810 = vunpack.c.0.s8 %v5809
  %v5811 = vperm.slane %v5807, %v5810
  %v5812 = vsel %vm573, %v5421, %v5410
  %v5814 = vunpack.c.l.s4 1983009808
  %v5815 = vunpack.c.0.s8 %v5814
  %v5816 = vperm.slane %v5812, %v5815
  %v5817 = vrot.slane %v5422, 4
  %v5818 = vsel %vm573, %v5817, %v5420
  %v5820 = vunpack.c.l.s4 1983009808
  %v5821 = vunpack.c.0.s8 %v5820
  %v5822 = vperm.slane %v5818, %v5821
  %v5823 = vrot.slane %v5811, 4
  %v5824 = vsel %vm573, %v5823, %v5805
  %v5825 = vrot.slane %v5805, 4
  %v5826 = vsel %vm573, %v5811, %v5825
  %v5828 = vunpack.c.l.s4 1934713408
  %v5829 = vunpack.c.0.s8 %v5828
  %v5830 = vperm.slane %v5824, %v5829
  %v5832 = vunpack.c.l.s4 1934713408
  %v5833 = vunpack.c.0.s8 %v5832
  %v5834 = vperm.slane %v5826, %v5833
  %v5835 = vrot.slane %v5822, 4
  %v5836 = vsel %vm573, %v5835, %v5816
  %v5837 = vrot.slane %v5816, 4
  %v5838 = vsel %vm573, %v5822, %v5837
  %v5840 = vunpack.c.l.s4 1934713408
  %v5841 = vunpack.c.0.s8 %v5840
  %v5842 = vperm.slane %v5836, %v5841
  %v5844 = vunpack.c.l.s4 1934713408
  %v5845 = vunpack.c.0.s8 %v5844
  %v5846 = vperm.slane %v5838, %v5845
  %v5847 = vrot.slane %v5842, 4
  %v5848 = vsel %vm573, %v5847, %v5830
  %v5849 = vrot.slane %v5830, 4
  %v5850 = vsel %vm573, %v5842, %v5849
  %v5851 = vrot.slane %v5846, 4
  %v5852 = vsel %vm573, %v5851, %v5834
  %v5853 = vrot.slane %v5834, 4
  %v5854 = vsel %vm573, %v5846, %v5853
  %5863 = vrot.lane.b32.xlu0 %v5472, 8
  %v5864 = vpop.permute.xlu0 %5863
  %5865 = vrot.lane.b32.xlu0 %v5526, 8
  %v5866 = vpop.permute.xlu0 %5865
  %5867 = vrot.lane.b32.xlu0 %v5580, 8
  %v5868 = vpop.permute.xlu0 %5867
  %5869 = vrot.lane.b32.xlu0 %v5634, 8
  %v5870 = vpop.permute.xlu0 %5869
  %5871 = vrot.lane.b32.xlu0 %v5688, 8
  %v5872 = vpop.permute.xlu0 %5871
  %5873 = vrot.lane.b32.xlu0 %v5742, 8
  %v5874 = vpop.permute.xlu0 %5873
  %5875 = vrot.lane.b32.xlu0 %v5796, 8
  %v5876 = vpop.permute.xlu0 %5875
  %5877 = vrot.lane.b32.xlu0 %v5850, 8
  %v5878 = vpop.permute.xlu0 %5877
  %5895 = vrot.lane.b32.xlu0 %v5474, 16
  %v5896 = vpop.permute.xlu0 %5895
  %5897 = vrot.lane.b32.xlu0 %v5528, 16
  %v5898 = vpop.permute.xlu0 %5897
  %5899 = vrot.lane.b32.xlu0 %v5582, 16
  %v5900 = vpop.permute.xlu0 %5899
  %5901 = vrot.lane.b32.xlu0 %v5636, 16
  %v5902 = vpop.permute.xlu0 %5901
  %5903 = vrot.lane.b32.xlu0 %v5690, 16
  %v5904 = vpop.permute.xlu0 %5903
  %5905 = vrot.lane.b32.xlu0 %v5744, 16
  %v5906 = vpop.permute.xlu0 %5905
  %5907 = vrot.lane.b32.xlu0 %v5798, 16
  %v5908 = vpop.permute.xlu0 %5907
  %5909 = vrot.lane.b32.xlu0 %v5852, 16
  %v5910 = vpop.permute.xlu0 %5909
  %5927 = vrot.lane.b32.xlu0 %v5476, 24
  %v5928 = vpop.permute.xlu0 %5927
  %5929 = vrot.lane.b32.xlu0 %v5530, 24
  %v5930 = vpop.permute.xlu0 %5929
  %5931 = vrot.lane.b32.xlu0 %v5584, 24
  %v5932 = vpop.permute.xlu0 %5931
  %5933 = vrot.lane.b32.xlu0 %v5638, 24
  %v5934 = vpop.permute.xlu0 %5933
  %5935 = vrot.lane.b32.xlu0 %v5692, 24
  %v5936 = vpop.permute.xlu0 %5935
  %5937 = vrot.lane.b32.xlu0 %v5746, 24
  %v5938 = vpop.permute.xlu0 %5937
  %5939 = vrot.lane.b32.xlu0 %v5800, 24
  %v5940 = vpop.permute.xlu0 %5939
  %5941 = vrot.lane.b32.xlu0 %v5854, 24
  %v5942 = vpop.permute.xlu0 %5941
  %v5951 = vsel %vm3341, %v5470, %v5864
  %v5952 = vsel %vm3341, %v5524, %v5866
  %v5953 = vsel %vm3341, %v5578, %v5868
  %v5954 = vsel %vm3341, %v5632, %v5870
  %v5955 = vsel %vm3341, %v5686, %v5872
  %v5956 = vsel %vm3341, %v5740, %v5874
  %v5957 = vsel %vm3341, %v5794, %v5876
  %v5958 = vsel %vm3341, %v5848, %v5878
  %vm5959 = vcmask 130048
  %v5960 = vsel %vm5959, %v5951, %v5896
  %v5961 = vsel %vm5959, %v5952, %v5898
  %v5962 = vsel %vm5959, %v5953, %v5900
  %v5963 = vsel %vm5959, %v5954, %v5902
  %v5964 = vsel %vm5959, %v5955, %v5904
  %v5965 = vsel %vm5959, %v5956, %v5906
  %v5966 = vsel %vm5959, %v5957, %v5908
  %v5967 = vsel %vm5959, %v5958, %v5910
  %vm5968 = vcmask 195584
  %v5969 = vsel %vm5968, %v5960, %v5928
  %v5970 = vsel %vm5968, %v5961, %v5930
  %v5971 = vsel %vm5968, %v5962, %v5932
  %v5972 = vsel %vm5968, %v5963, %v5934
  %v5973 = vsel %vm5968, %v5964, %v5936
  %v5974 = vsel %vm5968, %v5965, %v5938
  %v5975 = vsel %vm5968, %v5966, %v5940
  %v5976 = vsel %vm5968, %v5967, %v5942
  %v5977 = vpack.c.bf16 %v5970, %v5969
  %v5978 = vpack.c.bf16 %v5972, %v5971
  %v5979 = vpack.c.bf16 %v5974, %v5973
  %v5980 = vpack.c.bf16 %v5976, %v5975
  %v5981 = vld [vmem:[%s4] sm:$0xf]
  %v5982 = vld [vmem:[%s4 + $0x4] sm:$0xf]
  %v5983 = vld [vmem:[%s4 + $0x8] sm:$0xf]
  %v5984 = vld [vmem:[%s4 + $0xc] sm:$0xf]
  %v5985 = vperm.slane %v35, 2
  %v5990 = vunpack.c.l.b16 %v5981
  %v5991 = vunpack.c.l.b16 %v5982
  %v5992 = vunpack.c.l.b16 %v5983
  %v5993 = vunpack.c.l.b16 %v5984
  %v5994 = vpack.c.b16 %v5991, %v5990
  %v5995 = vpack.c.b16 %v5993, %v5992
  %v5999 = vsel %vm37, %v5977, 0
  %v6002 = vsel %vm37, %v5978, 0
  %v6005 = vsel %vm37, %v5979, 0
  %v6008 = vsel %vm37, %v5980, 0
  %6010 = vmatpush.bf16.msra.mxu0 0
  %6011 = vmatpush.bf16.msra.mxu0 0
  %6012 = vmatpush.bf16.msra.mxu0 0
  %6013 = vmatpush.bf16.msra.mxu0 0
  %6014 = vmatpush.bf16.msra.mxu0 0
  %6015 = vmatpush.bf16.msra.mxu0 0
  %6016 = vmatpush.bf16.msra.mxu0 %v5995
  %6017 = vmatpush.bf16.msra.mxu0 %v5994
  %6018 = vmatmul.bf16.gmra.mxu0 %v5999
  %v6019 = vpop.f32.mrf.mxu0
  %v6020 = vadd.f32 %v5985, %v6019
  %v6021 = vpop.f32.mrf.mxu0
  %v6022 = vadd.f32 %v5985, %v6021
  %6023 = vmatmul.bf16.gmra.mxu0 %v6002
  %v6024 = vpop.f32.mrf.mxu0
  %v6025 = vadd.f32 %v5985, %v6024
  %v6026 = vpop.f32.mrf.mxu0
  %v6027 = vadd.f32 %v5985, %v6026
  %6028 = vmatmul.bf16.gmra.mxu0 %v6005
  %v6029 = vpop.f32.mrf.mxu0
  %v6030 = vadd.f32 %v5985, %v6029
  %v6031 = vpop.f32.mrf.mxu0
  %v6032 = vadd.f32 %v5985, %v6031
  %6033 = vmatmul.bf16.gmra.mxu0 %v6008
  %v6034 = vpop.f32.mrf.mxu0
  %v6035 = vadd.f32 %v5985, %v6034
  %v6036 = vpop.f32.mrf.mxu0
  %v6037 = vadd.f32 %v5985, %v6036
  %6038 = vdwg.mxu0
  %v6039 = vadd.f32 %v27, %v6020
  %v6040 = vadd.f32 %v28, %v6022
  %v6041 = vadd.f32 %v29, %v6025
  %v6042 = vadd.f32 %v30, %v6027
  %v6043 = vadd.f32 %v31, %v6030
  %v6044 = vadd.f32 %v32, %v6032
  %v6045 = vadd.f32 %v33, %v6035
  %v6046 = vadd.f32 %v34, %v6037
  %v6047 = vsel %vm37, %v6039, 0.0
  %6048 = vadd.xlane.f32.xlu0 %v6047
  %v6049 = vpop.xlane.xlu0 %6048
  %v6050 = vsel %vm37, %v6040, 0.0
  %6051 = vadd.xlane.f32.xlu0 %v6050
  %v6052 = vpop.xlane.xlu0 %6051
  %v6053 = vsel %vm37, %v6041, 0.0
  %6054 = vadd.xlane.f32.xlu0 %v6053
  %v6055 = vpop.xlane.xlu0 %6054
  %v6056 = vsel %vm37, %v6042, 0.0
  %6057 = vadd.xlane.f32.xlu0 %v6056
  %v6058 = vpop.xlane.xlu0 %6057
  %v6059 = vsel %vm37, %v6043, 0.0
  %6060 = vadd.xlane.f32.xlu0 %v6059
  %v6061 = vpop.xlane.xlu0 %6060
  %v6062 = vsel %vm37, %v6044, 0.0
  %6063 = vadd.xlane.f32.xlu0 %v6062
  %v6064 = vpop.xlane.xlu0 %6063
  %v6065 = vsel %vm37, %v6045, 0.0
  %6066 = vadd.xlane.f32.xlu0 %v6065
  %v6067 = vpop.xlane.xlu0 %6066
  %v6068 = vsel %vm37, %v6046, 0.0
  %6069 = vadd.xlane.f32.xlu0 %v6068
  %v6070 = vpop.xlane.xlu0 %6069
  %v6071 = vmul.f32 %v6049, %v68
  %v6072 = vmul.f32 %v6052, %v68
  %v6073 = vmul.f32 %v6055, %v68
  %v6074 = vmul.f32 %v6058, %v68
  %v6075 = vmul.f32 %v6061, %v68
  %v6076 = vmul.f32 %v6064, %v68
  %v6077 = vmul.f32 %v6067, %v68
  %v6078 = vmul.f32 %v6070, %v68
  %v6079 = vsub.f32 %v6039, %v6071
  %v6080 = vsub.f32 %v6040, %v6072
  %v6081 = vsub.f32 %v6041, %v6073
  %v6082 = vsub.f32 %v6042, %v6074
  %v6083 = vsub.f32 %v6043, %v6075
  %v6084 = vsub.f32 %v6044, %v6076
  %v6085 = vsub.f32 %v6045, %v6077
  %v6086 = vsub.f32 %v6046, %v6078
  %v6087 = vmul.f32 %v6079, %v6079
  %v6088 = vmul.f32 %v6080, %v6080
  %v6089 = vmul.f32 %v6081, %v6081
  %v6090 = vmul.f32 %v6082, %v6082
  %v6091 = vmul.f32 %v6083, %v6083
  %v6092 = vmul.f32 %v6084, %v6084
  %v6093 = vmul.f32 %v6085, %v6085
  %v6094 = vmul.f32 %v6086, %v6086
  %v6095 = vsel %vm37, %v6087, 0.0
  %6096 = vadd.xlane.f32.xlu0 %v6095
  %v6097 = vpop.xlane.xlu0 %6096
  %v6098 = vsel %vm37, %v6088, 0.0
  %6099 = vadd.xlane.f32.xlu0 %v6098
  %v6100 = vpop.xlane.xlu0 %6099
  %v6101 = vsel %vm37, %v6089, 0.0
  %6102 = vadd.xlane.f32.xlu0 %v6101
  %v6103 = vpop.xlane.xlu0 %6102
  %v6104 = vsel %vm37, %v6090, 0.0
  %6105 = vadd.xlane.f32.xlu0 %v6104
  %v6106 = vpop.xlane.xlu0 %6105
  %v6107 = vsel %vm37, %v6091, 0.0
  %6108 = vadd.xlane.f32.xlu0 %v6107
  %v6109 = vpop.xlane.xlu0 %6108
  %v6110 = vsel %vm37, %v6092, 0.0
  %6111 = vadd.xlane.f32.xlu0 %v6110
  %v6112 = vpop.xlane.xlu0 %6111
  %v6113 = vsel %vm37, %v6093, 0.0
  %6114 = vadd.xlane.f32.xlu0 %v6113
  %v6115 = vpop.xlane.xlu0 %6114
  %v6116 = vsel %vm37, %v6094, 0.0
  %6117 = vadd.xlane.f32.xlu0 %v6116
  %v6118 = vpop.xlane.xlu0 %6117
  %v6119 = vmul.f32 %v6097, %v68
  %v6120 = vmul.f32 %v6100, %v68
  %v6121 = vmul.f32 %v6103, %v68
  %v6122 = vmul.f32 %v6106, %v68
  %v6123 = vmul.f32 %v6109, %v68
  %v6124 = vmul.f32 %v6112, %v68
  %v6125 = vmul.f32 %v6115, %v68
  %v6126 = vmul.f32 %v6118, %v68
  %v6127 = vadd.f32 %v6119, 1e-05
  %v6128 = vadd.f32 %v6120, 1e-05
  %v6129 = vadd.f32 %v6121, 1e-05
  %v6130 = vadd.f32 %v6122, 1e-05
  %v6131 = vadd.f32 %v6123, 1e-05
  %v6132 = vadd.f32 %v6124, 1e-05
  %v6133 = vadd.f32 %v6125, 1e-05
  %v6134 = vadd.f32 %v6126, 1e-05
  %v6135 = vrsqrt.pop %v6127
  %v6136 = vmul.f32 %v6135, %v6127
  %v6137 = vmul.f32 %v6136, %v6135
  %v6138 = vmul.f32 0.5, %v6137
  %v6139 = vsub.f32 1.5, %v6138
  %v6140 = vmul.f32 %v6135, %v6139
  %vm6141 = vweird.f32 %v6127
  %vm6142 = vweird.f32 %v6135
  %vm6143 = vmor %vm6141, %vm6142
  %v6144 = vsel %vm6143, %v6135, %v6140
  %v6145 = vrsqrt.pop %v6128
  %v6146 = vmul.f32 %v6145, %v6128
  %v6147 = vmul.f32 %v6146, %v6145
  %v6148 = vmul.f32 0.5, %v6147
  %v6149 = vsub.f32 1.5, %v6148
  %v6150 = vmul.f32 %v6145, %v6149
  %vm6151 = vweird.f32 %v6128
  %vm6152 = vweird.f32 %v6145
  %vm6153 = vmor %vm6151, %vm6152
  %v6154 = vsel %vm6153, %v6145, %v6150
  %v6155 = vrsqrt.pop %v6129
  %v6156 = vmul.f32 %v6155, %v6129
  %v6157 = vmul.f32 %v6156, %v6155
  %v6158 = vmul.f32 0.5, %v6157
  %v6159 = vsub.f32 1.5, %v6158
  %v6160 = vmul.f32 %v6155, %v6159
  %vm6161 = vweird.f32 %v6129
  %vm6162 = vweird.f32 %v6155
  %vm6163 = vmor %vm6161, %vm6162
  %v6164 = vsel %vm6163, %v6155, %v6160
  %v6165 = vrsqrt.pop %v6130
  %v6166 = vmul.f32 %v6165, %v6130
  %v6167 = vmul.f32 %v6166, %v6165
  %v6168 = vmul.f32 0.5, %v6167
  %v6169 = vsub.f32 1.5, %v6168
  %v6170 = vmul.f32 %v6165, %v6169
  %vm6171 = vweird.f32 %v6130
  %vm6172 = vweird.f32 %v6165
  %vm6173 = vmor %vm6171, %vm6172
  %v6174 = vsel %vm6173, %v6165, %v6170
  %v6175 = vrsqrt.pop %v6131
  %v6176 = vmul.f32 %v6175, %v6131
  %v6177 = vmul.f32 %v6176, %v6175
  %v6178 = vmul.f32 0.5, %v6177
  %v6179 = vsub.f32 1.5, %v6178
  %v6180 = vmul.f32 %v6175, %v6179
  %vm6181 = vweird.f32 %v6131
  %vm6182 = vweird.f32 %v6175
  %vm6183 = vmor %vm6181, %vm6182
  %v6184 = vsel %vm6183, %v6175, %v6180
  %v6185 = vrsqrt.pop %v6132
  %v6186 = vmul.f32 %v6185, %v6132
  %v6187 = vmul.f32 %v6186, %v6185
  %v6188 = vmul.f32 0.5, %v6187
  %v6189 = vsub.f32 1.5, %v6188
  %v6190 = vmul.f32 %v6185, %v6189
  %vm6191 = vweird.f32 %v6132
  %vm6192 = vweird.f32 %v6185
  %vm6193 = vmor %vm6191, %vm6192
  %v6194 = vsel %vm6193, %v6185, %v6190
  %v6195 = vrsqrt.pop %v6133
  %v6196 = vmul.f32 %v6195, %v6133
  %v6197 = vmul.f32 %v6196, %v6195
  %v6198 = vmul.f32 0.5, %v6197
  %v6199 = vsub.f32 1.5, %v6198
  %v6200 = vmul.f32 %v6195, %v6199
  %vm6201 = vweird.f32 %v6133
  %vm6202 = vweird.f32 %v6195
  %vm6203 = vmor %vm6201, %vm6202
  %v6204 = vsel %vm6203, %v6195, %v6200
  %v6205 = vrsqrt.pop %v6134
  %v6206 = vmul.f32 %v6205, %v6134
  %v6207 = vmul.f32 %v6206, %v6205
  %v6208 = vmul.f32 0.5, %v6207
  %v6209 = vsub.f32 1.5, %v6208
  %v6210 = vmul.f32 %v6205, %v6209
  %vm6211 = vweird.f32 %v6134
  %vm6212 = vweird.f32 %v6205
  %vm6213 = vmor %vm6211, %vm6212
  %v6214 = vsel %vm6213, %v6205, %v6210
  %v6215 = vmul.f32 %v6079, %v6144
  %v6216 = vmul.f32 %v6080, %v6154
  %v6217 = vmul.f32 %v6081, %v6164
  %v6218 = vmul.f32 %v6082, %v6174
  %v6219 = vmul.f32 %v6083, %v6184
  %v6220 = vmul.f32 %v6084, %v6194
  %v6221 = vmul.f32 %v6085, %v6204
  %v6222 = vmul.f32 %v6086, %v6214
  %v6223 = vperm.slane %v35, 3
  %v6224 = vmul.f32 %v6215, %v6223
  %v6225 = vmul.f32 %v6216, %v6223
  %v6226 = vmul.f32 %v6217, %v6223
  %v6227 = vmul.f32 %v6218, %v6223
  %v6228 = vmul.f32 %v6219, %v6223
  %v6229 = vmul.f32 %v6220, %v6223
  %v6230 = vmul.f32 %v6221, %v6223
  %v6231 = vmul.f32 %v6222, %v6223
  %v6232 = vperm.slane %v35, 4
  %v6233 = vadd.f32 %v6224, %v6232
  %v6234 = vadd.f32 %v6225, %v6232
  %v6235 = vadd.f32 %v6226, %v6232
  %v6236 = vadd.f32 %v6227, %v6232
  %v6237 = vadd.f32 %v6228, %v6232
  %v6238 = vadd.f32 %v6229, %v6232
  %v6239 = vadd.f32 %v6230, %v6232
  %v6240 = vadd.f32 %v6231, %v6232
  %v6241 = vpack.c.bf16 %v6234, %v6233
  %v6242 = vpack.c.bf16 %v6236, %v6235
  %v6243 = vpack.c.bf16 %v6238, %v6237
  %v6244 = vpack.c.bf16 %v6240, %v6239
  %v6245 = vld [vmem:[%s5] sm:$0xf]
  %v6246 = vld [vmem:[%s5 + $0x4] sm:$0xf]
  %v6247 = vld [vmem:[%s5 + $0x8] sm:$0xf]
  %v6248 = vld [vmem:[%s5 + $0xc] sm:$0xf]
  %v6250 = vperm.slane %v36, 0
  %v6256 = vunpack.c.l.b16 %v6245
  %v6257 = vunpack.c.l.b16 %v6246
  %v6258 = vunpack.c.l.b16 %v6247
  %v6259 = vunpack.c.l.b16 %v6248
  %v6260 = vpack.c.b16 %v6257, %v6256
  %v6261 = vpack.c.b16 %v6259, %v6258
  %v6265 = vsel %vm37, %v6241, 0
  %v6268 = vsel %vm37, %v6242, 0
  %v6271 = vsel %vm37, %v6243, 0
  %v6274 = vsel %vm37, %v6244, 0
  %6276 = vmatpush.bf16.msra.mxu0 0
  %6277 = vmatpush.bf16.msra.mxu0 0
  %6278 = vmatpush.bf16.msra.mxu0 0
  %6279 = vmatpush.bf16.msra.mxu0 0
  %6280 = vmatpush.bf16.msra.mxu0 0
  %6281 = vmatpush.bf16.msra.mxu0 0
  %6282 = vmatpush.bf16.msra.mxu0 %v6261
  %6283 = vmatpush.bf16.msra.mxu0 %v6260
  %6284 = vmatmul.bf16.gmra.mxu0 %v6265
  %v6285 = vpop.f32.mrf.mxu0
  %v6286 = vadd.f32 %v6250, %v6285
  %v6287 = vpop.f32.mrf.mxu0
  %v6288 = vadd.f32 %v6250, %v6287
  %6289 = vmatmul.bf16.gmra.mxu0 %v6268
  %v6290 = vpop.f32.mrf.mxu0
  %v6291 = vadd.f32 %v6250, %v6290
  %v6292 = vpop.f32.mrf.mxu0
  %v6293 = vadd.f32 %v6250, %v6292
  %6294 = vmatmul.bf16.gmra.mxu0 %v6271
  %v6295 = vpop.f32.mrf.mxu0
  %v6296 = vadd.f32 %v6250, %v6295
  %v6297 = vpop.f32.mrf.mxu0
  %v6298 = vadd.f32 %v6250, %v6297
  %6299 = vmatmul.bf16.gmra.mxu0 %v6274
  %v6300 = vpop.f32.mrf.mxu0
  %v6301 = vadd.f32 %v6250, %v6300
  %v6302 = vpop.f32.mrf.mxu0
  %v6303 = vadd.f32 %v6250, %v6302
  %6304 = vdwg.mxu0
  %v6305 = vxor.u32 %v6286, 2147483648
  %v6306 = vxor.u32 %v6288, 2147483648
  %v6307 = vxor.u32 %v6291, 2147483648
  %v6308 = vxor.u32 %v6293, 2147483648
  %v6309 = vxor.u32 %v6296, 2147483648
  %v6310 = vxor.u32 %v6298, 2147483648
  %v6311 = vxor.u32 %v6301, 2147483648
  %v6312 = vxor.u32 %v6303, 2147483648
  %v6313 = vmul.f32 %v6305, 1.442695
  %v6314 = vpow.pop %v6313
  %v6315 = vmul.f32 %v6306, 1.442695
  %v6316 = vpow.pop %v6315
  %v6317 = vmul.f32 %v6307, 1.442695
  %v6318 = vpow.pop %v6317
  %v6319 = vmul.f32 %v6308, 1.442695
  %v6320 = vpow.pop %v6319
  %v6321 = vmul.f32 %v6309, 1.442695
  %v6322 = vpow.pop %v6321
  %v6323 = vmul.f32 %v6310, 1.442695
  %v6324 = vpow.pop %v6323
  %v6325 = vmul.f32 %v6311, 1.442695
  %v6326 = vpow.pop %v6325
  %v6327 = vmul.f32 %v6312, 1.442695
  %v6328 = vpow.pop %v6327
  %v6329 = vadd.f32 %v6314, 1.0
  %v6330 = vadd.f32 %v6316, 1.0
  %v6331 = vadd.f32 %v6318, 1.0
  %v6332 = vadd.f32 %v6320, 1.0
  %v6333 = vadd.f32 %v6322, 1.0
  %v6334 = vadd.f32 %v6324, 1.0
  %v6335 = vadd.f32 %v6326, 1.0
  %v6336 = vadd.f32 %v6328, 1.0
  %v6337 = vrcp.pop %v6329
  %v6338 = vmul.f32 %v6329, %v6337
  %v6339 = vsub.f32 1.0, %v6338
  %v6340 = vmul.f32 %v6337, %v6339
  %v6341 = vadd.f32 %v6337, %v6340
  %vm6342 = vweird.f32 %v6329
  %vm6343 = vweird.f32 %v6337
  %vm6344 = vmor %vm6342, %vm6343
  %v6345 = vsel %vm6344, %v6337, %v6341
  %v6346 = vand.u32 2147483647, %v6329
  %vm6347 = vcmp.eq.f32.partialorder %v6346, 8.507059e+37
  %v6348 = vand.u32 %v6329, 2147483648
  %v6349 = vor.u32 1.1754944e-38, %v6348
  %v6350 = vsel %vm6347, %v6349, %v6345
  %v6351 = vmul.f32 1.0, %v6350
  %v6352 = vrcp.pop %v6330
  %v6353 = vmul.f32 %v6330, %v6352
  %v6354 = vsub.f32 1.0, %v6353
  %v6355 = vmul.f32 %v6352, %v6354
  %v6356 = vadd.f32 %v6352, %v6355
  %vm6357 = vweird.f32 %v6330
  %vm6358 = vweird.f32 %v6352
  %vm6359 = vmor %vm6357, %vm6358
  %v6360 = vsel %vm6359, %v6352, %v6356
  %v6361 = vand.u32 2147483647, %v6330
  %vm6362 = vcmp.eq.f32.partialorder %v6361, 8.507059e+37
  %v6363 = vand.u32 %v6330, 2147483648
  %v6364 = vor.u32 1.1754944e-38, %v6363
  %v6365 = vsel %vm6362, %v6364, %v6360
  %v6366 = vmul.f32 1.0, %v6365
  %v6367 = vrcp.pop %v6331
  %v6368 = vmul.f32 %v6331, %v6367
  %v6369 = vsub.f32 1.0, %v6368
  %v6370 = vmul.f32 %v6367, %v6369
  %v6371 = vadd.f32 %v6367, %v6370
  %vm6372 = vweird.f32 %v6331
  %vm6373 = vweird.f32 %v6367
  %vm6374 = vmor %vm6372, %vm6373
  %v6375 = vsel %vm6374, %v6367, %v6371
  %v6376 = vand.u32 2147483647, %v6331
  %vm6377 = vcmp.eq.f32.partialorder %v6376, 8.507059e+37
  %v6378 = vand.u32 %v6331, 2147483648
  %v6379 = vor.u32 1.1754944e-38, %v6378
  %v6380 = vsel %vm6377, %v6379, %v6375
  %v6381 = vmul.f32 1.0, %v6380
  %v6382 = vrcp.pop %v6332
  %v6383 = vmul.f32 %v6332, %v6382
  %v6384 = vsub.f32 1.0, %v6383
  %v6385 = vmul.f32 %v6382, %v6384
  %v6386 = vadd.f32 %v6382, %v6385
  %vm6387 = vweird.f32 %v6332
  %vm6388 = vweird.f32 %v6382
  %vm6389 = vmor %vm6387, %vm6388
  %v6390 = vsel %vm6389, %v6382, %v6386
  %v6391 = vand.u32 2147483647, %v6332
  %vm6392 = vcmp.eq.f32.partialorder %v6391, 8.507059e+37
  %v6393 = vand.u32 %v6332, 2147483648
  %v6394 = vor.u32 1.1754944e-38, %v6393
  %v6395 = vsel %vm6392, %v6394, %v6390
  %v6396 = vmul.f32 1.0, %v6395
  %v6397 = vrcp.pop %v6333
  %v6398 = vmul.f32 %v6333, %v6397
  %v6399 = vsub.f32 1.0, %v6398
  %v6400 = vmul.f32 %v6397, %v6399
  %v6401 = vadd.f32 %v6397, %v6400
  %vm6402 = vweird.f32 %v6333
  %vm6403 = vweird.f32 %v6397
  %vm6404 = vmor %vm6402, %vm6403
  %v6405 = vsel %vm6404, %v6397, %v6401
  %v6406 = vand.u32 2147483647, %v6333
  %vm6407 = vcmp.eq.f32.partialorder %v6406, 8.507059e+37
  %v6408 = vand.u32 %v6333, 2147483648
  %v6409 = vor.u32 1.1754944e-38, %v6408
  %v6410 = vsel %vm6407, %v6409, %v6405
  %v6411 = vmul.f32 1.0, %v6410
  %v6412 = vrcp.pop %v6334
  %v6413 = vmul.f32 %v6334, %v6412
  %v6414 = vsub.f32 1.0, %v6413
  %v6415 = vmul.f32 %v6412, %v6414
  %v6416 = vadd.f32 %v6412, %v6415
  %vm6417 = vweird.f32 %v6334
  %vm6418 = vweird.f32 %v6412
  %vm6419 = vmor %vm6417, %vm6418
  %v6420 = vsel %vm6419, %v6412, %v6416
  %v6421 = vand.u32 2147483647, %v6334
  %vm6422 = vcmp.eq.f32.partialorder %v6421, 8.507059e+37
  %v6423 = vand.u32 %v6334, 2147483648
  %v6424 = vor.u32 1.1754944e-38, %v6423
  %v6425 = vsel %vm6422, %v6424, %v6420
  %v6426 = vmul.f32 1.0, %v6425
  %v6427 = vrcp.pop %v6335
  %v6428 = vmul.f32 %v6335, %v6427
  %v6429 = vsub.f32 1.0, %v6428
  %v6430 = vmul.f32 %v6427, %v6429
  %v6431 = vadd.f32 %v6427, %v6430
  %vm6432 = vweird.f32 %v6335
  %vm6433 = vweird.f32 %v6427
  %vm6434 = vmor %vm6432, %vm6433
  %v6435 = vsel %vm6434, %v6427, %v6431
  %v6436 = vand.u32 2147483647, %v6335
  %vm6437 = vcmp.eq.f32.partialorder %v6436, 8.507059e+37
  %v6438 = vand.u32 %v6335, 2147483648
  %v6439 = vor.u32 1.1754944e-38, %v6438
  %v6440 = vsel %vm6437, %v6439, %v6435
  %v6441 = vmul.f32 1.0, %v6440
  %v6442 = vrcp.pop %v6336
  %v6443 = vmul.f32 %v6336, %v6442
  %v6444 = vsub.f32 1.0, %v6443
  %v6445 = vmul.f32 %v6442, %v6444
  %v6446 = vadd.f32 %v6442, %v6445
  %vm6447 = vweird.f32 %v6336
  %vm6448 = vweird.f32 %v6442
  %vm6449 = vmor %vm6447, %vm6448
  %v6450 = vsel %vm6449, %v6442, %v6446
  %v6451 = vand.u32 2147483647, %v6336
  %vm6452 = vcmp.eq.f32.partialorder %v6451, 8.507059e+37
  %v6453 = vand.u32 %v6336, 2147483648
  %v6454 = vor.u32 1.1754944e-38, %v6453
  %v6455 = vsel %vm6452, %v6454, %v6450
  %v6456 = vmul.f32 1.0, %v6455
  %v6457 = vmul.f32 %v6286, %v6351
  %v6458 = vmul.f32 %v6288, %v6366
  %v6459 = vmul.f32 %v6291, %v6381
  %v6460 = vmul.f32 %v6293, %v6396
  %v6461 = vmul.f32 %v6296, %v6411
  %v6462 = vmul.f32 %v6298, %v6426
  %v6463 = vmul.f32 %v6301, %v6441
  %v6464 = vmul.f32 %v6303, %v6456
  %v6465 = vpack.c.bf16 %v6458, %v6457
  %v6466 = vpack.c.bf16 %v6460, %v6459
  %v6467 = vpack.c.bf16 %v6462, %v6461
  %v6468 = vpack.c.bf16 %v6464, %v6463
  %v6469 = vld [vmem:[%s6] sm:$0xf]
  %v6470 = vld [vmem:[%s6 + $0x4] sm:$0xf]
  %v6471 = vld [vmem:[%s6 + $0x8] sm:$0xf]
  %v6472 = vld [vmem:[%s6 + $0xc] sm:$0xf]
  %v6473 = vld [vmem:[%s6 + $0x10] sm:$0xf]
  %v6474 = vld [vmem:[%s6 + $0x14] sm:$0xf]
  %v6475 = vld [vmem:[%s6 + $0x18] sm:$0xf]
  %v6476 = vld [vmem:[%s6 + $0x1c] sm:$0xf]
  %v6477 = vperm.slane %v35, 5
  %v6486 = vunpack.c.l.b16 %v6469
  %v6487 = vunpack.c.l.b16 %v6470
  %v6488 = vunpack.c.l.b16 %v6471
  %v6489 = vunpack.c.l.b16 %v6472
  %v6490 = vunpack.c.l.b16 %v6473
  %v6491 = vunpack.c.l.b16 %v6474
  %v6492 = vunpack.c.l.b16 %v6475
  %v6493 = vunpack.c.l.b16 %v6476
  %v6494 = vpack.c.b16 %v6487, %v6486
  %v6495 = vpack.c.b16 %v6489, %v6488
  %v6496 = vpack.c.b16 %v6491, %v6490
  %v6497 = vpack.c.b16 %v6493, %v6492
  %vm6502 = vcmask 523264
  %v6504 = vsel %vm6502, %v6465, 0
  %v6507 = vsel %vm6502, %v6466, 0
  %v6510 = vsel %vm6502, %v6467, 0
  %v6513 = vsel %vm6502, %v6468, 0
  %6515 = vmatpush.bf16.msra.mxu0 0
  %6516 = vmatpush.bf16.msra.mxu0 0
  %6517 = vmatpush.bf16.msra.mxu0 0
  %6518 = vmatpush.bf16.msra.mxu0 0
  %6519 = vmatpush.bf16.msra.mxu0 %v6497
  %6520 = vmatpush.bf16.msra.mxu0 %v6496
  %6521 = vmatpush.bf16.msra.mxu0 %v6495
  %6522 = vmatpush.bf16.msra.mxu0 %v6494
  %6523 = vmatmul.bf16.gmra.mxu0 %v6504
  %v6524 = vpop.f32.mrf.mxu0
  %v6525 = vadd.f32 %v6477, %v6524
  %v6526 = vpop.f32.mrf.mxu0
  %v6527 = vadd.f32 %v6477, %v6526
  %6528 = vmatmul.bf16.gmra.mxu0 %v6507
  %v6529 = vpop.f32.mrf.mxu0
  %v6530 = vadd.f32 %v6477, %v6529
  %v6531 = vpop.f32.mrf.mxu0
  %v6532 = vadd.f32 %v6477, %v6531
  %6533 = vmatmul.bf16.gmra.mxu0 %v6510
  %v6534 = vpop.f32.mrf.mxu0
  %v6535 = vadd.f32 %v6477, %v6534
  %v6536 = vpop.f32.mrf.mxu0
  %v6537 = vadd.f32 %v6477, %v6536
  %6538 = vmatmul.bf16.gmra.mxu0 %v6513
  %v6539 = vpop.f32.mrf.mxu0
  %v6540 = vadd.f32 %v6477, %v6539
  %v6541 = vpop.f32.mrf.mxu0
  %v6542 = vadd.f32 %v6477, %v6541
  %6543 = vdwg.mxu0
  %v6544 = vadd.f32 %v6039, %v6525
  %v6545 = vadd.f32 %v6040, %v6527
  %v6546 = vadd.f32 %v6041, %v6530
  %v6547 = vadd.f32 %v6042, %v6532
  %v6548 = vadd.f32 %v6043, %v6535
  %v6549 = vadd.f32 %v6044, %v6537
  %v6550 = vadd.f32 %v6045, %v6540
  %v6551 = vadd.f32 %v6046, %v6542
  %s6552 = scalar_lea.vmem %s1, 8
  %v6553 = vld [vmem:[%s6552] sm:$0x3f]
  %s6554 = scalar_lea.vmem %s2, 1
  %v6555 = vld [vmem:[%s6554] sm:$0x1]
  %v6556 = vsel %vm37, %v6544, 0.0
  %6557 = vadd.xlane.f32.xlu0 %v6556
  %v6558 = vpop.xlane.xlu0 %6557
  %v6559 = vsel %vm37, %v6545, 0.0
  %6560 = vadd.xlane.f32.xlu0 %v6559
  %v6561 = vpop.xlane.xlu0 %6560
  %v6562 = vsel %vm37, %v6546, 0.0
  %6563 = vadd.xlane.f32.xlu0 %v6562
  %v6564 = vpop.xlane.xlu0 %6563
  %v6565 = vsel %vm37, %v6547, 0.0
  %6566 = vadd.xlane.f32.xlu0 %v6565
  %v6567 = vpop.xlane.xlu0 %6566
  %v6568 = vsel %vm37, %v6548, 0.0
  %6569 = vadd.xlane.f32.xlu0 %v6568
  %v6570 = vpop.xlane.xlu0 %6569
  %v6571 = vsel %vm37, %v6549, 0.0
  %6572 = vadd.xlane.f32.xlu0 %v6571
  %v6573 = vpop.xlane.xlu0 %6572
  %v6574 = vsel %vm37, %v6550, 0.0
  %6575 = vadd.xlane.f32.xlu0 %v6574
  %v6576 = vpop.xlane.xlu0 %6575
  %v6577 = vsel %vm37, %v6551, 0.0
  %6578 = vadd.xlane.f32.xlu0 %v6577
  %v6579 = vpop.xlane.xlu0 %6578
  %v6580 = vmul.f32 %v6558, %v68
  %v6581 = vmul.f32 %v6561, %v68
  %v6582 = vmul.f32 %v6564, %v68
  %v6583 = vmul.f32 %v6567, %v68
  %v6584 = vmul.f32 %v6570, %v68
  %v6585 = vmul.f32 %v6573, %v68
  %v6586 = vmul.f32 %v6576, %v68
  %v6587 = vmul.f32 %v6579, %v68
  %v6588 = vsub.f32 %v6544, %v6580
  %v6589 = vsub.f32 %v6545, %v6581
  %v6590 = vsub.f32 %v6546, %v6582
  %v6591 = vsub.f32 %v6547, %v6583
  %v6592 = vsub.f32 %v6548, %v6584
  %v6593 = vsub.f32 %v6549, %v6585
  %v6594 = vsub.f32 %v6550, %v6586
  %v6595 = vsub.f32 %v6551, %v6587
  %v6596 = vmul.f32 %v6588, %v6588
  %v6597 = vmul.f32 %v6589, %v6589
  %v6598 = vmul.f32 %v6590, %v6590
  %v6599 = vmul.f32 %v6591, %v6591
  %v6600 = vmul.f32 %v6592, %v6592
  %v6601 = vmul.f32 %v6593, %v6593
  %v6602 = vmul.f32 %v6594, %v6594
  %v6603 = vmul.f32 %v6595, %v6595
  %v6604 = vsel %vm37, %v6596, 0.0
  %6605 = vadd.xlane.f32.xlu0 %v6604
  %v6606 = vpop.xlane.xlu0 %6605
  %v6607 = vsel %vm37, %v6597, 0.0
  %6608 = vadd.xlane.f32.xlu0 %v6607
  %v6609 = vpop.xlane.xlu0 %6608
  %v6610 = vsel %vm37, %v6598, 0.0
  %6611 = vadd.xlane.f32.xlu0 %v6610
  %v6612 = vpop.xlane.xlu0 %6611
  %v6613 = vsel %vm37, %v6599, 0.0
  %6614 = vadd.xlane.f32.xlu0 %v6613
  %v6615 = vpop.xlane.xlu0 %6614
  %v6616 = vsel %vm37, %v6600, 0.0
  %6617 = vadd.xlane.f32.xlu0 %v6616
  %v6618 = vpop.xlane.xlu0 %6617
  %v6619 = vsel %vm37, %v6601, 0.0
  %6620 = vadd.xlane.f32.xlu0 %v6619
  %v6621 = vpop.xlane.xlu0 %6620
  %v6622 = vsel %vm37, %v6602, 0.0
  %6623 = vadd.xlane.f32.xlu0 %v6622
  %v6624 = vpop.xlane.xlu0 %6623
  %v6625 = vsel %vm37, %v6603, 0.0
  %6626 = vadd.xlane.f32.xlu0 %v6625
  %v6627 = vpop.xlane.xlu0 %6626
  %v6628 = vmul.f32 %v6606, %v68
  %v6629 = vmul.f32 %v6609, %v68
  %v6630 = vmul.f32 %v6612, %v68
  %v6631 = vmul.f32 %v6615, %v68
  %v6632 = vmul.f32 %v6618, %v68
  %v6633 = vmul.f32 %v6621, %v68
  %v6634 = vmul.f32 %v6624, %v68
  %v6635 = vmul.f32 %v6627, %v68
  %v6636 = vadd.f32 %v6628, 1e-05
  %v6637 = vadd.f32 %v6629, 1e-05
  %v6638 = vadd.f32 %v6630, 1e-05
  %v6639 = vadd.f32 %v6631, 1e-05
  %v6640 = vadd.f32 %v6632, 1e-05
  %v6641 = vadd.f32 %v6633, 1e-05
  %v6642 = vadd.f32 %v6634, 1e-05
  %v6643 = vadd.f32 %v6635, 1e-05
  %v6644 = vrsqrt.pop %v6636
  %v6645 = vmul.f32 %v6644, %v6636
  %v6646 = vmul.f32 %v6645, %v6644
  %v6647 = vmul.f32 0.5, %v6646
  %v6648 = vsub.f32 1.5, %v6647
  %v6649 = vmul.f32 %v6644, %v6648
  %vm6650 = vweird.f32 %v6636
  %vm6651 = vweird.f32 %v6644
  %vm6652 = vmor %vm6650, %vm6651
  %v6653 = vsel %vm6652, %v6644, %v6649
  %v6654 = vrsqrt.pop %v6637
  %v6655 = vmul.f32 %v6654, %v6637
  %v6656 = vmul.f32 %v6655, %v6654
  %v6657 = vmul.f32 0.5, %v6656
  %v6658 = vsub.f32 1.5, %v6657
  %v6659 = vmul.f32 %v6654, %v6658
  %vm6660 = vweird.f32 %v6637
  %vm6661 = vweird.f32 %v6654
  %vm6662 = vmor %vm6660, %vm6661
  %v6663 = vsel %vm6662, %v6654, %v6659
  %v6664 = vrsqrt.pop %v6638
  %v6665 = vmul.f32 %v6664, %v6638
  %v6666 = vmul.f32 %v6665, %v6664
  %v6667 = vmul.f32 0.5, %v6666
  %v6668 = vsub.f32 1.5, %v6667
  %v6669 = vmul.f32 %v6664, %v6668
  %vm6670 = vweird.f32 %v6638
  %vm6671 = vweird.f32 %v6664
  %vm6672 = vmor %vm6670, %vm6671
  %v6673 = vsel %vm6672, %v6664, %v6669
  %v6674 = vrsqrt.pop %v6639
  %v6675 = vmul.f32 %v6674, %v6639
  %v6676 = vmul.f32 %v6675, %v6674
  %v6677 = vmul.f32 0.5, %v6676
  %v6678 = vsub.f32 1.5, %v6677
  %v6679 = vmul.f32 %v6674, %v6678
  %vm6680 = vweird.f32 %v6639
  %vm6681 = vweird.f32 %v6674
  %vm6682 = vmor %vm6680, %vm6681
  %v6683 = vsel %vm6682, %v6674, %v6679
  %v6684 = vrsqrt.pop %v6640
  %v6685 = vmul.f32 %v6684, %v6640
  %v6686 = vmul.f32 %v6685, %v6684
  %v6687 = vmul.f32 0.5, %v6686
  %v6688 = vsub.f32 1.5, %v6687
  %v6689 = vmul.f32 %v6684, %v6688
  %vm6690 = vweird.f32 %v6640
  %vm6691 = vweird.f32 %v6684
  %vm6692 = vmor %vm6690, %vm6691
  %v6693 = vsel %vm6692, %v6684, %v6689
  %v6694 = vrsqrt.pop %v6641
  %v6695 = vmul.f32 %v6694, %v6641
  %v6696 = vmul.f32 %v6695, %v6694
  %v6697 = vmul.f32 0.5, %v6696
  %v6698 = vsub.f32 1.5, %v6697
  %v6699 = vmul.f32 %v6694, %v6698
  %vm6700 = vweird.f32 %v6641
  %vm6701 = vweird.f32 %v6694
  %vm6702 = vmor %vm6700, %vm6701
  %v6703 = vsel %vm6702, %v6694, %v6699
  %v6704 = vrsqrt.pop %v6642
  %v6705 = vmul.f32 %v6704, %v6642
  %v6706 = vmul.f32 %v6705, %v6704
  %v6707 = vmul.f32 0.5, %v6706
  %v6708 = vsub.f32 1.5, %v6707
  %v6709 = vmul.f32 %v6704, %v6708
  %vm6710 = vweird.f32 %v6642
  %vm6711 = vweird.f32 %v6704
  %vm6712 = vmor %vm6710, %vm6711
  %v6713 = vsel %vm6712, %v6704, %v6709
  %v6714 = vrsqrt.pop %v6643
  %v6715 = vmul.f32 %v6714, %v6643
  %v6716 = vmul.f32 %v6715, %v6714
  %v6717 = vmul.f32 0.5, %v6716
  %v6718 = vsub.f32 1.5, %v6717
  %v6719 = vmul.f32 %v6714, %v6718
  %vm6720 = vweird.f32 %v6643
  %vm6721 = vweird.f32 %v6714
  %vm6722 = vmor %vm6720, %vm6721
  %v6723 = vsel %vm6722, %v6714, %v6719
  %v6724 = vmul.f32 %v6588, %v6653
  %v6725 = vmul.f32 %v6589, %v6663
  %v6726 = vmul.f32 %v6590, %v6673
  %v6727 = vmul.f32 %v6591, %v6683
  %v6728 = vmul.f32 %v6592, %v6693
  %v6729 = vmul.f32 %v6593, %v6703
  %v6730 = vmul.f32 %v6594, %v6713
  %v6731 = vmul.f32 %v6595, %v6723
  %v6732 = vperm.slane %v6553, 0
  %v6733 = vmul.f32 %v6724, %v6732
  %v6734 = vmul.f32 %v6725, %v6732
  %v6735 = vmul.f32 %v6726, %v6732
  %v6736 = vmul.f32 %v6727, %v6732
  %v6737 = vmul.f32 %v6728, %v6732
  %v6738 = vmul.f32 %v6729, %v6732
  %v6739 = vmul.f32 %v6730, %v6732
  %v6740 = vmul.f32 %v6731, %v6732
  %v6741 = vperm.slane %v6553, 1
  %v6742 = vadd.f32 %v6733, %v6741
  %v6743 = vadd.f32 %v6734, %v6741
  %v6744 = vadd.f32 %v6735, %v6741
  %v6745 = vadd.f32 %v6736, %v6741
  %v6746 = vadd.f32 %v6737, %v6741
  %v6747 = vadd.f32 %v6738, %v6741
  %v6748 = vadd.f32 %v6739, %v6741
  %v6749 = vadd.f32 %v6740, %v6741
  %v6750 = vpack.c.bf16 %v6743, %v6742
  %v6751 = vpack.c.bf16 %v6745, %v6744
  %v6752 = vpack.c.bf16 %v6747, %v6746
  %v6753 = vpack.c.bf16 %v6749, %v6748
  %s6754 = scalar_lea.vmem %s3, 16
  %v6755 = vld [vmem:[%s6754] sm:$0xf]
  %v6756 = vld [vmem:[%s6754 + $0x4] sm:$0xf]
  %v6757 = vld [vmem:[%s6754 + $0x8] sm:$0xf]
  %v6758 = vld [vmem:[%s6754 + $0xc] sm:$0xf]
  %v6763 = vunpack.c.l.b16 %v6755
  %v6764 = vunpack.c.l.b16 %v6756
  %v6765 = vunpack.c.l.b16 %v6757
  %v6766 = vunpack.c.l.b16 %v6758
  %v6767 = vpack.c.b16 %v6764, %v6763
  %v6768 = vpack.c.b16 %v6766, %v6765
  %v6772 = vsel %vm37, %v6750, 0
  %v6775 = vsel %vm37, %v6751, 0
  %v6778 = vsel %vm37, %v6752, 0
  %v6781 = vsel %vm37, %v6753, 0
  %6783 = vmatpush.bf16.msra.mxu0 0
  %6784 = vmatpush.bf16.msra.mxu0 0
  %6785 = vmatpush.bf16.msra.mxu0 0
  %6786 = vmatpush.bf16.msra.mxu0 0
  %6787 = vmatpush.bf16.msra.mxu0 0
  %6788 = vmatpush.bf16.msra.mxu0 0
  %6789 = vmatpush.bf16.msra.mxu0 %v6768
  %6790 = vmatpush.bf16.msra.mxu0 %v6767
  %6791 = vmatmul.bf16.gmra.mxu0 %v6772
  %v6792 = vpop.f32.mrf.mxu0
  %v6793 = vadd.f32 0.0, %v6792
  %v6794 = vpop.f32.mrf.mxu0
  %v6795 = vadd.f32 0.0, %v6794
  %6796 = vmatmul.bf16.gmra.mxu0 %v6775
  %v6797 = vpop.f32.mrf.mxu0
  %v6798 = vadd.f32 0.0, %v6797
  %v6799 = vpop.f32.mrf.mxu0
  %v6800 = vadd.f32 0.0, %v6799
  %6801 = vmatmul.bf16.gmra.mxu0 %v6778
  %v6802 = vpop.f32.mrf.mxu0
  %v6803 = vadd.f32 0.0, %v6802
  %v6804 = vpop.f32.mrf.mxu0
  %v6805 = vadd.f32 0.0, %v6804
  %6806 = vmatmul.bf16.gmra.mxu0 %v6781
  %v6807 = vpop.f32.mrf.mxu0
  %v6808 = vadd.f32 0.0, %v6807
  %v6809 = vpop.f32.mrf.mxu0
  %v6810 = vadd.f32 0.0, %v6809
  %6811 = vdwg.mxu0
  %6820 = vrot.lane.b32.xlu0 %v6793, 120
  %v6821 = vpop.permute.xlu0 %6820
  %6822 = vrot.lane.b32.xlu0 %v6795, 120
  %v6823 = vpop.permute.xlu0 %6822
  %6824 = vrot.lane.b32.xlu0 %v6798, 120
  %v6825 = vpop.permute.xlu0 %6824
  %6826 = vrot.lane.b32.xlu0 %v6800, 120
  %v6827 = vpop.permute.xlu0 %6826
  %6828 = vrot.lane.b32.xlu0 %v6803, 120
  %v6829 = vpop.permute.xlu0 %6828
  %6830 = vrot.lane.b32.xlu0 %v6805, 120
  %v6831 = vpop.permute.xlu0 %6830
  %6832 = vrot.lane.b32.xlu0 %v6808, 120
  %v6833 = vpop.permute.xlu0 %6832
  %6834 = vrot.lane.b32.xlu0 %v6810, 120
  %v6835 = vpop.permute.xlu0 %6834
  %6844 = vrot.lane.b32.xlu0 %v6793, 112
  %v6845 = vpop.permute.xlu0 %6844
  %6846 = vrot.lane.b32.xlu0 %v6795, 112
  %v6847 = vpop.permute.xlu0 %6846
  %6848 = vrot.lane.b32.xlu0 %v6798, 112
  %v6849 = vpop.permute.xlu0 %6848
  %6850 = vrot.lane.b32.xlu0 %v6800, 112
  %v6851 = vpop.permute.xlu0 %6850
  %6852 = vrot.lane.b32.xlu0 %v6803, 112
  %v6853 = vpop.permute.xlu0 %6852
  %6854 = vrot.lane.b32.xlu0 %v6805, 112
  %v6855 = vpop.permute.xlu0 %6854
  %6856 = vrot.lane.b32.xlu0 %v6808, 112
  %v6857 = vpop.permute.xlu0 %6856
  %6858 = vrot.lane.b32.xlu0 %v6810, 112
  %v6859 = vpop.permute.xlu0 %6858
  %6868 = vrot.lane.b32.xlu0 %v6793, 104
  %v6869 = vpop.permute.xlu0 %6868
  %6870 = vrot.lane.b32.xlu0 %v6795, 104
  %v6871 = vpop.permute.xlu0 %6870
  %6872 = vrot.lane.b32.xlu0 %v6798, 104
  %v6873 = vpop.permute.xlu0 %6872
  %6874 = vrot.lane.b32.xlu0 %v6800, 104
  %v6875 = vpop.permute.xlu0 %6874
  %6876 = vrot.lane.b32.xlu0 %v6803, 104
  %v6877 = vpop.permute.xlu0 %6876
  %6878 = vrot.lane.b32.xlu0 %v6805, 104
  %v6879 = vpop.permute.xlu0 %6878
  %6880 = vrot.lane.b32.xlu0 %v6808, 104
  %v6881 = vpop.permute.xlu0 %6880
  %6882 = vrot.lane.b32.xlu0 %v6810, 104
  %v6883 = vpop.permute.xlu0 %6882
  %6892 = vrot.lane.b32.xlu0 %v6793, 96
  %v6893 = vpop.permute.xlu0 %6892
  %6894 = vrot.lane.b32.xlu0 %v6795, 96
  %v6895 = vpop.permute.xlu0 %6894
  %6896 = vrot.lane.b32.xlu0 %v6798, 96
  %v6897 = vpop.permute.xlu0 %6896
  %6898 = vrot.lane.b32.xlu0 %v6800, 96
  %v6899 = vpop.permute.xlu0 %6898
  %6900 = vrot.lane.b32.xlu0 %v6803, 96
  %v6901 = vpop.permute.xlu0 %6900
  %6902 = vrot.lane.b32.xlu0 %v6805, 96
  %v6903 = vpop.permute.xlu0 %6902
  %6904 = vrot.lane.b32.xlu0 %v6808, 96
  %v6905 = vpop.permute.xlu0 %6904
  %6906 = vrot.lane.b32.xlu0 %v6810, 96
  %v6907 = vpop.permute.xlu0 %6906
  %6916 = vrot.lane.b32.xlu0 %v6793, 88
  %v6917 = vpop.permute.xlu0 %6916
  %6918 = vrot.lane.b32.xlu0 %v6795, 88
  %v6919 = vpop.permute.xlu0 %6918
  %6920 = vrot.lane.b32.xlu0 %v6798, 88
  %v6921 = vpop.permute.xlu0 %6920
  %6922 = vrot.lane.b32.xlu0 %v6800, 88
  %v6923 = vpop.permute.xlu0 %6922
  %6924 = vrot.lane.b32.xlu0 %v6803, 88
  %v6925 = vpop.permute.xlu0 %6924
  %6926 = vrot.lane.b32.xlu0 %v6805, 88
  %v6927 = vpop.permute.xlu0 %6926
  %6928 = vrot.lane.b32.xlu0 %v6808, 88
  %v6929 = vpop.permute.xlu0 %6928
  %6930 = vrot.lane.b32.xlu0 %v6810, 88
  %v6931 = vpop.permute.xlu0 %6930
  %6940 = vrot.lane.b32.xlu0 %v6793, 80
  %v6941 = vpop.permute.xlu0 %6940
  %6942 = vrot.lane.b32.xlu0 %v6795, 80
  %v6943 = vpop.permute.xlu0 %6942
  %6944 = vrot.lane.b32.xlu0 %v6798, 80
  %v6945 = vpop.permute.xlu0 %6944
  %6946 = vrot.lane.b32.xlu0 %v6800, 80
  %v6947 = vpop.permute.xlu0 %6946
  %6948 = vrot.lane.b32.xlu0 %v6803, 80
  %v6949 = vpop.permute.xlu0 %6948
  %6950 = vrot.lane.b32.xlu0 %v6805, 80
  %v6951 = vpop.permute.xlu0 %6950
  %6952 = vrot.lane.b32.xlu0 %v6808, 80
  %v6953 = vpop.permute.xlu0 %6952
  %6954 = vrot.lane.b32.xlu0 %v6810, 80
  %v6955 = vpop.permute.xlu0 %6954
  %6964 = vrot.lane.b32.xlu0 %v6793, 72
  %v6965 = vpop.permute.xlu0 %6964
  %6966 = vrot.lane.b32.xlu0 %v6795, 72
  %v6967 = vpop.permute.xlu0 %6966
  %6968 = vrot.lane.b32.xlu0 %v6798, 72
  %v6969 = vpop.permute.xlu0 %6968
  %6970 = vrot.lane.b32.xlu0 %v6800, 72
  %v6971 = vpop.permute.xlu0 %6970
  %6972 = vrot.lane.b32.xlu0 %v6803, 72
  %v6973 = vpop.permute.xlu0 %6972
  %6974 = vrot.lane.b32.xlu0 %v6805, 72
  %v6975 = vpop.permute.xlu0 %6974
  %6976 = vrot.lane.b32.xlu0 %v6808, 72
  %v6977 = vpop.permute.xlu0 %6976
  %6978 = vrot.lane.b32.xlu0 %v6810, 72
  %v6979 = vpop.permute.xlu0 %6978
  %6988 = vrot.lane.b32.xlu0 %v6793, 64
  %v6989 = vpop.permute.xlu0 %6988
  %6990 = vrot.lane.b32.xlu0 %v6795, 64
  %v6991 = vpop.permute.xlu0 %6990
  %6992 = vrot.lane.b32.xlu0 %v6798, 64
  %v6993 = vpop.permute.xlu0 %6992
  %6994 = vrot.lane.b32.xlu0 %v6800, 64
  %v6995 = vpop.permute.xlu0 %6994
  %6996 = vrot.lane.b32.xlu0 %v6803, 64
  %v6997 = vpop.permute.xlu0 %6996
  %6998 = vrot.lane.b32.xlu0 %v6805, 64
  %v6999 = vpop.permute.xlu0 %6998
  %7000 = vrot.lane.b32.xlu0 %v6808, 64
  %v7001 = vpop.permute.xlu0 %7000
  %7002 = vrot.lane.b32.xlu0 %v6810, 64
  %v7003 = vpop.permute.xlu0 %7002
  %7012 = vrot.lane.b32.xlu0 %v6793, 56
  %v7013 = vpop.permute.xlu0 %7012
  %7014 = vrot.lane.b32.xlu0 %v6795, 56
  %v7015 = vpop.permute.xlu0 %7014
  %7016 = vrot.lane.b32.xlu0 %v6798, 56
  %v7017 = vpop.permute.xlu0 %7016
  %7018 = vrot.lane.b32.xlu0 %v6800, 56
  %v7019 = vpop.permute.xlu0 %7018
  %7020 = vrot.lane.b32.xlu0 %v6803, 56
  %v7021 = vpop.permute.xlu0 %7020
  %7022 = vrot.lane.b32.xlu0 %v6805, 56
  %v7023 = vpop.permute.xlu0 %7022
  %7024 = vrot.lane.b32.xlu0 %v6808, 56
  %v7025 = vpop.permute.xlu0 %7024
  %7026 = vrot.lane.b32.xlu0 %v6810, 56
  %v7027 = vpop.permute.xlu0 %7026
  %7036 = vrot.lane.b32.xlu0 %v6793, 48
  %v7037 = vpop.permute.xlu0 %7036
  %7038 = vrot.lane.b32.xlu0 %v6795, 48
  %v7039 = vpop.permute.xlu0 %7038
  %7040 = vrot.lane.b32.xlu0 %v6798, 48
  %v7041 = vpop.permute.xlu0 %7040
  %7042 = vrot.lane.b32.xlu0 %v6800, 48
  %v7043 = vpop.permute.xlu0 %7042
  %7044 = vrot.lane.b32.xlu0 %v6803, 48
  %v7045 = vpop.permute.xlu0 %7044
  %7046 = vrot.lane.b32.xlu0 %v6805, 48
  %v7047 = vpop.permute.xlu0 %7046
  %7048 = vrot.lane.b32.xlu0 %v6808, 48
  %v7049 = vpop.permute.xlu0 %7048
  %7050 = vrot.lane.b32.xlu0 %v6810, 48
  %v7051 = vpop.permute.xlu0 %7050
  %7060 = vrot.lane.b32.xlu0 %v6793, 40
  %v7061 = vpop.permute.xlu0 %7060
  %7062 = vrot.lane.b32.xlu0 %v6795, 40
  %v7063 = vpop.permute.xlu0 %7062
  %7064 = vrot.lane.b32.xlu0 %v6798, 40
  %v7065 = vpop.permute.xlu0 %7064
  %7066 = vrot.lane.b32.xlu0 %v6800, 40
  %v7067 = vpop.permute.xlu0 %7066
  %7068 = vrot.lane.b32.xlu0 %v6803, 40
  %v7069 = vpop.permute.xlu0 %7068
  %7070 = vrot.lane.b32.xlu0 %v6805, 40
  %v7071 = vpop.permute.xlu0 %7070
  %7072 = vrot.lane.b32.xlu0 %v6808, 40
  %v7073 = vpop.permute.xlu0 %7072
  %7074 = vrot.lane.b32.xlu0 %v6810, 40
  %v7075 = vpop.permute.xlu0 %7074
  %v7084 = vrot.slane %v6845, 4
  %v7085 = vsel %vm573, %v7084, %v6793
  %v7086 = vrot.slane %v6793, 4
  %v7087 = vsel %vm573, %v6845, %v7086
  %v7089 = vunpack.c.l.s4 1983009808
  %v7090 = vunpack.c.0.s8 %v7089
  %v7091 = vperm.slane %v7085, %v7090
  %v7093 = vunpack.c.l.s4 1983009808
  %v7094 = vunpack.c.0.s8 %v7093
  %v7095 = vperm.slane %v7087, %v7094
  %v7096 = vrot.slane %v6869, 4
  %v7097 = vsel %vm573, %v7096, %v6821
  %v7098 = vrot.slane %v6821, 4
  %v7099 = vsel %vm573, %v6869, %v7098
  %v7101 = vunpack.c.l.s4 1983009808
  %v7102 = vunpack.c.0.s8 %v7101
  %v7103 = vperm.slane %v7097, %v7102
  %v7105 = vunpack.c.l.s4 1983009808
  %v7106 = vunpack.c.0.s8 %v7105
  %v7107 = vperm.slane %v7099, %v7106
  %v7108 = vrot.slane %v6941, 4
  %v7109 = vsel %vm573, %v7108, %v6893
  %v7110 = vrot.slane %v6893, 4
  %v7111 = vsel %vm573, %v6941, %v7110
  %v7113 = vunpack.c.l.s4 1983009808
  %v7114 = vunpack.c.0.s8 %v7113
  %v7115 = vperm.slane %v7109, %v7114
  %v7117 = vunpack.c.l.s4 1983009808
  %v7118 = vunpack.c.0.s8 %v7117
  %v7119 = vperm.slane %v7111, %v7118
  %v7120 = vrot.slane %v6965, 4
  %v7121 = vsel %vm573, %v7120, %v6917
  %v7122 = vrot.slane %v6917, 4
  %v7123 = vsel %vm573, %v6965, %v7122
  %v7125 = vunpack.c.l.s4 1983009808
  %v7126 = vunpack.c.0.s8 %v7125
  %v7127 = vperm.slane %v7121, %v7126
  %v7129 = vunpack.c.l.s4 1983009808
  %v7130 = vunpack.c.0.s8 %v7129
  %v7131 = vperm.slane %v7123, %v7130
  %v7132 = vrot.slane %v7103, 4
  %v7133 = vsel %vm573, %v7132, %v7091
  %v7134 = vrot.slane %v7091, 4
  %v7135 = vsel %vm573, %v7103, %v7134
  %v7137 = vunpack.c.l.s4 1934713408
  %v7138 = vunpack.c.0.s8 %v7137
  %v7139 = vperm.slane %v7133, %v7138
  %v7141 = vunpack.c.l.s4 1934713408
  %v7142 = vunpack.c.0.s8 %v7141
  %v7143 = vperm.slane %v7135, %v7142
  %v7144 = vrot.slane %v7107, 4
  %v7145 = vsel %vm573, %v7144, %v7095
  %v7146 = vrot.slane %v7095, 4
  %v7147 = vsel %vm573, %v7107, %v7146
  %v7149 = vunpack.c.l.s4 1934713408
  %v7150 = vunpack.c.0.s8 %v7149
  %v7151 = vperm.slane %v7145, %v7150
  %v7153 = vunpack.c.l.s4 1934713408
  %v7154 = vunpack.c.0.s8 %v7153
  %v7155 = vperm.slane %v7147, %v7154
  %v7156 = vrot.slane %v7127, 4
  %v7157 = vsel %vm573, %v7156, %v7115
  %v7158 = vrot.slane %v7115, 4
  %v7159 = vsel %vm573, %v7127, %v7158
  %v7161 = vunpack.c.l.s4 1934713408
  %v7162 = vunpack.c.0.s8 %v7161
  %v7163 = vperm.slane %v7157, %v7162
  %v7165 = vunpack.c.l.s4 1934713408
  %v7166 = vunpack.c.0.s8 %v7165
  %v7167 = vperm.slane %v7159, %v7166
  %v7168 = vrot.slane %v7131, 4
  %v7169 = vsel %vm573, %v7168, %v7119
  %v7170 = vrot.slane %v7119, 4
  %v7171 = vsel %vm573, %v7131, %v7170
  %v7173 = vunpack.c.l.s4 1934713408
  %v7174 = vunpack.c.0.s8 %v7173
  %v7175 = vperm.slane %v7169, %v7174
  %v7177 = vunpack.c.l.s4 1934713408
  %v7178 = vunpack.c.0.s8 %v7177
  %v7179 = vperm.slane %v7171, %v7178
  %v7180 = vrot.slane %v7163, 4
  %v7181 = vsel %vm573, %v7180, %v7139
  %v7182 = vrot.slane %v7139, 4
  %v7183 = vsel %vm573, %v7163, %v7182
  %v7184 = vrot.slane %v7167, 4
  %v7185 = vsel %vm573, %v7184, %v7143
  %v7186 = vrot.slane %v7143, 4
  %v7187 = vsel %vm573, %v7167, %v7186
  %v7188 = vrot.slane %v7175, 4
  %v7189 = vsel %vm573, %v7188, %v7151
  %v7190 = vrot.slane %v7151, 4
  %v7191 = vsel %vm573, %v7175, %v7190
  %v7192 = vrot.slane %v7179, 4
  %v7193 = vsel %vm573, %v7192, %v7155
  %v7194 = vrot.slane %v7155, 4
  %v7195 = vsel %vm573, %v7179, %v7194
  %v7196 = vrot.slane %v7037, 4
  %v7197 = vsel %vm573, %v7196, %v6989
  %v7198 = vrot.slane %v6989, 4
  %v7199 = vsel %vm573, %v7037, %v7198
  %v7201 = vunpack.c.l.s4 1983009808
  %v7202 = vunpack.c.0.s8 %v7201
  %v7203 = vperm.slane %v7197, %v7202
  %v7205 = vunpack.c.l.s4 1983009808
  %v7206 = vunpack.c.0.s8 %v7205
  %v7207 = vperm.slane %v7199, %v7206
  %v7208 = vrot.slane %v7061, 4
  %v7209 = vsel %vm573, %v7208, %v7013
  %v7210 = vrot.slane %v7013, 4
  %v7211 = vsel %vm573, %v7061, %v7210
  %v7213 = vunpack.c.l.s4 1983009808
  %v7214 = vunpack.c.0.s8 %v7213
  %v7215 = vperm.slane %v7209, %v7214
  %v7217 = vunpack.c.l.s4 1983009808
  %v7218 = vunpack.c.0.s8 %v7217
  %v7219 = vperm.slane %v7211, %v7218
  %v7220 = vrot.slane %v7215, 4
  %v7221 = vsel %vm573, %v7220, %v7203
  %v7222 = vrot.slane %v7203, 4
  %v7223 = vsel %vm573, %v7215, %v7222
  %v7225 = vunpack.c.l.s4 1934713408
  %v7226 = vunpack.c.0.s8 %v7225
  %v7227 = vperm.slane %v7221, %v7226
  %v7229 = vunpack.c.l.s4 1934713408
  %v7230 = vunpack.c.0.s8 %v7229
  %v7231 = vperm.slane %v7223, %v7230
  %v7232 = vrot.slane %v7219, 4
  %v7233 = vsel %vm573, %v7232, %v7207
  %v7234 = vrot.slane %v7207, 4
  %v7235 = vsel %vm573, %v7219, %v7234
  %v7237 = vunpack.c.l.s4 1934713408
  %v7238 = vunpack.c.0.s8 %v7237
  %v7239 = vperm.slane %v7233, %v7238
  %v7241 = vunpack.c.l.s4 1934713408
  %v7242 = vunpack.c.0.s8 %v7241
  %v7243 = vperm.slane %v7235, %v7242
  %v7244 = vrot.slane %v7227, 4
  %v7245 = vsel %vm573, 0.0, %v7244
  %v7246 = vrot.slane %v7231, 4
  %v7247 = vsel %vm573, 0.0, %v7246
  %v7248 = vrot.slane %v7239, 4
  %v7249 = vsel %vm573, 0.0, %v7248
  %v7250 = vrot.slane %v7243, 4
  %v7251 = vsel %vm573, 0.0, %v7250
  %v7252 = vrot.slane %v6847, 4
  %v7253 = vsel %vm573, %v7252, %v6795
  %v7254 = vrot.slane %v6795, 4
  %v7255 = vsel %vm573, %v6847, %v7254
  %v7257 = vunpack.c.l.s4 1983009808
  %v7258 = vunpack.c.0.s8 %v7257
  %v7259 = vperm.slane %v7253, %v7258
  %v7261 = vunpack.c.l.s4 1983009808
  %v7262 = vunpack.c.0.s8 %v7261
  %v7263 = vperm.slane %v7255, %v7262
  %v7264 = vrot.slane %v6871, 4
  %v7265 = vsel %vm573, %v7264, %v6823
  %v7266 = vrot.slane %v6823, 4
  %v7267 = vsel %vm573, %v6871, %v7266
  %v7269 = vunpack.c.l.s4 1983009808
  %v7270 = vunpack.c.0.s8 %v7269
  %v7271 = vperm.slane %v7265, %v7270
  %v7273 = vunpack.c.l.s4 1983009808
  %v7274 = vunpack.c.0.s8 %v7273
  %v7275 = vperm.slane %v7267, %v7274
  %v7276 = vrot.slane %v6943, 4
  %v7277 = vsel %vm573, %v7276, %v6895
  %v7278 = vrot.slane %v6895, 4
  %v7279 = vsel %vm573, %v6943, %v7278
  %v7281 = vunpack.c.l.s4 1983009808
  %v7282 = vunpack.c.0.s8 %v7281
  %v7283 = vperm.slane %v7277, %v7282
  %v7285 = vunpack.c.l.s4 1983009808
  %v7286 = vunpack.c.0.s8 %v7285
  %v7287 = vperm.slane %v7279, %v7286
  %v7288 = vrot.slane %v6967, 4
  %v7289 = vsel %vm573, %v7288, %v6919
  %v7290 = vrot.slane %v6919, 4
  %v7291 = vsel %vm573, %v6967, %v7290
  %v7293 = vunpack.c.l.s4 1983009808
  %v7294 = vunpack.c.0.s8 %v7293
  %v7295 = vperm.slane %v7289, %v7294
  %v7297 = vunpack.c.l.s4 1983009808
  %v7298 = vunpack.c.0.s8 %v7297
  %v7299 = vperm.slane %v7291, %v7298
  %v7300 = vrot.slane %v7271, 4
  %v7301 = vsel %vm573, %v7300, %v7259
  %v7302 = vrot.slane %v7259, 4
  %v7303 = vsel %vm573, %v7271, %v7302
  %v7305 = vunpack.c.l.s4 1934713408
  %v7306 = vunpack.c.0.s8 %v7305
  %v7307 = vperm.slane %v7301, %v7306
  %v7309 = vunpack.c.l.s4 1934713408
  %v7310 = vunpack.c.0.s8 %v7309
  %v7311 = vperm.slane %v7303, %v7310
  %v7312 = vrot.slane %v7275, 4
  %v7313 = vsel %vm573, %v7312, %v7263
  %v7314 = vrot.slane %v7263, 4
  %v7315 = vsel %vm573, %v7275, %v7314
  %v7317 = vunpack.c.l.s4 1934713408
  %v7318 = vunpack.c.0.s8 %v7317
  %v7319 = vperm.slane %v7313, %v7318
  %v7321 = vunpack.c.l.s4 1934713408
  %v7322 = vunpack.c.0.s8 %v7321
  %v7323 = vperm.slane %v7315, %v7322
  %v7324 = vrot.slane %v7295, 4
  %v7325 = vsel %vm573, %v7324, %v7283
  %v7326 = vrot.slane %v7283, 4
  %v7327 = vsel %vm573, %v7295, %v7326
  %v7329 = vunpack.c.l.s4 1934713408
  %v7330 = vunpack.c.0.s8 %v7329
  %v7331 = vperm.slane %v7325, %v7330
  %v7333 = vunpack.c.l.s4 1934713408
  %v7334 = vunpack.c.0.s8 %v7333
  %v7335 = vperm.slane %v7327, %v7334
  %v7336 = vrot.slane %v7299, 4
  %v7337 = vsel %vm573, %v7336, %v7287
  %v7338 = vrot.slane %v7287, 4
  %v7339 = vsel %vm573, %v7299, %v7338
  %v7341 = vunpack.c.l.s4 1934713408
  %v7342 = vunpack.c.0.s8 %v7341
  %v7343 = vperm.slane %v7337, %v7342
  %v7345 = vunpack.c.l.s4 1934713408
  %v7346 = vunpack.c.0.s8 %v7345
  %v7347 = vperm.slane %v7339, %v7346
  %v7348 = vrot.slane %v7331, 4
  %v7349 = vsel %vm573, %v7348, %v7307
  %v7350 = vrot.slane %v7307, 4
  %v7351 = vsel %vm573, %v7331, %v7350
  %v7352 = vrot.slane %v7335, 4
  %v7353 = vsel %vm573, %v7352, %v7311
  %v7354 = vrot.slane %v7311, 4
  %v7355 = vsel %vm573, %v7335, %v7354
  %v7356 = vrot.slane %v7343, 4
  %v7357 = vsel %vm573, %v7356, %v7319
  %v7358 = vrot.slane %v7319, 4
  %v7359 = vsel %vm573, %v7343, %v7358
  %v7360 = vrot.slane %v7347, 4
  %v7361 = vsel %vm573, %v7360, %v7323
  %v7362 = vrot.slane %v7323, 4
  %v7363 = vsel %vm573, %v7347, %v7362
  %v7364 = vrot.slane %v7039, 4
  %v7365 = vsel %vm573, %v7364, %v6991
  %v7366 = vrot.slane %v6991, 4
  %v7367 = vsel %vm573, %v7039, %v7366
  %v7369 = vunpack.c.l.s4 1983009808
  %v7370 = vunpack.c.0.s8 %v7369
  %v7371 = vperm.slane %v7365, %v7370
  %v7373 = vunpack.c.l.s4 1983009808
  %v7374 = vunpack.c.0.s8 %v7373
  %v7375 = vperm.slane %v7367, %v7374
  %v7376 = vrot.slane %v7063, 4
  %v7377 = vsel %vm573, %v7376, %v7015
  %v7378 = vrot.slane %v7015, 4
  %v7379 = vsel %vm573, %v7063, %v7378
  %v7381 = vunpack.c.l.s4 1983009808
  %v7382 = vunpack.c.0.s8 %v7381
  %v7383 = vperm.slane %v7377, %v7382
  %v7385 = vunpack.c.l.s4 1983009808
  %v7386 = vunpack.c.0.s8 %v7385
  %v7387 = vperm.slane %v7379, %v7386
  %v7388 = vrot.slane %v7383, 4
  %v7389 = vsel %vm573, %v7388, %v7371
  %v7390 = vrot.slane %v7371, 4
  %v7391 = vsel %vm573, %v7383, %v7390
  %v7393 = vunpack.c.l.s4 1934713408
  %v7394 = vunpack.c.0.s8 %v7393
  %v7395 = vperm.slane %v7389, %v7394
  %v7397 = vunpack.c.l.s4 1934713408
  %v7398 = vunpack.c.0.s8 %v7397
  %v7399 = vperm.slane %v7391, %v7398
  %v7400 = vrot.slane %v7387, 4
  %v7401 = vsel %vm573, %v7400, %v7375
  %v7402 = vrot.slane %v7375, 4
  %v7403 = vsel %vm573, %v7387, %v7402
  %v7405 = vunpack.c.l.s4 1934713408
  %v7406 = vunpack.c.0.s8 %v7405
  %v7407 = vperm.slane %v7401, %v7406
  %v7409 = vunpack.c.l.s4 1934713408
  %v7410 = vunpack.c.0.s8 %v7409
  %v7411 = vperm.slane %v7403, %v7410
  %v7412 = vrot.slane %v7395, 4
  %v7413 = vsel %vm573, 0.0, %v7412
  %v7414 = vrot.slane %v7399, 4
  %v7415 = vsel %vm573, 0.0, %v7414
  %v7416 = vrot.slane %v7407, 4
  %v7417 = vsel %vm573, 0.0, %v7416
  %v7418 = vrot.slane %v7411, 4
  %v7419 = vsel %vm573, 0.0, %v7418
  %v7420 = vrot.slane %v6849, 4
  %v7421 = vsel %vm573, %v7420, %v6798
  %v7422 = vrot.slane %v6798, 4
  %v7423 = vsel %vm573, %v6849, %v7422
  %v7425 = vunpack.c.l.s4 1983009808
  %v7426 = vunpack.c.0.s8 %v7425
  %v7427 = vperm.slane %v7421, %v7426
  %v7429 = vunpack.c.l.s4 1983009808
  %v7430 = vunpack.c.0.s8 %v7429
  %v7431 = vperm.slane %v7423, %v7430
  %v7432 = vrot.slane %v6873, 4
  %v7433 = vsel %vm573, %v7432, %v6825
  %v7434 = vrot.slane %v6825, 4
  %v7435 = vsel %vm573, %v6873, %v7434
  %v7437 = vunpack.c.l.s4 1983009808
  %v7438 = vunpack.c.0.s8 %v7437
  %v7439 = vperm.slane %v7433, %v7438
  %v7441 = vunpack.c.l.s4 1983009808
  %v7442 = vunpack.c.0.s8 %v7441
  %v7443 = vperm.slane %v7435, %v7442
  %v7444 = vrot.slane %v6945, 4
  %v7445 = vsel %vm573, %v7444, %v6897
  %v7446 = vrot.slane %v6897, 4
  %v7447 = vsel %vm573, %v6945, %v7446
  %v7449 = vunpack.c.l.s4 1983009808
  %v7450 = vunpack.c.0.s8 %v7449
  %v7451 = vperm.slane %v7445, %v7450
  %v7453 = vunpack.c.l.s4 1983009808
  %v7454 = vunpack.c.0.s8 %v7453
  %v7455 = vperm.slane %v7447, %v7454
  %v7456 = vrot.slane %v6969, 4
  %v7457 = vsel %vm573, %v7456, %v6921
  %v7458 = vrot.slane %v6921, 4
  %v7459 = vsel %vm573, %v6969, %v7458
  %v7461 = vunpack.c.l.s4 1983009808
  %v7462 = vunpack.c.0.s8 %v7461
  %v7463 = vperm.slane %v7457, %v7462
  %v7465 = vunpack.c.l.s4 1983009808
  %v7466 = vunpack.c.0.s8 %v7465
  %v7467 = vperm.slane %v7459, %v7466
  %v7468 = vrot.slane %v7439, 4
  %v7469 = vsel %vm573, %v7468, %v7427
  %v7470 = vrot.slane %v7427, 4
  %v7471 = vsel %vm573, %v7439, %v7470
  %v7473 = vunpack.c.l.s4 1934713408
  %v7474 = vunpack.c.0.s8 %v7473
  %v7475 = vperm.slane %v7469, %v7474
  %v7477 = vunpack.c.l.s4 1934713408
  %v7478 = vunpack.c.0.s8 %v7477
  %v7479 = vperm.slane %v7471, %v7478
  %v7480 = vrot.slane %v7443, 4
  %v7481 = vsel %vm573, %v7480, %v7431
  %v7482 = vrot.slane %v7431, 4
  %v7483 = vsel %vm573, %v7443, %v7482
  %v7485 = vunpack.c.l.s4 1934713408
  %v7486 = vunpack.c.0.s8 %v7485
  %v7487 = vperm.slane %v7481, %v7486
  %v7489 = vunpack.c.l.s4 1934713408
  %v7490 = vunpack.c.0.s8 %v7489
  %v7491 = vperm.slane %v7483, %v7490
  %v7492 = vrot.slane %v7463, 4
  %v7493 = vsel %vm573, %v7492, %v7451
  %v7494 = vrot.slane %v7451, 4
  %v7495 = vsel %vm573, %v7463, %v7494
  %v7497 = vunpack.c.l.s4 1934713408
  %v7498 = vunpack.c.0.s8 %v7497
  %v7499 = vperm.slane %v7493, %v7498
  %v7501 = vunpack.c.l.s4 1934713408
  %v7502 = vunpack.c.0.s8 %v7501
  %v7503 = vperm.slane %v7495, %v7502
  %v7504 = vrot.slane %v7467, 4
  %v7505 = vsel %vm573, %v7504, %v7455
  %v7506 = vrot.slane %v7455, 4
  %v7507 = vsel %vm573, %v7467, %v7506
  %v7509 = vunpack.c.l.s4 1934713408
  %v7510 = vunpack.c.0.s8 %v7509
  %v7511 = vperm.slane %v7505, %v7510
  %v7513 = vunpack.c.l.s4 1934713408
  %v7514 = vunpack.c.0.s8 %v7513
  %v7515 = vperm.slane %v7507, %v7514
  %v7516 = vrot.slane %v7499, 4
  %v7517 = vsel %vm573, %v7516, %v7475
  %v7518 = vrot.slane %v7475, 4
  %v7519 = vsel %vm573, %v7499, %v7518
  %v7520 = vrot.slane %v7503, 4
  %v7521 = vsel %vm573, %v7520, %v7479
  %v7522 = vrot.slane %v7479, 4
  %v7523 = vsel %vm573, %v7503, %v7522
  %v7524 = vrot.slane %v7511, 4
  %v7525 = vsel %vm573, %v7524, %v7487
  %v7526 = vrot.slane %v7487, 4
  %v7527 = vsel %vm573, %v7511, %v7526
  %v7528 = vrot.slane %v7515, 4
  %v7529 = vsel %vm573, %v7528, %v7491
  %v7530 = vrot.slane %v7491, 4
  %v7531 = vsel %vm573, %v7515, %v7530
  %v7532 = vrot.slane %v7041, 4
  %v7533 = vsel %vm573, %v7532, %v6993
  %v7534 = vrot.slane %v6993, 4
  %v7535 = vsel %vm573, %v7041, %v7534
  %v7537 = vunpack.c.l.s4 1983009808
  %v7538 = vunpack.c.0.s8 %v7537
  %v7539 = vperm.slane %v7533, %v7538
  %v7541 = vunpack.c.l.s4 1983009808
  %v7542 = vunpack.c.0.s8 %v7541
  %v7543 = vperm.slane %v7535, %v7542
  %v7544 = vrot.slane %v7065, 4
  %v7545 = vsel %vm573, %v7544, %v7017
  %v7546 = vrot.slane %v7017, 4
  %v7547 = vsel %vm573, %v7065, %v7546
  %v7549 = vunpack.c.l.s4 1983009808
  %v7550 = vunpack.c.0.s8 %v7549
  %v7551 = vperm.slane %v7545, %v7550
  %v7553 = vunpack.c.l.s4 1983009808
  %v7554 = vunpack.c.0.s8 %v7553
  %v7555 = vperm.slane %v7547, %v7554
  %v7556 = vrot.slane %v7551, 4
  %v7557 = vsel %vm573, %v7556, %v7539
  %v7558 = vrot.slane %v7539, 4
  %v7559 = vsel %vm573, %v7551, %v7558
  %v7561 = vunpack.c.l.s4 1934713408
  %v7562 = vunpack.c.0.s8 %v7561
  %v7563 = vperm.slane %v7557, %v7562
  %v7565 = vunpack.c.l.s4 1934713408
  %v7566 = vunpack.c.0.s8 %v7565
  %v7567 = vperm.slane %v7559, %v7566
  %v7568 = vrot.slane %v7555, 4
  %v7569 = vsel %vm573, %v7568, %v7543
  %v7570 = vrot.slane %v7543, 4
  %v7571 = vsel %vm573, %v7555, %v7570
  %v7573 = vunpack.c.l.s4 1934713408
  %v7574 = vunpack.c.0.s8 %v7573
  %v7575 = vperm.slane %v7569, %v7574
  %v7577 = vunpack.c.l.s4 1934713408
  %v7578 = vunpack.c.0.s8 %v7577
  %v7579 = vperm.slane %v7571, %v7578
  %v7580 = vrot.slane %v7563, 4
  %v7581 = vsel %vm573, 0.0, %v7580
  %v7582 = vrot.slane %v7567, 4
  %v7583 = vsel %vm573, 0.0, %v7582
  %v7584 = vrot.slane %v7575, 4
  %v7585 = vsel %vm573, 0.0, %v7584
  %v7586 = vrot.slane %v7579, 4
  %v7587 = vsel %vm573, 0.0, %v7586
  %v7588 = vrot.slane %v6851, 4
  %v7589 = vsel %vm573, %v7588, %v6800
  %v7590 = vrot.slane %v6800, 4
  %v7591 = vsel %vm573, %v6851, %v7590
  %v7593 = vunpack.c.l.s4 1983009808
  %v7594 = vunpack.c.0.s8 %v7593
  %v7595 = vperm.slane %v7589, %v7594
  %v7597 = vunpack.c.l.s4 1983009808
  %v7598 = vunpack.c.0.s8 %v7597
  %v7599 = vperm.slane %v7591, %v7598
  %v7600 = vrot.slane %v6875, 4
  %v7601 = vsel %vm573, %v7600, %v6827
  %v7602 = vrot.slane %v6827, 4
  %v7603 = vsel %vm573, %v6875, %v7602
  %v7605 = vunpack.c.l.s4 1983009808
  %v7606 = vunpack.c.0.s8 %v7605
  %v7607 = vperm.slane %v7601, %v7606
  %v7609 = vunpack.c.l.s4 1983009808
  %v7610 = vunpack.c.0.s8 %v7609
  %v7611 = vperm.slane %v7603, %v7610
  %v7612 = vrot.slane %v6947, 4
  %v7613 = vsel %vm573, %v7612, %v6899
  %v7614 = vrot.slane %v6899, 4
  %v7615 = vsel %vm573, %v6947, %v7614
  %v7617 = vunpack.c.l.s4 1983009808
  %v7618 = vunpack.c.0.s8 %v7617
  %v7619 = vperm.slane %v7613, %v7618
  %v7621 = vunpack.c.l.s4 1983009808
  %v7622 = vunpack.c.0.s8 %v7621
  %v7623 = vperm.slane %v7615, %v7622
  %v7624 = vrot.slane %v6971, 4
  %v7625 = vsel %vm573, %v7624, %v6923
  %v7626 = vrot.slane %v6923, 4
  %v7627 = vsel %vm573, %v6971, %v7626
  %v7629 = vunpack.c.l.s4 1983009808
  %v7630 = vunpack.c.0.s8 %v7629
  %v7631 = vperm.slane %v7625, %v7630
  %v7633 = vunpack.c.l.s4 1983009808
  %v7634 = vunpack.c.0.s8 %v7633
  %v7635 = vperm.slane %v7627, %v7634
  %v7636 = vrot.slane %v7607, 4
  %v7637 = vsel %vm573, %v7636, %v7595
  %v7638 = vrot.slane %v7595, 4
  %v7639 = vsel %vm573, %v7607, %v7638
  %v7641 = vunpack.c.l.s4 1934713408
  %v7642 = vunpack.c.0.s8 %v7641
  %v7643 = vperm.slane %v7637, %v7642
  %v7645 = vunpack.c.l.s4 1934713408
  %v7646 = vunpack.c.0.s8 %v7645
  %v7647 = vperm.slane %v7639, %v7646
  %v7648 = vrot.slane %v7611, 4
  %v7649 = vsel %vm573, %v7648, %v7599
  %v7650 = vrot.slane %v7599, 4
  %v7651 = vsel %vm573, %v7611, %v7650
  %v7653 = vunpack.c.l.s4 1934713408
  %v7654 = vunpack.c.0.s8 %v7653
  %v7655 = vperm.slane %v7649, %v7654
  %v7657 = vunpack.c.l.s4 1934713408
  %v7658 = vunpack.c.0.s8 %v7657
  %v7659 = vperm.slane %v7651, %v7658
  %v7660 = vrot.slane %v7631, 4
  %v7661 = vsel %vm573, %v7660, %v7619
  %v7662 = vrot.slane %v7619, 4
  %v7663 = vsel %vm573, %v7631, %v7662
  %v7665 = vunpack.c.l.s4 1934713408
  %v7666 = vunpack.c.0.s8 %v7665
  %v7667 = vperm.slane %v7661, %v7666
  %v7669 = vunpack.c.l.s4 1934713408
  %v7670 = vunpack.c.0.s8 %v7669
  %v7671 = vperm.slane %v7663, %v7670
  %v7672 = vrot.slane %v7635, 4
  %v7673 = vsel %vm573, %v7672, %v7623
  %v7674 = vrot.slane %v7623, 4
  %v7675 = vsel %vm573, %v7635, %v7674
  %v7677 = vunpack.c.l.s4 1934713408
  %v7678 = vunpack.c.0.s8 %v7677
  %v7679 = vperm.slane %v7673, %v7678
  %v7681 = vunpack.c.l.s4 1934713408
  %v7682 = vunpack.c.0.s8 %v7681
  %v7683 = vperm.slane %v7675, %v7682
  %v7684 = vrot.slane %v7667, 4
  %v7685 = vsel %vm573, %v7684, %v7643
  %v7686 = vrot.slane %v7643, 4
  %v7687 = vsel %vm573, %v7667, %v7686
  %v7688 = vrot.slane %v7671, 4
  %v7689 = vsel %vm573, %v7688, %v7647
  %v7690 = vrot.slane %v7647, 4
  %v7691 = vsel %vm573, %v7671, %v7690
  %v7692 = vrot.slane %v7679, 4
  %v7693 = vsel %vm573, %v7692, %v7655
  %v7694 = vrot.slane %v7655, 4
  %v7695 = vsel %vm573, %v7679, %v7694
  %v7696 = vrot.slane %v7683, 4
  %v7697 = vsel %vm573, %v7696, %v7659
  %v7698 = vrot.slane %v7659, 4
  %v7699 = vsel %vm573, %v7683, %v7698
  %v7700 = vrot.slane %v7043, 4
  %v7701 = vsel %vm573, %v7700, %v6995
  %v7702 = vrot.slane %v6995, 4
  %v7703 = vsel %vm573, %v7043, %v7702
  %v7705 = vunpack.c.l.s4 1983009808
  %v7706 = vunpack.c.0.s8 %v7705
  %v7707 = vperm.slane %v7701, %v7706
  %v7709 = vunpack.c.l.s4 1983009808
  %v7710 = vunpack.c.0.s8 %v7709
  %v7711 = vperm.slane %v7703, %v7710
  %v7712 = vrot.slane %v7067, 4
  %v7713 = vsel %vm573, %v7712, %v7019
  %v7714 = vrot.slane %v7019, 4
  %v7715 = vsel %vm573, %v7067, %v7714
  %v7717 = vunpack.c.l.s4 1983009808
  %v7718 = vunpack.c.0.s8 %v7717
  %v7719 = vperm.slane %v7713, %v7718
  %v7721 = vunpack.c.l.s4 1983009808
  %v7722 = vunpack.c.0.s8 %v7721
  %v7723 = vperm.slane %v7715, %v7722
  %v7724 = vrot.slane %v7719, 4
  %v7725 = vsel %vm573, %v7724, %v7707
  %v7726 = vrot.slane %v7707, 4
  %v7727 = vsel %vm573, %v7719, %v7726
  %v7729 = vunpack.c.l.s4 1934713408
  %v7730 = vunpack.c.0.s8 %v7729
  %v7731 = vperm.slane %v7725, %v7730
  %v7733 = vunpack.c.l.s4 1934713408
  %v7734 = vunpack.c.0.s8 %v7733
  %v7735 = vperm.slane %v7727, %v7734
  %v7736 = vrot.slane %v7723, 4
  %v7737 = vsel %vm573, %v7736, %v7711
  %v7738 = vrot.slane %v7711, 4
  %v7739 = vsel %vm573, %v7723, %v7738
  %v7741 = vunpack.c.l.s4 1934713408
  %v7742 = vunpack.c.0.s8 %v7741
  %v7743 = vperm.slane %v7737, %v7742
  %v7745 = vunpack.c.l.s4 1934713408
  %v7746 = vunpack.c.0.s8 %v7745
  %v7747 = vperm.slane %v7739, %v7746
  %v7748 = vrot.slane %v7731, 4
  %v7749 = vsel %vm573, 0.0, %v7748
  %v7750 = vrot.slane %v7735, 4
  %v7751 = vsel %vm573, 0.0, %v7750
  %v7752 = vrot.slane %v7743, 4
  %v7753 = vsel %vm573, 0.0, %v7752
  %v7754 = vrot.slane %v7747, 4
  %v7755 = vsel %vm573, 0.0, %v7754
  %v7756 = vrot.slane %v6853, 4
  %v7757 = vsel %vm573, %v7756, %v6803
  %v7758 = vrot.slane %v6803, 4
  %v7759 = vsel %vm573, %v6853, %v7758
  %v7761 = vunpack.c.l.s4 1983009808
  %v7762 = vunpack.c.0.s8 %v7761
  %v7763 = vperm.slane %v7757, %v7762
  %v7765 = vunpack.c.l.s4 1983009808
  %v7766 = vunpack.c.0.s8 %v7765
  %v7767 = vperm.slane %v7759, %v7766
  %v7768 = vrot.slane %v6877, 4
  %v7769 = vsel %vm573, %v7768, %v6829
  %v7770 = vrot.slane %v6829, 4
  %v7771 = vsel %vm573, %v6877, %v7770
  %v7773 = vunpack.c.l.s4 1983009808
  %v7774 = vunpack.c.0.s8 %v7773
  %v7775 = vperm.slane %v7769, %v7774
  %v7777 = vunpack.c.l.s4 1983009808
  %v7778 = vunpack.c.0.s8 %v7777
  %v7779 = vperm.slane %v7771, %v7778
  %v7780 = vrot.slane %v6949, 4
  %v7781 = vsel %vm573, %v7780, %v6901
  %v7782 = vrot.slane %v6901, 4
  %v7783 = vsel %vm573, %v6949, %v7782
  %v7785 = vunpack.c.l.s4 1983009808
  %v7786 = vunpack.c.0.s8 %v7785
  %v7787 = vperm.slane %v7781, %v7786
  %v7789 = vunpack.c.l.s4 1983009808
  %v7790 = vunpack.c.0.s8 %v7789
  %v7791 = vperm.slane %v7783, %v7790
  %v7792 = vrot.slane %v6973, 4
  %v7793 = vsel %vm573, %v7792, %v6925
  %v7794 = vrot.slane %v6925, 4
  %v7795 = vsel %vm573, %v6973, %v7794
  %v7797 = vunpack.c.l.s4 1983009808
  %v7798 = vunpack.c.0.s8 %v7797
  %v7799 = vperm.slane %v7793, %v7798
  %v7801 = vunpack.c.l.s4 1983009808
  %v7802 = vunpack.c.0.s8 %v7801
  %v7803 = vperm.slane %v7795, %v7802
  %v7804 = vrot.slane %v7775, 4
  %v7805 = vsel %vm573, %v7804, %v7763
  %v7806 = vrot.slane %v7763, 4
  %v7807 = vsel %vm573, %v7775, %v7806
  %v7809 = vunpack.c.l.s4 1934713408
  %v7810 = vunpack.c.0.s8 %v7809
  %v7811 = vperm.slane %v7805, %v7810
  %v7813 = vunpack.c.l.s4 1934713408
  %v7814 = vunpack.c.0.s8 %v7813
  %v7815 = vperm.slane %v7807, %v7814
  %v7816 = vrot.slane %v7779, 4
  %v7817 = vsel %vm573, %v7816, %v7767
  %v7818 = vrot.slane %v7767, 4
  %v7819 = vsel %vm573, %v7779, %v7818
  %v7821 = vunpack.c.l.s4 1934713408
  %v7822 = vunpack.c.0.s8 %v7821
  %v7823 = vperm.slane %v7817, %v7822
  %v7825 = vunpack.c.l.s4 1934713408
  %v7826 = vunpack.c.0.s8 %v7825
  %v7827 = vperm.slane %v7819, %v7826
  %v7828 = vrot.slane %v7799, 4
  %v7829 = vsel %vm573, %v7828, %v7787
  %v7830 = vrot.slane %v7787, 4
  %v7831 = vsel %vm573, %v7799, %v7830
  %v7833 = vunpack.c.l.s4 1934713408
  %v7834 = vunpack.c.0.s8 %v7833
  %v7835 = vperm.slane %v7829, %v7834
  %v7837 = vunpack.c.l.s4 1934713408
  %v7838 = vunpack.c.0.s8 %v7837
  %v7839 = vperm.slane %v7831, %v7838
  %v7840 = vrot.slane %v7803, 4
  %v7841 = vsel %vm573, %v7840, %v7791
  %v7842 = vrot.slane %v7791, 4
  %v7843 = vsel %vm573, %v7803, %v7842
  %v7845 = vunpack.c.l.s4 1934713408
  %v7846 = vunpack.c.0.s8 %v7845
  %v7847 = vperm.slane %v7841, %v7846
  %v7849 = vunpack.c.l.s4 1934713408
  %v7850 = vunpack.c.0.s8 %v7849
  %v7851 = vperm.slane %v7843, %v7850
  %v7852 = vrot.slane %v7835, 4
  %v7853 = vsel %vm573, %v7852, %v7811
  %v7854 = vrot.slane %v7811, 4
  %v7855 = vsel %vm573, %v7835, %v7854
  %v7856 = vrot.slane %v7839, 4
  %v7857 = vsel %vm573, %v7856, %v7815
  %v7858 = vrot.slane %v7815, 4
  %v7859 = vsel %vm573, %v7839, %v7858
  %v7860 = vrot.slane %v7847, 4
  %v7861 = vsel %vm573, %v7860, %v7823
  %v7862 = vrot.slane %v7823, 4
  %v7863 = vsel %vm573, %v7847, %v7862
  %v7864 = vrot.slane %v7851, 4
  %v7865 = vsel %vm573, %v7864, %v7827
  %v7866 = vrot.slane %v7827, 4
  %v7867 = vsel %vm573, %v7851, %v7866
  %v7868 = vrot.slane %v7045, 4
  %v7869 = vsel %vm573, %v7868, %v6997
  %v7870 = vrot.slane %v6997, 4
  %v7871 = vsel %vm573, %v7045, %v7870
  %v7873 = vunpack.c.l.s4 1983009808
  %v7874 = vunpack.c.0.s8 %v7873
  %v7875 = vperm.slane %v7869, %v7874
  %v7877 = vunpack.c.l.s4 1983009808
  %v7878 = vunpack.c.0.s8 %v7877
  %v7879 = vperm.slane %v7871, %v7878
  %v7880 = vrot.slane %v7069, 4
  %v7881 = vsel %vm573, %v7880, %v7021
  %v7882 = vrot.slane %v7021, 4
  %v7883 = vsel %vm573, %v7069, %v7882
  %v7885 = vunpack.c.l.s4 1983009808
  %v7886 = vunpack.c.0.s8 %v7885
  %v7887 = vperm.slane %v7881, %v7886
  %v7889 = vunpack.c.l.s4 1983009808
  %v7890 = vunpack.c.0.s8 %v7889
  %v7891 = vperm.slane %v7883, %v7890
  %v7892 = vrot.slane %v7887, 4
  %v7893 = vsel %vm573, %v7892, %v7875
  %v7894 = vrot.slane %v7875, 4
  %v7895 = vsel %vm573, %v7887, %v7894
  %v7897 = vunpack.c.l.s4 1934713408
  %v7898 = vunpack.c.0.s8 %v7897
  %v7899 = vperm.slane %v7893, %v7898
  %v7901 = vunpack.c.l.s4 1934713408
  %v7902 = vunpack.c.0.s8 %v7901
  %v7903 = vperm.slane %v7895, %v7902
  %v7904 = vrot.slane %v7891, 4
  %v7905 = vsel %vm573, %v7904, %v7879
  %v7906 = vrot.slane %v7879, 4
  %v7907 = vsel %vm573, %v7891, %v7906
  %v7909 = vunpack.c.l.s4 1934713408
  %v7910 = vunpack.c.0.s8 %v7909
  %v7911 = vperm.slane %v7905, %v7910
  %v7913 = vunpack.c.l.s4 1934713408
  %v7914 = vunpack.c.0.s8 %v7913
  %v7915 = vperm.slane %v7907, %v7914
  %v7916 = vrot.slane %v7899, 4
  %v7917 = vsel %vm573, 0.0, %v7916
  %v7918 = vrot.slane %v7903, 4
  %v7919 = vsel %vm573, 0.0, %v7918
  %v7920 = vrot.slane %v7911, 4
  %v7921 = vsel %vm573, 0.0, %v7920
  %v7922 = vrot.slane %v7915, 4
  %v7923 = vsel %vm573, 0.0, %v7922
  %v7924 = vrot.slane %v6855, 4
  %v7925 = vsel %vm573, %v7924, %v6805
  %v7926 = vrot.slane %v6805, 4
  %v7927 = vsel %vm573, %v6855, %v7926
  %v7929 = vunpack.c.l.s4 1983009808
  %v7930 = vunpack.c.0.s8 %v7929
  %v7931 = vperm.slane %v7925, %v7930
  %v7933 = vunpack.c.l.s4 1983009808
  %v7934 = vunpack.c.0.s8 %v7933
  %v7935 = vperm.slane %v7927, %v7934
  %v7936 = vrot.slane %v6879, 4
  %v7937 = vsel %vm573, %v7936, %v6831
  %v7938 = vrot.slane %v6831, 4
  %v7939 = vsel %vm573, %v6879, %v7938
  %v7941 = vunpack.c.l.s4 1983009808
  %v7942 = vunpack.c.0.s8 %v7941
  %v7943 = vperm.slane %v7937, %v7942
  %v7945 = vunpack.c.l.s4 1983009808
  %v7946 = vunpack.c.0.s8 %v7945
  %v7947 = vperm.slane %v7939, %v7946
  %v7948 = vrot.slane %v6951, 4
  %v7949 = vsel %vm573, %v7948, %v6903
  %v7950 = vrot.slane %v6903, 4
  %v7951 = vsel %vm573, %v6951, %v7950
  %v7953 = vunpack.c.l.s4 1983009808
  %v7954 = vunpack.c.0.s8 %v7953
  %v7955 = vperm.slane %v7949, %v7954
  %v7957 = vunpack.c.l.s4 1983009808
  %v7958 = vunpack.c.0.s8 %v7957
  %v7959 = vperm.slane %v7951, %v7958
  %v7960 = vrot.slane %v6975, 4
  %v7961 = vsel %vm573, %v7960, %v6927
  %v7962 = vrot.slane %v6927, 4
  %v7963 = vsel %vm573, %v6975, %v7962
  %v7965 = vunpack.c.l.s4 1983009808
  %v7966 = vunpack.c.0.s8 %v7965
  %v7967 = vperm.slane %v7961, %v7966
  %v7969 = vunpack.c.l.s4 1983009808
  %v7970 = vunpack.c.0.s8 %v7969
  %v7971 = vperm.slane %v7963, %v7970
  %v7972 = vrot.slane %v7943, 4
  %v7973 = vsel %vm573, %v7972, %v7931
  %v7974 = vrot.slane %v7931, 4
  %v7975 = vsel %vm573, %v7943, %v7974
  %v7977 = vunpack.c.l.s4 1934713408
  %v7978 = vunpack.c.0.s8 %v7977
  %v7979 = vperm.slane %v7973, %v7978
  %v7981 = vunpack.c.l.s4 1934713408
  %v7982 = vunpack.c.0.s8 %v7981
  %v7983 = vperm.slane %v7975, %v7982
  %v7984 = vrot.slane %v7947, 4
  %v7985 = vsel %vm573, %v7984, %v7935
  %v7986 = vrot.slane %v7935, 4
  %v7987 = vsel %vm573, %v7947, %v7986
  %v7989 = vunpack.c.l.s4 1934713408
  %v7990 = vunpack.c.0.s8 %v7989
  %v7991 = vperm.slane %v7985, %v7990
  %v7993 = vunpack.c.l.s4 1934713408
  %v7994 = vunpack.c.0.s8 %v7993
  %v7995 = vperm.slane %v7987, %v7994
  %v7996 = vrot.slane %v7967, 4
  %v7997 = vsel %vm573, %v7996, %v7955
  %v7998 = vrot.slane %v7955, 4
  %v7999 = vsel %vm573, %v7967, %v7998
  %v8001 = vunpack.c.l.s4 1934713408
  %v8002 = vunpack.c.0.s8 %v8001
  %v8003 = vperm.slane %v7997, %v8002
  %v8005 = vunpack.c.l.s4 1934713408
  %v8006 = vunpack.c.0.s8 %v8005
  %v8007 = vperm.slane %v7999, %v8006
  %v8008 = vrot.slane %v7971, 4
  %v8009 = vsel %vm573, %v8008, %v7959
  %v8010 = vrot.slane %v7959, 4
  %v8011 = vsel %vm573, %v7971, %v8010
  %v8013 = vunpack.c.l.s4 1934713408
  %v8014 = vunpack.c.0.s8 %v8013
  %v8015 = vperm.slane %v8009, %v8014
  %v8017 = vunpack.c.l.s4 1934713408
  %v8018 = vunpack.c.0.s8 %v8017
  %v8019 = vperm.slane %v8011, %v8018
  %v8020 = vrot.slane %v8003, 4
  %v8021 = vsel %vm573, %v8020, %v7979
  %v8022 = vrot.slane %v7979, 4
  %v8023 = vsel %vm573, %v8003, %v8022
  %v8024 = vrot.slane %v8007, 4
  %v8025 = vsel %vm573, %v8024, %v7983
  %v8026 = vrot.slane %v7983, 4
  %v8027 = vsel %vm573, %v8007, %v8026
  %v8028 = vrot.slane %v8015, 4
  %v8029 = vsel %vm573, %v8028, %v7991
  %v8030 = vrot.slane %v7991, 4
  %v8031 = vsel %vm573, %v8015, %v8030
  %v8032 = vrot.slane %v8019, 4
  %v8033 = vsel %vm573, %v8032, %v7995
  %v8034 = vrot.slane %v7995, 4
  %v8035 = vsel %vm573, %v8019, %v8034
  %v8036 = vrot.slane %v7047, 4
  %v8037 = vsel %vm573, %v8036, %v6999
  %v8038 = vrot.slane %v6999, 4
  %v8039 = vsel %vm573, %v7047, %v8038
  %v8041 = vunpack.c.l.s4 1983009808
  %v8042 = vunpack.c.0.s8 %v8041
  %v8043 = vperm.slane %v8037, %v8042
  %v8045 = vunpack.c.l.s4 1983009808
  %v8046 = vunpack.c.0.s8 %v8045
  %v8047 = vperm.slane %v8039, %v8046
  %v8048 = vrot.slane %v7071, 4
  %v8049 = vsel %vm573, %v8048, %v7023
  %v8050 = vrot.slane %v7023, 4
  %v8051 = vsel %vm573, %v7071, %v8050
  %v8053 = vunpack.c.l.s4 1983009808
  %v8054 = vunpack.c.0.s8 %v8053
  %v8055 = vperm.slane %v8049, %v8054
  %v8057 = vunpack.c.l.s4 1983009808
  %v8058 = vunpack.c.0.s8 %v8057
  %v8059 = vperm.slane %v8051, %v8058
  %v8060 = vrot.slane %v8055, 4
  %v8061 = vsel %vm573, %v8060, %v8043
  %v8062 = vrot.slane %v8043, 4
  %v8063 = vsel %vm573, %v8055, %v8062
  %v8065 = vunpack.c.l.s4 1934713408
  %v8066 = vunpack.c.0.s8 %v8065
  %v8067 = vperm.slane %v8061, %v8066
  %v8069 = vunpack.c.l.s4 1934713408
  %v8070 = vunpack.c.0.s8 %v8069
  %v8071 = vperm.slane %v8063, %v8070
  %v8072 = vrot.slane %v8059, 4
  %v8073 = vsel %vm573, %v8072, %v8047
  %v8074 = vrot.slane %v8047, 4
  %v8075 = vsel %vm573, %v8059, %v8074
  %v8077 = vunpack.c.l.s4 1934713408
  %v8078 = vunpack.c.0.s8 %v8077
  %v8079 = vperm.slane %v8073, %v8078
  %v8081 = vunpack.c.l.s4 1934713408
  %v8082 = vunpack.c.0.s8 %v8081
  %v8083 = vperm.slane %v8075, %v8082
  %v8084 = vrot.slane %v8067, 4
  %v8085 = vsel %vm573, 0.0, %v8084
  %v8086 = vrot.slane %v8071, 4
  %v8087 = vsel %vm573, 0.0, %v8086
  %v8088 = vrot.slane %v8079, 4
  %v8089 = vsel %vm573, 0.0, %v8088
  %v8090 = vrot.slane %v8083, 4
  %v8091 = vsel %vm573, 0.0, %v8090
  %v8092 = vrot.slane %v6857, 4
  %v8093 = vsel %vm573, %v8092, %v6808
  %v8094 = vrot.slane %v6808, 4
  %v8095 = vsel %vm573, %v6857, %v8094
  %v8097 = vunpack.c.l.s4 1983009808
  %v8098 = vunpack.c.0.s8 %v8097
  %v8099 = vperm.slane %v8093, %v8098
  %v8101 = vunpack.c.l.s4 1983009808
  %v8102 = vunpack.c.0.s8 %v8101
  %v8103 = vperm.slane %v8095, %v8102
  %v8104 = vrot.slane %v6881, 4
  %v8105 = vsel %vm573, %v8104, %v6833
  %v8106 = vrot.slane %v6833, 4
  %v8107 = vsel %vm573, %v6881, %v8106
  %v8109 = vunpack.c.l.s4 1983009808
  %v8110 = vunpack.c.0.s8 %v8109
  %v8111 = vperm.slane %v8105, %v8110
  %v8113 = vunpack.c.l.s4 1983009808
  %v8114 = vunpack.c.0.s8 %v8113
  %v8115 = vperm.slane %v8107, %v8114
  %v8116 = vrot.slane %v6953, 4
  %v8117 = vsel %vm573, %v8116, %v6905
  %v8118 = vrot.slane %v6905, 4
  %v8119 = vsel %vm573, %v6953, %v8118
  %v8121 = vunpack.c.l.s4 1983009808
  %v8122 = vunpack.c.0.s8 %v8121
  %v8123 = vperm.slane %v8117, %v8122
  %v8125 = vunpack.c.l.s4 1983009808
  %v8126 = vunpack.c.0.s8 %v8125
  %v8127 = vperm.slane %v8119, %v8126
  %v8128 = vrot.slane %v6977, 4
  %v8129 = vsel %vm573, %v8128, %v6929
  %v8130 = vrot.slane %v6929, 4
  %v8131 = vsel %vm573, %v6977, %v8130
  %v8133 = vunpack.c.l.s4 1983009808
  %v8134 = vunpack.c.0.s8 %v8133
  %v8135 = vperm.slane %v8129, %v8134
  %v8137 = vunpack.c.l.s4 1983009808
  %v8138 = vunpack.c.0.s8 %v8137
  %v8139 = vperm.slane %v8131, %v8138
  %v8140 = vrot.slane %v8111, 4
  %v8141 = vsel %vm573, %v8140, %v8099
  %v8142 = vrot.slane %v8099, 4
  %v8143 = vsel %vm573, %v8111, %v8142
  %v8145 = vunpack.c.l.s4 1934713408
  %v8146 = vunpack.c.0.s8 %v8145
  %v8147 = vperm.slane %v8141, %v8146
  %v8149 = vunpack.c.l.s4 1934713408
  %v8150 = vunpack.c.0.s8 %v8149
  %v8151 = vperm.slane %v8143, %v8150
  %v8152 = vrot.slane %v8115, 4
  %v8153 = vsel %vm573, %v8152, %v8103
  %v8154 = vrot.slane %v8103, 4
  %v8155 = vsel %vm573, %v8115, %v8154
  %v8157 = vunpack.c.l.s4 1934713408
  %v8158 = vunpack.c.0.s8 %v8157
  %v8159 = vperm.slane %v8153, %v8158
  %v8161 = vunpack.c.l.s4 1934713408
  %v8162 = vunpack.c.0.s8 %v8161
  %v8163 = vperm.slane %v8155, %v8162
  %v8164 = vrot.slane %v8135, 4
  %v8165 = vsel %vm573, %v8164, %v8123
  %v8166 = vrot.slane %v8123, 4
  %v8167 = vsel %vm573, %v8135, %v8166
  %v8169 = vunpack.c.l.s4 1934713408
  %v8170 = vunpack.c.0.s8 %v8169
  %v8171 = vperm.slane %v8165, %v8170
  %v8173 = vunpack.c.l.s4 1934713408
  %v8174 = vunpack.c.0.s8 %v8173
  %v8175 = vperm.slane %v8167, %v8174
  %v8176 = vrot.slane %v8139, 4
  %v8177 = vsel %vm573, %v8176, %v8127
  %v8178 = vrot.slane %v8127, 4
  %v8179 = vsel %vm573, %v8139, %v8178
  %v8181 = vunpack.c.l.s4 1934713408
  %v8182 = vunpack.c.0.s8 %v8181
  %v8183 = vperm.slane %v8177, %v8182
  %v8185 = vunpack.c.l.s4 1934713408
  %v8186 = vunpack.c.0.s8 %v8185
  %v8187 = vperm.slane %v8179, %v8186
  %v8188 = vrot.slane %v8171, 4
  %v8189 = vsel %vm573, %v8188, %v8147
  %v8190 = vrot.slane %v8147, 4
  %v8191 = vsel %vm573, %v8171, %v8190
  %v8192 = vrot.slane %v8175, 4
  %v8193 = vsel %vm573, %v8192, %v8151
  %v8194 = vrot.slane %v8151, 4
  %v8195 = vsel %vm573, %v8175, %v8194
  %v8196 = vrot.slane %v8183, 4
  %v8197 = vsel %vm573, %v8196, %v8159
  %v8198 = vrot.slane %v8159, 4
  %v8199 = vsel %vm573, %v8183, %v8198
  %v8200 = vrot.slane %v8187, 4
  %v8201 = vsel %vm573, %v8200, %v8163
  %v8202 = vrot.slane %v8163, 4
  %v8203 = vsel %vm573, %v8187, %v8202
  %v8204 = vrot.slane %v7049, 4
  %v8205 = vsel %vm573, %v8204, %v7001
  %v8206 = vrot.slane %v7001, 4
  %v8207 = vsel %vm573, %v7049, %v8206
  %v8209 = vunpack.c.l.s4 1983009808
  %v8210 = vunpack.c.0.s8 %v8209
  %v8211 = vperm.slane %v8205, %v8210
  %v8213 = vunpack.c.l.s4 1983009808
  %v8214 = vunpack.c.0.s8 %v8213
  %v8215 = vperm.slane %v8207, %v8214
  %v8216 = vrot.slane %v7073, 4
  %v8217 = vsel %vm573, %v8216, %v7025
  %v8218 = vrot.slane %v7025, 4
  %v8219 = vsel %vm573, %v7073, %v8218
  %v8221 = vunpack.c.l.s4 1983009808
  %v8222 = vunpack.c.0.s8 %v8221
  %v8223 = vperm.slane %v8217, %v8222
  %v8225 = vunpack.c.l.s4 1983009808
  %v8226 = vunpack.c.0.s8 %v8225
  %v8227 = vperm.slane %v8219, %v8226
  %v8228 = vrot.slane %v8223, 4
  %v8229 = vsel %vm573, %v8228, %v8211
  %v8230 = vrot.slane %v8211, 4
  %v8231 = vsel %vm573, %v8223, %v8230
  %v8233 = vunpack.c.l.s4 1934713408
  %v8234 = vunpack.c.0.s8 %v8233
  %v8235 = vperm.slane %v8229, %v8234
  %v8237 = vunpack.c.l.s4 1934713408
  %v8238 = vunpack.c.0.s8 %v8237
  %v8239 = vperm.slane %v8231, %v8238
  %v8240 = vrot.slane %v8227, 4
  %v8241 = vsel %vm573, %v8240, %v8215
  %v8242 = vrot.slane %v8215, 4
  %v8243 = vsel %vm573, %v8227, %v8242
  %v8245 = vunpack.c.l.s4 1934713408
  %v8246 = vunpack.c.0.s8 %v8245
  %v8247 = vperm.slane %v8241, %v8246
  %v8249 = vunpack.c.l.s4 1934713408
  %v8250 = vunpack.c.0.s8 %v8249
  %v8251 = vperm.slane %v8243, %v8250
  %v8252 = vrot.slane %v8235, 4
  %v8253 = vsel %vm573, 0.0, %v8252
  %v8254 = vrot.slane %v8239, 4
  %v8255 = vsel %vm573, 0.0, %v8254
  %v8256 = vrot.slane %v8247, 4
  %v8257 = vsel %vm573, 0.0, %v8256
  %v8258 = vrot.slane %v8251, 4
  %v8259 = vsel %vm573, 0.0, %v8258
  %v8260 = vrot.slane %v6859, 4
  %v8261 = vsel %vm573, %v8260, %v6810
  %v8262 = vrot.slane %v6810, 4
  %v8263 = vsel %vm573, %v6859, %v8262
  %v8265 = vunpack.c.l.s4 1983009808
  %v8266 = vunpack.c.0.s8 %v8265
  %v8267 = vperm.slane %v8261, %v8266
  %v8269 = vunpack.c.l.s4 1983009808
  %v8270 = vunpack.c.0.s8 %v8269
  %v8271 = vperm.slane %v8263, %v8270
  %v8272 = vrot.slane %v6883, 4
  %v8273 = vsel %vm573, %v8272, %v6835
  %v8274 = vrot.slane %v6835, 4
  %v8275 = vsel %vm573, %v6883, %v8274
  %v8277 = vunpack.c.l.s4 1983009808
  %v8278 = vunpack.c.0.s8 %v8277
  %v8279 = vperm.slane %v8273, %v8278
  %v8281 = vunpack.c.l.s4 1983009808
  %v8282 = vunpack.c.0.s8 %v8281
  %v8283 = vperm.slane %v8275, %v8282
  %v8284 = vrot.slane %v6955, 4
  %v8285 = vsel %vm573, %v8284, %v6907
  %v8286 = vrot.slane %v6907, 4
  %v8287 = vsel %vm573, %v6955, %v8286
  %v8289 = vunpack.c.l.s4 1983009808
  %v8290 = vunpack.c.0.s8 %v8289
  %v8291 = vperm.slane %v8285, %v8290
  %v8293 = vunpack.c.l.s4 1983009808
  %v8294 = vunpack.c.0.s8 %v8293
  %v8295 = vperm.slane %v8287, %v8294
  %v8296 = vrot.slane %v6979, 4
  %v8297 = vsel %vm573, %v8296, %v6931
  %v8298 = vrot.slane %v6931, 4
  %v8299 = vsel %vm573, %v6979, %v8298
  %v8301 = vunpack.c.l.s4 1983009808
  %v8302 = vunpack.c.0.s8 %v8301
  %v8303 = vperm.slane %v8297, %v8302
  %v8305 = vunpack.c.l.s4 1983009808
  %v8306 = vunpack.c.0.s8 %v8305
  %v8307 = vperm.slane %v8299, %v8306
  %v8308 = vrot.slane %v8279, 4
  %v8309 = vsel %vm573, %v8308, %v8267
  %v8310 = vrot.slane %v8267, 4
  %v8311 = vsel %vm573, %v8279, %v8310
  %v8313 = vunpack.c.l.s4 1934713408
  %v8314 = vunpack.c.0.s8 %v8313
  %v8315 = vperm.slane %v8309, %v8314
  %v8317 = vunpack.c.l.s4 1934713408
  %v8318 = vunpack.c.0.s8 %v8317
  %v8319 = vperm.slane %v8311, %v8318
  %v8320 = vrot.slane %v8283, 4
  %v8321 = vsel %vm573, %v8320, %v8271
  %v8322 = vrot.slane %v8271, 4
  %v8323 = vsel %vm573, %v8283, %v8322
  %v8325 = vunpack.c.l.s4 1934713408
  %v8326 = vunpack.c.0.s8 %v8325
  %v8327 = vperm.slane %v8321, %v8326
  %v8329 = vunpack.c.l.s4 1934713408
  %v8330 = vunpack.c.0.s8 %v8329
  %v8331 = vperm.slane %v8323, %v8330
  %v8332 = vrot.slane %v8303, 4
  %v8333 = vsel %vm573, %v8332, %v8291
  %v8334 = vrot.slane %v8291, 4
  %v8335 = vsel %vm573, %v8303, %v8334
  %v8337 = vunpack.c.l.s4 1934713408
  %v8338 = vunpack.c.0.s8 %v8337
  %v8339 = vperm.slane %v8333, %v8338
  %v8341 = vunpack.c.l.s4 1934713408
  %v8342 = vunpack.c.0.s8 %v8341
  %v8343 = vperm.slane %v8335, %v8342
  %v8344 = vrot.slane %v8307, 4
  %v8345 = vsel %vm573, %v8344, %v8295
  %v8346 = vrot.slane %v8295, 4
  %v8347 = vsel %vm573, %v8307, %v8346
  %v8349 = vunpack.c.l.s4 1934713408
  %v8350 = vunpack.c.0.s8 %v8349
  %v8351 = vperm.slane %v8345, %v8350
  %v8353 = vunpack.c.l.s4 1934713408
  %v8354 = vunpack.c.0.s8 %v8353
  %v8355 = vperm.slane %v8347, %v8354
  %v8356 = vrot.slane %v8339, 4
  %v8357 = vsel %vm573, %v8356, %v8315
  %v8358 = vrot.slane %v8315, 4
  %v8359 = vsel %vm573, %v8339, %v8358
  %v8360 = vrot.slane %v8343, 4
  %v8361 = vsel %vm573, %v8360, %v8319
  %v8362 = vrot.slane %v8319, 4
  %v8363 = vsel %vm573, %v8343, %v8362
  %v8364 = vrot.slane %v8351, 4
  %v8365 = vsel %vm573, %v8364, %v8327
  %v8366 = vrot.slane %v8327, 4
  %v8367 = vsel %vm573, %v8351, %v8366
  %v8368 = vrot.slane %v8355, 4
  %v8369 = vsel %vm573, %v8368, %v8331
  %v8370 = vrot.slane %v8331, 4
  %v8371 = vsel %vm573, %v8355, %v8370
  %v8372 = vrot.slane %v7051, 4
  %v8373 = vsel %vm573, %v8372, %v7003
  %v8374 = vrot.slane %v7003, 4
  %v8375 = vsel %vm573, %v7051, %v8374
  %v8377 = vunpack.c.l.s4 1983009808
  %v8378 = vunpack.c.0.s8 %v8377
  %v8379 = vperm.slane %v8373, %v8378
  %v8381 = vunpack.c.l.s4 1983009808
  %v8382 = vunpack.c.0.s8 %v8381
  %v8383 = vperm.slane %v8375, %v8382
  %v8384 = vrot.slane %v7075, 4
  %v8385 = vsel %vm573, %v8384, %v7027
  %v8386 = vrot.slane %v7027, 4
  %v8387 = vsel %vm573, %v7075, %v8386
  %v8389 = vunpack.c.l.s4 1983009808
  %v8390 = vunpack.c.0.s8 %v8389
  %v8391 = vperm.slane %v8385, %v8390
  %v8393 = vunpack.c.l.s4 1983009808
  %v8394 = vunpack.c.0.s8 %v8393
  %v8395 = vperm.slane %v8387, %v8394
  %v8396 = vrot.slane %v8391, 4
  %v8397 = vsel %vm573, %v8396, %v8379
  %v8398 = vrot.slane %v8379, 4
  %v8399 = vsel %vm573, %v8391, %v8398
  %v8401 = vunpack.c.l.s4 1934713408
  %v8402 = vunpack.c.0.s8 %v8401
  %v8403 = vperm.slane %v8397, %v8402
  %v8405 = vunpack.c.l.s4 1934713408
  %v8406 = vunpack.c.0.s8 %v8405
  %v8407 = vperm.slane %v8399, %v8406
  %v8408 = vrot.slane %v8395, 4
  %v8409 = vsel %vm573, %v8408, %v8383
  %v8410 = vrot.slane %v8383, 4
  %v8411 = vsel %vm573, %v8395, %v8410
  %v8413 = vunpack.c.l.s4 1934713408
  %v8414 = vunpack.c.0.s8 %v8413
  %v8415 = vperm.slane %v8409, %v8414
  %v8417 = vunpack.c.l.s4 1934713408
  %v8418 = vunpack.c.0.s8 %v8417
  %v8419 = vperm.slane %v8411, %v8418
  %v8420 = vrot.slane %v8403, 4
  %v8421 = vsel %vm573, 0.0, %v8420
  %v8422 = vrot.slane %v8407, 4
  %v8423 = vsel %vm573, 0.0, %v8422
  %v8424 = vrot.slane %v8415, 4
  %v8425 = vsel %vm573, 0.0, %v8424
  %v8426 = vrot.slane %v8419, 4
  %v8427 = vsel %vm573, 0.0, %v8426
  %v8428 = vrot.slane %v7185, 4
  %v8429 = vsel %vm573, %v8428, %v7181
  %v8430 = vrot.slane %v7181, 4
  %v8431 = vsel %vm573, %v7185, %v8430
  %v8433 = vunpack.c.l.s4 1983009808
  %v8434 = vunpack.c.0.s8 %v8433
  %v8435 = vperm.slane %v8429, %v8434
  %v8437 = vunpack.c.l.s4 1983009808
  %v8438 = vunpack.c.0.s8 %v8437
  %v8439 = vperm.slane %v8431, %v8438
  %v8440 = vrot.slane %v7187, 4
  %v8441 = vsel %vm573, %v8440, %v7183
  %v8442 = vrot.slane %v7183, 4
  %v8443 = vsel %vm573, %v7187, %v8442
  %v8445 = vunpack.c.l.s4 1983009808
  %v8446 = vunpack.c.0.s8 %v8445
  %v8447 = vperm.slane %v8441, %v8446
  %v8449 = vunpack.c.l.s4 1983009808
  %v8450 = vunpack.c.0.s8 %v8449
  %v8451 = vperm.slane %v8443, %v8450
  %v8452 = vrot.slane %v7193, 4
  %v8453 = vsel %vm573, %v8452, %v7189
  %v8454 = vrot.slane %v7189, 4
  %v8455 = vsel %vm573, %v7193, %v8454
  %v8457 = vunpack.c.l.s4 1983009808
  %v8458 = vunpack.c.0.s8 %v8457
  %v8459 = vperm.slane %v8453, %v8458
  %v8461 = vunpack.c.l.s4 1983009808
  %v8462 = vunpack.c.0.s8 %v8461
  %v8463 = vperm.slane %v8455, %v8462
  %v8464 = vrot.slane %v7195, 4
  %v8465 = vsel %vm573, %v8464, %v7191
  %v8466 = vrot.slane %v7191, 4
  %v8467 = vsel %vm573, %v7195, %v8466
  %v8469 = vunpack.c.l.s4 1983009808
  %v8470 = vunpack.c.0.s8 %v8469
  %v8471 = vperm.slane %v8465, %v8470
  %v8473 = vunpack.c.l.s4 1983009808
  %v8474 = vunpack.c.0.s8 %v8473
  %v8475 = vperm.slane %v8467, %v8474
  %v8476 = vrot.slane %v8447, 4
  %v8477 = vsel %vm573, %v8476, %v8435
  %v8478 = vrot.slane %v8435, 4
  %v8479 = vsel %vm573, %v8447, %v8478
  %v8481 = vunpack.c.l.s4 1934713408
  %v8482 = vunpack.c.0.s8 %v8481
  %v8483 = vperm.slane %v8477, %v8482
  %v8485 = vunpack.c.l.s4 1934713408
  %v8486 = vunpack.c.0.s8 %v8485
  %v8487 = vperm.slane %v8479, %v8486
  %v8488 = vrot.slane %v8451, 4
  %v8489 = vsel %vm573, %v8488, %v8439
  %v8490 = vrot.slane %v8439, 4
  %v8491 = vsel %vm573, %v8451, %v8490
  %v8493 = vunpack.c.l.s4 1934713408
  %v8494 = vunpack.c.0.s8 %v8493
  %v8495 = vperm.slane %v8489, %v8494
  %v8497 = vunpack.c.l.s4 1934713408
  %v8498 = vunpack.c.0.s8 %v8497
  %v8499 = vperm.slane %v8491, %v8498
  %v8500 = vrot.slane %v8471, 4
  %v8501 = vsel %vm573, %v8500, %v8459
  %v8502 = vrot.slane %v8459, 4
  %v8503 = vsel %vm573, %v8471, %v8502
  %v8505 = vunpack.c.l.s4 1934713408
  %v8506 = vunpack.c.0.s8 %v8505
  %v8507 = vperm.slane %v8501, %v8506
  %v8509 = vunpack.c.l.s4 1934713408
  %v8510 = vunpack.c.0.s8 %v8509
  %v8511 = vperm.slane %v8503, %v8510
  %v8512 = vrot.slane %v8475, 4
  %v8513 = vsel %vm573, %v8512, %v8463
  %v8514 = vrot.slane %v8463, 4
  %v8515 = vsel %vm573, %v8475, %v8514
  %v8517 = vunpack.c.l.s4 1934713408
  %v8518 = vunpack.c.0.s8 %v8517
  %v8519 = vperm.slane %v8513, %v8518
  %v8521 = vunpack.c.l.s4 1934713408
  %v8522 = vunpack.c.0.s8 %v8521
  %v8523 = vperm.slane %v8515, %v8522
  %v8524 = vrot.slane %v8507, 4
  %v8525 = vsel %vm573, %v8524, %v8483
  %v8526 = vrot.slane %v8483, 4
  %v8527 = vsel %vm573, %v8507, %v8526
  %v8528 = vrot.slane %v8511, 4
  %v8529 = vsel %vm573, %v8528, %v8487
  %v8530 = vrot.slane %v8487, 4
  %v8531 = vsel %vm573, %v8511, %v8530
  %v8532 = vrot.slane %v8519, 4
  %v8533 = vsel %vm573, %v8532, %v8495
  %v8534 = vrot.slane %v8495, 4
  %v8535 = vsel %vm573, %v8519, %v8534
  %v8536 = vrot.slane %v8523, 4
  %v8537 = vsel %vm573, %v8536, %v8499
  %v8538 = vrot.slane %v8499, 4
  %v8539 = vsel %vm573, %v8523, %v8538
  %v8540 = vrot.slane %v7353, 4
  %v8541 = vsel %vm573, %v8540, %v7349
  %v8542 = vrot.slane %v7349, 4
  %v8543 = vsel %vm573, %v7353, %v8542
  %v8545 = vunpack.c.l.s4 1983009808
  %v8546 = vunpack.c.0.s8 %v8545
  %v8547 = vperm.slane %v8541, %v8546
  %v8549 = vunpack.c.l.s4 1983009808
  %v8550 = vunpack.c.0.s8 %v8549
  %v8551 = vperm.slane %v8543, %v8550
  %v8552 = vrot.slane %v7355, 4
  %v8553 = vsel %vm573, %v8552, %v7351
  %v8554 = vrot.slane %v7351, 4
  %v8555 = vsel %vm573, %v7355, %v8554
  %v8557 = vunpack.c.l.s4 1983009808
  %v8558 = vunpack.c.0.s8 %v8557
  %v8559 = vperm.slane %v8553, %v8558
  %v8561 = vunpack.c.l.s4 1983009808
  %v8562 = vunpack.c.0.s8 %v8561
  %v8563 = vperm.slane %v8555, %v8562
  %v8564 = vrot.slane %v7361, 4
  %v8565 = vsel %vm573, %v8564, %v7357
  %v8566 = vrot.slane %v7357, 4
  %v8567 = vsel %vm573, %v7361, %v8566
  %v8569 = vunpack.c.l.s4 1983009808
  %v8570 = vunpack.c.0.s8 %v8569
  %v8571 = vperm.slane %v8565, %v8570
  %v8573 = vunpack.c.l.s4 1983009808
  %v8574 = vunpack.c.0.s8 %v8573
  %v8575 = vperm.slane %v8567, %v8574
  %v8576 = vrot.slane %v7363, 4
  %v8577 = vsel %vm573, %v8576, %v7359
  %v8578 = vrot.slane %v7359, 4
  %v8579 = vsel %vm573, %v7363, %v8578
  %v8581 = vunpack.c.l.s4 1983009808
  %v8582 = vunpack.c.0.s8 %v8581
  %v8583 = vperm.slane %v8577, %v8582
  %v8585 = vunpack.c.l.s4 1983009808
  %v8586 = vunpack.c.0.s8 %v8585
  %v8587 = vperm.slane %v8579, %v8586
  %v8588 = vrot.slane %v8559, 4
  %v8589 = vsel %vm573, %v8588, %v8547
  %v8590 = vrot.slane %v8547, 4
  %v8591 = vsel %vm573, %v8559, %v8590
  %v8593 = vunpack.c.l.s4 1934713408
  %v8594 = vunpack.c.0.s8 %v8593
  %v8595 = vperm.slane %v8589, %v8594
  %v8597 = vunpack.c.l.s4 1934713408
  %v8598 = vunpack.c.0.s8 %v8597
  %v8599 = vperm.slane %v8591, %v8598
  %v8600 = vrot.slane %v8563, 4
  %v8601 = vsel %vm573, %v8600, %v8551
  %v8602 = vrot.slane %v8551, 4
  %v8603 = vsel %vm573, %v8563, %v8602
  %v8605 = vunpack.c.l.s4 1934713408
  %v8606 = vunpack.c.0.s8 %v8605
  %v8607 = vperm.slane %v8601, %v8606
  %v8609 = vunpack.c.l.s4 1934713408
  %v8610 = vunpack.c.0.s8 %v8609
  %v8611 = vperm.slane %v8603, %v8610
  %v8612 = vrot.slane %v8583, 4
  %v8613 = vsel %vm573, %v8612, %v8571
  %v8614 = vrot.slane %v8571, 4
  %v8615 = vsel %vm573, %v8583, %v8614
  %v8617 = vunpack.c.l.s4 1934713408
  %v8618 = vunpack.c.0.s8 %v8617
  %v8619 = vperm.slane %v8613, %v8618
  %v8621 = vunpack.c.l.s4 1934713408
  %v8622 = vunpack.c.0.s8 %v8621
  %v8623 = vperm.slane %v8615, %v8622
  %v8624 = vrot.slane %v8587, 4
  %v8625 = vsel %vm573, %v8624, %v8575
  %v8626 = vrot.slane %v8575, 4
  %v8627 = vsel %vm573, %v8587, %v8626
  %v8629 = vunpack.c.l.s4 1934713408
  %v8630 = vunpack.c.0.s8 %v8629
  %v8631 = vperm.slane %v8625, %v8630
  %v8633 = vunpack.c.l.s4 1934713408
  %v8634 = vunpack.c.0.s8 %v8633
  %v8635 = vperm.slane %v8627, %v8634
  %v8636 = vrot.slane %v8619, 4
  %v8637 = vsel %vm573, %v8636, %v8595
  %v8638 = vrot.slane %v8595, 4
  %v8639 = vsel %vm573, %v8619, %v8638
  %v8640 = vrot.slane %v8623, 4
  %v8641 = vsel %vm573, %v8640, %v8599
  %v8642 = vrot.slane %v8599, 4
  %v8643 = vsel %vm573, %v8623, %v8642
  %v8644 = vrot.slane %v8631, 4
  %v8645 = vsel %vm573, %v8644, %v8607
  %v8646 = vrot.slane %v8607, 4
  %v8647 = vsel %vm573, %v8631, %v8646
  %v8648 = vrot.slane %v8635, 4
  %v8649 = vsel %vm573, %v8648, %v8611
  %v8650 = vrot.slane %v8611, 4
  %v8651 = vsel %vm573, %v8635, %v8650
  %v8652 = vrot.slane %v7521, 4
  %v8653 = vsel %vm573, %v8652, %v7517
  %v8654 = vrot.slane %v7517, 4
  %v8655 = vsel %vm573, %v7521, %v8654
  %v8657 = vunpack.c.l.s4 1983009808
  %v8658 = vunpack.c.0.s8 %v8657
  %v8659 = vperm.slane %v8653, %v8658
  %v8661 = vunpack.c.l.s4 1983009808
  %v8662 = vunpack.c.0.s8 %v8661
  %v8663 = vperm.slane %v8655, %v8662
  %v8664 = vrot.slane %v7523, 4
  %v8665 = vsel %vm573, %v8664, %v7519
  %v8666 = vrot.slane %v7519, 4
  %v8667 = vsel %vm573, %v7523, %v8666
  %v8669 = vunpack.c.l.s4 1983009808
  %v8670 = vunpack.c.0.s8 %v8669
  %v8671 = vperm.slane %v8665, %v8670
  %v8673 = vunpack.c.l.s4 1983009808
  %v8674 = vunpack.c.0.s8 %v8673
  %v8675 = vperm.slane %v8667, %v8674
  %v8676 = vrot.slane %v7529, 4
  %v8677 = vsel %vm573, %v8676, %v7525
  %v8678 = vrot.slane %v7525, 4
  %v8679 = vsel %vm573, %v7529, %v8678
  %v8681 = vunpack.c.l.s4 1983009808
  %v8682 = vunpack.c.0.s8 %v8681
  %v8683 = vperm.slane %v8677, %v8682
  %v8685 = vunpack.c.l.s4 1983009808
  %v8686 = vunpack.c.0.s8 %v8685
  %v8687 = vperm.slane %v8679, %v8686
  %v8688 = vrot.slane %v7531, 4
  %v8689 = vsel %vm573, %v8688, %v7527
  %v8690 = vrot.slane %v7527, 4
  %v8691 = vsel %vm573, %v7531, %v8690
  %v8693 = vunpack.c.l.s4 1983009808
  %v8694 = vunpack.c.0.s8 %v8693
  %v8695 = vperm.slane %v8689, %v8694
  %v8697 = vunpack.c.l.s4 1983009808
  %v8698 = vunpack.c.0.s8 %v8697
  %v8699 = vperm.slane %v8691, %v8698
  %v8700 = vrot.slane %v8671, 4
  %v8701 = vsel %vm573, %v8700, %v8659
  %v8702 = vrot.slane %v8659, 4
  %v8703 = vsel %vm573, %v8671, %v8702
  %v8705 = vunpack.c.l.s4 1934713408
  %v8706 = vunpack.c.0.s8 %v8705
  %v8707 = vperm.slane %v8701, %v8706
  %v8709 = vunpack.c.l.s4 1934713408
  %v8710 = vunpack.c.0.s8 %v8709
  %v8711 = vperm.slane %v8703, %v8710
  %v8712 = vrot.slane %v8675, 4
  %v8713 = vsel %vm573, %v8712, %v8663
  %v8714 = vrot.slane %v8663, 4
  %v8715 = vsel %vm573, %v8675, %v8714
  %v8717 = vunpack.c.l.s4 1934713408
  %v8718 = vunpack.c.0.s8 %v8717
  %v8719 = vperm.slane %v8713, %v8718
  %v8721 = vunpack.c.l.s4 1934713408
  %v8722 = vunpack.c.0.s8 %v8721
  %v8723 = vperm.slane %v8715, %v8722
  %v8724 = vrot.slane %v8695, 4
  %v8725 = vsel %vm573, %v8724, %v8683
  %v8726 = vrot.slane %v8683, 4
  %v8727 = vsel %vm573, %v8695, %v8726
  %v8729 = vunpack.c.l.s4 1934713408
  %v8730 = vunpack.c.0.s8 %v8729
  %v8731 = vperm.slane %v8725, %v8730
  %v8733 = vunpack.c.l.s4 1934713408
  %v8734 = vunpack.c.0.s8 %v8733
  %v8735 = vperm.slane %v8727, %v8734
  %v8736 = vrot.slane %v8699, 4
  %v8737 = vsel %vm573, %v8736, %v8687
  %v8738 = vrot.slane %v8687, 4
  %v8739 = vsel %vm573, %v8699, %v8738
  %v8741 = vunpack.c.l.s4 1934713408
  %v8742 = vunpack.c.0.s8 %v8741
  %v8743 = vperm.slane %v8737, %v8742
  %v8745 = vunpack.c.l.s4 1934713408
  %v8746 = vunpack.c.0.s8 %v8745
  %v8747 = vperm.slane %v8739, %v8746
  %v8748 = vrot.slane %v8731, 4
  %v8749 = vsel %vm573, %v8748, %v8707
  %v8750 = vrot.slane %v8707, 4
  %v8751 = vsel %vm573, %v8731, %v8750
  %v8752 = vrot.slane %v8735, 4
  %v8753 = vsel %vm573, %v8752, %v8711
  %v8754 = vrot.slane %v8711, 4
  %v8755 = vsel %vm573, %v8735, %v8754
  %v8756 = vrot.slane %v8743, 4
  %v8757 = vsel %vm573, %v8756, %v8719
  %v8758 = vrot.slane %v8719, 4
  %v8759 = vsel %vm573, %v8743, %v8758
  %v8760 = vrot.slane %v8747, 4
  %v8761 = vsel %vm573, %v8760, %v8723
  %v8762 = vrot.slane %v8723, 4
  %v8763 = vsel %vm573, %v8747, %v8762
  %v8764 = vrot.slane %v7689, 4
  %v8765 = vsel %vm573, %v8764, %v7685
  %v8766 = vrot.slane %v7685, 4
  %v8767 = vsel %vm573, %v7689, %v8766
  %v8769 = vunpack.c.l.s4 1983009808
  %v8770 = vunpack.c.0.s8 %v8769
  %v8771 = vperm.slane %v8765, %v8770
  %v8773 = vunpack.c.l.s4 1983009808
  %v8774 = vunpack.c.0.s8 %v8773
  %v8775 = vperm.slane %v8767, %v8774
  %v8776 = vrot.slane %v7691, 4
  %v8777 = vsel %vm573, %v8776, %v7687
  %v8778 = vrot.slane %v7687, 4
  %v8779 = vsel %vm573, %v7691, %v8778
  %v8781 = vunpack.c.l.s4 1983009808
  %v8782 = vunpack.c.0.s8 %v8781
  %v8783 = vperm.slane %v8777, %v8782
  %v8785 = vunpack.c.l.s4 1983009808
  %v8786 = vunpack.c.0.s8 %v8785
  %v8787 = vperm.slane %v8779, %v8786
  %v8788 = vrot.slane %v7697, 4
  %v8789 = vsel %vm573, %v8788, %v7693
  %v8790 = vrot.slane %v7693, 4
  %v8791 = vsel %vm573, %v7697, %v8790
  %v8793 = vunpack.c.l.s4 1983009808
  %v8794 = vunpack.c.0.s8 %v8793
  %v8795 = vperm.slane %v8789, %v8794
  %v8797 = vunpack.c.l.s4 1983009808
  %v8798 = vunpack.c.0.s8 %v8797
  %v8799 = vperm.slane %v8791, %v8798
  %v8800 = vrot.slane %v7699, 4
  %v8801 = vsel %vm573, %v8800, %v7695
  %v8802 = vrot.slane %v7695, 4
  %v8803 = vsel %vm573, %v7699, %v8802
  %v8805 = vunpack.c.l.s4 1983009808
  %v8806 = vunpack.c.0.s8 %v8805
  %v8807 = vperm.slane %v8801, %v8806
  %v8809 = vunpack.c.l.s4 1983009808
  %v8810 = vunpack.c.0.s8 %v8809
  %v8811 = vperm.slane %v8803, %v8810
  %v8812 = vrot.slane %v8783, 4
  %v8813 = vsel %vm573, %v8812, %v8771
  %v8814 = vrot.slane %v8771, 4
  %v8815 = vsel %vm573, %v8783, %v8814
  %v8817 = vunpack.c.l.s4 1934713408
  %v8818 = vunpack.c.0.s8 %v8817
  %v8819 = vperm.slane %v8813, %v8818
  %v8821 = vunpack.c.l.s4 1934713408
  %v8822 = vunpack.c.0.s8 %v8821
  %v8823 = vperm.slane %v8815, %v8822
  %v8824 = vrot.slane %v8787, 4
  %v8825 = vsel %vm573, %v8824, %v8775
  %v8826 = vrot.slane %v8775, 4
  %v8827 = vsel %vm573, %v8787, %v8826
  %v8829 = vunpack.c.l.s4 1934713408
  %v8830 = vunpack.c.0.s8 %v8829
  %v8831 = vperm.slane %v8825, %v8830
  %v8833 = vunpack.c.l.s4 1934713408
  %v8834 = vunpack.c.0.s8 %v8833
  %v8835 = vperm.slane %v8827, %v8834
  %v8836 = vrot.slane %v8807, 4
  %v8837 = vsel %vm573, %v8836, %v8795
  %v8838 = vrot.slane %v8795, 4
  %v8839 = vsel %vm573, %v8807, %v8838
  %v8841 = vunpack.c.l.s4 1934713408
  %v8842 = vunpack.c.0.s8 %v8841
  %v8843 = vperm.slane %v8837, %v8842
  %v8845 = vunpack.c.l.s4 1934713408
  %v8846 = vunpack.c.0.s8 %v8845
  %v8847 = vperm.slane %v8839, %v8846
  %v8848 = vrot.slane %v8811, 4
  %v8849 = vsel %vm573, %v8848, %v8799
  %v8850 = vrot.slane %v8799, 4
  %v8851 = vsel %vm573, %v8811, %v8850
  %v8853 = vunpack.c.l.s4 1934713408
  %v8854 = vunpack.c.0.s8 %v8853
  %v8855 = vperm.slane %v8849, %v8854
  %v8857 = vunpack.c.l.s4 1934713408
  %v8858 = vunpack.c.0.s8 %v8857
  %v8859 = vperm.slane %v8851, %v8858
  %v8860 = vrot.slane %v8843, 4
  %v8861 = vsel %vm573, %v8860, %v8819
  %v8862 = vrot.slane %v8819, 4
  %v8863 = vsel %vm573, %v8843, %v8862
  %v8864 = vrot.slane %v8847, 4
  %v8865 = vsel %vm573, %v8864, %v8823
  %v8866 = vrot.slane %v8823, 4
  %v8867 = vsel %vm573, %v8847, %v8866
  %v8868 = vrot.slane %v8855, 4
  %v8869 = vsel %vm573, %v8868, %v8831
  %v8870 = vrot.slane %v8831, 4
  %v8871 = vsel %vm573, %v8855, %v8870
  %v8872 = vrot.slane %v8859, 4
  %v8873 = vsel %vm573, %v8872, %v8835
  %v8874 = vrot.slane %v8835, 4
  %v8875 = vsel %vm573, %v8859, %v8874
  %v8876 = vrot.slane %v7857, 4
  %v8877 = vsel %vm573, %v8876, %v7853
  %v8878 = vrot.slane %v7853, 4
  %v8879 = vsel %vm573, %v7857, %v8878
  %v8881 = vunpack.c.l.s4 1983009808
  %v8882 = vunpack.c.0.s8 %v8881
  %v8883 = vperm.slane %v8877, %v8882
  %v8885 = vunpack.c.l.s4 1983009808
  %v8886 = vunpack.c.0.s8 %v8885
  %v8887 = vperm.slane %v8879, %v8886
  %v8888 = vrot.slane %v7859, 4
  %v8889 = vsel %vm573, %v8888, %v7855
  %v8890 = vrot.slane %v7855, 4
  %v8891 = vsel %vm573, %v7859, %v8890
  %v8893 = vunpack.c.l.s4 1983009808
  %v8894 = vunpack.c.0.s8 %v8893
  %v8895 = vperm.slane %v8889, %v8894
  %v8897 = vunpack.c.l.s4 1983009808
  %v8898 = vunpack.c.0.s8 %v8897
  %v8899 = vperm.slane %v8891, %v8898
  %v8900 = vrot.slane %v7865, 4
  %v8901 = vsel %vm573, %v8900, %v7861
  %v8902 = vrot.slane %v7861, 4
  %v8903 = vsel %vm573, %v7865, %v8902
  %v8905 = vunpack.c.l.s4 1983009808
  %v8906 = vunpack.c.0.s8 %v8905
  %v8907 = vperm.slane %v8901, %v8906
  %v8909 = vunpack.c.l.s4 1983009808
  %v8910 = vunpack.c.0.s8 %v8909
  %v8911 = vperm.slane %v8903, %v8910
  %v8912 = vrot.slane %v7867, 4
  %v8913 = vsel %vm573, %v8912, %v7863
  %v8914 = vrot.slane %v7863, 4
  %v8915 = vsel %vm573, %v7867, %v8914
  %v8917 = vunpack.c.l.s4 1983009808
  %v8918 = vunpack.c.0.s8 %v8917
  %v8919 = vperm.slane %v8913, %v8918
  %v8921 = vunpack.c.l.s4 1983009808
  %v8922 = vunpack.c.0.s8 %v8921
  %v8923 = vperm.slane %v8915, %v8922
  %v8924 = vrot.slane %v8895, 4
  %v8925 = vsel %vm573, %v8924, %v8883
  %v8926 = vrot.slane %v8883, 4
  %v8927 = vsel %vm573, %v8895, %v8926
  %v8929 = vunpack.c.l.s4 1934713408
  %v8930 = vunpack.c.0.s8 %v8929
  %v8931 = vperm.slane %v8925, %v8930
  %v8933 = vunpack.c.l.s4 1934713408
  %v8934 = vunpack.c.0.s8 %v8933
  %v8935 = vperm.slane %v8927, %v8934
  %v8936 = vrot.slane %v8899, 4
  %v8937 = vsel %vm573, %v8936, %v8887
  %v8938 = vrot.slane %v8887, 4
  %v8939 = vsel %vm573, %v8899, %v8938
  %v8941 = vunpack.c.l.s4 1934713408
  %v8942 = vunpack.c.0.s8 %v8941
  %v8943 = vperm.slane %v8937, %v8942
  %v8945 = vunpack.c.l.s4 1934713408
  %v8946 = vunpack.c.0.s8 %v8945
  %v8947 = vperm.slane %v8939, %v8946
  %v8948 = vrot.slane %v8919, 4
  %v8949 = vsel %vm573, %v8948, %v8907
  %v8950 = vrot.slane %v8907, 4
  %v8951 = vsel %vm573, %v8919, %v8950
  %v8953 = vunpack.c.l.s4 1934713408
  %v8954 = vunpack.c.0.s8 %v8953
  %v8955 = vperm.slane %v8949, %v8954
  %v8957 = vunpack.c.l.s4 1934713408
  %v8958 = vunpack.c.0.s8 %v8957
  %v8959 = vperm.slane %v8951, %v8958
  %v8960 = vrot.slane %v8923, 4
  %v8961 = vsel %vm573, %v8960, %v8911
  %v8962 = vrot.slane %v8911, 4
  %v8963 = vsel %vm573, %v8923, %v8962
  %v8965 = vunpack.c.l.s4 1934713408
  %v8966 = vunpack.c.0.s8 %v8965
  %v8967 = vperm.slane %v8961, %v8966
  %v8969 = vunpack.c.l.s4 1934713408
  %v8970 = vunpack.c.0.s8 %v8969
  %v8971 = vperm.slane %v8963, %v8970
  %v8972 = vrot.slane %v8955, 4
  %v8973 = vsel %vm573, %v8972, %v8931
  %v8974 = vrot.slane %v8931, 4
  %v8975 = vsel %vm573, %v8955, %v8974
  %v8976 = vrot.slane %v8959, 4
  %v8977 = vsel %vm573, %v8976, %v8935
  %v8978 = vrot.slane %v8935, 4
  %v8979 = vsel %vm573, %v8959, %v8978
  %v8980 = vrot.slane %v8967, 4
  %v8981 = vsel %vm573, %v8980, %v8943
  %v8982 = vrot.slane %v8943, 4
  %v8983 = vsel %vm573, %v8967, %v8982
  %v8984 = vrot.slane %v8971, 4
  %v8985 = vsel %vm573, %v8984, %v8947
  %v8986 = vrot.slane %v8947, 4
  %v8987 = vsel %vm573, %v8971, %v8986
  %v8988 = vrot.slane %v8025, 4
  %v8989 = vsel %vm573, %v8988, %v8021
  %v8990 = vrot.slane %v8021, 4
  %v8991 = vsel %vm573, %v8025, %v8990
  %v8993 = vunpack.c.l.s4 1983009808
  %v8994 = vunpack.c.0.s8 %v8993
  %v8995 = vperm.slane %v8989, %v8994
  %v8997 = vunpack.c.l.s4 1983009808
  %v8998 = vunpack.c.0.s8 %v8997
  %v8999 = vperm.slane %v8991, %v8998
  %v9000 = vrot.slane %v8027, 4
  %v9001 = vsel %vm573, %v9000, %v8023
  %v9002 = vrot.slane %v8023, 4
  %v9003 = vsel %vm573, %v8027, %v9002
  %v9005 = vunpack.c.l.s4 1983009808
  %v9006 = vunpack.c.0.s8 %v9005
  %v9007 = vperm.slane %v9001, %v9006
  %v9009 = vunpack.c.l.s4 1983009808
  %v9010 = vunpack.c.0.s8 %v9009
  %v9011 = vperm.slane %v9003, %v9010
  %v9012 = vrot.slane %v8033, 4
  %v9013 = vsel %vm573, %v9012, %v8029
  %v9014 = vrot.slane %v8029, 4
  %v9015 = vsel %vm573, %v8033, %v9014
  %v9017 = vunpack.c.l.s4 1983009808
  %v9018 = vunpack.c.0.s8 %v9017
  %v9019 = vperm.slane %v9013, %v9018
  %v9021 = vunpack.c.l.s4 1983009808
  %v9022 = vunpack.c.0.s8 %v9021
  %v9023 = vperm.slane %v9015, %v9022
  %v9024 = vrot.slane %v8035, 4
  %v9025 = vsel %vm573, %v9024, %v8031
  %v9026 = vrot.slane %v8031, 4
  %v9027 = vsel %vm573, %v8035, %v9026
  %v9029 = vunpack.c.l.s4 1983009808
  %v9030 = vunpack.c.0.s8 %v9029
  %v9031 = vperm.slane %v9025, %v9030
  %v9033 = vunpack.c.l.s4 1983009808
  %v9034 = vunpack.c.0.s8 %v9033
  %v9035 = vperm.slane %v9027, %v9034
  %v9036 = vrot.slane %v9007, 4
  %v9037 = vsel %vm573, %v9036, %v8995
  %v9038 = vrot.slane %v8995, 4
  %v9039 = vsel %vm573, %v9007, %v9038
  %v9041 = vunpack.c.l.s4 1934713408
  %v9042 = vunpack.c.0.s8 %v9041
  %v9043 = vperm.slane %v9037, %v9042
  %v9045 = vunpack.c.l.s4 1934713408
  %v9046 = vunpack.c.0.s8 %v9045
  %v9047 = vperm.slane %v9039, %v9046
  %v9048 = vrot.slane %v9011, 4
  %v9049 = vsel %vm573, %v9048, %v8999
  %v9050 = vrot.slane %v8999, 4
  %v9051 = vsel %vm573, %v9011, %v9050
  %v9053 = vunpack.c.l.s4 1934713408
  %v9054 = vunpack.c.0.s8 %v9053
  %v9055 = vperm.slane %v9049, %v9054
  %v9057 = vunpack.c.l.s4 1934713408
  %v9058 = vunpack.c.0.s8 %v9057
  %v9059 = vperm.slane %v9051, %v9058
  %v9060 = vrot.slane %v9031, 4
  %v9061 = vsel %vm573, %v9060, %v9019
  %v9062 = vrot.slane %v9019, 4
  %v9063 = vsel %vm573, %v9031, %v9062
  %v9065 = vunpack.c.l.s4 1934713408
  %v9066 = vunpack.c.0.s8 %v9065
  %v9067 = vperm.slane %v9061, %v9066
  %v9069 = vunpack.c.l.s4 1934713408
  %v9070 = vunpack.c.0.s8 %v9069
  %v9071 = vperm.slane %v9063, %v9070
  %v9072 = vrot.slane %v9035, 4
  %v9073 = vsel %vm573, %v9072, %v9023
  %v9074 = vrot.slane %v9023, 4
  %v9075 = vsel %vm573, %v9035, %v9074
  %v9077 = vunpack.c.l.s4 1934713408
  %v9078 = vunpack.c.0.s8 %v9077
  %v9079 = vperm.slane %v9073, %v9078
  %v9081 = vunpack.c.l.s4 1934713408
  %v9082 = vunpack.c.0.s8 %v9081
  %v9083 = vperm.slane %v9075, %v9082
  %v9084 = vrot.slane %v9067, 4
  %v9085 = vsel %vm573, %v9084, %v9043
  %v9086 = vrot.slane %v9043, 4
  %v9087 = vsel %vm573, %v9067, %v9086
  %v9088 = vrot.slane %v9071, 4
  %v9089 = vsel %vm573, %v9088, %v9047
  %v9090 = vrot.slane %v9047, 4
  %v9091 = vsel %vm573, %v9071, %v9090
  %v9092 = vrot.slane %v9079, 4
  %v9093 = vsel %vm573, %v9092, %v9055
  %v9094 = vrot.slane %v9055, 4
  %v9095 = vsel %vm573, %v9079, %v9094
  %v9096 = vrot.slane %v9083, 4
  %v9097 = vsel %vm573, %v9096, %v9059
  %v9098 = vrot.slane %v9059, 4
  %v9099 = vsel %vm573, %v9083, %v9098
  %v9100 = vrot.slane %v8193, 4
  %v9101 = vsel %vm573, %v9100, %v8189
  %v9102 = vrot.slane %v8189, 4
  %v9103 = vsel %vm573, %v8193, %v9102
  %v9105 = vunpack.c.l.s4 1983009808
  %v9106 = vunpack.c.0.s8 %v9105
  %v9107 = vperm.slane %v9101, %v9106
  %v9109 = vunpack.c.l.s4 1983009808
  %v9110 = vunpack.c.0.s8 %v9109
  %v9111 = vperm.slane %v9103, %v9110
  %v9112 = vrot.slane %v8195, 4
  %v9113 = vsel %vm573, %v9112, %v8191
  %v9114 = vrot.slane %v8191, 4
  %v9115 = vsel %vm573, %v8195, %v9114
  %v9117 = vunpack.c.l.s4 1983009808
  %v9118 = vunpack.c.0.s8 %v9117
  %v9119 = vperm.slane %v9113, %v9118
  %v9121 = vunpack.c.l.s4 1983009808
  %v9122 = vunpack.c.0.s8 %v9121
  %v9123 = vperm.slane %v9115, %v9122
  %v9124 = vrot.slane %v8201, 4
  %v9125 = vsel %vm573, %v9124, %v8197
  %v9126 = vrot.slane %v8197, 4
  %v9127 = vsel %vm573, %v8201, %v9126
  %v9129 = vunpack.c.l.s4 1983009808
  %v9130 = vunpack.c.0.s8 %v9129
  %v9131 = vperm.slane %v9125, %v9130
  %v9133 = vunpack.c.l.s4 1983009808
  %v9134 = vunpack.c.0.s8 %v9133
  %v9135 = vperm.slane %v9127, %v9134
  %v9136 = vrot.slane %v8203, 4
  %v9137 = vsel %vm573, %v9136, %v8199
  %v9138 = vrot.slane %v8199, 4
  %v9139 = vsel %vm573, %v8203, %v9138
  %v9141 = vunpack.c.l.s4 1983009808
  %v9142 = vunpack.c.0.s8 %v9141
  %v9143 = vperm.slane %v9137, %v9142
  %v9145 = vunpack.c.l.s4 1983009808
  %v9146 = vunpack.c.0.s8 %v9145
  %v9147 = vperm.slane %v9139, %v9146
  %v9148 = vrot.slane %v9119, 4
  %v9149 = vsel %vm573, %v9148, %v9107
  %v9150 = vrot.slane %v9107, 4
  %v9151 = vsel %vm573, %v9119, %v9150
  %v9153 = vunpack.c.l.s4 1934713408
  %v9154 = vunpack.c.0.s8 %v9153
  %v9155 = vperm.slane %v9149, %v9154
  %v9157 = vunpack.c.l.s4 1934713408
  %v9158 = vunpack.c.0.s8 %v9157
  %v9159 = vperm.slane %v9151, %v9158
  %v9160 = vrot.slane %v9123, 4
  %v9161 = vsel %vm573, %v9160, %v9111
  %v9162 = vrot.slane %v9111, 4
  %v9163 = vsel %vm573, %v9123, %v9162
  %v9165 = vunpack.c.l.s4 1934713408
  %v9166 = vunpack.c.0.s8 %v9165
  %v9167 = vperm.slane %v9161, %v9166
  %v9169 = vunpack.c.l.s4 1934713408
  %v9170 = vunpack.c.0.s8 %v9169
  %v9171 = vperm.slane %v9163, %v9170
  %v9172 = vrot.slane %v9143, 4
  %v9173 = vsel %vm573, %v9172, %v9131
  %v9174 = vrot.slane %v9131, 4
  %v9175 = vsel %vm573, %v9143, %v9174
  %v9177 = vunpack.c.l.s4 1934713408
  %v9178 = vunpack.c.0.s8 %v9177
  %v9179 = vperm.slane %v9173, %v9178
  %v9181 = vunpack.c.l.s4 1934713408
  %v9182 = vunpack.c.0.s8 %v9181
  %v9183 = vperm.slane %v9175, %v9182
  %v9184 = vrot.slane %v9147, 4
  %v9185 = vsel %vm573, %v9184, %v9135
  %v9186 = vrot.slane %v9135, 4
  %v9187 = vsel %vm573, %v9147, %v9186
  %v9189 = vunpack.c.l.s4 1934713408
  %v9190 = vunpack.c.0.s8 %v9189
  %v9191 = vperm.slane %v9185, %v9190
  %v9193 = vunpack.c.l.s4 1934713408
  %v9194 = vunpack.c.0.s8 %v9193
  %v9195 = vperm.slane %v9187, %v9194
  %v9196 = vrot.slane %v9179, 4
  %v9197 = vsel %vm573, %v9196, %v9155
  %v9198 = vrot.slane %v9155, 4
  %v9199 = vsel %vm573, %v9179, %v9198
  %v9200 = vrot.slane %v9183, 4
  %v9201 = vsel %vm573, %v9200, %v9159
  %v9202 = vrot.slane %v9159, 4
  %v9203 = vsel %vm573, %v9183, %v9202
  %v9204 = vrot.slane %v9191, 4
  %v9205 = vsel %vm573, %v9204, %v9167
  %v9206 = vrot.slane %v9167, 4
  %v9207 = vsel %vm573, %v9191, %v9206
  %v9208 = vrot.slane %v9195, 4
  %v9209 = vsel %vm573, %v9208, %v9171
  %v9210 = vrot.slane %v9171, 4
  %v9211 = vsel %vm573, %v9195, %v9210
  %v9212 = vrot.slane %v8361, 4
  %v9213 = vsel %vm573, %v9212, %v8357
  %v9214 = vrot.slane %v8357, 4
  %v9215 = vsel %vm573, %v8361, %v9214
  %v9217 = vunpack.c.l.s4 1983009808
  %v9218 = vunpack.c.0.s8 %v9217
  %v9219 = vperm.slane %v9213, %v9218
  %v9221 = vunpack.c.l.s4 1983009808
  %v9222 = vunpack.c.0.s8 %v9221
  %v9223 = vperm.slane %v9215, %v9222
  %v9224 = vrot.slane %v8363, 4
  %v9225 = vsel %vm573, %v9224, %v8359
  %v9226 = vrot.slane %v8359, 4
  %v9227 = vsel %vm573, %v8363, %v9226
  %v9229 = vunpack.c.l.s4 1983009808
  %v9230 = vunpack.c.0.s8 %v9229
  %v9231 = vperm.slane %v9225, %v9230
  %v9233 = vunpack.c.l.s4 1983009808
  %v9234 = vunpack.c.0.s8 %v9233
  %v9235 = vperm.slane %v9227, %v9234
  %v9236 = vrot.slane %v8369, 4
  %v9237 = vsel %vm573, %v9236, %v8365
  %v9238 = vrot.slane %v8365, 4
  %v9239 = vsel %vm573, %v8369, %v9238
  %v9241 = vunpack.c.l.s4 1983009808
  %v9242 = vunpack.c.0.s8 %v9241
  %v9243 = vperm.slane %v9237, %v9242
  %v9245 = vunpack.c.l.s4 1983009808
  %v9246 = vunpack.c.0.s8 %v9245
  %v9247 = vperm.slane %v9239, %v9246
  %v9248 = vrot.slane %v8371, 4
  %v9249 = vsel %vm573, %v9248, %v8367
  %v9250 = vrot.slane %v8367, 4
  %v9251 = vsel %vm573, %v8371, %v9250
  %v9253 = vunpack.c.l.s4 1983009808
  %v9254 = vunpack.c.0.s8 %v9253
  %v9255 = vperm.slane %v9249, %v9254
  %v9257 = vunpack.c.l.s4 1983009808
  %v9258 = vunpack.c.0.s8 %v9257
  %v9259 = vperm.slane %v9251, %v9258
  %v9260 = vrot.slane %v9231, 4
  %v9261 = vsel %vm573, %v9260, %v9219
  %v9262 = vrot.slane %v9219, 4
  %v9263 = vsel %vm573, %v9231, %v9262
  %v9265 = vunpack.c.l.s4 1934713408
  %v9266 = vunpack.c.0.s8 %v9265
  %v9267 = vperm.slane %v9261, %v9266
  %v9269 = vunpack.c.l.s4 1934713408
  %v9270 = vunpack.c.0.s8 %v9269
  %v9271 = vperm.slane %v9263, %v9270
  %v9272 = vrot.slane %v9235, 4
  %v9273 = vsel %vm573, %v9272, %v9223
  %v9274 = vrot.slane %v9223, 4
  %v9275 = vsel %vm573, %v9235, %v9274
  %v9277 = vunpack.c.l.s4 1934713408
  %v9278 = vunpack.c.0.s8 %v9277
  %v9279 = vperm.slane %v9273, %v9278
  %v9281 = vunpack.c.l.s4 1934713408
  %v9282 = vunpack.c.0.s8 %v9281
  %v9283 = vperm.slane %v9275, %v9282
  %v9284 = vrot.slane %v9255, 4
  %v9285 = vsel %vm573, %v9284, %v9243
  %v9286 = vrot.slane %v9243, 4
  %v9287 = vsel %vm573, %v9255, %v9286
  %v9289 = vunpack.c.l.s4 1934713408
  %v9290 = vunpack.c.0.s8 %v9289
  %v9291 = vperm.slane %v9285, %v9290
  %v9293 = vunpack.c.l.s4 1934713408
  %v9294 = vunpack.c.0.s8 %v9293
  %v9295 = vperm.slane %v9287, %v9294
  %v9296 = vrot.slane %v9259, 4
  %v9297 = vsel %vm573, %v9296, %v9247
  %v9298 = vrot.slane %v9247, 4
  %v9299 = vsel %vm573, %v9259, %v9298
  %v9301 = vunpack.c.l.s4 1934713408
  %v9302 = vunpack.c.0.s8 %v9301
  %v9303 = vperm.slane %v9297, %v9302
  %v9305 = vunpack.c.l.s4 1934713408
  %v9306 = vunpack.c.0.s8 %v9305
  %v9307 = vperm.slane %v9299, %v9306
  %v9308 = vrot.slane %v9291, 4
  %v9309 = vsel %vm573, %v9308, %v9267
  %v9310 = vrot.slane %v9267, 4
  %v9311 = vsel %vm573, %v9291, %v9310
  %v9312 = vrot.slane %v9295, 4
  %v9313 = vsel %vm573, %v9312, %v9271
  %v9314 = vrot.slane %v9271, 4
  %v9315 = vsel %vm573, %v9295, %v9314
  %v9316 = vrot.slane %v9303, 4
  %v9317 = vsel %vm573, %v9316, %v9279
  %v9318 = vrot.slane %v9279, 4
  %v9319 = vsel %vm573, %v9303, %v9318
  %v9320 = vrot.slane %v9307, 4
  %v9321 = vsel %vm573, %v9320, %v9283
  %v9322 = vrot.slane %v9283, 4
  %v9323 = vsel %vm573, %v9307, %v9322
  %v9324 = vsel %vm573, %v7246, %v7227
  %v9326 = vunpack.c.l.s4 1983009808
  %v9327 = vunpack.c.0.s8 %v9326
  %v9328 = vperm.slane %v9324, %v9327
  %v9329 = vrot.slane %v7247, 4
  %v9330 = vsel %vm573, %v9329, %v7245
  %v9332 = vunpack.c.l.s4 1983009808
  %v9333 = vunpack.c.0.s8 %v9332
  %v9334 = vperm.slane %v9330, %v9333
  %v9335 = vsel %vm573, %v7250, %v7239
  %v9337 = vunpack.c.l.s4 1983009808
  %v9338 = vunpack.c.0.s8 %v9337
  %v9339 = vperm.slane %v9335, %v9338
  %v9340 = vrot.slane %v7251, 4
  %v9341 = vsel %vm573, %v9340, %v7249
  %v9343 = vunpack.c.l.s4 1983009808
  %v9344 = vunpack.c.0.s8 %v9343
  %v9345 = vperm.slane %v9341, %v9344
  %v9346 = vrot.slane %v9334, 4
  %v9347 = vsel %vm573, %v9346, %v9328
  %v9348 = vrot.slane %v9328, 4
  %v9349 = vsel %vm573, %v9334, %v9348
  %v9351 = vunpack.c.l.s4 1934713408
  %v9352 = vunpack.c.0.s8 %v9351
  %v9353 = vperm.slane %v9347, %v9352
  %v9355 = vunpack.c.l.s4 1934713408
  %v9356 = vunpack.c.0.s8 %v9355
  %v9357 = vperm.slane %v9349, %v9356
  %v9358 = vrot.slane %v9345, 4
  %v9359 = vsel %vm573, %v9358, %v9339
  %v9360 = vrot.slane %v9339, 4
  %v9361 = vsel %vm573, %v9345, %v9360
  %v9363 = vunpack.c.l.s4 1934713408
  %v9364 = vunpack.c.0.s8 %v9363
  %v9365 = vperm.slane %v9359, %v9364
  %v9367 = vunpack.c.l.s4 1934713408
  %v9368 = vunpack.c.0.s8 %v9367
  %v9369 = vperm.slane %v9361, %v9368
  %v9370 = vrot.slane %v9365, 4
  %v9371 = vsel %vm573, %v9370, %v9353
  %v9372 = vrot.slane %v9353, 4
  %v9373 = vsel %vm573, %v9365, %v9372
  %v9374 = vrot.slane %v9369, 4
  %v9375 = vsel %vm573, %v9374, %v9357
  %v9376 = vrot.slane %v9357, 4
  %v9377 = vsel %vm573, %v9369, %v9376
  %v9378 = vsel %vm573, %v7414, %v7395
  %v9380 = vunpack.c.l.s4 1983009808
  %v9381 = vunpack.c.0.s8 %v9380
  %v9382 = vperm.slane %v9378, %v9381
  %v9383 = vrot.slane %v7415, 4
  %v9384 = vsel %vm573, %v9383, %v7413
  %v9386 = vunpack.c.l.s4 1983009808
  %v9387 = vunpack.c.0.s8 %v9386
  %v9388 = vperm.slane %v9384, %v9387
  %v9389 = vsel %vm573, %v7418, %v7407
  %v9391 = vunpack.c.l.s4 1983009808
  %v9392 = vunpack.c.0.s8 %v9391
  %v9393 = vperm.slane %v9389, %v9392
  %v9394 = vrot.slane %v7419, 4
  %v9395 = vsel %vm573, %v9394, %v7417
  %v9397 = vunpack.c.l.s4 1983009808
  %v9398 = vunpack.c.0.s8 %v9397
  %v9399 = vperm.slane %v9395, %v9398
  %v9400 = vrot.slane %v9388, 4
  %v9401 = vsel %vm573, %v9400, %v9382
  %v9402 = vrot.slane %v9382, 4
  %v9403 = vsel %vm573, %v9388, %v9402
  %v9405 = vunpack.c.l.s4 1934713408
  %v9406 = vunpack.c.0.s8 %v9405
  %v9407 = vperm.slane %v9401, %v9406
  %v9409 = vunpack.c.l.s4 1934713408
  %v9410 = vunpack.c.0.s8 %v9409
  %v9411 = vperm.slane %v9403, %v9410
  %v9412 = vrot.slane %v9399, 4
  %v9413 = vsel %vm573, %v9412, %v9393
  %v9414 = vrot.slane %v9393, 4
  %v9415 = vsel %vm573, %v9399, %v9414
  %v9417 = vunpack.c.l.s4 1934713408
  %v9418 = vunpack.c.0.s8 %v9417
  %v9419 = vperm.slane %v9413, %v9418
  %v9421 = vunpack.c.l.s4 1934713408
  %v9422 = vunpack.c.0.s8 %v9421
  %v9423 = vperm.slane %v9415, %v9422
  %v9424 = vrot.slane %v9419, 4
  %v9425 = vsel %vm573, %v9424, %v9407
  %v9426 = vrot.slane %v9407, 4
  %v9427 = vsel %vm573, %v9419, %v9426
  %v9428 = vrot.slane %v9423, 4
  %v9429 = vsel %vm573, %v9428, %v9411
  %v9430 = vrot.slane %v9411, 4
  %v9431 = vsel %vm573, %v9423, %v9430
  %v9432 = vsel %vm573, %v7582, %v7563
  %v9434 = vunpack.c.l.s4 1983009808
  %v9435 = vunpack.c.0.s8 %v9434
  %v9436 = vperm.slane %v9432, %v9435
  %v9437 = vrot.slane %v7583, 4
  %v9438 = vsel %vm573, %v9437, %v7581
  %v9440 = vunpack.c.l.s4 1983009808
  %v9441 = vunpack.c.0.s8 %v9440
  %v9442 = vperm.slane %v9438, %v9441
  %v9443 = vsel %vm573, %v7586, %v7575
  %v9445 = vunpack.c.l.s4 1983009808
  %v9446 = vunpack.c.0.s8 %v9445
  %v9447 = vperm.slane %v9443, %v9446
  %v9448 = vrot.slane %v7587, 4
  %v9449 = vsel %vm573, %v9448, %v7585
  %v9451 = vunpack.c.l.s4 1983009808
  %v9452 = vunpack.c.0.s8 %v9451
  %v9453 = vperm.slane %v9449, %v9452
  %v9454 = vrot.slane %v9442, 4
  %v9455 = vsel %vm573, %v9454, %v9436
  %v9456 = vrot.slane %v9436, 4
  %v9457 = vsel %vm573, %v9442, %v9456
  %v9459 = vunpack.c.l.s4 1934713408
  %v9460 = vunpack.c.0.s8 %v9459
  %v9461 = vperm.slane %v9455, %v9460
  %v9463 = vunpack.c.l.s4 1934713408
  %v9464 = vunpack.c.0.s8 %v9463
  %v9465 = vperm.slane %v9457, %v9464
  %v9466 = vrot.slane %v9453, 4
  %v9467 = vsel %vm573, %v9466, %v9447
  %v9468 = vrot.slane %v9447, 4
  %v9469 = vsel %vm573, %v9453, %v9468
  %v9471 = vunpack.c.l.s4 1934713408
  %v9472 = vunpack.c.0.s8 %v9471
  %v9473 = vperm.slane %v9467, %v9472
  %v9475 = vunpack.c.l.s4 1934713408
  %v9476 = vunpack.c.0.s8 %v9475
  %v9477 = vperm.slane %v9469, %v9476
  %v9478 = vrot.slane %v9473, 4
  %v9479 = vsel %vm573, %v9478, %v9461
  %v9480 = vrot.slane %v9461, 4
  %v9481 = vsel %vm573, %v9473, %v9480
  %v9482 = vrot.slane %v9477, 4
  %v9483 = vsel %vm573, %v9482, %v9465
  %v9484 = vrot.slane %v9465, 4
  %v9485 = vsel %vm573, %v9477, %v9484
  %v9486 = vsel %vm573, %v7750, %v7731
  %v9488 = vunpack.c.l.s4 1983009808
  %v9489 = vunpack.c.0.s8 %v9488
  %v9490 = vperm.slane %v9486, %v9489
  %v9491 = vrot.slane %v7751, 4
  %v9492 = vsel %vm573, %v9491, %v7749
  %v9494 = vunpack.c.l.s4 1983009808
  %v9495 = vunpack.c.0.s8 %v9494
  %v9496 = vperm.slane %v9492, %v9495
  %v9497 = vsel %vm573, %v7754, %v7743
  %v9499 = vunpack.c.l.s4 1983009808
  %v9500 = vunpack.c.0.s8 %v9499
  %v9501 = vperm.slane %v9497, %v9500
  %v9502 = vrot.slane %v7755, 4
  %v9503 = vsel %vm573, %v9502, %v7753
  %v9505 = vunpack.c.l.s4 1983009808
  %v9506 = vunpack.c.0.s8 %v9505
  %v9507 = vperm.slane %v9503, %v9506
  %v9508 = vrot.slane %v9496, 4
  %v9509 = vsel %vm573, %v9508, %v9490
  %v9510 = vrot.slane %v9490, 4
  %v9511 = vsel %vm573, %v9496, %v9510
  %v9513 = vunpack.c.l.s4 1934713408
  %v9514 = vunpack.c.0.s8 %v9513
  %v9515 = vperm.slane %v9509, %v9514
  %v9517 = vunpack.c.l.s4 1934713408
  %v9518 = vunpack.c.0.s8 %v9517
  %v9519 = vperm.slane %v9511, %v9518
  %v9520 = vrot.slane %v9507, 4
  %v9521 = vsel %vm573, %v9520, %v9501
  %v9522 = vrot.slane %v9501, 4
  %v9523 = vsel %vm573, %v9507, %v9522
  %v9525 = vunpack.c.l.s4 1934713408
  %v9526 = vunpack.c.0.s8 %v9525
  %v9527 = vperm.slane %v9521, %v9526
  %v9529 = vunpack.c.l.s4 1934713408
  %v9530 = vunpack.c.0.s8 %v9529
  %v9531 = vperm.slane %v9523, %v9530
  %v9532 = vrot.slane %v9527, 4
  %v9533 = vsel %vm573, %v9532, %v9515
  %v9534 = vrot.slane %v9515, 4
  %v9535 = vsel %vm573, %v9527, %v9534
  %v9536 = vrot.slane %v9531, 4
  %v9537 = vsel %vm573, %v9536, %v9519
  %v9538 = vrot.slane %v9519, 4
  %v9539 = vsel %vm573, %v9531, %v9538
  %v9540 = vsel %vm573, %v7918, %v7899
  %v9542 = vunpack.c.l.s4 1983009808
  %v9543 = vunpack.c.0.s8 %v9542
  %v9544 = vperm.slane %v9540, %v9543
  %v9545 = vrot.slane %v7919, 4
  %v9546 = vsel %vm573, %v9545, %v7917
  %v9548 = vunpack.c.l.s4 1983009808
  %v9549 = vunpack.c.0.s8 %v9548
  %v9550 = vperm.slane %v9546, %v9549
  %v9551 = vsel %vm573, %v7922, %v7911
  %v9553 = vunpack.c.l.s4 1983009808
  %v9554 = vunpack.c.0.s8 %v9553
  %v9555 = vperm.slane %v9551, %v9554
  %v9556 = vrot.slane %v7923, 4
  %v9557 = vsel %vm573, %v9556, %v7921
  %v9559 = vunpack.c.l.s4 1983009808
  %v9560 = vunpack.c.0.s8 %v9559
  %v9561 = vperm.slane %v9557, %v9560
  %v9562 = vrot.slane %v9550, 4
  %v9563 = vsel %vm573, %v9562, %v9544
  %v9564 = vrot.slane %v9544, 4
  %v9565 = vsel %vm573, %v9550, %v9564
  %v9567 = vunpack.c.l.s4 1934713408
  %v9568 = vunpack.c.0.s8 %v9567
  %v9569 = vperm.slane %v9563, %v9568
  %v9571 = vunpack.c.l.s4 1934713408
  %v9572 = vunpack.c.0.s8 %v9571
  %v9573 = vperm.slane %v9565, %v9572
  %v9574 = vrot.slane %v9561, 4
  %v9575 = vsel %vm573, %v9574, %v9555
  %v9576 = vrot.slane %v9555, 4
  %v9577 = vsel %vm573, %v9561, %v9576
  %v9579 = vunpack.c.l.s4 1934713408
  %v9580 = vunpack.c.0.s8 %v9579
  %v9581 = vperm.slane %v9575, %v9580
  %v9583 = vunpack.c.l.s4 1934713408
  %v9584 = vunpack.c.0.s8 %v9583
  %v9585 = vperm.slane %v9577, %v9584
  %v9586 = vrot.slane %v9581, 4
  %v9587 = vsel %vm573, %v9586, %v9569
  %v9588 = vrot.slane %v9569, 4
  %v9589 = vsel %vm573, %v9581, %v9588
  %v9590 = vrot.slane %v9585, 4
  %v9591 = vsel %vm573, %v9590, %v9573
  %v9592 = vrot.slane %v9573, 4
  %v9593 = vsel %vm573, %v9585, %v9592
  %v9594 = vsel %vm573, %v8086, %v8067
  %v9596 = vunpack.c.l.s4 1983009808
  %v9597 = vunpack.c.0.s8 %v9596
  %v9598 = vperm.slane %v9594, %v9597
  %v9599 = vrot.slane %v8087, 4
  %v9600 = vsel %vm573, %v9599, %v8085
  %v9602 = vunpack.c.l.s4 1983009808
  %v9603 = vunpack.c.0.s8 %v9602
  %v9604 = vperm.slane %v9600, %v9603
  %v9605 = vsel %vm573, %v8090, %v8079
  %v9607 = vunpack.c.l.s4 1983009808
  %v9608 = vunpack.c.0.s8 %v9607
  %v9609 = vperm.slane %v9605, %v9608
  %v9610 = vrot.slane %v8091, 4
  %v9611 = vsel %vm573, %v9610, %v8089
  %v9613 = vunpack.c.l.s4 1983009808
  %v9614 = vunpack.c.0.s8 %v9613
  %v9615 = vperm.slane %v9611, %v9614
  %v9616 = vrot.slane %v9604, 4
  %v9617 = vsel %vm573, %v9616, %v9598
  %v9618 = vrot.slane %v9598, 4
  %v9619 = vsel %vm573, %v9604, %v9618
  %v9621 = vunpack.c.l.s4 1934713408
  %v9622 = vunpack.c.0.s8 %v9621
  %v9623 = vperm.slane %v9617, %v9622
  %v9625 = vunpack.c.l.s4 1934713408
  %v9626 = vunpack.c.0.s8 %v9625
  %v9627 = vperm.slane %v9619, %v9626
  %v9628 = vrot.slane %v9615, 4
  %v9629 = vsel %vm573, %v9628, %v9609
  %v9630 = vrot.slane %v9609, 4
  %v9631 = vsel %vm573, %v9615, %v9630
  %v9633 = vunpack.c.l.s4 1934713408
  %v9634 = vunpack.c.0.s8 %v9633
  %v9635 = vperm.slane %v9629, %v9634
  %v9637 = vunpack.c.l.s4 1934713408
  %v9638 = vunpack.c.0.s8 %v9637
  %v9639 = vperm.slane %v9631, %v9638
  %v9640 = vrot.slane %v9635, 4
  %v9641 = vsel %vm573, %v9640, %v9623
  %v9642 = vrot.slane %v9623, 4
  %v9643 = vsel %vm573, %v9635, %v9642
  %v9644 = vrot.slane %v9639, 4
  %v9645 = vsel %vm573, %v9644, %v9627
  %v9646 = vrot.slane %v9627, 4
  %v9647 = vsel %vm573, %v9639, %v9646
  %v9648 = vsel %vm573, %v8254, %v8235
  %v9650 = vunpack.c.l.s4 1983009808
  %v9651 = vunpack.c.0.s8 %v9650
  %v9652 = vperm.slane %v9648, %v9651
  %v9653 = vrot.slane %v8255, 4
  %v9654 = vsel %vm573, %v9653, %v8253
  %v9656 = vunpack.c.l.s4 1983009808
  %v9657 = vunpack.c.0.s8 %v9656
  %v9658 = vperm.slane %v9654, %v9657
  %v9659 = vsel %vm573, %v8258, %v8247
  %v9661 = vunpack.c.l.s4 1983009808
  %v9662 = vunpack.c.0.s8 %v9661
  %v9663 = vperm.slane %v9659, %v9662
  %v9664 = vrot.slane %v8259, 4
  %v9665 = vsel %vm573, %v9664, %v8257
  %v9667 = vunpack.c.l.s4 1983009808
  %v9668 = vunpack.c.0.s8 %v9667
  %v9669 = vperm.slane %v9665, %v9668
  %v9670 = vrot.slane %v9658, 4
  %v9671 = vsel %vm573, %v9670, %v9652
  %v9672 = vrot.slane %v9652, 4
  %v9673 = vsel %vm573, %v9658, %v9672
  %v9675 = vunpack.c.l.s4 1934713408
  %v9676 = vunpack.c.0.s8 %v9675
  %v9677 = vperm.slane %v9671, %v9676
  %v9679 = vunpack.c.l.s4 1934713408
  %v9680 = vunpack.c.0.s8 %v9679
  %v9681 = vperm.slane %v9673, %v9680
  %v9682 = vrot.slane %v9669, 4
  %v9683 = vsel %vm573, %v9682, %v9663
  %v9684 = vrot.slane %v9663, 4
  %v9685 = vsel %vm573, %v9669, %v9684
  %v9687 = vunpack.c.l.s4 1934713408
  %v9688 = vunpack.c.0.s8 %v9687
  %v9689 = vperm.slane %v9683, %v9688
  %v9691 = vunpack.c.l.s4 1934713408
  %v9692 = vunpack.c.0.s8 %v9691
  %v9693 = vperm.slane %v9685, %v9692
  %v9694 = vrot.slane %v9689, 4
  %v9695 = vsel %vm573, %v9694, %v9677
  %v9696 = vrot.slane %v9677, 4
  %v9697 = vsel %vm573, %v9689, %v9696
  %v9698 = vrot.slane %v9693, 4
  %v9699 = vsel %vm573, %v9698, %v9681
  %v9700 = vrot.slane %v9681, 4
  %v9701 = vsel %vm573, %v9693, %v9700
  %v9702 = vsel %vm573, %v8422, %v8403
  %v9704 = vunpack.c.l.s4 1983009808
  %v9705 = vunpack.c.0.s8 %v9704
  %v9706 = vperm.slane %v9702, %v9705
  %v9707 = vrot.slane %v8423, 4
  %v9708 = vsel %vm573, %v9707, %v8421
  %v9710 = vunpack.c.l.s4 1983009808
  %v9711 = vunpack.c.0.s8 %v9710
  %v9712 = vperm.slane %v9708, %v9711
  %v9713 = vsel %vm573, %v8426, %v8415
  %v9715 = vunpack.c.l.s4 1983009808
  %v9716 = vunpack.c.0.s8 %v9715
  %v9717 = vperm.slane %v9713, %v9716
  %v9718 = vrot.slane %v8427, 4
  %v9719 = vsel %vm573, %v9718, %v8425
  %v9721 = vunpack.c.l.s4 1983009808
  %v9722 = vunpack.c.0.s8 %v9721
  %v9723 = vperm.slane %v9719, %v9722
  %v9724 = vrot.slane %v9712, 4
  %v9725 = vsel %vm573, %v9724, %v9706
  %v9726 = vrot.slane %v9706, 4
  %v9727 = vsel %vm573, %v9712, %v9726
  %v9729 = vunpack.c.l.s4 1934713408
  %v9730 = vunpack.c.0.s8 %v9729
  %v9731 = vperm.slane %v9725, %v9730
  %v9733 = vunpack.c.l.s4 1934713408
  %v9734 = vunpack.c.0.s8 %v9733
  %v9735 = vperm.slane %v9727, %v9734
  %v9736 = vrot.slane %v9723, 4
  %v9737 = vsel %vm573, %v9736, %v9717
  %v9738 = vrot.slane %v9717, 4
  %v9739 = vsel %vm573, %v9723, %v9738
  %v9741 = vunpack.c.l.s4 1934713408
  %v9742 = vunpack.c.0.s8 %v9741
  %v9743 = vperm.slane %v9737, %v9742
  %v9745 = vunpack.c.l.s4 1934713408
  %v9746 = vunpack.c.0.s8 %v9745
  %v9747 = vperm.slane %v9739, %v9746
  %v9748 = vrot.slane %v9743, 4
  %v9749 = vsel %vm573, %v9748, %v9731
  %v9750 = vrot.slane %v9731, 4
  %v9751 = vsel %vm573, %v9743, %v9750
  %v9752 = vrot.slane %v9747, 4
  %v9753 = vsel %vm573, %v9752, %v9735
  %v9754 = vrot.slane %v9735, 4
  %v9755 = vsel %vm573, %v9747, %v9754
  %v9756 = vpack.c.bf16 %v8525, %v8525
  %v9757 = vpack.c.bf16 %v8637, %v8637
  %v9758 = vpack.c.bf16 %v8749, %v8749
  %v9759 = vpack.c.bf16 %v8861, %v8861
  %v9760 = vpack.c.bf16 %v8973, %v8973
  %v9761 = vpack.c.bf16 %v9085, %v9085
  %v9762 = vpack.c.bf16 %v9197, %v9197
  %v9763 = vpack.c.bf16 %v9309, %v9309
  %v9764 = vpack.c.bf16 %v8527, %v8527
  %v9765 = vpack.c.bf16 %v8639, %v8639
  %v9766 = vpack.c.bf16 %v8751, %v8751
  %v9767 = vpack.c.bf16 %v8863, %v8863
  %v9768 = vpack.c.bf16 %v8975, %v8975
  %v9769 = vpack.c.bf16 %v9087, %v9087
  %v9770 = vpack.c.bf16 %v9199, %v9199
  %v9771 = vpack.c.bf16 %v9311, %v9311
  %v9772 = vpack.c.bf16 %v8529, %v8529
  %v9773 = vpack.c.bf16 %v8641, %v8641
  %v9774 = vpack.c.bf16 %v8753, %v8753
  %v9775 = vpack.c.bf16 %v8865, %v8865
  %v9776 = vpack.c.bf16 %v8977, %v8977
  %v9777 = vpack.c.bf16 %v9089, %v9089
  %v9778 = vpack.c.bf16 %v9201, %v9201
  %v9779 = vpack.c.bf16 %v9313, %v9313
  %v9780 = vpack.c.bf16 %v8531, %v8531
  %v9781 = vpack.c.bf16 %v8643, %v8643
  %v9782 = vpack.c.bf16 %v8755, %v8755
  %v9783 = vpack.c.bf16 %v8867, %v8867
  %v9784 = vpack.c.bf16 %v8979, %v8979
  %v9785 = vpack.c.bf16 %v9091, %v9091
  %v9786 = vpack.c.bf16 %v9203, %v9203
  %v9787 = vpack.c.bf16 %v9315, %v9315
  %v9788 = vpack.c.bf16 %v8533, %v8533
  %v9789 = vpack.c.bf16 %v8645, %v8645
  %v9790 = vpack.c.bf16 %v8757, %v8757
  %v9791 = vpack.c.bf16 %v8869, %v8869
  %v9792 = vpack.c.bf16 %v8981, %v8981
  %v9793 = vpack.c.bf16 %v9093, %v9093
  %v9794 = vpack.c.bf16 %v9205, %v9205
  %v9795 = vpack.c.bf16 %v9317, %v9317
  %v9796 = vpack.c.bf16 %v8535, %v8535
  %v9797 = vpack.c.bf16 %v8647, %v8647
  %v9798 = vpack.c.bf16 %v8759, %v8759
  %v9799 = vpack.c.bf16 %v8871, %v8871
  %v9800 = vpack.c.bf16 %v8983, %v8983
  %v9801 = vpack.c.bf16 %v9095, %v9095
  %v9802 = vpack.c.bf16 %v9207, %v9207
  %v9803 = vpack.c.bf16 %v9319, %v9319
  %v9804 = vpack.c.bf16 %v8537, %v8537
  %v9805 = vpack.c.bf16 %v8649, %v8649
  %v9806 = vpack.c.bf16 %v8761, %v8761
  %v9807 = vpack.c.bf16 %v8873, %v8873
  %v9808 = vpack.c.bf16 %v8985, %v8985
  %v9809 = vpack.c.bf16 %v9097, %v9097
  %v9810 = vpack.c.bf16 %v9209, %v9209
  %v9811 = vpack.c.bf16 %v9321, %v9321
  %v9812 = vpack.c.bf16 %v8539, %v8539
  %v9813 = vpack.c.bf16 %v8651, %v8651
  %v9814 = vpack.c.bf16 %v8763, %v8763
  %v9815 = vpack.c.bf16 %v8875, %v8875
  %v9816 = vpack.c.bf16 %v8987, %v8987
  %v9817 = vpack.c.bf16 %v9099, %v9099
  %v9818 = vpack.c.bf16 %v9211, %v9211
  %v9819 = vpack.c.bf16 %v9323, %v9323
  %v9820 = vpack.c.bf16 %v9371, %v9371
  %v9821 = vpack.c.bf16 %v9425, %v9425
  %v9822 = vpack.c.bf16 %v9479, %v9479
  %v9823 = vpack.c.bf16 %v9533, %v9533
  %v9824 = vpack.c.bf16 %v9587, %v9587
  %v9825 = vpack.c.bf16 %v9641, %v9641
  %v9826 = vpack.c.bf16 %v9695, %v9695
  %v9827 = vpack.c.bf16 %v9749, %v9749
  %v9828 = vpack.c.bf16 %v9373, %v9373
  %v9829 = vpack.c.bf16 %v9427, %v9427
  %v9830 = vpack.c.bf16 %v9481, %v9481
  %v9831 = vpack.c.bf16 %v9535, %v9535
  %v9832 = vpack.c.bf16 %v9589, %v9589
  %v9833 = vpack.c.bf16 %v9643, %v9643
  %v9834 = vpack.c.bf16 %v9697, %v9697
  %v9835 = vpack.c.bf16 %v9751, %v9751
  %v9836 = vpack.c.bf16 %v9375, %v9375
  %v9837 = vpack.c.bf16 %v9429, %v9429
  %v9838 = vpack.c.bf16 %v9483, %v9483
  %v9839 = vpack.c.bf16 %v9537, %v9537
  %v9840 = vpack.c.bf16 %v9591, %v9591
  %v9841 = vpack.c.bf16 %v9645, %v9645
  %v9842 = vpack.c.bf16 %v9699, %v9699
  %v9843 = vpack.c.bf16 %v9753, %v9753
  %v9844 = vpack.c.bf16 %v9377, %v9377
  %v9845 = vpack.c.bf16 %v9431, %v9431
  %v9846 = vpack.c.bf16 %v9485, %v9485
  %v9847 = vpack.c.bf16 %v9539, %v9539
  %v9848 = vpack.c.bf16 %v9593, %v9593
  %v9849 = vpack.c.bf16 %v9647, %v9647
  %v9850 = vpack.c.bf16 %v9701, %v9701
  %v9851 = vpack.c.bf16 %v9755, %v9755
  %v9853 = vsel %vm3341, %v9756, 0
  %v9856 = vsel %vm3341, %v9788, 0
  %9858 = vmatpush.bf16.xpose.msra.mxu0 0
  %9859 = vmatpush.bf16.xpose.msra.mxu0 0
  %9860 = vmatpush.bf16.xpose.msra.mxu0 0
  %9861 = vmatpush.bf16.xpose.msra.mxu0 0
  %9862 = vmatpush.bf16.xpose.msra.mxu0 0
  %9863 = vmatpush.bf16.xpose.msra.mxu0 0
  %9864 = vmatpush.bf16.xpose.msra.mxu0 0
  %9865 = vmatpush.bf16.xpose.msra.mxu0 %v9856
  %9866 = vmatmul.bf16.gmra.mxu0 %v9853
  %v9867 = vpop.f32.mrf.mxu0
  %v9868 = vadd.f32 0.0, %v9867
  %v9869 = vpop.f32.mrf.mxu0
  %9870 = vdwg.mxu0
  %v9872 = vsel %vm3341, %v9757, 0
  %v9875 = vsel %vm3341, %v9789, 0
  %9877 = vmatpush.bf16.xpose.msra.mxu0 0
  %9878 = vmatpush.bf16.xpose.msra.mxu0 0
  %9879 = vmatpush.bf16.xpose.msra.mxu0 0
  %9880 = vmatpush.bf16.xpose.msra.mxu0 0
  %9881 = vmatpush.bf16.xpose.msra.mxu0 0
  %9882 = vmatpush.bf16.xpose.msra.mxu0 0
  %9883 = vmatpush.bf16.xpose.msra.mxu0 0
  %9884 = vmatpush.bf16.xpose.msra.mxu0 %v9875
  %9885 = vmatmul.bf16.gmra.mxu0 %v9872
  %v9886 = vpop.f32.mrf.mxu0
  %v9887 = vadd.f32 0.0, %v9886
  %v9888 = vpop.f32.mrf.mxu0
  %9889 = vdwg.mxu0
  %v9891 = vsel %vm3341, %v9758, 0
  %v9894 = vsel %vm3341, %v9790, 0
  %9896 = vmatpush.bf16.xpose.msra.mxu0 0
  %9897 = vmatpush.bf16.xpose.msra.mxu0 0
  %9898 = vmatpush.bf16.xpose.msra.mxu0 0
  %9899 = vmatpush.bf16.xpose.msra.mxu0 0
  %9900 = vmatpush.bf16.xpose.msra.mxu0 0
  %9901 = vmatpush.bf16.xpose.msra.mxu0 0
  %9902 = vmatpush.bf16.xpose.msra.mxu0 0
  %9903 = vmatpush.bf16.xpose.msra.mxu0 %v9894
  %9904 = vmatmul.bf16.gmra.mxu0 %v9891
  %v9905 = vpop.f32.mrf.mxu0
  %v9906 = vadd.f32 0.0, %v9905
  %v9907 = vpop.f32.mrf.mxu0
  %9908 = vdwg.mxu0
  %v9910 = vsel %vm3341, %v9759, 0
  %v9913 = vsel %vm3341, %v9791, 0
  %9915 = vmatpush.bf16.xpose.msra.mxu0 0
  %9916 = vmatpush.bf16.xpose.msra.mxu0 0
  %9917 = vmatpush.bf16.xpose.msra.mxu0 0
  %9918 = vmatpush.bf16.xpose.msra.mxu0 0
  %9919 = vmatpush.bf16.xpose.msra.mxu0 0
  %9920 = vmatpush.bf16.xpose.msra.mxu0 0
  %9921 = vmatpush.bf16.xpose.msra.mxu0 0
  %9922 = vmatpush.bf16.xpose.msra.mxu0 %v9913
  %9923 = vmatmul.bf16.gmra.mxu0 %v9910
  %v9924 = vpop.f32.mrf.mxu0
  %v9925 = vadd.f32 0.0, %v9924
  %v9926 = vpop.f32.mrf.mxu0
  %9927 = vdwg.mxu0
  %v9929 = vsel %vm3341, %v9760, 0
  %v9932 = vsel %vm3341, %v9792, 0
  %9934 = vmatpush.bf16.xpose.msra.mxu0 0
  %9935 = vmatpush.bf16.xpose.msra.mxu0 0
  %9936 = vmatpush.bf16.xpose.msra.mxu0 0
  %9937 = vmatpush.bf16.xpose.msra.mxu0 0
  %9938 = vmatpush.bf16.xpose.msra.mxu0 0
  %9939 = vmatpush.bf16.xpose.msra.mxu0 0
  %9940 = vmatpush.bf16.xpose.msra.mxu0 0
  %9941 = vmatpush.bf16.xpose.msra.mxu0 %v9932
  %9942 = vmatmul.bf16.gmra.mxu0 %v9929
  %v9943 = vpop.f32.mrf.mxu0
  %v9944 = vadd.f32 0.0, %v9943
  %v9945 = vpop.f32.mrf.mxu0
  %9946 = vdwg.mxu0
  %v9948 = vsel %vm3341, %v9761, 0
  %v9951 = vsel %vm3341, %v9793, 0
  %9953 = vmatpush.bf16.xpose.msra.mxu0 0
  %9954 = vmatpush.bf16.xpose.msra.mxu0 0
  %9955 = vmatpush.bf16.xpose.msra.mxu0 0
  %9956 = vmatpush.bf16.xpose.msra.mxu0 0
  %9957 = vmatpush.bf16.xpose.msra.mxu0 0
  %9958 = vmatpush.bf16.xpose.msra.mxu0 0
  %9959 = vmatpush.bf16.xpose.msra.mxu0 0
  %9960 = vmatpush.bf16.xpose.msra.mxu0 %v9951
  %9961 = vmatmul.bf16.gmra.mxu0 %v9948
  %v9962 = vpop.f32.mrf.mxu0
  %v9963 = vadd.f32 0.0, %v9962
  %v9964 = vpop.f32.mrf.mxu0
  %9965 = vdwg.mxu0
  %v9967 = vsel %vm3341, %v9762, 0
  %v9970 = vsel %vm3341, %v9794, 0
  %9972 = vmatpush.bf16.xpose.msra.mxu0 0
  %9973 = vmatpush.bf16.xpose.msra.mxu0 0
  %9974 = vmatpush.bf16.xpose.msra.mxu0 0
  %9975 = vmatpush.bf16.xpose.msra.mxu0 0
  %9976 = vmatpush.bf16.xpose.msra.mxu0 0
  %9977 = vmatpush.bf16.xpose.msra.mxu0 0
  %9978 = vmatpush.bf16.xpose.msra.mxu0 0
  %9979 = vmatpush.bf16.xpose.msra.mxu0 %v9970
  %9980 = vmatmul.bf16.gmra.mxu0 %v9967
  %v9981 = vpop.f32.mrf.mxu0
  %v9982 = vadd.f32 0.0, %v9981
  %v9983 = vpop.f32.mrf.mxu0
  %9984 = vdwg.mxu0
  %v9986 = vsel %vm3341, %v9763, 0
  %v9989 = vsel %vm3341, %v9795, 0
  %9991 = vmatpush.bf16.xpose.msra.mxu0 0
  %9992 = vmatpush.bf16.xpose.msra.mxu0 0
  %9993 = vmatpush.bf16.xpose.msra.mxu0 0
  %9994 = vmatpush.bf16.xpose.msra.mxu0 0
  %9995 = vmatpush.bf16.xpose.msra.mxu0 0
  %9996 = vmatpush.bf16.xpose.msra.mxu0 0
  %9997 = vmatpush.bf16.xpose.msra.mxu0 0
  %9998 = vmatpush.bf16.xpose.msra.mxu0 %v9989
  %9999 = vmatmul.bf16.gmra.mxu0 %v9986
  %v10000 = vpop.f32.mrf.mxu0
  %v10001 = vadd.f32 0.0, %v10000
  %v10002 = vpop.f32.mrf.mxu0
  %10003 = vdwg.mxu0
  %v10005 = vsel %vm3341, %v9764, 0
  %v10008 = vsel %vm3341, %v9796, 0
  %10010 = vmatpush.bf16.xpose.msra.mxu0 0
  %10011 = vmatpush.bf16.xpose.msra.mxu0 0
  %10012 = vmatpush.bf16.xpose.msra.mxu0 0
  %10013 = vmatpush.bf16.xpose.msra.mxu0 0
  %10014 = vmatpush.bf16.xpose.msra.mxu0 0
  %10015 = vmatpush.bf16.xpose.msra.mxu0 0
  %10016 = vmatpush.bf16.xpose.msra.mxu0 0
  %10017 = vmatpush.bf16.xpose.msra.mxu0 %v10008
  %10018 = vmatmul.bf16.gmra.mxu0 %v10005
  %v10019 = vpop.f32.mrf.mxu0
  %v10020 = vadd.f32 0.0, %v10019
  %v10021 = vpop.f32.mrf.mxu0
  %10022 = vdwg.mxu0
  %v10024 = vsel %vm3341, %v9765, 0
  %v10027 = vsel %vm3341, %v9797, 0
  %10029 = vmatpush.bf16.xpose.msra.mxu0 0
  %10030 = vmatpush.bf16.xpose.msra.mxu0 0
  %10031 = vmatpush.bf16.xpose.msra.mxu0 0
  %10032 = vmatpush.bf16.xpose.msra.mxu0 0
  %10033 = vmatpush.bf16.xpose.msra.mxu0 0
  %10034 = vmatpush.bf16.xpose.msra.mxu0 0
  %10035 = vmatpush.bf16.xpose.msra.mxu0 0
  %10036 = vmatpush.bf16.xpose.msra.mxu0 %v10027
  %10037 = vmatmul.bf16.gmra.mxu0 %v10024
  %v10038 = vpop.f32.mrf.mxu0
  %v10039 = vadd.f32 0.0, %v10038
  %v10040 = vpop.f32.mrf.mxu0
  %10041 = vdwg.mxu0
  %v10043 = vsel %vm3341, %v9766, 0
  %v10046 = vsel %vm3341, %v9798, 0
  %10048 = vmatpush.bf16.xpose.msra.mxu0 0
  %10049 = vmatpush.bf16.xpose.msra.mxu0 0
  %10050 = vmatpush.bf16.xpose.msra.mxu0 0
  %10051 = vmatpush.bf16.xpose.msra.mxu0 0
  %10052 = vmatpush.bf16.xpose.msra.mxu0 0
  %10053 = vmatpush.bf16.xpose.msra.mxu0 0
  %10054 = vmatpush.bf16.xpose.msra.mxu0 0
  %10055 = vmatpush.bf16.xpose.msra.mxu0 %v10046
  %10056 = vmatmul.bf16.gmra.mxu0 %v10043
  %v10057 = vpop.f32.mrf.mxu0
  %v10058 = vadd.f32 0.0, %v10057
  %v10059 = vpop.f32.mrf.mxu0
  %10060 = vdwg.mxu0
  %v10062 = vsel %vm3341, %v9767, 0
  %v10065 = vsel %vm3341, %v9799, 0
  %10067 = vmatpush.bf16.xpose.msra.mxu0 0
  %10068 = vmatpush.bf16.xpose.msra.mxu0 0
  %10069 = vmatpush.bf16.xpose.msra.mxu0 0
  %10070 = vmatpush.bf16.xpose.msra.mxu0 0
  %10071 = vmatpush.bf16.xpose.msra.mxu0 0
  %10072 = vmatpush.bf16.xpose.msra.mxu0 0
  %10073 = vmatpush.bf16.xpose.msra.mxu0 0
  %10074 = vmatpush.bf16.xpose.msra.mxu0 %v10065
  %10075 = vmatmul.bf16.gmra.mxu0 %v10062
  %v10076 = vpop.f32.mrf.mxu0
  %v10077 = vadd.f32 0.0, %v10076
  %v10078 = vpop.f32.mrf.mxu0
  %10079 = vdwg.mxu0
  %v10081 = vsel %vm3341, %v9768, 0
  %v10084 = vsel %vm3341, %v9800, 0
  %10086 = vmatpush.bf16.xpose.msra.mxu0 0
  %10087 = vmatpush.bf16.xpose.msra.mxu0 0
  %10088 = vmatpush.bf16.xpose.msra.mxu0 0
  %10089 = vmatpush.bf16.xpose.msra.mxu0 0
  %10090 = vmatpush.bf16.xpose.msra.mxu0 0
  %10091 = vmatpush.bf16.xpose.msra.mxu0 0
  %10092 = vmatpush.bf16.xpose.msra.mxu0 0
  %10093 = vmatpush.bf16.xpose.msra.mxu0 %v10084
  %10094 = vmatmul.bf16.gmra.mxu0 %v10081
  %v10095 = vpop.f32.mrf.mxu0
  %v10096 = vadd.f32 0.0, %v10095
  %v10097 = vpop.f32.mrf.mxu0
  %10098 = vdwg.mxu0
  %v10100 = vsel %vm3341, %v9769, 0
  %v10103 = vsel %vm3341, %v9801, 0
  %10105 = vmatpush.bf16.xpose.msra.mxu0 0
  %10106 = vmatpush.bf16.xpose.msra.mxu0 0
  %10107 = vmatpush.bf16.xpose.msra.mxu0 0
  %10108 = vmatpush.bf16.xpose.msra.mxu0 0
  %10109 = vmatpush.bf16.xpose.msra.mxu0 0
  %10110 = vmatpush.bf16.xpose.msra.mxu0 0
  %10111 = vmatpush.bf16.xpose.msra.mxu0 0
  %10112 = vmatpush.bf16.xpose.msra.mxu0 %v10103
  %10113 = vmatmul.bf16.gmra.mxu0 %v10100
  %v10114 = vpop.f32.mrf.mxu0
  %v10115 = vadd.f32 0.0, %v10114
  %v10116 = vpop.f32.mrf.mxu0
  %10117 = vdwg.mxu0
  %v10119 = vsel %vm3341, %v9770, 0
  %v10122 = vsel %vm3341, %v9802, 0
  %10124 = vmatpush.bf16.xpose.msra.mxu0 0
  %10125 = vmatpush.bf16.xpose.msra.mxu0 0
  %10126 = vmatpush.bf16.xpose.msra.mxu0 0
  %10127 = vmatpush.bf16.xpose.msra.mxu0 0
  %10128 = vmatpush.bf16.xpose.msra.mxu0 0
  %10129 = vmatpush.bf16.xpose.msra.mxu0 0
  %10130 = vmatpush.bf16.xpose.msra.mxu0 0
  %10131 = vmatpush.bf16.xpose.msra.mxu0 %v10122
  %10132 = vmatmul.bf16.gmra.mxu0 %v10119
  %v10133 = vpop.f32.mrf.mxu0
  %v10134 = vadd.f32 0.0, %v10133
  %v10135 = vpop.f32.mrf.mxu0
  %10136 = vdwg.mxu0
  %v10138 = vsel %vm3341, %v9771, 0
  %v10141 = vsel %vm3341, %v9803, 0
  %10143 = vmatpush.bf16.xpose.msra.mxu0 0
  %10144 = vmatpush.bf16.xpose.msra.mxu0 0
  %10145 = vmatpush.bf16.xpose.msra.mxu0 0
  %10146 = vmatpush.bf16.xpose.msra.mxu0 0
  %10147 = vmatpush.bf16.xpose.msra.mxu0 0
  %10148 = vmatpush.bf16.xpose.msra.mxu0 0
  %10149 = vmatpush.bf16.xpose.msra.mxu0 0
  %10150 = vmatpush.bf16.xpose.msra.mxu0 %v10141
  %10151 = vmatmul.bf16.gmra.mxu0 %v10138
  %v10152 = vpop.f32.mrf.mxu0
  %v10153 = vadd.f32 0.0, %v10152
  %v10154 = vpop.f32.mrf.mxu0
  %10155 = vdwg.mxu0
  %v10157 = vsel %vm3341, %v9772, 0
  %v10160 = vsel %vm3341, %v9804, 0
  %10162 = vmatpush.bf16.xpose.msra.mxu0 0
  %10163 = vmatpush.bf16.xpose.msra.mxu0 0
  %10164 = vmatpush.bf16.xpose.msra.mxu0 0
  %10165 = vmatpush.bf16.xpose.msra.mxu0 0
  %10166 = vmatpush.bf16.xpose.msra.mxu0 0
  %10167 = vmatpush.bf16.xpose.msra.mxu0 0
  %10168 = vmatpush.bf16.xpose.msra.mxu0 0
  %10169 = vmatpush.bf16.xpose.msra.mxu0 %v10160
  %10170 = vmatmul.bf16.gmra.mxu0 %v10157
  %v10171 = vpop.f32.mrf.mxu0
  %v10172 = vadd.f32 0.0, %v10171
  %v10173 = vpop.f32.mrf.mxu0
  %10174 = vdwg.mxu0
  %v10176 = vsel %vm3341, %v9773, 0
  %v10179 = vsel %vm3341, %v9805, 0
  %10181 = vmatpush.bf16.xpose.msra.mxu0 0
  %10182 = vmatpush.bf16.xpose.msra.mxu0 0
  %10183 = vmatpush.bf16.xpose.msra.mxu0 0
  %10184 = vmatpush.bf16.xpose.msra.mxu0 0
  %10185 = vmatpush.bf16.xpose.msra.mxu0 0
  %10186 = vmatpush.bf16.xpose.msra.mxu0 0
  %10187 = vmatpush.bf16.xpose.msra.mxu0 0
  %10188 = vmatpush.bf16.xpose.msra.mxu0 %v10179
  %10189 = vmatmul.bf16.gmra.mxu0 %v10176
  %v10190 = vpop.f32.mrf.mxu0
  %v10191 = vadd.f32 0.0, %v10190
  %v10192 = vpop.f32.mrf.mxu0
  %10193 = vdwg.mxu0
  %v10195 = vsel %vm3341, %v9774, 0
  %v10198 = vsel %vm3341, %v9806, 0
  %10200 = vmatpush.bf16.xpose.msra.mxu0 0
  %10201 = vmatpush.bf16.xpose.msra.mxu0 0
  %10202 = vmatpush.bf16.xpose.msra.mxu0 0
  %10203 = vmatpush.bf16.xpose.msra.mxu0 0
  %10204 = vmatpush.bf16.xpose.msra.mxu0 0
  %10205 = vmatpush.bf16.xpose.msra.mxu0 0
  %10206 = vmatpush.bf16.xpose.msra.mxu0 0
  %10207 = vmatpush.bf16.xpose.msra.mxu0 %v10198
  %10208 = vmatmul.bf16.gmra.mxu0 %v10195
  %v10209 = vpop.f32.mrf.mxu0
  %v10210 = vadd.f32 0.0, %v10209
  %v10211 = vpop.f32.mrf.mxu0
  %10212 = vdwg.mxu0
  %v10214 = vsel %vm3341, %v9775, 0
  %v10217 = vsel %vm3341, %v9807, 0
  %10219 = vmatpush.bf16.xpose.msra.mxu0 0
  %10220 = vmatpush.bf16.xpose.msra.mxu0 0
  %10221 = vmatpush.bf16.xpose.msra.mxu0 0
  %10222 = vmatpush.bf16.xpose.msra.mxu0 0
  %10223 = vmatpush.bf16.xpose.msra.mxu0 0
  %10224 = vmatpush.bf16.xpose.msra.mxu0 0
  %10225 = vmatpush.bf16.xpose.msra.mxu0 0
  %10226 = vmatpush.bf16.xpose.msra.mxu0 %v10217
  %10227 = vmatmul.bf16.gmra.mxu0 %v10214
  %v10228 = vpop.f32.mrf.mxu0
  %v10229 = vadd.f32 0.0, %v10228
  %v10230 = vpop.f32.mrf.mxu0
  %10231 = vdwg.mxu0
  %v10233 = vsel %vm3341, %v9776, 0
  %v10236 = vsel %vm3341, %v9808, 0
  %10238 = vmatpush.bf16.xpose.msra.mxu0 0
  %10239 = vmatpush.bf16.xpose.msra.mxu0 0
  %10240 = vmatpush.bf16.xpose.msra.mxu0 0
  %10241 = vmatpush.bf16.xpose.msra.mxu0 0
  %10242 = vmatpush.bf16.xpose.msra.mxu0 0
  %10243 = vmatpush.bf16.xpose.msra.mxu0 0
  %10244 = vmatpush.bf16.xpose.msra.mxu0 0
  %10245 = vmatpush.bf16.xpose.msra.mxu0 %v10236
  %10246 = vmatmul.bf16.gmra.mxu0 %v10233
  %v10247 = vpop.f32.mrf.mxu0
  %v10248 = vadd.f32 0.0, %v10247
  %v10249 = vpop.f32.mrf.mxu0
  %10250 = vdwg.mxu0
  %v10252 = vsel %vm3341, %v9777, 0
  %v10255 = vsel %vm3341, %v9809, 0
  %10257 = vmatpush.bf16.xpose.msra.mxu0 0
  %10258 = vmatpush.bf16.xpose.msra.mxu0 0
  %10259 = vmatpush.bf16.xpose.msra.mxu0 0
  %10260 = vmatpush.bf16.xpose.msra.mxu0 0
  %10261 = vmatpush.bf16.xpose.msra.mxu0 0
  %10262 = vmatpush.bf16.xpose.msra.mxu0 0
  %10263 = vmatpush.bf16.xpose.msra.mxu0 0
  %10264 = vmatpush.bf16.xpose.msra.mxu0 %v10255
  %10265 = vmatmul.bf16.gmra.mxu0 %v10252
  %v10266 = vpop.f32.mrf.mxu0
  %v10267 = vadd.f32 0.0, %v10266
  %v10268 = vpop.f32.mrf.mxu0
  %10269 = vdwg.mxu0
  %v10271 = vsel %vm3341, %v9778, 0
  %v10274 = vsel %vm3341, %v9810, 0
  %10276 = vmatpush.bf16.xpose.msra.mxu0 0
  %10277 = vmatpush.bf16.xpose.msra.mxu0 0
  %10278 = vmatpush.bf16.xpose.msra.mxu0 0
  %10279 = vmatpush.bf16.xpose.msra.mxu0 0
  %10280 = vmatpush.bf16.xpose.msra.mxu0 0
  %10281 = vmatpush.bf16.xpose.msra.mxu0 0
  %10282 = vmatpush.bf16.xpose.msra.mxu0 0
  %10283 = vmatpush.bf16.xpose.msra.mxu0 %v10274
  %10284 = vmatmul.bf16.gmra.mxu0 %v10271
  %v10285 = vpop.f32.mrf.mxu0
  %v10286 = vadd.f32 0.0, %v10285
  %v10287 = vpop.f32.mrf.mxu0
  %10288 = vdwg.mxu0
  %v10290 = vsel %vm3341, %v9779, 0
  %v10293 = vsel %vm3341, %v9811, 0
  %10295 = vmatpush.bf16.xpose.msra.mxu0 0
  %10296 = vmatpush.bf16.xpose.msra.mxu0 0
  %10297 = vmatpush.bf16.xpose.msra.mxu0 0
  %10298 = vmatpush.bf16.xpose.msra.mxu0 0
  %10299 = vmatpush.bf16.xpose.msra.mxu0 0
  %10300 = vmatpush.bf16.xpose.msra.mxu0 0
  %10301 = vmatpush.bf16.xpose.msra.mxu0 0
  %10302 = vmatpush.bf16.xpose.msra.mxu0 %v10293
  %10303 = vmatmul.bf16.gmra.mxu0 %v10290
  %v10304 = vpop.f32.mrf.mxu0
  %v10305 = vadd.f32 0.0, %v10304
  %v10306 = vpop.f32.mrf.mxu0
  %10307 = vdwg.mxu0
  %v10309 = vsel %vm3341, %v9780, 0
  %v10312 = vsel %vm3341, %v9812, 0
  %10314 = vmatpush.bf16.xpose.msra.mxu0 0
  %10315 = vmatpush.bf16.xpose.msra.mxu0 0
  %10316 = vmatpush.bf16.xpose.msra.mxu0 0
  %10317 = vmatpush.bf16.xpose.msra.mxu0 0
  %10318 = vmatpush.bf16.xpose.msra.mxu0 0
  %10319 = vmatpush.bf16.xpose.msra.mxu0 0
  %10320 = vmatpush.bf16.xpose.msra.mxu0 0
  %10321 = vmatpush.bf16.xpose.msra.mxu0 %v10312
  %10322 = vmatmul.bf16.gmra.mxu0 %v10309
  %v10323 = vpop.f32.mrf.mxu0
  %v10324 = vadd.f32 0.0, %v10323
  %v10325 = vpop.f32.mrf.mxu0
  %10326 = vdwg.mxu0
  %v10328 = vsel %vm3341, %v9781, 0
  %v10331 = vsel %vm3341, %v9813, 0
  %10333 = vmatpush.bf16.xpose.msra.mxu0 0
  %10334 = vmatpush.bf16.xpose.msra.mxu0 0
  %10335 = vmatpush.bf16.xpose.msra.mxu0 0
  %10336 = vmatpush.bf16.xpose.msra.mxu0 0
  %10337 = vmatpush.bf16.xpose.msra.mxu0 0
  %10338 = vmatpush.bf16.xpose.msra.mxu0 0
  %10339 = vmatpush.bf16.xpose.msra.mxu0 0
  %10340 = vmatpush.bf16.xpose.msra.mxu0 %v10331
  %10341 = vmatmul.bf16.gmra.mxu0 %v10328
  %v10342 = vpop.f32.mrf.mxu0
  %v10343 = vadd.f32 0.0, %v10342
  %v10344 = vpop.f32.mrf.mxu0
  %10345 = vdwg.mxu0
  %v10347 = vsel %vm3341, %v9782, 0
  %v10350 = vsel %vm3341, %v9814, 0
  %10352 = vmatpush.bf16.xpose.msra.mxu0 0
  %10353 = vmatpush.bf16.xpose.msra.mxu0 0
  %10354 = vmatpush.bf16.xpose.msra.mxu0 0
  %10355 = vmatpush.bf16.xpose.msra.mxu0 0
  %10356 = vmatpush.bf16.xpose.msra.mxu0 0
  %10357 = vmatpush.bf16.xpose.msra.mxu0 0
  %10358 = vmatpush.bf16.xpose.msra.mxu0 0
  %10359 = vmatpush.bf16.xpose.msra.mxu0 %v10350
  %10360 = vmatmul.bf16.gmra.mxu0 %v10347
  %v10361 = vpop.f32.mrf.mxu0
  %v10362 = vadd.f32 0.0, %v10361
  %v10363 = vpop.f32.mrf.mxu0
  %10364 = vdwg.mxu0
  %v10366 = vsel %vm3341, %v9783, 0
  %v10369 = vsel %vm3341, %v9815, 0
  %10371 = vmatpush.bf16.xpose.msra.mxu0 0
  %10372 = vmatpush.bf16.xpose.msra.mxu0 0
  %10373 = vmatpush.bf16.xpose.msra.mxu0 0
  %10374 = vmatpush.bf16.xpose.msra.mxu0 0
  %10375 = vmatpush.bf16.xpose.msra.mxu0 0
  %10376 = vmatpush.bf16.xpose.msra.mxu0 0
  %10377 = vmatpush.bf16.xpose.msra.mxu0 0
  %10378 = vmatpush.bf16.xpose.msra.mxu0 %v10369
  %10379 = vmatmul.bf16.gmra.mxu0 %v10366
  %v10380 = vpop.f32.mrf.mxu0
  %v10381 = vadd.f32 0.0, %v10380
  %v10382 = vpop.f32.mrf.mxu0
  %10383 = vdwg.mxu0
  %v10385 = vsel %vm3341, %v9784, 0
  %v10388 = vsel %vm3341, %v9816, 0
  %10390 = vmatpush.bf16.xpose.msra.mxu0 0
  %10391 = vmatpush.bf16.xpose.msra.mxu0 0
  %10392 = vmatpush.bf16.xpose.msra.mxu0 0
  %10393 = vmatpush.bf16.xpose.msra.mxu0 0
  %10394 = vmatpush.bf16.xpose.msra.mxu0 0
  %10395 = vmatpush.bf16.xpose.msra.mxu0 0
  %10396 = vmatpush.bf16.xpose.msra.mxu0 0
  %10397 = vmatpush.bf16.xpose.msra.mxu0 %v10388
  %10398 = vmatmul.bf16.gmra.mxu0 %v10385
  %v10399 = vpop.f32.mrf.mxu0
  %v10400 = vadd.f32 0.0, %v10399
  %v10401 = vpop.f32.mrf.mxu0
  %10402 = vdwg.mxu0
  %v10404 = vsel %vm3341, %v9785, 0
  %v10407 = vsel %vm3341, %v9817, 0
  %10409 = vmatpush.bf16.xpose.msra.mxu0 0
  %10410 = vmatpush.bf16.xpose.msra.mxu0 0
  %10411 = vmatpush.bf16.xpose.msra.mxu0 0
  %10412 = vmatpush.bf16.xpose.msra.mxu0 0
  %10413 = vmatpush.bf16.xpose.msra.mxu0 0
  %10414 = vmatpush.bf16.xpose.msra.mxu0 0
  %10415 = vmatpush.bf16.xpose.msra.mxu0 0
  %10416 = vmatpush.bf16.xpose.msra.mxu0 %v10407
  %10417 = vmatmul.bf16.gmra.mxu0 %v10404
  %v10418 = vpop.f32.mrf.mxu0
  %v10419 = vadd.f32 0.0, %v10418
  %v10420 = vpop.f32.mrf.mxu0
  %10421 = vdwg.mxu0
  %v10423 = vsel %vm3341, %v9786, 0
  %v10426 = vsel %vm3341, %v9818, 0
  %10428 = vmatpush.bf16.xpose.msra.mxu0 0
  %10429 = vmatpush.bf16.xpose.msra.mxu0 0
  %10430 = vmatpush.bf16.xpose.msra.mxu0 0
  %10431 = vmatpush.bf16.xpose.msra.mxu0 0
  %10432 = vmatpush.bf16.xpose.msra.mxu0 0
  %10433 = vmatpush.bf16.xpose.msra.mxu0 0
  %10434 = vmatpush.bf16.xpose.msra.mxu0 0
  %10435 = vmatpush.bf16.xpose.msra.mxu0 %v10426
  %10436 = vmatmul.bf16.gmra.mxu0 %v10423
  %v10437 = vpop.f32.mrf.mxu0
  %v10438 = vadd.f32 0.0, %v10437
  %v10439 = vpop.f32.mrf.mxu0
  %10440 = vdwg.mxu0
  %v10442 = vsel %vm3341, %v9787, 0
  %v10445 = vsel %vm3341, %v9819, 0
  %10447 = vmatpush.bf16.xpose.msra.mxu0 0
  %10448 = vmatpush.bf16.xpose.msra.mxu0 0
  %10449 = vmatpush.bf16.xpose.msra.mxu0 0
  %10450 = vmatpush.bf16.xpose.msra.mxu0 0
  %10451 = vmatpush.bf16.xpose.msra.mxu0 0
  %10452 = vmatpush.bf16.xpose.msra.mxu0 0
  %10453 = vmatpush.bf16.xpose.msra.mxu0 0
  %10454 = vmatpush.bf16.xpose.msra.mxu0 %v10445
  %10455 = vmatmul.bf16.gmra.mxu0 %v10442
  %v10456 = vpop.f32.mrf.mxu0
  %v10457 = vadd.f32 0.0, %v10456
  %v10458 = vpop.f32.mrf.mxu0
  %10459 = vdwg.mxu0
  %v10460 = vmul.f32 %v9868, 0.35355338
  %v10461 = vmul.f32 %v9887, 0.35355338
  %v10462 = vmul.f32 %v9906, 0.35355338
  %v10463 = vmul.f32 %v9925, 0.35355338
  %v10464 = vmul.f32 %v9944, 0.35355338
  %v10465 = vmul.f32 %v9963, 0.35355338
  %v10466 = vmul.f32 %v9982, 0.35355338
  %v10467 = vmul.f32 %v10001, 0.35355338
  %v10468 = vmul.f32 %v10020, 0.35355338
  %v10469 = vmul.f32 %v10039, 0.35355338
  %v10470 = vmul.f32 %v10058, 0.35355338
  %v10471 = vmul.f32 %v10077, 0.35355338
  %v10472 = vmul.f32 %v10096, 0.35355338
  %v10473 = vmul.f32 %v10115, 0.35355338
  %v10474 = vmul.f32 %v10134, 0.35355338
  %v10475 = vmul.f32 %v10153, 0.35355338
  %v10476 = vmul.f32 %v10172, 0.35355338
  %v10477 = vmul.f32 %v10191, 0.35355338
  %v10478 = vmul.f32 %v10210, 0.35355338
  %v10479 = vmul.f32 %v10229, 0.35355338
  %v10480 = vmul.f32 %v10248, 0.35355338
  %v10481 = vmul.f32 %v10267, 0.35355338
  %v10482 = vmul.f32 %v10286, 0.35355338
  %v10483 = vmul.f32 %v10305, 0.35355338
  %v10484 = vmul.f32 %v10324, 0.35355338
  %v10485 = vmul.f32 %v10343, 0.35355338
  %v10486 = vmul.f32 %v10362, 0.35355338
  %v10487 = vmul.f32 %v10381, 0.35355338
  %v10488 = vmul.f32 %v10400, 0.35355338
  %v10489 = vmul.f32 %v10419, 0.35355338
  %v10490 = vmul.f32 %v10438, 0.35355338
  %v10491 = vmul.f32 %v10457, 0.35355338
  %v10492 = vsel %vm3341, %v10460, -inf
  %10493 = vmax.xlane.f32.xlu0 %v10492
  %v10494 = vpop.xlane.xlu0 %10493
  %v10495 = vsel %vm3341, %v10461, -inf
  %10496 = vmax.xlane.f32.xlu0 %v10495
  %v10497 = vpop.xlane.xlu0 %10496
  %v10498 = vsel %vm3341, %v10462, -inf
  %10499 = vmax.xlane.f32.xlu0 %v10498
  %v10500 = vpop.xlane.xlu0 %10499
  %v10501 = vsel %vm3341, %v10463, -inf
  %10502 = vmax.xlane.f32.xlu0 %v10501
  %v10503 = vpop.xlane.xlu0 %10502
  %v10504 = vsel %vm3341, %v10464, -inf
  %10505 = vmax.xlane.f32.xlu0 %v10504
  %v10506 = vpop.xlane.xlu0 %10505
  %v10507 = vsel %vm3341, %v10465, -inf
  %10508 = vmax.xlane.f32.xlu0 %v10507
  %v10509 = vpop.xlane.xlu0 %10508
  %v10510 = vsel %vm3341, %v10466, -inf
  %10511 = vmax.xlane.f32.xlu0 %v10510
  %v10512 = vpop.xlane.xlu0 %10511
  %v10513 = vsel %vm3341, %v10467, -inf
  %10514 = vmax.xlane.f32.xlu0 %v10513
  %v10515 = vpop.xlane.xlu0 %10514
  %v10516 = vsel %vm3341, %v10468, -inf
  %10517 = vmax.xlane.f32.xlu0 %v10516
  %v10518 = vpop.xlane.xlu0 %10517
  %v10519 = vsel %vm3341, %v10469, -inf
  %10520 = vmax.xlane.f32.xlu0 %v10519
  %v10521 = vpop.xlane.xlu0 %10520
  %v10522 = vsel %vm3341, %v10470, -inf
  %10523 = vmax.xlane.f32.xlu0 %v10522
  %v10524 = vpop.xlane.xlu0 %10523
  %v10525 = vsel %vm3341, %v10471, -inf
  %10526 = vmax.xlane.f32.xlu0 %v10525
  %v10527 = vpop.xlane.xlu0 %10526
  %v10528 = vsel %vm3341, %v10472, -inf
  %10529 = vmax.xlane.f32.xlu0 %v10528
  %v10530 = vpop.xlane.xlu0 %10529
  %v10531 = vsel %vm3341, %v10473, -inf
  %10532 = vmax.xlane.f32.xlu0 %v10531
  %v10533 = vpop.xlane.xlu0 %10532
  %v10534 = vsel %vm3341, %v10474, -inf
  %10535 = vmax.xlane.f32.xlu0 %v10534
  %v10536 = vpop.xlane.xlu0 %10535
  %v10537 = vsel %vm3341, %v10475, -inf
  %10538 = vmax.xlane.f32.xlu0 %v10537
  %v10539 = vpop.xlane.xlu0 %10538
  %v10540 = vsel %vm3341, %v10476, -inf
  %10541 = vmax.xlane.f32.xlu0 %v10540
  %v10542 = vpop.xlane.xlu0 %10541
  %v10543 = vsel %vm3341, %v10477, -inf
  %10544 = vmax.xlane.f32.xlu0 %v10543
  %v10545 = vpop.xlane.xlu0 %10544
  %v10546 = vsel %vm3341, %v10478, -inf
  %10547 = vmax.xlane.f32.xlu0 %v10546
  %v10548 = vpop.xlane.xlu0 %10547
  %v10549 = vsel %vm3341, %v10479, -inf
  %10550 = vmax.xlane.f32.xlu0 %v10549
  %v10551 = vpop.xlane.xlu0 %10550
  %v10552 = vsel %vm3341, %v10480, -inf
  %10553 = vmax.xlane.f32.xlu0 %v10552
  %v10554 = vpop.xlane.xlu0 %10553
  %v10555 = vsel %vm3341, %v10481, -inf
  %10556 = vmax.xlane.f32.xlu0 %v10555
  %v10557 = vpop.xlane.xlu0 %10556
  %v10558 = vsel %vm3341, %v10482, -inf
  %10559 = vmax.xlane.f32.xlu0 %v10558
  %v10560 = vpop.xlane.xlu0 %10559
  %v10561 = vsel %vm3341, %v10483, -inf
  %10562 = vmax.xlane.f32.xlu0 %v10561
  %v10563 = vpop.xlane.xlu0 %10562
  %v10564 = vsel %vm3341, %v10484, -inf
  %10565 = vmax.xlane.f32.xlu0 %v10564
  %v10566 = vpop.xlane.xlu0 %10565
  %v10567 = vsel %vm3341, %v10485, -inf
  %10568 = vmax.xlane.f32.xlu0 %v10567
  %v10569 = vpop.xlane.xlu0 %10568
  %v10570 = vsel %vm3341, %v10486, -inf
  %10571 = vmax.xlane.f32.xlu0 %v10570
  %v10572 = vpop.xlane.xlu0 %10571
  %v10573 = vsel %vm3341, %v10487, -inf
  %10574 = vmax.xlane.f32.xlu0 %v10573
  %v10575 = vpop.xlane.xlu0 %10574
  %v10576 = vsel %vm3341, %v10488, -inf
  %10577 = vmax.xlane.f32.xlu0 %v10576
  %v10578 = vpop.xlane.xlu0 %10577
  %v10579 = vsel %vm3341, %v10489, -inf
  %10580 = vmax.xlane.f32.xlu0 %v10579
  %v10581 = vpop.xlane.xlu0 %10580
  %v10582 = vsel %vm3341, %v10490, -inf
  %10583 = vmax.xlane.f32.xlu0 %v10582
  %v10584 = vpop.xlane.xlu0 %10583
  %v10585 = vsel %vm3341, %v10491, -inf
  %10586 = vmax.xlane.f32.xlu0 %v10585
  %v10587 = vpop.xlane.xlu0 %10586
  %v10588 = vsub.f32 %v10460, %v10494
  %v10589 = vsub.f32 %v10461, %v10497
  %v10590 = vsub.f32 %v10462, %v10500
  %v10591 = vsub.f32 %v10463, %v10503
  %v10592 = vsub.f32 %v10464, %v10506
  %v10593 = vsub.f32 %v10465, %v10509
  %v10594 = vsub.f32 %v10466, %v10512
  %v10595 = vsub.f32 %v10467, %v10515
  %v10596 = vsub.f32 %v10468, %v10518
  %v10597 = vsub.f32 %v10469, %v10521
  %v10598 = vsub.f32 %v10470, %v10524
  %v10599 = vsub.f32 %v10471, %v10527
  %v10600 = vsub.f32 %v10472, %v10530
  %v10601 = vsub.f32 %v10473, %v10533
  %v10602 = vsub.f32 %v10474, %v10536
  %v10603 = vsub.f32 %v10475, %v10539
  %v10604 = vsub.f32 %v10476, %v10542
  %v10605 = vsub.f32 %v10477, %v10545
  %v10606 = vsub.f32 %v10478, %v10548
  %v10607 = vsub.f32 %v10479, %v10551
  %v10608 = vsub.f32 %v10480, %v10554
  %v10609 = vsub.f32 %v10481, %v10557
  %v10610 = vsub.f32 %v10482, %v10560
  %v10611 = vsub.f32 %v10483, %v10563
  %v10612 = vsub.f32 %v10484, %v10566
  %v10613 = vsub.f32 %v10485, %v10569
  %v10614 = vsub.f32 %v10486, %v10572
  %v10615 = vsub.f32 %v10487, %v10575
  %v10616 = vsub.f32 %v10488, %v10578
  %v10617 = vsub.f32 %v10489, %v10581
  %v10618 = vsub.f32 %v10490, %v10584
  %v10619 = vsub.f32 %v10491, %v10587
  %v10620 = vmul.f32 %v10588, 1.442695
  %v10621 = vpow.pop %v10620
  %v10622 = vmul.f32 %v10589, 1.442695
  %v10623 = vpow.pop %v10622
  %v10624 = vmul.f32 %v10590, 1.442695
  %v10625 = vpow.pop %v10624
  %v10626 = vmul.f32 %v10591, 1.442695
  %v10627 = vpow.pop %v10626
  %v10628 = vmul.f32 %v10592, 1.442695
  %v10629 = vpow.pop %v10628
  %v10630 = vmul.f32 %v10593, 1.442695
  %v10631 = vpow.pop %v10630
  %v10632 = vmul.f32 %v10594, 1.442695
  %v10633 = vpow.pop %v10632
  %v10634 = vmul.f32 %v10595, 1.442695
  %v10635 = vpow.pop %v10634
  %v10636 = vmul.f32 %v10596, 1.442695
  %v10637 = vpow.pop %v10636
  %v10638 = vmul.f32 %v10597, 1.442695
  %v10639 = vpow.pop %v10638
  %v10640 = vmul.f32 %v10598, 1.442695
  %v10641 = vpow.pop %v10640
  %v10642 = vmul.f32 %v10599, 1.442695
  %v10643 = vpow.pop %v10642
  %v10644 = vmul.f32 %v10600, 1.442695
  %v10645 = vpow.pop %v10644
  %v10646 = vmul.f32 %v10601, 1.442695
  %v10647 = vpow.pop %v10646
  %v10648 = vmul.f32 %v10602, 1.442695
  %v10649 = vpow.pop %v10648
  %v10650 = vmul.f32 %v10603, 1.442695
  %v10651 = vpow.pop %v10650
  %v10652 = vmul.f32 %v10604, 1.442695
  %v10653 = vpow.pop %v10652
  %v10654 = vmul.f32 %v10605, 1.442695
  %v10655 = vpow.pop %v10654
  %v10656 = vmul.f32 %v10606, 1.442695
  %v10657 = vpow.pop %v10656
  %v10658 = vmul.f32 %v10607, 1.442695
  %v10659 = vpow.pop %v10658
  %v10660 = vmul.f32 %v10608, 1.442695
  %v10661 = vpow.pop %v10660
  %v10662 = vmul.f32 %v10609, 1.442695
  %v10663 = vpow.pop %v10662
  %v10664 = vmul.f32 %v10610, 1.442695
  %v10665 = vpow.pop %v10664
  %v10666 = vmul.f32 %v10611, 1.442695
  %v10667 = vpow.pop %v10666
  %v10668 = vmul.f32 %v10612, 1.442695
  %v10669 = vpow.pop %v10668
  %v10670 = vmul.f32 %v10613, 1.442695
  %v10671 = vpow.pop %v10670
  %v10672 = vmul.f32 %v10614, 1.442695
  %v10673 = vpow.pop %v10672
  %v10674 = vmul.f32 %v10615, 1.442695
  %v10675 = vpow.pop %v10674
  %v10676 = vmul.f32 %v10616, 1.442695
  %v10677 = vpow.pop %v10676
  %v10678 = vmul.f32 %v10617, 1.442695
  %v10679 = vpow.pop %v10678
  %v10680 = vmul.f32 %v10618, 1.442695
  %v10681 = vpow.pop %v10680
  %v10682 = vmul.f32 %v10619, 1.442695
  %v10683 = vpow.pop %v10682
  %v10684 = vsel %vm3341, %v10621, 0.0
  %10685 = vadd.xlane.f32.xlu0 %v10684
  %v10686 = vpop.xlane.xlu0 %10685
  %v10687 = vsel %vm3341, %v10623, 0.0
  %10688 = vadd.xlane.f32.xlu0 %v10687
  %v10689 = vpop.xlane.xlu0 %10688
  %v10690 = vsel %vm3341, %v10625, 0.0
  %10691 = vadd.xlane.f32.xlu0 %v10690
  %v10692 = vpop.xlane.xlu0 %10691
  %v10693 = vsel %vm3341, %v10627, 0.0
  %10694 = vadd.xlane.f32.xlu0 %v10693
  %v10695 = vpop.xlane.xlu0 %10694
  %v10696 = vsel %vm3341, %v10629, 0.0
  %10697 = vadd.xlane.f32.xlu0 %v10696
  %v10698 = vpop.xlane.xlu0 %10697
  %v10699 = vsel %vm3341, %v10631, 0.0
  %10700 = vadd.xlane.f32.xlu0 %v10699
  %v10701 = vpop.xlane.xlu0 %10700
  %v10702 = vsel %vm3341, %v10633, 0.0
  %10703 = vadd.xlane.f32.xlu0 %v10702
  %v10704 = vpop.xlane.xlu0 %10703
  %v10705 = vsel %vm3341, %v10635, 0.0
  %10706 = vadd.xlane.f32.xlu0 %v10705
  %v10707 = vpop.xlane.xlu0 %10706
  %v10708 = vsel %vm3341, %v10637, 0.0
  %10709 = vadd.xlane.f32.xlu0 %v10708
  %v10710 = vpop.xlane.xlu0 %10709
  %v10711 = vsel %vm3341, %v10639, 0.0
  %10712 = vadd.xlane.f32.xlu0 %v10711
  %v10713 = vpop.xlane.xlu0 %10712
  %v10714 = vsel %vm3341, %v10641, 0.0
  %10715 = vadd.xlane.f32.xlu0 %v10714
  %v10716 = vpop.xlane.xlu0 %10715
  %v10717 = vsel %vm3341, %v10643, 0.0
  %10718 = vadd.xlane.f32.xlu0 %v10717
  %v10719 = vpop.xlane.xlu0 %10718
  %v10720 = vsel %vm3341, %v10645, 0.0
  %10721 = vadd.xlane.f32.xlu0 %v10720
  %v10722 = vpop.xlane.xlu0 %10721
  %v10723 = vsel %vm3341, %v10647, 0.0
  %10724 = vadd.xlane.f32.xlu0 %v10723
  %v10725 = vpop.xlane.xlu0 %10724
  %v10726 = vsel %vm3341, %v10649, 0.0
  %10727 = vadd.xlane.f32.xlu0 %v10726
  %v10728 = vpop.xlane.xlu0 %10727
  %v10729 = vsel %vm3341, %v10651, 0.0
  %10730 = vadd.xlane.f32.xlu0 %v10729
  %v10731 = vpop.xlane.xlu0 %10730
  %v10732 = vsel %vm3341, %v10653, 0.0
  %10733 = vadd.xlane.f32.xlu0 %v10732
  %v10734 = vpop.xlane.xlu0 %10733
  %v10735 = vsel %vm3341, %v10655, 0.0
  %10736 = vadd.xlane.f32.xlu0 %v10735
  %v10737 = vpop.xlane.xlu0 %10736
  %v10738 = vsel %vm3341, %v10657, 0.0
  %10739 = vadd.xlane.f32.xlu0 %v10738
  %v10740 = vpop.xlane.xlu0 %10739
  %v10741 = vsel %vm3341, %v10659, 0.0
  %10742 = vadd.xlane.f32.xlu0 %v10741
  %v10743 = vpop.xlane.xlu0 %10742
  %v10744 = vsel %vm3341, %v10661, 0.0
  %10745 = vadd.xlane.f32.xlu0 %v10744
  %v10746 = vpop.xlane.xlu0 %10745
  %v10747 = vsel %vm3341, %v10663, 0.0
  %10748 = vadd.xlane.f32.xlu0 %v10747
  %v10749 = vpop.xlane.xlu0 %10748
  %v10750 = vsel %vm3341, %v10665, 0.0
  %10751 = vadd.xlane.f32.xlu0 %v10750
  %v10752 = vpop.xlane.xlu0 %10751
  %v10753 = vsel %vm3341, %v10667, 0.0
  %10754 = vadd.xlane.f32.xlu0 %v10753
  %v10755 = vpop.xlane.xlu0 %10754
  %v10756 = vsel %vm3341, %v10669, 0.0
  %10757 = vadd.xlane.f32.xlu0 %v10756
  %v10758 = vpop.xlane.xlu0 %10757
  %v10759 = vsel %vm3341, %v10671, 0.0
  %10760 = vadd.xlane.f32.xlu0 %v10759
  %v10761 = vpop.xlane.xlu0 %10760
  %v10762 = vsel %vm3341, %v10673, 0.0
  %10763 = vadd.xlane.f32.xlu0 %v10762
  %v10764 = vpop.xlane.xlu0 %10763
  %v10765 = vsel %vm3341, %v10675, 0.0
  %10766 = vadd.xlane.f32.xlu0 %v10765
  %v10767 = vpop.xlane.xlu0 %10766
  %v10768 = vsel %vm3341, %v10677, 0.0
  %10769 = vadd.xlane.f32.xlu0 %v10768
  %v10770 = vpop.xlane.xlu0 %10769
  %v10771 = vsel %vm3341, %v10679, 0.0
  %10772 = vadd.xlane.f32.xlu0 %v10771
  %v10773 = vpop.xlane.xlu0 %10772
  %v10774 = vsel %vm3341, %v10681, 0.0
  %10775 = vadd.xlane.f32.xlu0 %v10774
  %v10776 = vpop.xlane.xlu0 %10775
  %v10777 = vsel %vm3341, %v10683, 0.0
  %10778 = vadd.xlane.f32.xlu0 %v10777
  %v10779 = vpop.xlane.xlu0 %10778
  %v10780 = vrcp.pop %v10686
  %v10781 = vrcp.pop %v10689
  %v10782 = vrcp.pop %v10692
  %v10783 = vrcp.pop %v10695
  %v10784 = vrcp.pop %v10698
  %v10785 = vrcp.pop %v10701
  %v10786 = vrcp.pop %v10704
  %v10787 = vrcp.pop %v10707
  %v10788 = vrcp.pop %v10710
  %v10789 = vrcp.pop %v10713
  %v10790 = vrcp.pop %v10716
  %v10791 = vrcp.pop %v10719
  %v10792 = vrcp.pop %v10722
  %v10793 = vrcp.pop %v10725
  %v10794 = vrcp.pop %v10728
  %v10795 = vrcp.pop %v10731
  %v10796 = vrcp.pop %v10734
  %v10797 = vrcp.pop %v10737
  %v10798 = vrcp.pop %v10740
  %v10799 = vrcp.pop %v10743
  %v10800 = vrcp.pop %v10746
  %v10801 = vrcp.pop %v10749
  %v10802 = vrcp.pop %v10752
  %v10803 = vrcp.pop %v10755
  %v10804 = vrcp.pop %v10758
  %v10805 = vrcp.pop %v10761
  %v10806 = vrcp.pop %v10764
  %v10807 = vrcp.pop %v10767
  %v10808 = vrcp.pop %v10770
  %v10809 = vrcp.pop %v10773
  %v10810 = vrcp.pop %v10776
  %v10811 = vrcp.pop %v10779
  %v10812 = vmul.f32 %v10621, %v10780
  %v10813 = vmul.f32 %v10623, %v10781
  %v10814 = vmul.f32 %v10625, %v10782
  %v10815 = vmul.f32 %v10627, %v10783
  %v10816 = vmul.f32 %v10629, %v10784
  %v10817 = vmul.f32 %v10631, %v10785
  %v10818 = vmul.f32 %v10633, %v10786
  %v10819 = vmul.f32 %v10635, %v10787
  %v10820 = vmul.f32 %v10637, %v10788
  %v10821 = vmul.f32 %v10639, %v10789
  %v10822 = vmul.f32 %v10641, %v10790
  %v10823 = vmul.f32 %v10643, %v10791
  %v10824 = vmul.f32 %v10645, %v10792
  %v10825 = vmul.f32 %v10647, %v10793
  %v10826 = vmul.f32 %v10649, %v10794
  %v10827 = vmul.f32 %v10651, %v10795
  %v10828 = vmul.f32 %v10653, %v10796
  %v10829 = vmul.f32 %v10655, %v10797
  %v10830 = vmul.f32 %v10657, %v10798
  %v10831 = vmul.f32 %v10659, %v10799
  %v10832 = vmul.f32 %v10661, %v10800
  %v10833 = vmul.f32 %v10663, %v10801
  %v10834 = vmul.f32 %v10665, %v10802
  %v10835 = vmul.f32 %v10667, %v10803
  %v10836 = vmul.f32 %v10669, %v10804
  %v10837 = vmul.f32 %v10671, %v10805
  %v10838 = vmul.f32 %v10673, %v10806
  %v10839 = vmul.f32 %v10675, %v10807
  %v10840 = vmul.f32 %v10677, %v10808
  %v10841 = vmul.f32 %v10679, %v10809
  %v10842 = vmul.f32 %v10681, %v10810
  %v10843 = vmul.f32 %v10683, %v10811
  %v10844 = vpack.c.bf16 %v10812, %v10812
  %v10845 = vpack.c.bf16 %v10813, %v10813
  %v10846 = vpack.c.bf16 %v10814, %v10814
  %v10847 = vpack.c.bf16 %v10815, %v10815
  %v10848 = vpack.c.bf16 %v10816, %v10816
  %v10849 = vpack.c.bf16 %v10817, %v10817
  %v10850 = vpack.c.bf16 %v10818, %v10818
  %v10851 = vpack.c.bf16 %v10819, %v10819
  %v10852 = vpack.c.bf16 %v10820, %v10820
  %v10853 = vpack.c.bf16 %v10821, %v10821
  %v10854 = vpack.c.bf16 %v10822, %v10822
  %v10855 = vpack.c.bf16 %v10823, %v10823
  %v10856 = vpack.c.bf16 %v10824, %v10824
  %v10857 = vpack.c.bf16 %v10825, %v10825
  %v10858 = vpack.c.bf16 %v10826, %v10826
  %v10859 = vpack.c.bf16 %v10827, %v10827
  %v10860 = vpack.c.bf16 %v10828, %v10828
  %v10861 = vpack.c.bf16 %v10829, %v10829
  %v10862 = vpack.c.bf16 %v10830, %v10830
  %v10863 = vpack.c.bf16 %v10831, %v10831
  %v10864 = vpack.c.bf16 %v10832, %v10832
  %v10865 = vpack.c.bf16 %v10833, %v10833
  %v10866 = vpack.c.bf16 %v10834, %v10834
  %v10867 = vpack.c.bf16 %v10835, %v10835
  %v10868 = vpack.c.bf16 %v10836, %v10836
  %v10869 = vpack.c.bf16 %v10837, %v10837
  %v10870 = vpack.c.bf16 %v10838, %v10838
  %v10871 = vpack.c.bf16 %v10839, %v10839
  %v10872 = vpack.c.bf16 %v10840, %v10840
  %v10873 = vpack.c.bf16 %v10841, %v10841
  %v10874 = vpack.c.bf16 %v10842, %v10842
  %v10875 = vpack.c.bf16 %v10843, %v10843
  %v10877 = vsel %vm3341, %v10844, 0
  %v10880 = vsel %vm4369, %v9820, 0
  %10882 = vmatpush.bf16.msra.mxu0 0
  %10883 = vmatpush.bf16.msra.mxu0 0
  %10884 = vmatpush.bf16.msra.mxu0 0
  %10885 = vmatpush.bf16.msra.mxu0 0
  %10886 = vmatpush.bf16.msra.mxu0 0
  %10887 = vmatpush.bf16.msra.mxu0 0
  %10888 = vmatpush.bf16.msra.mxu0 0
  %10889 = vmatpush.bf16.msra.mxu0 %v10880
  %10890 = vmatmul.bf16.gmra.mxu0 %v10877
  %v10891 = vpop.f32.mrf.mxu0
  %v10892 = vadd.f32 0.0, %v10891
  %v10893 = vpop.f32.mrf.mxu0
  %10894 = vdwg.mxu0
  %v10896 = vsel %vm3341, %v10845, 0
  %v10899 = vsel %vm4369, %v9821, 0
  %10901 = vmatpush.bf16.msra.mxu0 0
  %10902 = vmatpush.bf16.msra.mxu0 0
  %10903 = vmatpush.bf16.msra.mxu0 0
  %10904 = vmatpush.bf16.msra.mxu0 0
  %10905 = vmatpush.bf16.msra.mxu0 0
  %10906 = vmatpush.bf16.msra.mxu0 0
  %10907 = vmatpush.bf16.msra.mxu0 0
  %10908 = vmatpush.bf16.msra.mxu0 %v10899
  %10909 = vmatmul.bf16.gmra.mxu0 %v10896
  %v10910 = vpop.f32.mrf.mxu0
  %v10911 = vadd.f32 0.0, %v10910
  %v10912 = vpop.f32.mrf.mxu0
  %10913 = vdwg.mxu0
  %v10915 = vsel %vm3341, %v10846, 0
  %v10918 = vsel %vm4369, %v9822, 0
  %10920 = vmatpush.bf16.msra.mxu0 0
  %10921 = vmatpush.bf16.msra.mxu0 0
  %10922 = vmatpush.bf16.msra.mxu0 0
  %10923 = vmatpush.bf16.msra.mxu0 0
  %10924 = vmatpush.bf16.msra.mxu0 0
  %10925 = vmatpush.bf16.msra.mxu0 0
  %10926 = vmatpush.bf16.msra.mxu0 0
  %10927 = vmatpush.bf16.msra.mxu0 %v10918
  %10928 = vmatmul.bf16.gmra.mxu0 %v10915
  %v10929 = vpop.f32.mrf.mxu0
  %v10930 = vadd.f32 0.0, %v10929
  %v10931 = vpop.f32.mrf.mxu0
  %10932 = vdwg.mxu0
  %v10934 = vsel %vm3341, %v10847, 0
  %v10937 = vsel %vm4369, %v9823, 0
  %10939 = vmatpush.bf16.msra.mxu0 0
  %10940 = vmatpush.bf16.msra.mxu0 0
  %10941 = vmatpush.bf16.msra.mxu0 0
  %10942 = vmatpush.bf16.msra.mxu0 0
  %10943 = vmatpush.bf16.msra.mxu0 0
  %10944 = vmatpush.bf16.msra.mxu0 0
  %10945 = vmatpush.bf16.msra.mxu0 0
  %10946 = vmatpush.bf16.msra.mxu0 %v10937
  %10947 = vmatmul.bf16.gmra.mxu0 %v10934
  %v10948 = vpop.f32.mrf.mxu0
  %v10949 = vadd.f32 0.0, %v10948
  %v10950 = vpop.f32.mrf.mxu0
  %10951 = vdwg.mxu0
  %v10953 = vsel %vm3341, %v10848, 0
  %v10956 = vsel %vm4369, %v9824, 0
  %10958 = vmatpush.bf16.msra.mxu0 0
  %10959 = vmatpush.bf16.msra.mxu0 0
  %10960 = vmatpush.bf16.msra.mxu0 0
  %10961 = vmatpush.bf16.msra.mxu0 0
  %10962 = vmatpush.bf16.msra.mxu0 0
  %10963 = vmatpush.bf16.msra.mxu0 0
  %10964 = vmatpush.bf16.msra.mxu0 0
  %10965 = vmatpush.bf16.msra.mxu0 %v10956
  %10966 = vmatmul.bf16.gmra.mxu0 %v10953
  %v10967 = vpop.f32.mrf.mxu0
  %v10968 = vadd.f32 0.0, %v10967
  %v10969 = vpop.f32.mrf.mxu0
  %10970 = vdwg.mxu0
  %v10972 = vsel %vm3341, %v10849, 0
  %v10975 = vsel %vm4369, %v9825, 0
  %10977 = vmatpush.bf16.msra.mxu0 0
  %10978 = vmatpush.bf16.msra.mxu0 0
  %10979 = vmatpush.bf16.msra.mxu0 0
  %10980 = vmatpush.bf16.msra.mxu0 0
  %10981 = vmatpush.bf16.msra.mxu0 0
  %10982 = vmatpush.bf16.msra.mxu0 0
  %10983 = vmatpush.bf16.msra.mxu0 0
  %10984 = vmatpush.bf16.msra.mxu0 %v10975
  %10985 = vmatmul.bf16.gmra.mxu0 %v10972
  %v10986 = vpop.f32.mrf.mxu0
  %v10987 = vadd.f32 0.0, %v10986
  %v10988 = vpop.f32.mrf.mxu0
  %10989 = vdwg.mxu0
  %v10991 = vsel %vm3341, %v10850, 0
  %v10994 = vsel %vm4369, %v9826, 0
  %10996 = vmatpush.bf16.msra.mxu0 0
  %10997 = vmatpush.bf16.msra.mxu0 0
  %10998 = vmatpush.bf16.msra.mxu0 0
  %10999 = vmatpush.bf16.msra.mxu0 0
  %11000 = vmatpush.bf16.msra.mxu0 0
  %11001 = vmatpush.bf16.msra.mxu0 0
  %11002 = vmatpush.bf16.msra.mxu0 0
  %11003 = vmatpush.bf16.msra.mxu0 %v10994
  %11004 = vmatmul.bf16.gmra.mxu0 %v10991
  %v11005 = vpop.f32.mrf.mxu0
  %v11006 = vadd.f32 0.0, %v11005
  %v11007 = vpop.f32.mrf.mxu0
  %11008 = vdwg.mxu0
  %v11010 = vsel %vm3341, %v10851, 0
  %v11013 = vsel %vm4369, %v9827, 0
  %11015 = vmatpush.bf16.msra.mxu0 0
  %11016 = vmatpush.bf16.msra.mxu0 0
  %11017 = vmatpush.bf16.msra.mxu0 0
  %11018 = vmatpush.bf16.msra.mxu0 0
  %11019 = vmatpush.bf16.msra.mxu0 0
  %11020 = vmatpush.bf16.msra.mxu0 0
  %11021 = vmatpush.bf16.msra.mxu0 0
  %11022 = vmatpush.bf16.msra.mxu0 %v11013
  %11023 = vmatmul.bf16.gmra.mxu0 %v11010
  %v11024 = vpop.f32.mrf.mxu0
  %v11025 = vadd.f32 0.0, %v11024
  %v11026 = vpop.f32.mrf.mxu0
  %11027 = vdwg.mxu0
  %v11029 = vsel %vm3341, %v10852, 0
  %v11032 = vsel %vm4369, %v9828, 0
  %11034 = vmatpush.bf16.msra.mxu0 0
  %11035 = vmatpush.bf16.msra.mxu0 0
  %11036 = vmatpush.bf16.msra.mxu0 0
  %11037 = vmatpush.bf16.msra.mxu0 0
  %11038 = vmatpush.bf16.msra.mxu0 0
  %11039 = vmatpush.bf16.msra.mxu0 0
  %11040 = vmatpush.bf16.msra.mxu0 0
  %11041 = vmatpush.bf16.msra.mxu0 %v11032
  %11042 = vmatmul.bf16.gmra.mxu0 %v11029
  %v11043 = vpop.f32.mrf.mxu0
  %v11044 = vadd.f32 0.0, %v11043
  %v11045 = vpop.f32.mrf.mxu0
  %11046 = vdwg.mxu0
  %v11048 = vsel %vm3341, %v10853, 0
  %v11051 = vsel %vm4369, %v9829, 0
  %11053 = vmatpush.bf16.msra.mxu0 0
  %11054 = vmatpush.bf16.msra.mxu0 0
  %11055 = vmatpush.bf16.msra.mxu0 0
  %11056 = vmatpush.bf16.msra.mxu0 0
  %11057 = vmatpush.bf16.msra.mxu0 0
  %11058 = vmatpush.bf16.msra.mxu0 0
  %11059 = vmatpush.bf16.msra.mxu0 0
  %11060 = vmatpush.bf16.msra.mxu0 %v11051
  %11061 = vmatmul.bf16.gmra.mxu0 %v11048
  %v11062 = vpop.f32.mrf.mxu0
  %v11063 = vadd.f32 0.0, %v11062
  %v11064 = vpop.f32.mrf.mxu0
  %11065 = vdwg.mxu0
  %v11067 = vsel %vm3341, %v10854, 0
  %v11070 = vsel %vm4369, %v9830, 0
  %11072 = vmatpush.bf16.msra.mxu0 0
  %11073 = vmatpush.bf16.msra.mxu0 0
  %11074 = vmatpush.bf16.msra.mxu0 0
  %11075 = vmatpush.bf16.msra.mxu0 0
  %11076 = vmatpush.bf16.msra.mxu0 0
  %11077 = vmatpush.bf16.msra.mxu0 0
  %11078 = vmatpush.bf16.msra.mxu0 0
  %11079 = vmatpush.bf16.msra.mxu0 %v11070
  %11080 = vmatmul.bf16.gmra.mxu0 %v11067
  %v11081 = vpop.f32.mrf.mxu0
  %v11082 = vadd.f32 0.0, %v11081
  %v11083 = vpop.f32.mrf.mxu0
  %11084 = vdwg.mxu0
  %v11086 = vsel %vm3341, %v10855, 0
  %v11089 = vsel %vm4369, %v9831, 0
  %11091 = vmatpush.bf16.msra.mxu0 0
  %11092 = vmatpush.bf16.msra.mxu0 0
  %11093 = vmatpush.bf16.msra.mxu0 0
  %11094 = vmatpush.bf16.msra.mxu0 0
  %11095 = vmatpush.bf16.msra.mxu0 0
  %11096 = vmatpush.bf16.msra.mxu0 0
  %11097 = vmatpush.bf16.msra.mxu0 0
  %11098 = vmatpush.bf16.msra.mxu0 %v11089
  %11099 = vmatmul.bf16.gmra.mxu0 %v11086
  %v11100 = vpop.f32.mrf.mxu0
  %v11101 = vadd.f32 0.0, %v11100
  %v11102 = vpop.f32.mrf.mxu0
  %11103 = vdwg.mxu0
  %v11105 = vsel %vm3341, %v10856, 0
  %v11108 = vsel %vm4369, %v9832, 0
  %11110 = vmatpush.bf16.msra.mxu0 0
  %11111 = vmatpush.bf16.msra.mxu0 0
  %11112 = vmatpush.bf16.msra.mxu0 0
  %11113 = vmatpush.bf16.msra.mxu0 0
  %11114 = vmatpush.bf16.msra.mxu0 0
  %11115 = vmatpush.bf16.msra.mxu0 0
  %11116 = vmatpush.bf16.msra.mxu0 0
  %11117 = vmatpush.bf16.msra.mxu0 %v11108
  %11118 = vmatmul.bf16.gmra.mxu0 %v11105
  %v11119 = vpop.f32.mrf.mxu0
  %v11120 = vadd.f32 0.0, %v11119
  %v11121 = vpop.f32.mrf.mxu0
  %11122 = vdwg.mxu0
  %v11124 = vsel %vm3341, %v10857, 0
  %v11127 = vsel %vm4369, %v9833, 0
  %11129 = vmatpush.bf16.msra.mxu0 0
  %11130 = vmatpush.bf16.msra.mxu0 0
  %11131 = vmatpush.bf16.msra.mxu0 0
  %11132 = vmatpush.bf16.msra.mxu0 0
  %11133 = vmatpush.bf16.msra.mxu0 0
  %11134 = vmatpush.bf16.msra.mxu0 0
  %11135 = vmatpush.bf16.msra.mxu0 0
  %11136 = vmatpush.bf16.msra.mxu0 %v11127
  %11137 = vmatmul.bf16.gmra.mxu0 %v11124
  %v11138 = vpop.f32.mrf.mxu0
  %v11139 = vadd.f32 0.0, %v11138
  %v11140 = vpop.f32.mrf.mxu0
  %11141 = vdwg.mxu0
  %v11143 = vsel %vm3341, %v10858, 0
  %v11146 = vsel %vm4369, %v9834, 0
  %11148 = vmatpush.bf16.msra.mxu0 0
  %11149 = vmatpush.bf16.msra.mxu0 0
  %11150 = vmatpush.bf16.msra.mxu0 0
  %11151 = vmatpush.bf16.msra.mxu0 0
  %11152 = vmatpush.bf16.msra.mxu0 0
  %11153 = vmatpush.bf16.msra.mxu0 0
  %11154 = vmatpush.bf16.msra.mxu0 0
  %11155 = vmatpush.bf16.msra.mxu0 %v11146
  %11156 = vmatmul.bf16.gmra.mxu0 %v11143
  %v11157 = vpop.f32.mrf.mxu0
  %v11158 = vadd.f32 0.0, %v11157
  %v11159 = vpop.f32.mrf.mxu0
  %11160 = vdwg.mxu0
  %v11162 = vsel %vm3341, %v10859, 0
  %v11165 = vsel %vm4369, %v9835, 0
  %11167 = vmatpush.bf16.msra.mxu0 0
  %11168 = vmatpush.bf16.msra.mxu0 0
  %11169 = vmatpush.bf16.msra.mxu0 0
  %11170 = vmatpush.bf16.msra.mxu0 0
  %11171 = vmatpush.bf16.msra.mxu0 0
  %11172 = vmatpush.bf16.msra.mxu0 0
  %11173 = vmatpush.bf16.msra.mxu0 0
  %11174 = vmatpush.bf16.msra.mxu0 %v11165
  %11175 = vmatmul.bf16.gmra.mxu0 %v11162
  %v11176 = vpop.f32.mrf.mxu0
  %v11177 = vadd.f32 0.0, %v11176
  %v11178 = vpop.f32.mrf.mxu0
  %11179 = vdwg.mxu0
  %v11181 = vsel %vm3341, %v10860, 0
  %v11184 = vsel %vm4369, %v9836, 0
  %11186 = vmatpush.bf16.msra.mxu0 0
  %11187 = vmatpush.bf16.msra.mxu0 0
  %11188 = vmatpush.bf16.msra.mxu0 0
  %11189 = vmatpush.bf16.msra.mxu0 0
  %11190 = vmatpush.bf16.msra.mxu0 0
  %11191 = vmatpush.bf16.msra.mxu0 0
  %11192 = vmatpush.bf16.msra.mxu0 0
  %11193 = vmatpush.bf16.msra.mxu0 %v11184
  %11194 = vmatmul.bf16.gmra.mxu0 %v11181
  %v11195 = vpop.f32.mrf.mxu0
  %v11196 = vadd.f32 0.0, %v11195
  %v11197 = vpop.f32.mrf.mxu0
  %11198 = vdwg.mxu0
  %v11200 = vsel %vm3341, %v10861, 0
  %v11203 = vsel %vm4369, %v9837, 0
  %11205 = vmatpush.bf16.msra.mxu0 0
  %11206 = vmatpush.bf16.msra.mxu0 0
  %11207 = vmatpush.bf16.msra.mxu0 0
  %11208 = vmatpush.bf16.msra.mxu0 0
  %11209 = vmatpush.bf16.msra.mxu0 0
  %11210 = vmatpush.bf16.msra.mxu0 0
  %11211 = vmatpush.bf16.msra.mxu0 0
  %11212 = vmatpush.bf16.msra.mxu0 %v11203
  %11213 = vmatmul.bf16.gmra.mxu0 %v11200
  %v11214 = vpop.f32.mrf.mxu0
  %v11215 = vadd.f32 0.0, %v11214
  %v11216 = vpop.f32.mrf.mxu0
  %11217 = vdwg.mxu0
  %v11219 = vsel %vm3341, %v10862, 0
  %v11222 = vsel %vm4369, %v9838, 0
  %11224 = vmatpush.bf16.msra.mxu0 0
  %11225 = vmatpush.bf16.msra.mxu0 0
  %11226 = vmatpush.bf16.msra.mxu0 0
  %11227 = vmatpush.bf16.msra.mxu0 0
  %11228 = vmatpush.bf16.msra.mxu0 0
  %11229 = vmatpush.bf16.msra.mxu0 0
  %11230 = vmatpush.bf16.msra.mxu0 0
  %11231 = vmatpush.bf16.msra.mxu0 %v11222
  %11232 = vmatmul.bf16.gmra.mxu0 %v11219
  %v11233 = vpop.f32.mrf.mxu0
  %v11234 = vadd.f32 0.0, %v11233
  %v11235 = vpop.f32.mrf.mxu0
  %11236 = vdwg.mxu0
  %v11238 = vsel %vm3341, %v10863, 0
  %v11241 = vsel %vm4369, %v9839, 0
  %11243 = vmatpush.bf16.msra.mxu0 0
  %11244 = vmatpush.bf16.msra.mxu0 0
  %11245 = vmatpush.bf16.msra.mxu0 0
  %11246 = vmatpush.bf16.msra.mxu0 0
  %11247 = vmatpush.bf16.msra.mxu0 0
  %11248 = vmatpush.bf16.msra.mxu0 0
  %11249 = vmatpush.bf16.msra.mxu0 0
  %11250 = vmatpush.bf16.msra.mxu0 %v11241
  %11251 = vmatmul.bf16.gmra.mxu0 %v11238
  %v11252 = vpop.f32.mrf.mxu0
  %v11253 = vadd.f32 0.0, %v11252
  %v11254 = vpop.f32.mrf.mxu0
  %11255 = vdwg.mxu0
  %v11257 = vsel %vm3341, %v10864, 0
  %v11260 = vsel %vm4369, %v9840, 0
  %11262 = vmatpush.bf16.msra.mxu0 0
  %11263 = vmatpush.bf16.msra.mxu0 0
  %11264 = vmatpush.bf16.msra.mxu0 0
  %11265 = vmatpush.bf16.msra.mxu0 0
  %11266 = vmatpush.bf16.msra.mxu0 0
  %11267 = vmatpush.bf16.msra.mxu0 0
  %11268 = vmatpush.bf16.msra.mxu0 0
  %11269 = vmatpush.bf16.msra.mxu0 %v11260
  %11270 = vmatmul.bf16.gmra.mxu0 %v11257
  %v11271 = vpop.f32.mrf.mxu0
  %v11272 = vadd.f32 0.0, %v11271
  %v11273 = vpop.f32.mrf.mxu0
  %11274 = vdwg.mxu0
  %v11276 = vsel %vm3341, %v10865, 0
  %v11279 = vsel %vm4369, %v9841, 0
  %11281 = vmatpush.bf16.msra.mxu0 0
  %11282 = vmatpush.bf16.msra.mxu0 0
  %11283 = vmatpush.bf16.msra.mxu0 0
  %11284 = vmatpush.bf16.msra.mxu0 0
  %11285 = vmatpush.bf16.msra.mxu0 0
  %11286 = vmatpush.bf16.msra.mxu0 0
  %11287 = vmatpush.bf16.msra.mxu0 0
  %11288 = vmatpush.bf16.msra.mxu0 %v11279
  %11289 = vmatmul.bf16.gmra.mxu0 %v11276
  %v11290 = vpop.f32.mrf.mxu0
  %v11291 = vadd.f32 0.0, %v11290
  %v11292 = vpop.f32.mrf.mxu0
  %11293 = vdwg.mxu0
  %v11295 = vsel %vm3341, %v10866, 0
  %v11298 = vsel %vm4369, %v9842, 0
  %11300 = vmatpush.bf16.msra.mxu0 0
  %11301 = vmatpush.bf16.msra.mxu0 0
  %11302 = vmatpush.bf16.msra.mxu0 0
  %11303 = vmatpush.bf16.msra.mxu0 0
  %11304 = vmatpush.bf16.msra.mxu0 0
  %11305 = vmatpush.bf16.msra.mxu0 0
  %11306 = vmatpush.bf16.msra.mxu0 0
  %11307 = vmatpush.bf16.msra.mxu0 %v11298
  %11308 = vmatmul.bf16.gmra.mxu0 %v11295
  %v11309 = vpop.f32.mrf.mxu0
  %v11310 = vadd.f32 0.0, %v11309
  %v11311 = vpop.f32.mrf.mxu0
  %11312 = vdwg.mxu0
  %v11314 = vsel %vm3341, %v10867, 0
  %v11317 = vsel %vm4369, %v9843, 0
  %11319 = vmatpush.bf16.msra.mxu0 0
  %11320 = vmatpush.bf16.msra.mxu0 0
  %11321 = vmatpush.bf16.msra.mxu0 0
  %11322 = vmatpush.bf16.msra.mxu0 0
  %11323 = vmatpush.bf16.msra.mxu0 0
  %11324 = vmatpush.bf16.msra.mxu0 0
  %11325 = vmatpush.bf16.msra.mxu0 0
  %11326 = vmatpush.bf16.msra.mxu0 %v11317
  %11327 = vmatmul.bf16.gmra.mxu0 %v11314
  %v11328 = vpop.f32.mrf.mxu0
  %v11329 = vadd.f32 0.0, %v11328
  %v11330 = vpop.f32.mrf.mxu0
  %11331 = vdwg.mxu0
  %v11333 = vsel %vm3341, %v10868, 0
  %v11336 = vsel %vm4369, %v9844, 0
  %11338 = vmatpush.bf16.msra.mxu0 0
  %11339 = vmatpush.bf16.msra.mxu0 0
  %11340 = vmatpush.bf16.msra.mxu0 0
  %11341 = vmatpush.bf16.msra.mxu0 0
  %11342 = vmatpush.bf16.msra.mxu0 0
  %11343 = vmatpush.bf16.msra.mxu0 0
  %11344 = vmatpush.bf16.msra.mxu0 0
  %11345 = vmatpush.bf16.msra.mxu0 %v11336
  %11346 = vmatmul.bf16.gmra.mxu0 %v11333
  %v11347 = vpop.f32.mrf.mxu0
  %v11348 = vadd.f32 0.0, %v11347
  %v11349 = vpop.f32.mrf.mxu0
  %11350 = vdwg.mxu0
  %v11352 = vsel %vm3341, %v10869, 0
  %v11355 = vsel %vm4369, %v9845, 0
  %11357 = vmatpush.bf16.msra.mxu0 0
  %11358 = vmatpush.bf16.msra.mxu0 0
  %11359 = vmatpush.bf16.msra.mxu0 0
  %11360 = vmatpush.bf16.msra.mxu0 0
  %11361 = vmatpush.bf16.msra.mxu0 0
  %11362 = vmatpush.bf16.msra.mxu0 0
  %11363 = vmatpush.bf16.msra.mxu0 0
  %11364 = vmatpush.bf16.msra.mxu0 %v11355
  %11365 = vmatmul.bf16.gmra.mxu0 %v11352
  %v11366 = vpop.f32.mrf.mxu0
  %v11367 = vadd.f32 0.0, %v11366
  %v11368 = vpop.f32.mrf.mxu0
  %11369 = vdwg.mxu0
  %v11371 = vsel %vm3341, %v10870, 0
  %v11374 = vsel %vm4369, %v9846, 0
  %11376 = vmatpush.bf16.msra.mxu0 0
  %11377 = vmatpush.bf16.msra.mxu0 0
  %11378 = vmatpush.bf16.msra.mxu0 0
  %11379 = vmatpush.bf16.msra.mxu0 0
  %11380 = vmatpush.bf16.msra.mxu0 0
  %11381 = vmatpush.bf16.msra.mxu0 0
  %11382 = vmatpush.bf16.msra.mxu0 0
  %11383 = vmatpush.bf16.msra.mxu0 %v11374
  %11384 = vmatmul.bf16.gmra.mxu0 %v11371
  %v11385 = vpop.f32.mrf.mxu0
  %v11386 = vadd.f32 0.0, %v11385
  %v11387 = vpop.f32.mrf.mxu0
  %11388 = vdwg.mxu0
  %v11390 = vsel %vm3341, %v10871, 0
  %v11393 = vsel %vm4369, %v9847, 0
  %11395 = vmatpush.bf16.msra.mxu0 0
  %11396 = vmatpush.bf16.msra.mxu0 0
  %11397 = vmatpush.bf16.msra.mxu0 0
  %11398 = vmatpush.bf16.msra.mxu0 0
  %11399 = vmatpush.bf16.msra.mxu0 0
  %11400 = vmatpush.bf16.msra.mxu0 0
  %11401 = vmatpush.bf16.msra.mxu0 0
  %11402 = vmatpush.bf16.msra.mxu0 %v11393
  %11403 = vmatmul.bf16.gmra.mxu0 %v11390
  %v11404 = vpop.f32.mrf.mxu0
  %v11405 = vadd.f32 0.0, %v11404
  %v11406 = vpop.f32.mrf.mxu0
  %11407 = vdwg.mxu0
  %v11409 = vsel %vm3341, %v10872, 0
  %v11412 = vsel %vm4369, %v9848, 0
  %11414 = vmatpush.bf16.msra.mxu0 0
  %11415 = vmatpush.bf16.msra.mxu0 0
  %11416 = vmatpush.bf16.msra.mxu0 0
  %11417 = vmatpush.bf16.msra.mxu0 0
  %11418 = vmatpush.bf16.msra.mxu0 0
  %11419 = vmatpush.bf16.msra.mxu0 0
  %11420 = vmatpush.bf16.msra.mxu0 0
  %11421 = vmatpush.bf16.msra.mxu0 %v11412
  %11422 = vmatmul.bf16.gmra.mxu0 %v11409
  %v11423 = vpop.f32.mrf.mxu0
  %v11424 = vadd.f32 0.0, %v11423
  %v11425 = vpop.f32.mrf.mxu0
  %11426 = vdwg.mxu0
  %v11428 = vsel %vm3341, %v10873, 0
  %v11431 = vsel %vm4369, %v9849, 0
  %11433 = vmatpush.bf16.msra.mxu0 0
  %11434 = vmatpush.bf16.msra.mxu0 0
  %11435 = vmatpush.bf16.msra.mxu0 0
  %11436 = vmatpush.bf16.msra.mxu0 0
  %11437 = vmatpush.bf16.msra.mxu0 0
  %11438 = vmatpush.bf16.msra.mxu0 0
  %11439 = vmatpush.bf16.msra.mxu0 0
  %11440 = vmatpush.bf16.msra.mxu0 %v11431
  %11441 = vmatmul.bf16.gmra.mxu0 %v11428
  %v11442 = vpop.f32.mrf.mxu0
  %v11443 = vadd.f32 0.0, %v11442
  %v11444 = vpop.f32.mrf.mxu0
  %11445 = vdwg.mxu0
  %v11447 = vsel %vm3341, %v10874, 0
  %v11450 = vsel %vm4369, %v9850, 0
  %11452 = vmatpush.bf16.msra.mxu0 0
  %11453 = vmatpush.bf16.msra.mxu0 0
  %11454 = vmatpush.bf16.msra.mxu0 0
  %11455 = vmatpush.bf16.msra.mxu0 0
  %11456 = vmatpush.bf16.msra.mxu0 0
  %11457 = vmatpush.bf16.msra.mxu0 0
  %11458 = vmatpush.bf16.msra.mxu0 0
  %11459 = vmatpush.bf16.msra.mxu0 %v11450
  %11460 = vmatmul.bf16.gmra.mxu0 %v11447
  %v11461 = vpop.f32.mrf.mxu0
  %v11462 = vadd.f32 0.0, %v11461
  %v11463 = vpop.f32.mrf.mxu0
  %11464 = vdwg.mxu0
  %v11466 = vsel %vm3341, %v10875, 0
  %v11469 = vsel %vm4369, %v9851, 0
  %11471 = vmatpush.bf16.msra.mxu0 0
  %11472 = vmatpush.bf16.msra.mxu0 0
  %11473 = vmatpush.bf16.msra.mxu0 0
  %11474 = vmatpush.bf16.msra.mxu0 0
  %11475 = vmatpush.bf16.msra.mxu0 0
  %11476 = vmatpush.bf16.msra.mxu0 0
  %11477 = vmatpush.bf16.msra.mxu0 0
  %11478 = vmatpush.bf16.msra.mxu0 %v11469
  %11479 = vmatmul.bf16.gmra.mxu0 %v11466
  %v11480 = vpop.f32.mrf.mxu0
  %v11481 = vadd.f32 0.0, %v11480
  %v11482 = vpop.f32.mrf.mxu0
  %11483 = vdwg.mxu0
  %v11484 = vrot.slane %v11196, 4
  %v11485 = vsel %vm573, %v11484, %v10892
  %v11486 = vrot.slane %v10892, 4
  %v11487 = vsel %vm573, %v11196, %v11486
  %v11489 = vunpack.c.l.s4 1983009808
  %v11490 = vunpack.c.0.s8 %v11489
  %v11491 = vperm.slane %v11485, %v11490
  %v11493 = vunpack.c.l.s4 1983009808
  %v11494 = vunpack.c.0.s8 %v11493
  %v11495 = vperm.slane %v11487, %v11494
  %v11496 = vrot.slane %v11348, 4
  %v11497 = vsel %vm573, %v11496, %v11044
  %v11498 = vrot.slane %v11044, 4
  %v11499 = vsel %vm573, %v11348, %v11498
  %v11501 = vunpack.c.l.s4 1983009808
  %v11502 = vunpack.c.0.s8 %v11501
  %v11503 = vperm.slane %v11497, %v11502
  %v11505 = vunpack.c.l.s4 1983009808
  %v11506 = vunpack.c.0.s8 %v11505
  %v11507 = vperm.slane %v11499, %v11506
  %v11508 = vrot.slane %v11503, 4
  %v11509 = vsel %vm573, %v11508, %v11491
  %v11510 = vrot.slane %v11491, 4
  %v11511 = vsel %vm573, %v11503, %v11510
  %v11513 = vunpack.c.l.s4 1934713408
  %v11514 = vunpack.c.0.s8 %v11513
  %v11515 = vperm.slane %v11509, %v11514
  %v11517 = vunpack.c.l.s4 1934713408
  %v11518 = vunpack.c.0.s8 %v11517
  %v11519 = vperm.slane %v11511, %v11518
  %v11520 = vrot.slane %v11507, 4
  %v11521 = vsel %vm573, %v11520, %v11495
  %v11522 = vrot.slane %v11495, 4
  %v11523 = vsel %vm573, %v11507, %v11522
  %v11525 = vunpack.c.l.s4 1934713408
  %v11526 = vunpack.c.0.s8 %v11525
  %v11527 = vperm.slane %v11521, %v11526
  %v11529 = vunpack.c.l.s4 1934713408
  %v11530 = vunpack.c.0.s8 %v11529
  %v11531 = vperm.slane %v11523, %v11530
  %v11532 = vrot.slane %v11515, 4
  %v11533 = vsel %vm573, 0.0, %v11532
  %v11534 = vrot.slane %v11519, 4
  %v11535 = vsel %vm573, 0.0, %v11534
  %v11536 = vrot.slane %v11527, 4
  %v11537 = vsel %vm573, 0.0, %v11536
  %v11538 = vrot.slane %v11531, 4
  %v11539 = vsel %vm573, 0.0, %v11538
  %v11540 = vrot.slane %v11215, 4
  %v11541 = vsel %vm573, %v11540, %v10911
  %v11542 = vrot.slane %v10911, 4
  %v11543 = vsel %vm573, %v11215, %v11542
  %v11545 = vunpack.c.l.s4 1983009808
  %v11546 = vunpack.c.0.s8 %v11545
  %v11547 = vperm.slane %v11541, %v11546
  %v11549 = vunpack.c.l.s4 1983009808
  %v11550 = vunpack.c.0.s8 %v11549
  %v11551 = vperm.slane %v11543, %v11550
  %v11552 = vrot.slane %v11367, 4
  %v11553 = vsel %vm573, %v11552, %v11063
  %v11554 = vrot.slane %v11063, 4
  %v11555 = vsel %vm573, %v11367, %v11554
  %v11557 = vunpack.c.l.s4 1983009808
  %v11558 = vunpack.c.0.s8 %v11557
  %v11559 = vperm.slane %v11553, %v11558
  %v11561 = vunpack.c.l.s4 1983009808
  %v11562 = vunpack.c.0.s8 %v11561
  %v11563 = vperm.slane %v11555, %v11562
  %v11564 = vrot.slane %v11559, 4
  %v11565 = vsel %vm573, %v11564, %v11547
  %v11566 = vrot.slane %v11547, 4
  %v11567 = vsel %vm573, %v11559, %v11566
  %v11569 = vunpack.c.l.s4 1934713408
  %v11570 = vunpack.c.0.s8 %v11569
  %v11571 = vperm.slane %v11565, %v11570
  %v11573 = vunpack.c.l.s4 1934713408
  %v11574 = vunpack.c.0.s8 %v11573
  %v11575 = vperm.slane %v11567, %v11574
  %v11576 = vrot.slane %v11563, 4
  %v11577 = vsel %vm573, %v11576, %v11551
  %v11578 = vrot.slane %v11551, 4
  %v11579 = vsel %vm573, %v11563, %v11578
  %v11581 = vunpack.c.l.s4 1934713408
  %v11582 = vunpack.c.0.s8 %v11581
  %v11583 = vperm.slane %v11577, %v11582
  %v11585 = vunpack.c.l.s4 1934713408
  %v11586 = vunpack.c.0.s8 %v11585
  %v11587 = vperm.slane %v11579, %v11586
  %v11588 = vrot.slane %v11571, 4
  %v11589 = vsel %vm573, 0.0, %v11588
  %v11590 = vrot.slane %v11575, 4
  %v11591 = vsel %vm573, 0.0, %v11590
  %v11592 = vrot.slane %v11583, 4
  %v11593 = vsel %vm573, 0.0, %v11592
  %v11594 = vrot.slane %v11587, 4
  %v11595 = vsel %vm573, 0.0, %v11594
  %v11596 = vrot.slane %v11234, 4
  %v11597 = vsel %vm573, %v11596, %v10930
  %v11598 = vrot.slane %v10930, 4
  %v11599 = vsel %vm573, %v11234, %v11598
  %v11601 = vunpack.c.l.s4 1983009808
  %v11602 = vunpack.c.0.s8 %v11601
  %v11603 = vperm.slane %v11597, %v11602
  %v11605 = vunpack.c.l.s4 1983009808
  %v11606 = vunpack.c.0.s8 %v11605
  %v11607 = vperm.slane %v11599, %v11606
  %v11608 = vrot.slane %v11386, 4
  %v11609 = vsel %vm573, %v11608, %v11082
  %v11610 = vrot.slane %v11082, 4
  %v11611 = vsel %vm573, %v11386, %v11610
  %v11613 = vunpack.c.l.s4 1983009808
  %v11614 = vunpack.c.0.s8 %v11613
  %v11615 = vperm.slane %v11609, %v11614
  %v11617 = vunpack.c.l.s4 1983009808
  %v11618 = vunpack.c.0.s8 %v11617
  %v11619 = vperm.slane %v11611, %v11618
  %v11620 = vrot.slane %v11615, 4
  %v11621 = vsel %vm573, %v11620, %v11603
  %v11622 = vrot.slane %v11603, 4
  %v11623 = vsel %vm573, %v11615, %v11622
  %v11625 = vunpack.c.l.s4 1934713408
  %v11626 = vunpack.c.0.s8 %v11625
  %v11627 = vperm.slane %v11621, %v11626
  %v11629 = vunpack.c.l.s4 1934713408
  %v11630 = vunpack.c.0.s8 %v11629
  %v11631 = vperm.slane %v11623, %v11630
  %v11632 = vrot.slane %v11619, 4
  %v11633 = vsel %vm573, %v11632, %v11607
  %v11634 = vrot.slane %v11607, 4
  %v11635 = vsel %vm573, %v11619, %v11634
  %v11637 = vunpack.c.l.s4 1934713408
  %v11638 = vunpack.c.0.s8 %v11637
  %v11639 = vperm.slane %v11633, %v11638
  %v11641 = vunpack.c.l.s4 1934713408
  %v11642 = vunpack.c.0.s8 %v11641
  %v11643 = vperm.slane %v11635, %v11642
  %v11644 = vrot.slane %v11627, 4
  %v11645 = vsel %vm573, 0.0, %v11644
  %v11646 = vrot.slane %v11631, 4
  %v11647 = vsel %vm573, 0.0, %v11646
  %v11648 = vrot.slane %v11639, 4
  %v11649 = vsel %vm573, 0.0, %v11648
  %v11650 = vrot.slane %v11643, 4
  %v11651 = vsel %vm573, 0.0, %v11650
  %v11652 = vrot.slane %v11253, 4
  %v11653 = vsel %vm573, %v11652, %v10949
  %v11654 = vrot.slane %v10949, 4
  %v11655 = vsel %vm573, %v11253, %v11654
  %v11657 = vunpack.c.l.s4 1983009808
  %v11658 = vunpack.c.0.s8 %v11657
  %v11659 = vperm.slane %v11653, %v11658
  %v11661 = vunpack.c.l.s4 1983009808
  %v11662 = vunpack.c.0.s8 %v11661
  %v11663 = vperm.slane %v11655, %v11662
  %v11664 = vrot.slane %v11405, 4
  %v11665 = vsel %vm573, %v11664, %v11101
  %v11666 = vrot.slane %v11101, 4
  %v11667 = vsel %vm573, %v11405, %v11666
  %v11669 = vunpack.c.l.s4 1983009808
  %v11670 = vunpack.c.0.s8 %v11669
  %v11671 = vperm.slane %v11665, %v11670
  %v11673 = vunpack.c.l.s4 1983009808
  %v11674 = vunpack.c.0.s8 %v11673
  %v11675 = vperm.slane %v11667, %v11674
  %v11676 = vrot.slane %v11671, 4
  %v11677 = vsel %vm573, %v11676, %v11659
  %v11678 = vrot.slane %v11659, 4
  %v11679 = vsel %vm573, %v11671, %v11678
  %v11681 = vunpack.c.l.s4 1934713408
  %v11682 = vunpack.c.0.s8 %v11681
  %v11683 = vperm.slane %v11677, %v11682
  %v11685 = vunpack.c.l.s4 1934713408
  %v11686 = vunpack.c.0.s8 %v11685
  %v11687 = vperm.slane %v11679, %v11686
  %v11688 = vrot.slane %v11675, 4
  %v11689 = vsel %vm573, %v11688, %v11663
  %v11690 = vrot.slane %v11663, 4
  %v11691 = vsel %vm573, %v11675, %v11690
  %v11693 = vunpack.c.l.s4 1934713408
  %v11694 = vunpack.c.0.s8 %v11693
  %v11695 = vperm.slane %v11689, %v11694
  %v11697 = vunpack.c.l.s4 1934713408
  %v11698 = vunpack.c.0.s8 %v11697
  %v11699 = vperm.slane %v11691, %v11698
  %v11700 = vrot.slane %v11683, 4
  %v11701 = vsel %vm573, 0.0, %v11700
  %v11702 = vrot.slane %v11687, 4
  %v11703 = vsel %vm573, 0.0, %v11702
  %v11704 = vrot.slane %v11695, 4
  %v11705 = vsel %vm573, 0.0, %v11704
  %v11706 = vrot.slane %v11699, 4
  %v11707 = vsel %vm573, 0.0, %v11706
  %v11708 = vrot.slane %v11272, 4
  %v11709 = vsel %vm573, %v11708, %v10968
  %v11710 = vrot.slane %v10968, 4
  %v11711 = vsel %vm573, %v11272, %v11710
  %v11713 = vunpack.c.l.s4 1983009808
  %v11714 = vunpack.c.0.s8 %v11713
  %v11715 = vperm.slane %v11709, %v11714
  %v11717 = vunpack.c.l.s4 1983009808
  %v11718 = vunpack.c.0.s8 %v11717
  %v11719 = vperm.slane %v11711, %v11718
  %v11720 = vrot.slane %v11424, 4
  %v11721 = vsel %vm573, %v11720, %v11120
  %v11722 = vrot.slane %v11120, 4
  %v11723 = vsel %vm573, %v11424, %v11722
  %v11725 = vunpack.c.l.s4 1983009808
  %v11726 = vunpack.c.0.s8 %v11725
  %v11727 = vperm.slane %v11721, %v11726
  %v11729 = vunpack.c.l.s4 1983009808
  %v11730 = vunpack.c.0.s8 %v11729
  %v11731 = vperm.slane %v11723, %v11730
  %v11732 = vrot.slane %v11727, 4
  %v11733 = vsel %vm573, %v11732, %v11715
  %v11734 = vrot.slane %v11715, 4
  %v11735 = vsel %vm573, %v11727, %v11734
  %v11737 = vunpack.c.l.s4 1934713408
  %v11738 = vunpack.c.0.s8 %v11737
  %v11739 = vperm.slane %v11733, %v11738
  %v11741 = vunpack.c.l.s4 1934713408
  %v11742 = vunpack.c.0.s8 %v11741
  %v11743 = vperm.slane %v11735, %v11742
  %v11744 = vrot.slane %v11731, 4
  %v11745 = vsel %vm573, %v11744, %v11719
  %v11746 = vrot.slane %v11719, 4
  %v11747 = vsel %vm573, %v11731, %v11746
  %v11749 = vunpack.c.l.s4 1934713408
  %v11750 = vunpack.c.0.s8 %v11749
  %v11751 = vperm.slane %v11745, %v11750
  %v11753 = vunpack.c.l.s4 1934713408
  %v11754 = vunpack.c.0.s8 %v11753
  %v11755 = vperm.slane %v11747, %v11754
  %v11756 = vrot.slane %v11739, 4
  %v11757 = vsel %vm573, 0.0, %v11756
  %v11758 = vrot.slane %v11743, 4
  %v11759 = vsel %vm573, 0.0, %v11758
  %v11760 = vrot.slane %v11751, 4
  %v11761 = vsel %vm573, 0.0, %v11760
  %v11762 = vrot.slane %v11755, 4
  %v11763 = vsel %vm573, 0.0, %v11762
  %v11764 = vrot.slane %v11291, 4
  %v11765 = vsel %vm573, %v11764, %v10987
  %v11766 = vrot.slane %v10987, 4
  %v11767 = vsel %vm573, %v11291, %v11766
  %v11769 = vunpack.c.l.s4 1983009808
  %v11770 = vunpack.c.0.s8 %v11769
  %v11771 = vperm.slane %v11765, %v11770
  %v11773 = vunpack.c.l.s4 1983009808
  %v11774 = vunpack.c.0.s8 %v11773
  %v11775 = vperm.slane %v11767, %v11774
  %v11776 = vrot.slane %v11443, 4
  %v11777 = vsel %vm573, %v11776, %v11139
  %v11778 = vrot.slane %v11139, 4
  %v11779 = vsel %vm573, %v11443, %v11778
  %v11781 = vunpack.c.l.s4 1983009808
  %v11782 = vunpack.c.0.s8 %v11781
  %v11783 = vperm.slane %v11777, %v11782
  %v11785 = vunpack.c.l.s4 1983009808
  %v11786 = vunpack.c.0.s8 %v11785
  %v11787 = vperm.slane %v11779, %v11786
  %v11788 = vrot.slane %v11783, 4
  %v11789 = vsel %vm573, %v11788, %v11771
  %v11790 = vrot.slane %v11771, 4
  %v11791 = vsel %vm573, %v11783, %v11790
  %v11793 = vunpack.c.l.s4 1934713408
  %v11794 = vunpack.c.0.s8 %v11793
  %v11795 = vperm.slane %v11789, %v11794
  %v11797 = vunpack.c.l.s4 1934713408
  %v11798 = vunpack.c.0.s8 %v11797
  %v11799 = vperm.slane %v11791, %v11798
  %v11800 = vrot.slane %v11787, 4
  %v11801 = vsel %vm573, %v11800, %v11775
  %v11802 = vrot.slane %v11775, 4
  %v11803 = vsel %vm573, %v11787, %v11802
  %v11805 = vunpack.c.l.s4 1934713408
  %v11806 = vunpack.c.0.s8 %v11805
  %v11807 = vperm.slane %v11801, %v11806
  %v11809 = vunpack.c.l.s4 1934713408
  %v11810 = vunpack.c.0.s8 %v11809
  %v11811 = vperm.slane %v11803, %v11810
  %v11812 = vrot.slane %v11795, 4
  %v11813 = vsel %vm573, 0.0, %v11812
  %v11814 = vrot.slane %v11799, 4
  %v11815 = vsel %vm573, 0.0, %v11814
  %v11816 = vrot.slane %v11807, 4
  %v11817 = vsel %vm573, 0.0, %v11816
  %v11818 = vrot.slane %v11811, 4
  %v11819 = vsel %vm573, 0.0, %v11818
  %v11820 = vrot.slane %v11310, 4
  %v11821 = vsel %vm573, %v11820, %v11006
  %v11822 = vrot.slane %v11006, 4
  %v11823 = vsel %vm573, %v11310, %v11822
  %v11825 = vunpack.c.l.s4 1983009808
  %v11826 = vunpack.c.0.s8 %v11825
  %v11827 = vperm.slane %v11821, %v11826
  %v11829 = vunpack.c.l.s4 1983009808
  %v11830 = vunpack.c.0.s8 %v11829
  %v11831 = vperm.slane %v11823, %v11830
  %v11832 = vrot.slane %v11462, 4
  %v11833 = vsel %vm573, %v11832, %v11158
  %v11834 = vrot.slane %v11158, 4
  %v11835 = vsel %vm573, %v11462, %v11834
  %v11837 = vunpack.c.l.s4 1983009808
  %v11838 = vunpack.c.0.s8 %v11837
  %v11839 = vperm.slane %v11833, %v11838
  %v11841 = vunpack.c.l.s4 1983009808
  %v11842 = vunpack.c.0.s8 %v11841
  %v11843 = vperm.slane %v11835, %v11842
  %v11844 = vrot.slane %v11839, 4
  %v11845 = vsel %vm573, %v11844, %v11827
  %v11846 = vrot.slane %v11827, 4
  %v11847 = vsel %vm573, %v11839, %v11846
  %v11849 = vunpack.c.l.s4 1934713408
  %v11850 = vunpack.c.0.s8 %v11849
  %v11851 = vperm.slane %v11845, %v11850
  %v11853 = vunpack.c.l.s4 1934713408
  %v11854 = vunpack.c.0.s8 %v11853
  %v11855 = vperm.slane %v11847, %v11854
  %v11856 = vrot.slane %v11843, 4
  %v11857 = vsel %vm573, %v11856, %v11831
  %v11858 = vrot.slane %v11831, 4
  %v11859 = vsel %vm573, %v11843, %v11858
  %v11861 = vunpack.c.l.s4 1934713408
  %v11862 = vunpack.c.0.s8 %v11861
  %v11863 = vperm.slane %v11857, %v11862
  %v11865 = vunpack.c.l.s4 1934713408
  %v11866 = vunpack.c.0.s8 %v11865
  %v11867 = vperm.slane %v11859, %v11866
  %v11868 = vrot.slane %v11851, 4
  %v11869 = vsel %vm573, 0.0, %v11868
  %v11870 = vrot.slane %v11855, 4
  %v11871 = vsel %vm573, 0.0, %v11870
  %v11872 = vrot.slane %v11863, 4
  %v11873 = vsel %vm573, 0.0, %v11872
  %v11874 = vrot.slane %v11867, 4
  %v11875 = vsel %vm573, 0.0, %v11874
  %v11876 = vrot.slane %v11329, 4
  %v11877 = vsel %vm573, %v11876, %v11025
  %v11878 = vrot.slane %v11025, 4
  %v11879 = vsel %vm573, %v11329, %v11878
  %v11881 = vunpack.c.l.s4 1983009808
  %v11882 = vunpack.c.0.s8 %v11881
  %v11883 = vperm.slane %v11877, %v11882
  %v11885 = vunpack.c.l.s4 1983009808
  %v11886 = vunpack.c.0.s8 %v11885
  %v11887 = vperm.slane %v11879, %v11886
  %v11888 = vrot.slane %v11481, 4
  %v11889 = vsel %vm573, %v11888, %v11177
  %v11890 = vrot.slane %v11177, 4
  %v11891 = vsel %vm573, %v11481, %v11890
  %v11893 = vunpack.c.l.s4 1983009808
  %v11894 = vunpack.c.0.s8 %v11893
  %v11895 = vperm.slane %v11889, %v11894
  %v11897 = vunpack.c.l.s4 1983009808
  %v11898 = vunpack.c.0.s8 %v11897
  %v11899 = vperm.slane %v11891, %v11898
  %v11900 = vrot.slane %v11895, 4
  %v11901 = vsel %vm573, %v11900, %v11883
  %v11902 = vrot.slane %v11883, 4
  %v11903 = vsel %vm573, %v11895, %v11902
  %v11905 = vunpack.c.l.s4 1934713408
  %v11906 = vunpack.c.0.s8 %v11905
  %v11907 = vperm.slane %v11901, %v11906
  %v11909 = vunpack.c.l.s4 1934713408
  %v11910 = vunpack.c.0.s8 %v11909
  %v11911 = vperm.slane %v11903, %v11910
  %v11912 = vrot.slane %v11899, 4
  %v11913 = vsel %vm573, %v11912, %v11887
  %v11914 = vrot.slane %v11887, 4
  %v11915 = vsel %vm573, %v11899, %v11914
  %v11917 = vunpack.c.l.s4 1934713408
  %v11918 = vunpack.c.0.s8 %v11917
  %v11919 = vperm.slane %v11913, %v11918
  %v11921 = vunpack.c.l.s4 1934713408
  %v11922 = vunpack.c.0.s8 %v11921
  %v11923 = vperm.slane %v11915, %v11922
  %v11924 = vrot.slane %v11907, 4
  %v11925 = vsel %vm573, 0.0, %v11924
  %v11926 = vrot.slane %v11911, 4
  %v11927 = vsel %vm573, 0.0, %v11926
  %v11928 = vrot.slane %v11919, 4
  %v11929 = vsel %vm573, 0.0, %v11928
  %v11930 = vrot.slane %v11923, 4
  %v11931 = vsel %vm573, 0.0, %v11930
  %v11932 = vsel %vm573, %v11534, %v11515
  %v11934 = vunpack.c.l.s4 1983009808
  %v11935 = vunpack.c.0.s8 %v11934
  %v11936 = vperm.slane %v11932, %v11935
  %v11937 = vrot.slane %v11535, 4
  %v11938 = vsel %vm573, %v11937, %v11533
  %v11940 = vunpack.c.l.s4 1983009808
  %v11941 = vunpack.c.0.s8 %v11940
  %v11942 = vperm.slane %v11938, %v11941
  %v11943 = vsel %vm573, %v11538, %v11527
  %v11945 = vunpack.c.l.s4 1983009808
  %v11946 = vunpack.c.0.s8 %v11945
  %v11947 = vperm.slane %v11943, %v11946
  %v11948 = vrot.slane %v11539, 4
  %v11949 = vsel %vm573, %v11948, %v11537
  %v11951 = vunpack.c.l.s4 1983009808
  %v11952 = vunpack.c.0.s8 %v11951
  %v11953 = vperm.slane %v11949, %v11952
  %v11954 = vrot.slane %v11942, 4
  %v11955 = vsel %vm573, %v11954, %v11936
  %v11956 = vrot.slane %v11936, 4
  %v11957 = vsel %vm573, %v11942, %v11956
  %v11959 = vunpack.c.l.s4 1934713408
  %v11960 = vunpack.c.0.s8 %v11959
  %v11961 = vperm.slane %v11955, %v11960
  %v11963 = vunpack.c.l.s4 1934713408
  %v11964 = vunpack.c.0.s8 %v11963
  %v11965 = vperm.slane %v11957, %v11964
  %v11966 = vrot.slane %v11953, 4
  %v11967 = vsel %vm573, %v11966, %v11947
  %v11968 = vrot.slane %v11947, 4
  %v11969 = vsel %vm573, %v11953, %v11968
  %v11971 = vunpack.c.l.s4 1934713408
  %v11972 = vunpack.c.0.s8 %v11971
  %v11973 = vperm.slane %v11967, %v11972
  %v11975 = vunpack.c.l.s4 1934713408
  %v11976 = vunpack.c.0.s8 %v11975
  %v11977 = vperm.slane %v11969, %v11976
  %v11978 = vrot.slane %v11973, 4
  %v11979 = vsel %vm573, %v11978, %v11961
  %v11980 = vrot.slane %v11961, 4
  %v11981 = vsel %vm573, %v11973, %v11980
  %v11982 = vrot.slane %v11977, 4
  %v11983 = vsel %vm573, %v11982, %v11965
  %v11984 = vrot.slane %v11965, 4
  %v11985 = vsel %vm573, %v11977, %v11984
  %v11986 = vsel %vm573, %v11590, %v11571
  %v11988 = vunpack.c.l.s4 1983009808
  %v11989 = vunpack.c.0.s8 %v11988
  %v11990 = vperm.slane %v11986, %v11989
  %v11991 = vrot.slane %v11591, 4
  %v11992 = vsel %vm573, %v11991, %v11589
  %v11994 = vunpack.c.l.s4 1983009808
  %v11995 = vunpack.c.0.s8 %v11994
  %v11996 = vperm.slane %v11992, %v11995
  %v11997 = vsel %vm573, %v11594, %v11583
  %v11999 = vunpack.c.l.s4 1983009808
  %v12000 = vunpack.c.0.s8 %v11999
  %v12001 = vperm.slane %v11997, %v12000
  %v12002 = vrot.slane %v11595, 4
  %v12003 = vsel %vm573, %v12002, %v11593
  %v12005 = vunpack.c.l.s4 1983009808
  %v12006 = vunpack.c.0.s8 %v12005
  %v12007 = vperm.slane %v12003, %v12006
  %v12008 = vrot.slane %v11996, 4
  %v12009 = vsel %vm573, %v12008, %v11990
  %v12010 = vrot.slane %v11990, 4
  %v12011 = vsel %vm573, %v11996, %v12010
  %v12013 = vunpack.c.l.s4 1934713408
  %v12014 = vunpack.c.0.s8 %v12013
  %v12015 = vperm.slane %v12009, %v12014
  %v12017 = vunpack.c.l.s4 1934713408
  %v12018 = vunpack.c.0.s8 %v12017
  %v12019 = vperm.slane %v12011, %v12018
  %v12020 = vrot.slane %v12007, 4
  %v12021 = vsel %vm573, %v12020, %v12001
  %v12022 = vrot.slane %v12001, 4
  %v12023 = vsel %vm573, %v12007, %v12022
  %v12025 = vunpack.c.l.s4 1934713408
  %v12026 = vunpack.c.0.s8 %v12025
  %v12027 = vperm.slane %v12021, %v12026
  %v12029 = vunpack.c.l.s4 1934713408
  %v12030 = vunpack.c.0.s8 %v12029
  %v12031 = vperm.slane %v12023, %v12030
  %v12032 = vrot.slane %v12027, 4
  %v12033 = vsel %vm573, %v12032, %v12015
  %v12034 = vrot.slane %v12015, 4
  %v12035 = vsel %vm573, %v12027, %v12034
  %v12036 = vrot.slane %v12031, 4
  %v12037 = vsel %vm573, %v12036, %v12019
  %v12038 = vrot.slane %v12019, 4
  %v12039 = vsel %vm573, %v12031, %v12038
  %v12040 = vsel %vm573, %v11646, %v11627
  %v12042 = vunpack.c.l.s4 1983009808
  %v12043 = vunpack.c.0.s8 %v12042
  %v12044 = vperm.slane %v12040, %v12043
  %v12045 = vrot.slane %v11647, 4
  %v12046 = vsel %vm573, %v12045, %v11645
  %v12048 = vunpack.c.l.s4 1983009808
  %v12049 = vunpack.c.0.s8 %v12048
  %v12050 = vperm.slane %v12046, %v12049
  %v12051 = vsel %vm573, %v11650, %v11639
  %v12053 = vunpack.c.l.s4 1983009808
  %v12054 = vunpack.c.0.s8 %v12053
  %v12055 = vperm.slane %v12051, %v12054
  %v12056 = vrot.slane %v11651, 4
  %v12057 = vsel %vm573, %v12056, %v11649
  %v12059 = vunpack.c.l.s4 1983009808
  %v12060 = vunpack.c.0.s8 %v12059
  %v12061 = vperm.slane %v12057, %v12060
  %v12062 = vrot.slane %v12050, 4
  %v12063 = vsel %vm573, %v12062, %v12044
  %v12064 = vrot.slane %v12044, 4
  %v12065 = vsel %vm573, %v12050, %v12064
  %v12067 = vunpack.c.l.s4 1934713408
  %v12068 = vunpack.c.0.s8 %v12067
  %v12069 = vperm.slane %v12063, %v12068
  %v12071 = vunpack.c.l.s4 1934713408
  %v12072 = vunpack.c.0.s8 %v12071
  %v12073 = vperm.slane %v12065, %v12072
  %v12074 = vrot.slane %v12061, 4
  %v12075 = vsel %vm573, %v12074, %v12055
  %v12076 = vrot.slane %v12055, 4
  %v12077 = vsel %vm573, %v12061, %v12076
  %v12079 = vunpack.c.l.s4 1934713408
  %v12080 = vunpack.c.0.s8 %v12079
  %v12081 = vperm.slane %v12075, %v12080
  %v12083 = vunpack.c.l.s4 1934713408
  %v12084 = vunpack.c.0.s8 %v12083
  %v12085 = vperm.slane %v12077, %v12084
  %v12086 = vrot.slane %v12081, 4
  %v12087 = vsel %vm573, %v12086, %v12069
  %v12088 = vrot.slane %v12069, 4
  %v12089 = vsel %vm573, %v12081, %v12088
  %v12090 = vrot.slane %v12085, 4
  %v12091 = vsel %vm573, %v12090, %v12073
  %v12092 = vrot.slane %v12073, 4
  %v12093 = vsel %vm573, %v12085, %v12092
  %v12094 = vsel %vm573, %v11702, %v11683
  %v12096 = vunpack.c.l.s4 1983009808
  %v12097 = vunpack.c.0.s8 %v12096
  %v12098 = vperm.slane %v12094, %v12097
  %v12099 = vrot.slane %v11703, 4
  %v12100 = vsel %vm573, %v12099, %v11701
  %v12102 = vunpack.c.l.s4 1983009808
  %v12103 = vunpack.c.0.s8 %v12102
  %v12104 = vperm.slane %v12100, %v12103
  %v12105 = vsel %vm573, %v11706, %v11695
  %v12107 = vunpack.c.l.s4 1983009808
  %v12108 = vunpack.c.0.s8 %v12107
  %v12109 = vperm.slane %v12105, %v12108
  %v12110 = vrot.slane %v11707, 4
  %v12111 = vsel %vm573, %v12110, %v11705
  %v12113 = vunpack.c.l.s4 1983009808
  %v12114 = vunpack.c.0.s8 %v12113
  %v12115 = vperm.slane %v12111, %v12114
  %v12116 = vrot.slane %v12104, 4
  %v12117 = vsel %vm573, %v12116, %v12098
  %v12118 = vrot.slane %v12098, 4
  %v12119 = vsel %vm573, %v12104, %v12118
  %v12121 = vunpack.c.l.s4 1934713408
  %v12122 = vunpack.c.0.s8 %v12121
  %v12123 = vperm.slane %v12117, %v12122
  %v12125 = vunpack.c.l.s4 1934713408
  %v12126 = vunpack.c.0.s8 %v12125
  %v12127 = vperm.slane %v12119, %v12126
  %v12128 = vrot.slane %v12115, 4
  %v12129 = vsel %vm573, %v12128, %v12109
  %v12130 = vrot.slane %v12109, 4
  %v12131 = vsel %vm573, %v12115, %v12130
  %v12133 = vunpack.c.l.s4 1934713408
  %v12134 = vunpack.c.0.s8 %v12133
  %v12135 = vperm.slane %v12129, %v12134
  %v12137 = vunpack.c.l.s4 1934713408
  %v12138 = vunpack.c.0.s8 %v12137
  %v12139 = vperm.slane %v12131, %v12138
  %v12140 = vrot.slane %v12135, 4
  %v12141 = vsel %vm573, %v12140, %v12123
  %v12142 = vrot.slane %v12123, 4
  %v12143 = vsel %vm573, %v12135, %v12142
  %v12144 = vrot.slane %v12139, 4
  %v12145 = vsel %vm573, %v12144, %v12127
  %v12146 = vrot.slane %v12127, 4
  %v12147 = vsel %vm573, %v12139, %v12146
  %v12148 = vsel %vm573, %v11758, %v11739
  %v12150 = vunpack.c.l.s4 1983009808
  %v12151 = vunpack.c.0.s8 %v12150
  %v12152 = vperm.slane %v12148, %v12151
  %v12153 = vrot.slane %v11759, 4
  %v12154 = vsel %vm573, %v12153, %v11757
  %v12156 = vunpack.c.l.s4 1983009808
  %v12157 = vunpack.c.0.s8 %v12156
  %v12158 = vperm.slane %v12154, %v12157
  %v12159 = vsel %vm573, %v11762, %v11751
  %v12161 = vunpack.c.l.s4 1983009808
  %v12162 = vunpack.c.0.s8 %v12161
  %v12163 = vperm.slane %v12159, %v12162
  %v12164 = vrot.slane %v11763, 4
  %v12165 = vsel %vm573, %v12164, %v11761
  %v12167 = vunpack.c.l.s4 1983009808
  %v12168 = vunpack.c.0.s8 %v12167
  %v12169 = vperm.slane %v12165, %v12168
  %v12170 = vrot.slane %v12158, 4
  %v12171 = vsel %vm573, %v12170, %v12152
  %v12172 = vrot.slane %v12152, 4
  %v12173 = vsel %vm573, %v12158, %v12172
  %v12175 = vunpack.c.l.s4 1934713408
  %v12176 = vunpack.c.0.s8 %v12175
  %v12177 = vperm.slane %v12171, %v12176
  %v12179 = vunpack.c.l.s4 1934713408
  %v12180 = vunpack.c.0.s8 %v12179
  %v12181 = vperm.slane %v12173, %v12180
  %v12182 = vrot.slane %v12169, 4
  %v12183 = vsel %vm573, %v12182, %v12163
  %v12184 = vrot.slane %v12163, 4
  %v12185 = vsel %vm573, %v12169, %v12184
  %v12187 = vunpack.c.l.s4 1934713408
  %v12188 = vunpack.c.0.s8 %v12187
  %v12189 = vperm.slane %v12183, %v12188
  %v12191 = vunpack.c.l.s4 1934713408
  %v12192 = vunpack.c.0.s8 %v12191
  %v12193 = vperm.slane %v12185, %v12192
  %v12194 = vrot.slane %v12189, 4
  %v12195 = vsel %vm573, %v12194, %v12177
  %v12196 = vrot.slane %v12177, 4
  %v12197 = vsel %vm573, %v12189, %v12196
  %v12198 = vrot.slane %v12193, 4
  %v12199 = vsel %vm573, %v12198, %v12181
  %v12200 = vrot.slane %v12181, 4
  %v12201 = vsel %vm573, %v12193, %v12200
  %v12202 = vsel %vm573, %v11814, %v11795
  %v12204 = vunpack.c.l.s4 1983009808
  %v12205 = vunpack.c.0.s8 %v12204
  %v12206 = vperm.slane %v12202, %v12205
  %v12207 = vrot.slane %v11815, 4
  %v12208 = vsel %vm573, %v12207, %v11813
  %v12210 = vunpack.c.l.s4 1983009808
  %v12211 = vunpack.c.0.s8 %v12210
  %v12212 = vperm.slane %v12208, %v12211
  %v12213 = vsel %vm573, %v11818, %v11807
  %v12215 = vunpack.c.l.s4 1983009808
  %v12216 = vunpack.c.0.s8 %v12215
  %v12217 = vperm.slane %v12213, %v12216
  %v12218 = vrot.slane %v11819, 4
  %v12219 = vsel %vm573, %v12218, %v11817
  %v12221 = vunpack.c.l.s4 1983009808
  %v12222 = vunpack.c.0.s8 %v12221
  %v12223 = vperm.slane %v12219, %v12222
  %v12224 = vrot.slane %v12212, 4
  %v12225 = vsel %vm573, %v12224, %v12206
  %v12226 = vrot.slane %v12206, 4
  %v12227 = vsel %vm573, %v12212, %v12226
  %v12229 = vunpack.c.l.s4 1934713408
  %v12230 = vunpack.c.0.s8 %v12229
  %v12231 = vperm.slane %v12225, %v12230
  %v12233 = vunpack.c.l.s4 1934713408
  %v12234 = vunpack.c.0.s8 %v12233
  %v12235 = vperm.slane %v12227, %v12234
  %v12236 = vrot.slane %v12223, 4
  %v12237 = vsel %vm573, %v12236, %v12217
  %v12238 = vrot.slane %v12217, 4
  %v12239 = vsel %vm573, %v12223, %v12238
  %v12241 = vunpack.c.l.s4 1934713408
  %v12242 = vunpack.c.0.s8 %v12241
  %v12243 = vperm.slane %v12237, %v12242
  %v12245 = vunpack.c.l.s4 1934713408
  %v12246 = vunpack.c.0.s8 %v12245
  %v12247 = vperm.slane %v12239, %v12246
  %v12248 = vrot.slane %v12243, 4
  %v12249 = vsel %vm573, %v12248, %v12231
  %v12250 = vrot.slane %v12231, 4
  %v12251 = vsel %vm573, %v12243, %v12250
  %v12252 = vrot.slane %v12247, 4
  %v12253 = vsel %vm573, %v12252, %v12235
  %v12254 = vrot.slane %v12235, 4
  %v12255 = vsel %vm573, %v12247, %v12254
  %v12256 = vsel %vm573, %v11870, %v11851
  %v12258 = vunpack.c.l.s4 1983009808
  %v12259 = vunpack.c.0.s8 %v12258
  %v12260 = vperm.slane %v12256, %v12259
  %v12261 = vrot.slane %v11871, 4
  %v12262 = vsel %vm573, %v12261, %v11869
  %v12264 = vunpack.c.l.s4 1983009808
  %v12265 = vunpack.c.0.s8 %v12264
  %v12266 = vperm.slane %v12262, %v12265
  %v12267 = vsel %vm573, %v11874, %v11863
  %v12269 = vunpack.c.l.s4 1983009808
  %v12270 = vunpack.c.0.s8 %v12269
  %v12271 = vperm.slane %v12267, %v12270
  %v12272 = vrot.slane %v11875, 4
  %v12273 = vsel %vm573, %v12272, %v11873
  %v12275 = vunpack.c.l.s4 1983009808
  %v12276 = vunpack.c.0.s8 %v12275
  %v12277 = vperm.slane %v12273, %v12276
  %v12278 = vrot.slane %v12266, 4
  %v12279 = vsel %vm573, %v12278, %v12260
  %v12280 = vrot.slane %v12260, 4
  %v12281 = vsel %vm573, %v12266, %v12280
  %v12283 = vunpack.c.l.s4 1934713408
  %v12284 = vunpack.c.0.s8 %v12283
  %v12285 = vperm.slane %v12279, %v12284
  %v12287 = vunpack.c.l.s4 1934713408
  %v12288 = vunpack.c.0.s8 %v12287
  %v12289 = vperm.slane %v12281, %v12288
  %v12290 = vrot.slane %v12277, 4
  %v12291 = vsel %vm573, %v12290, %v12271
  %v12292 = vrot.slane %v12271, 4
  %v12293 = vsel %vm573, %v12277, %v12292
  %v12295 = vunpack.c.l.s4 1934713408
  %v12296 = vunpack.c.0.s8 %v12295
  %v12297 = vperm.slane %v12291, %v12296
  %v12299 = vunpack.c.l.s4 1934713408
  %v12300 = vunpack.c.0.s8 %v12299
  %v12301 = vperm.slane %v12293, %v12300
  %v12302 = vrot.slane %v12297, 4
  %v12303 = vsel %vm573, %v12302, %v12285
  %v12304 = vrot.slane %v12285, 4
  %v12305 = vsel %vm573, %v12297, %v12304
  %v12306 = vrot.slane %v12301, 4
  %v12307 = vsel %vm573, %v12306, %v12289
  %v12308 = vrot.slane %v12289, 4
  %v12309 = vsel %vm573, %v12301, %v12308
  %v12310 = vsel %vm573, %v11926, %v11907
  %v12312 = vunpack.c.l.s4 1983009808
  %v12313 = vunpack.c.0.s8 %v12312
  %v12314 = vperm.slane %v12310, %v12313
  %v12315 = vrot.slane %v11927, 4
  %v12316 = vsel %vm573, %v12315, %v11925
  %v12318 = vunpack.c.l.s4 1983009808
  %v12319 = vunpack.c.0.s8 %v12318
  %v12320 = vperm.slane %v12316, %v12319
  %v12321 = vsel %vm573, %v11930, %v11919
  %v12323 = vunpack.c.l.s4 1983009808
  %v12324 = vunpack.c.0.s8 %v12323
  %v12325 = vperm.slane %v12321, %v12324
  %v12326 = vrot.slane %v11931, 4
  %v12327 = vsel %vm573, %v12326, %v11929
  %v12329 = vunpack.c.l.s4 1983009808
  %v12330 = vunpack.c.0.s8 %v12329
  %v12331 = vperm.slane %v12327, %v12330
  %v12332 = vrot.slane %v12320, 4
  %v12333 = vsel %vm573, %v12332, %v12314
  %v12334 = vrot.slane %v12314, 4
  %v12335 = vsel %vm573, %v12320, %v12334
  %v12337 = vunpack.c.l.s4 1934713408
  %v12338 = vunpack.c.0.s8 %v12337
  %v12339 = vperm.slane %v12333, %v12338
  %v12341 = vunpack.c.l.s4 1934713408
  %v12342 = vunpack.c.0.s8 %v12341
  %v12343 = vperm.slane %v12335, %v12342
  %v12344 = vrot.slane %v12331, 4
  %v12345 = vsel %vm573, %v12344, %v12325
  %v12346 = vrot.slane %v12325, 4
  %v12347 = vsel %vm573, %v12331, %v12346
  %v12349 = vunpack.c.l.s4 1934713408
  %v12350 = vunpack.c.0.s8 %v12349
  %v12351 = vperm.slane %v12345, %v12350
  %v12353 = vunpack.c.l.s4 1934713408
  %v12354 = vunpack.c.0.s8 %v12353
  %v12355 = vperm.slane %v12347, %v12354
  %v12356 = vrot.slane %v12351, 4
  %v12357 = vsel %vm573, %v12356, %v12339
  %v12358 = vrot.slane %v12339, 4
  %v12359 = vsel %vm573, %v12351, %v12358
  %v12360 = vrot.slane %v12355, 4
  %v12361 = vsel %vm573, %v12360, %v12343
  %v12362 = vrot.slane %v12343, 4
  %v12363 = vsel %vm573, %v12355, %v12362
  %12372 = vrot.lane.b32.xlu0 %v11981, 8
  %v12373 = vpop.permute.xlu0 %12372
  %12374 = vrot.lane.b32.xlu0 %v12035, 8
  %v12375 = vpop.permute.xlu0 %12374
  %12376 = vrot.lane.b32.xlu0 %v12089, 8
  %v12377 = vpop.permute.xlu0 %12376
  %12378 = vrot.lane.b32.xlu0 %v12143, 8
  %v12379 = vpop.permute.xlu0 %12378
  %12380 = vrot.lane.b32.xlu0 %v12197, 8
  %v12381 = vpop.permute.xlu0 %12380
  %12382 = vrot.lane.b32.xlu0 %v12251, 8
  %v12383 = vpop.permute.xlu0 %12382
  %12384 = vrot.lane.b32.xlu0 %v12305, 8
  %v12385 = vpop.permute.xlu0 %12384
  %12386 = vrot.lane.b32.xlu0 %v12359, 8
  %v12387 = vpop.permute.xlu0 %12386
  %12404 = vrot.lane.b32.xlu0 %v11983, 16
  %v12405 = vpop.permute.xlu0 %12404
  %12406 = vrot.lane.b32.xlu0 %v12037, 16
  %v12407 = vpop.permute.xlu0 %12406
  %12408 = vrot.lane.b32.xlu0 %v12091, 16
  %v12409 = vpop.permute.xlu0 %12408
  %12410 = vrot.lane.b32.xlu0 %v12145, 16
  %v12411 = vpop.permute.xlu0 %12410
  %12412 = vrot.lane.b32.xlu0 %v12199, 16
  %v12413 = vpop.permute.xlu0 %12412
  %12414 = vrot.lane.b32.xlu0 %v12253, 16
  %v12415 = vpop.permute.xlu0 %12414
  %12416 = vrot.lane.b32.xlu0 %v12307, 16
  %v12417 = vpop.permute.xlu0 %12416
  %12418 = vrot.lane.b32.xlu0 %v12361, 16
  %v12419 = vpop.permute.xlu0 %12418
  %12436 = vrot.lane.b32.xlu0 %v11985, 24
  %v12437 = vpop.permute.xlu0 %12436
  %12438 = vrot.lane.b32.xlu0 %v12039, 24
  %v12439 = vpop.permute.xlu0 %12438
  %12440 = vrot.lane.b32.xlu0 %v12093, 24
  %v12441 = vpop.permute.xlu0 %12440
  %12442 = vrot.lane.b32.xlu0 %v12147, 24
  %v12443 = vpop.permute.xlu0 %12442
  %12444 = vrot.lane.b32.xlu0 %v12201, 24
  %v12445 = vpop.permute.xlu0 %12444
  %12446 = vrot.lane.b32.xlu0 %v12255, 24
  %v12447 = vpop.permute.xlu0 %12446
  %12448 = vrot.lane.b32.xlu0 %v12309, 24
  %v12449 = vpop.permute.xlu0 %12448
  %12450 = vrot.lane.b32.xlu0 %v12363, 24
  %v12451 = vpop.permute.xlu0 %12450
  %v12460 = vsel %vm3341, %v11979, %v12373
  %v12461 = vsel %vm3341, %v12033, %v12375
  %v12462 = vsel %vm3341, %v12087, %v12377
  %v12463 = vsel %vm3341, %v12141, %v12379
  %v12464 = vsel %vm3341, %v12195, %v12381
  %v12465 = vsel %vm3341, %v12249, %v12383
  %v12466 = vsel %vm3341, %v12303, %v12385
  %v12467 = vsel %vm3341, %v12357, %v12387
  %v12468 = vsel %vm5959, %v12460, %v12405
  %v12469 = vsel %vm5959, %v12461, %v12407
  %v12470 = vsel %vm5959, %v12462, %v12409
  %v12471 = vsel %vm5959, %v12463, %v12411
  %v12472 = vsel %vm5959, %v12464, %v12413
  %v12473 = vsel %vm5959, %v12465, %v12415
  %v12474 = vsel %vm5959, %v12466, %v12417
  %v12475 = vsel %vm5959, %v12467, %v12419
  %v12476 = vsel %vm5968, %v12468, %v12437
  %v12477 = vsel %vm5968, %v12469, %v12439
  %v12478 = vsel %vm5968, %v12470, %v12441
  %v12479 = vsel %vm5968, %v12471, %v12443
  %v12480 = vsel %vm5968, %v12472, %v12445
  %v12481 = vsel %vm5968, %v12473, %v12447
  %v12482 = vsel %vm5968, %v12474, %v12449
  %v12483 = vsel %vm5968, %v12475, %v12451
  %v12484 = vpack.c.bf16 %v12477, %v12476
  %v12485 = vpack.c.bf16 %v12479, %v12478
  %v12486 = vpack.c.bf16 %v12481, %v12480
  %v12487 = vpack.c.bf16 %v12483, %v12482
  %s12488 = scalar_lea.vmem %s4, 16
  %v12489 = vld [vmem:[%s12488] sm:$0xf]
  %v12490 = vld [vmem:[%s12488 + $0x4] sm:$0xf]
  %v12491 = vld [vmem:[%s12488 + $0x8] sm:$0xf]
  %v12492 = vld [vmem:[%s12488 + $0xc] sm:$0xf]
  %v12493 = vperm.slane %v6553, 2
  %v12498 = vunpack.c.l.b16 %v12489
  %v12499 = vunpack.c.l.b16 %v12490
  %v12500 = vunpack.c.l.b16 %v12491
  %v12501 = vunpack.c.l.b16 %v12492
  %v12502 = vpack.c.b16 %v12499, %v12498
  %v12503 = vpack.c.b16 %v12501, %v12500
  %v12507 = vsel %vm37, %v12484, 0
  %v12510 = vsel %vm37, %v12485, 0
  %v12513 = vsel %vm37, %v12486, 0
  %v12516 = vsel %vm37, %v12487, 0
  %12518 = vmatpush.bf16.msra.mxu0 0
  %12519 = vmatpush.bf16.msra.mxu0 0
  %12520 = vmatpush.bf16.msra.mxu0 0
  %12521 = vmatpush.bf16.msra.mxu0 0
  %12522 = vmatpush.bf16.msra.mxu0 0
  %12523 = vmatpush.bf16.msra.mxu0 0
  %12524 = vmatpush.bf16.msra.mxu0 %v12503
  %12525 = vmatpush.bf16.msra.mxu0 %v12502
  %12526 = vmatmul.bf16.gmra.mxu0 %v12507
  %v12527 = vpop.f32.mrf.mxu0
  %v12528 = vadd.f32 %v12493, %v12527
  %v12529 = vpop.f32.mrf.mxu0
  %v12530 = vadd.f32 %v12493, %v12529
  %12531 = vmatmul.bf16.gmra.mxu0 %v12510
  %v12532 = vpop.f32.mrf.mxu0
  %v12533 = vadd.f32 %v12493, %v12532
  %v12534 = vpop.f32.mrf.mxu0
  %v12535 = vadd.f32 %v12493, %v12534
  %12536 = vmatmul.bf16.gmra.mxu0 %v12513
  %v12537 = vpop.f32.mrf.mxu0
  %v12538 = vadd.f32 %v12493, %v12537
  %v12539 = vpop.f32.mrf.mxu0
  %v12540 = vadd.f32 %v12493, %v12539
  %12541 = vmatmul.bf16.gmra.mxu0 %v12516
  %v12542 = vpop.f32.mrf.mxu0
  %v12543 = vadd.f32 %v12493, %v12542
  %v12544 = vpop.f32.mrf.mxu0
  %v12545 = vadd.f32 %v12493, %v12544
  %12546 = vdwg.mxu0
  %v12547 = vadd.f32 %v6544, %v12528
  %v12548 = vadd.f32 %v6545, %v12530
  %v12549 = vadd.f32 %v6546, %v12533
  %v12550 = vadd.f32 %v6547, %v12535
  %v12551 = vadd.f32 %v6548, %v12538
  %v12552 = vadd.f32 %v6549, %v12540
  %v12553 = vadd.f32 %v6550, %v12543
  %v12554 = vadd.f32 %v6551, %v12545
  %v12555 = vsel %vm37, %v12547, 0.0
  %12556 = vadd.xlane.f32.xlu0 %v12555
  %v12557 = vpop.xlane.xlu0 %12556
  %v12558 = vsel %vm37, %v12548, 0.0
  %12559 = vadd.xlane.f32.xlu0 %v12558
  %v12560 = vpop.xlane.xlu0 %12559
  %v12561 = vsel %vm37, %v12549, 0.0
  %12562 = vadd.xlane.f32.xlu0 %v12561
  %v12563 = vpop.xlane.xlu0 %12562
  %v12564 = vsel %vm37, %v12550, 0.0
  %12565 = vadd.xlane.f32.xlu0 %v12564
  %v12566 = vpop.xlane.xlu0 %12565
  %v12567 = vsel %vm37, %v12551, 0.0
  %12568 = vadd.xlane.f32.xlu0 %v12567
  %v12569 = vpop.xlane.xlu0 %12568
  %v12570 = vsel %vm37, %v12552, 0.0
  %12571 = vadd.xlane.f32.xlu0 %v12570
  %v12572 = vpop.xlane.xlu0 %12571
  %v12573 = vsel %vm37, %v12553, 0.0
  %12574 = vadd.xlane.f32.xlu0 %v12573
  %v12575 = vpop.xlane.xlu0 %12574
  %v12576 = vsel %vm37, %v12554, 0.0
  %12577 = vadd.xlane.f32.xlu0 %v12576
  %v12578 = vpop.xlane.xlu0 %12577
  %v12579 = vmul.f32 %v12557, %v68
  %v12580 = vmul.f32 %v12560, %v68
  %v12581 = vmul.f32 %v12563, %v68
  %v12582 = vmul.f32 %v12566, %v68
  %v12583 = vmul.f32 %v12569, %v68
  %v12584 = vmul.f32 %v12572, %v68
  %v12585 = vmul.f32 %v12575, %v68
  %v12586 = vmul.f32 %v12578, %v68
  %v12587 = vsub.f32 %v12547, %v12579
  %v12588 = vsub.f32 %v12548, %v12580
  %v12589 = vsub.f32 %v12549, %v12581
  %v12590 = vsub.f32 %v12550, %v12582
  %v12591 = vsub.f32 %v12551, %v12583
  %v12592 = vsub.f32 %v12552, %v12584
  %v12593 = vsub.f32 %v12553, %v12585
  %v12594 = vsub.f32 %v12554, %v12586
  %v12595 = vmul.f32 %v12587, %v12587
  %v12596 = vmul.f32 %v12588, %v12588
  %v12597 = vmul.f32 %v12589, %v12589
  %v12598 = vmul.f32 %v12590, %v12590
  %v12599 = vmul.f32 %v12591, %v12591
  %v12600 = vmul.f32 %v12592, %v12592
  %v12601 = vmul.f32 %v12593, %v12593
  %v12602 = vmul.f32 %v12594, %v12594
  %v12603 = vsel %vm37, %v12595, 0.0
  %12604 = vadd.xlane.f32.xlu0 %v12603
  %v12605 = vpop.xlane.xlu0 %12604
  %v12606 = vsel %vm37, %v12596, 0.0
  %12607 = vadd.xlane.f32.xlu0 %v12606
  %v12608 = vpop.xlane.xlu0 %12607
  %v12609 = vsel %vm37, %v12597, 0.0
  %12610 = vadd.xlane.f32.xlu0 %v12609
  %v12611 = vpop.xlane.xlu0 %12610
  %v12612 = vsel %vm37, %v12598, 0.0
  %12613 = vadd.xlane.f32.xlu0 %v12612
  %v12614 = vpop.xlane.xlu0 %12613
  %v12615 = vsel %vm37, %v12599, 0.0
  %12616 = vadd.xlane.f32.xlu0 %v12615
  %v12617 = vpop.xlane.xlu0 %12616
  %v12618 = vsel %vm37, %v12600, 0.0
  %12619 = vadd.xlane.f32.xlu0 %v12618
  %v12620 = vpop.xlane.xlu0 %12619
  %v12621 = vsel %vm37, %v12601, 0.0
  %12622 = vadd.xlane.f32.xlu0 %v12621
  %v12623 = vpop.xlane.xlu0 %12622
  %v12624 = vsel %vm37, %v12602, 0.0
  %12625 = vadd.xlane.f32.xlu0 %v12624
  %v12626 = vpop.xlane.xlu0 %12625
  %v12627 = vmul.f32 %v12605, %v68
  %v12628 = vmul.f32 %v12608, %v68
  %v12629 = vmul.f32 %v12611, %v68
  %v12630 = vmul.f32 %v12614, %v68
  %v12631 = vmul.f32 %v12617, %v68
  %v12632 = vmul.f32 %v12620, %v68
  %v12633 = vmul.f32 %v12623, %v68
  %v12634 = vmul.f32 %v12626, %v68
  %v12635 = vadd.f32 %v12627, 1e-05
  %v12636 = vadd.f32 %v12628, 1e-05
  %v12637 = vadd.f32 %v12629, 1e-05
  %v12638 = vadd.f32 %v12630, 1e-05
  %v12639 = vadd.f32 %v12631, 1e-05
  %v12640 = vadd.f32 %v12632, 1e-05
  %v12641 = vadd.f32 %v12633, 1e-05
  %v12642 = vadd.f32 %v12634, 1e-05
  %v12643 = vrsqrt.pop %v12635
  %v12644 = vmul.f32 %v12643, %v12635
  %v12645 = vmul.f32 %v12644, %v12643
  %v12646 = vmul.f32 0.5, %v12645
  %v12647 = vsub.f32 1.5, %v12646
  %v12648 = vmul.f32 %v12643, %v12647
  %vm12649 = vweird.f32 %v12635
  %vm12650 = vweird.f32 %v12643
  %vm12651 = vmor %vm12649, %vm12650
  %v12652 = vsel %vm12651, %v12643, %v12648
  %v12653 = vrsqrt.pop %v12636
  %v12654 = vmul.f32 %v12653, %v12636
  %v12655 = vmul.f32 %v12654, %v12653
  %v12656 = vmul.f32 0.5, %v12655
  %v12657 = vsub.f32 1.5, %v12656
  %v12658 = vmul.f32 %v12653, %v12657
  %vm12659 = vweird.f32 %v12636
  %vm12660 = vweird.f32 %v12653
  %vm12661 = vmor %vm12659, %vm12660
  %v12662 = vsel %vm12661, %v12653, %v12658
  %v12663 = vrsqrt.pop %v12637
  %v12664 = vmul.f32 %v12663, %v12637
  %v12665 = vmul.f32 %v12664, %v12663
  %v12666 = vmul.f32 0.5, %v12665
  %v12667 = vsub.f32 1.5, %v12666
  %v12668 = vmul.f32 %v12663, %v12667
  %vm12669 = vweird.f32 %v12637
  %vm12670 = vweird.f32 %v12663
  %vm12671 = vmor %vm12669, %vm12670
  %v12672 = vsel %vm12671, %v12663, %v12668
  %v12673 = vrsqrt.pop %v12638
  %v12674 = vmul.f32 %v12673, %v12638
  %v12675 = vmul.f32 %v12674, %v12673
  %v12676 = vmul.f32 0.5, %v12675
  %v12677 = vsub.f32 1.5, %v12676
  %v12678 = vmul.f32 %v12673, %v12677
  %vm12679 = vweird.f32 %v12638
  %vm12680 = vweird.f32 %v12673
  %vm12681 = vmor %vm12679, %vm12680
  %v12682 = vsel %vm12681, %v12673, %v12678
  %v12683 = vrsqrt.pop %v12639
  %v12684 = vmul.f32 %v12683, %v12639
  %v12685 = vmul.f32 %v12684, %v12683
  %v12686 = vmul.f32 0.5, %v12685
  %v12687 = vsub.f32 1.5, %v12686
  %v12688 = vmul.f32 %v12683, %v12687
  %vm12689 = vweird.f32 %v12639
  %vm12690 = vweird.f32 %v12683
  %vm12691 = vmor %vm12689, %vm12690
  %v12692 = vsel %vm12691, %v12683, %v12688
  %v12693 = vrsqrt.pop %v12640
  %v12694 = vmul.f32 %v12693, %v12640
  %v12695 = vmul.f32 %v12694, %v12693
  %v12696 = vmul.f32 0.5, %v12695
  %v12697 = vsub.f32 1.5, %v12696
  %v12698 = vmul.f32 %v12693, %v12697
  %vm12699 = vweird.f32 %v12640
  %vm12700 = vweird.f32 %v12693
  %vm12701 = vmor %vm12699, %vm12700
  %v12702 = vsel %vm12701, %v12693, %v12698
  %v12703 = vrsqrt.pop %v12641
  %v12704 = vmul.f32 %v12703, %v12641
  %v12705 = vmul.f32 %v12704, %v12703
  %v12706 = vmul.f32 0.5, %v12705
  %v12707 = vsub.f32 1.5, %v12706
  %v12708 = vmul.f32 %v12703, %v12707
  %vm12709 = vweird.f32 %v12641
  %vm12710 = vweird.f32 %v12703
  %vm12711 = vmor %vm12709, %vm12710
  %v12712 = vsel %vm12711, %v12703, %v12708
  %v12713 = vrsqrt.pop %v12642
  %v12714 = vmul.f32 %v12713, %v12642
  %v12715 = vmul.f32 %v12714, %v12713
  %v12716 = vmul.f32 0.5, %v12715
  %v12717 = vsub.f32 1.5, %v12716
  %v12718 = vmul.f32 %v12713, %v12717
  %vm12719 = vweird.f32 %v12642
  %vm12720 = vweird.f32 %v12713
  %vm12721 = vmor %vm12719, %vm12720
  %v12722 = vsel %vm12721, %v12713, %v12718
  %v12723 = vmul.f32 %v12587, %v12652
  %v12724 = vmul.f32 %v12588, %v12662
  %v12725 = vmul.f32 %v12589, %v12672
  %v12726 = vmul.f32 %v12590, %v12682
  %v12727 = vmul.f32 %v12591, %v12692
  %v12728 = vmul.f32 %v12592, %v12702
  %v12729 = vmul.f32 %v12593, %v12712
  %v12730 = vmul.f32 %v12594, %v12722
  %v12731 = vperm.slane %v6553, 3
  %v12732 = vmul.f32 %v12723, %v12731
  %v12733 = vmul.f32 %v12724, %v12731
  %v12734 = vmul.f32 %v12725, %v12731
  %v12735 = vmul.f32 %v12726, %v12731
  %v12736 = vmul.f32 %v12727, %v12731
  %v12737 = vmul.f32 %v12728, %v12731
  %v12738 = vmul.f32 %v12729, %v12731
  %v12739 = vmul.f32 %v12730, %v12731
  %v12740 = vperm.slane %v6553, 4
  %v12741 = vadd.f32 %v12732, %v12740
  %v12742 = vadd.f32 %v12733, %v12740
  %v12743 = vadd.f32 %v12734, %v12740
  %v12744 = vadd.f32 %v12735, %v12740
  %v12745 = vadd.f32 %v12736, %v12740
  %v12746 = vadd.f32 %v12737, %v12740
  %v12747 = vadd.f32 %v12738, %v12740
  %v12748 = vadd.f32 %v12739, %v12740
  %v12749 = vpack.c.bf16 %v12742, %v12741
  %v12750 = vpack.c.bf16 %v12744, %v12743
  %v12751 = vpack.c.bf16 %v12746, %v12745
  %v12752 = vpack.c.bf16 %v12748, %v12747
  %s12753 = scalar_lea.vmem %s5, 16
  %v12754 = vld [vmem:[%s12753] sm:$0xf]
  %v12755 = vld [vmem:[%s12753 + $0x4] sm:$0xf]
  %v12756 = vld [vmem:[%s12753 + $0x8] sm:$0xf]
  %v12757 = vld [vmem:[%s12753 + $0xc] sm:$0xf]
  %v12759 = vperm.slane %v6555, 0
  %v12765 = vunpack.c.l.b16 %v12754
  %v12766 = vunpack.c.l.b16 %v12755
  %v12767 = vunpack.c.l.b16 %v12756
  %v12768 = vunpack.c.l.b16 %v12757
  %v12769 = vpack.c.b16 %v12766, %v12765
  %v12770 = vpack.c.b16 %v12768, %v12767
  %v12774 = vsel %vm37, %v12749, 0
  %v12777 = vsel %vm37, %v12750, 0
  %v12780 = vsel %vm37, %v12751, 0
  %v12783 = vsel %vm37, %v12752, 0
  %12785 = vmatpush.bf16.msra.mxu0 0
  %12786 = vmatpush.bf16.msra.mxu0 0
  %12787 = vmatpush.bf16.msra.mxu0 0
  %12788 = vmatpush.bf16.msra.mxu0 0
  %12789 = vmatpush.bf16.msra.mxu0 0
  %12790 = vmatpush.bf16.msra.mxu0 0
  %12791 = vmatpush.bf16.msra.mxu0 %v12770
  %12792 = vmatpush.bf16.msra.mxu0 %v12769
  %12793 = vmatmul.bf16.gmra.mxu0 %v12774
  %v12794 = vpop.f32.mrf.mxu0
  %v12795 = vadd.f32 %v12759, %v12794
  %v12796 = vpop.f32.mrf.mxu0
  %v12797 = vadd.f32 %v12759, %v12796
  %12798 = vmatmul.bf16.gmra.mxu0 %v12777
  %v12799 = vpop.f32.mrf.mxu0
  %v12800 = vadd.f32 %v12759, %v12799
  %v12801 = vpop.f32.mrf.mxu0
  %v12802 = vadd.f32 %v12759, %v12801
  %12803 = vmatmul.bf16.gmra.mxu0 %v12780
  %v12804 = vpop.f32.mrf.mxu0
  %v12805 = vadd.f32 %v12759, %v12804
  %v12806 = vpop.f32.mrf.mxu0
  %v12807 = vadd.f32 %v12759, %v12806
  %12808 = vmatmul.bf16.gmra.mxu0 %v12783
  %v12809 = vpop.f32.mrf.mxu0
  %v12810 = vadd.f32 %v12759, %v12809
  %v12811 = vpop.f32.mrf.mxu0
  %v12812 = vadd.f32 %v12759, %v12811
  %12813 = vdwg.mxu0
  %v12814 = vxor.u32 %v12795, 2147483648
  %v12815 = vxor.u32 %v12797, 2147483648
  %v12816 = vxor.u32 %v12800, 2147483648
  %v12817 = vxor.u32 %v12802, 2147483648
  %v12818 = vxor.u32 %v12805, 2147483648
  %v12819 = vxor.u32 %v12807, 2147483648
  %v12820 = vxor.u32 %v12810, 2147483648
  %v12821 = vxor.u32 %v12812, 2147483648
  %v12822 = vmul.f32 %v12814, 1.442695
  %v12823 = vpow.pop %v12822
  %v12824 = vmul.f32 %v12815, 1.442695
  %v12825 = vpow.pop %v12824
  %v12826 = vmul.f32 %v12816, 1.442695
  %v12827 = vpow.pop %v12826
  %v12828 = vmul.f32 %v12817, 1.442695
  %v12829 = vpow.pop %v12828
  %v12830 = vmul.f32 %v12818, 1.442695
  %v12831 = vpow.pop %v12830
  %v12832 = vmul.f32 %v12819, 1.442695
  %v12833 = vpow.pop %v12832
  %v12834 = vmul.f32 %v12820, 1.442695
  %v12835 = vpow.pop %v12834
  %v12836 = vmul.f32 %v12821, 1.442695
  %v12837 = vpow.pop %v12836
  %v12838 = vadd.f32 %v12823, 1.0
  %v12839 = vadd.f32 %v12825, 1.0
  %v12840 = vadd.f32 %v12827, 1.0
  %v12841 = vadd.f32 %v12829, 1.0
  %v12842 = vadd.f32 %v12831, 1.0
  %v12843 = vadd.f32 %v12833, 1.0
  %v12844 = vadd.f32 %v12835, 1.0
  %v12845 = vadd.f32 %v12837, 1.0
  %v12846 = vrcp.pop %v12838
  %v12847 = vmul.f32 %v12838, %v12846
  %v12848 = vsub.f32 1.0, %v12847
  %v12849 = vmul.f32 %v12846, %v12848
  %v12850 = vadd.f32 %v12846, %v12849
  %vm12851 = vweird.f32 %v12838
  %vm12852 = vweird.f32 %v12846
  %vm12853 = vmor %vm12851, %vm12852
  %v12854 = vsel %vm12853, %v12846, %v12850
  %v12855 = vand.u32 2147483647, %v12838
  %vm12856 = vcmp.eq.f32.partialorder %v12855, 8.507059e+37
  %v12857 = vand.u32 %v12838, 2147483648
  %v12858 = vor.u32 1.1754944e-38, %v12857
  %v12859 = vsel %vm12856, %v12858, %v12854
  %v12860 = vmul.f32 1.0, %v12859
  %v12861 = vrcp.pop %v12839
  %v12862 = vmul.f32 %v12839, %v12861
  %v12863 = vsub.f32 1.0, %v12862
  %v12864 = vmul.f32 %v12861, %v12863
  %v12865 = vadd.f32 %v12861, %v12864
  %vm12866 = vweird.f32 %v12839
  %vm12867 = vweird.f32 %v12861
  %vm12868 = vmor %vm12866, %vm12867
  %v12869 = vsel %vm12868, %v12861, %v12865
  %v12870 = vand.u32 2147483647, %v12839
  %vm12871 = vcmp.eq.f32.partialorder %v12870, 8.507059e+37
  %v12872 = vand.u32 %v12839, 2147483648
  %v12873 = vor.u32 1.1754944e-38, %v12872
  %v12874 = vsel %vm12871, %v12873, %v12869
  %v12875 = vmul.f32 1.0, %v12874
  %v12876 = vrcp.pop %v12840
  %v12877 = vmul.f32 %v12840, %v12876
  %v12878 = vsub.f32 1.0, %v12877
  %v12879 = vmul.f32 %v12876, %v12878
  %v12880 = vadd.f32 %v12876, %v12879
  %vm12881 = vweird.f32 %v12840
  %vm12882 = vweird.f32 %v12876
  %vm12883 = vmor %vm12881, %vm12882
  %v12884 = vsel %vm12883, %v12876, %v12880
  %v12885 = vand.u32 2147483647, %v12840
  %vm12886 = vcmp.eq.f32.partialorder %v12885, 8.507059e+37
  %v12887 = vand.u32 %v12840, 2147483648
  %v12888 = vor.u32 1.1754944e-38, %v12887
  %v12889 = vsel %vm12886, %v12888, %v12884
  %v12890 = vmul.f32 1.0, %v12889
  %v12891 = vrcp.pop %v12841
  %v12892 = vmul.f32 %v12841, %v12891
  %v12893 = vsub.f32 1.0, %v12892
  %v12894 = vmul.f32 %v12891, %v12893
  %v12895 = vadd.f32 %v12891, %v12894
  %vm12896 = vweird.f32 %v12841
  %vm12897 = vweird.f32 %v12891
  %vm12898 = vmor %vm12896, %vm12897
  %v12899 = vsel %vm12898, %v12891, %v12895
  %v12900 = vand.u32 2147483647, %v12841
  %vm12901 = vcmp.eq.f32.partialorder %v12900, 8.507059e+37
  %v12902 = vand.u32 %v12841, 2147483648
  %v12903 = vor.u32 1.1754944e-38, %v12902
  %v12904 = vsel %vm12901, %v12903, %v12899
  %v12905 = vmul.f32 1.0, %v12904
  %v12906 = vrcp.pop %v12842
  %v12907 = vmul.f32 %v12842, %v12906
  %v12908 = vsub.f32 1.0, %v12907
  %v12909 = vmul.f32 %v12906, %v12908
  %v12910 = vadd.f32 %v12906, %v12909
  %vm12911 = vweird.f32 %v12842
  %vm12912 = vweird.f32 %v12906
  %vm12913 = vmor %vm12911, %vm12912
  %v12914 = vsel %vm12913, %v12906, %v12910
  %v12915 = vand.u32 2147483647, %v12842
  %vm12916 = vcmp.eq.f32.partialorder %v12915, 8.507059e+37
  %v12917 = vand.u32 %v12842, 2147483648
  %v12918 = vor.u32 1.1754944e-38, %v12917
  %v12919 = vsel %vm12916, %v12918, %v12914
  %v12920 = vmul.f32 1.0, %v12919
  %v12921 = vrcp.pop %v12843
  %v12922 = vmul.f32 %v12843, %v12921
  %v12923 = vsub.f32 1.0, %v12922
  %v12924 = vmul.f32 %v12921, %v12923
  %v12925 = vadd.f32 %v12921, %v12924
  %vm12926 = vweird.f32 %v12843
  %vm12927 = vweird.f32 %v12921
  %vm12928 = vmor %vm12926, %vm12927
  %v12929 = vsel %vm12928, %v12921, %v12925
  %v12930 = vand.u32 2147483647, %v12843
  %vm12931 = vcmp.eq.f32.partialorder %v12930, 8.507059e+37
  %v12932 = vand.u32 %v12843, 2147483648
  %v12933 = vor.u32 1.1754944e-38, %v12932
  %v12934 = vsel %vm12931, %v12933, %v12929
  %v12935 = vmul.f32 1.0, %v12934
  %v12936 = vrcp.pop %v12844
  %v12937 = vmul.f32 %v12844, %v12936
  %v12938 = vsub.f32 1.0, %v12937
  %v12939 = vmul.f32 %v12936, %v12938
  %v12940 = vadd.f32 %v12936, %v12939
  %vm12941 = vweird.f32 %v12844
  %vm12942 = vweird.f32 %v12936
  %vm12943 = vmor %vm12941, %vm12942
  %v12944 = vsel %vm12943, %v12936, %v12940
  %v12945 = vand.u32 2147483647, %v12844
  %vm12946 = vcmp.eq.f32.partialorder %v12945, 8.507059e+37
  %v12947 = vand.u32 %v12844, 2147483648
  %v12948 = vor.u32 1.1754944e-38, %v12947
  %v12949 = vsel %vm12946, %v12948, %v12944
  %v12950 = vmul.f32 1.0, %v12949
  %v12951 = vrcp.pop %v12845
  %v12952 = vmul.f32 %v12845, %v12951
  %v12953 = vsub.f32 1.0, %v12952
  %v12954 = vmul.f32 %v12951, %v12953
  %v12955 = vadd.f32 %v12951, %v12954
  %vm12956 = vweird.f32 %v12845
  %vm12957 = vweird.f32 %v12951
  %vm12958 = vmor %vm12956, %vm12957
  %v12959 = vsel %vm12958, %v12951, %v12955
  %v12960 = vand.u32 2147483647, %v12845
  %vm12961 = vcmp.eq.f32.partialorder %v12960, 8.507059e+37
  %v12962 = vand.u32 %v12845, 2147483648
  %v12963 = vor.u32 1.1754944e-38, %v12962
  %v12964 = vsel %vm12961, %v12963, %v12959
  %v12965 = vmul.f32 1.0, %v12964
  %v12966 = vmul.f32 %v12795, %v12860
  %v12967 = vmul.f32 %v12797, %v12875
  %v12968 = vmul.f32 %v12800, %v12890
  %v12969 = vmul.f32 %v12802, %v12905
  %v12970 = vmul.f32 %v12805, %v12920
  %v12971 = vmul.f32 %v12807, %v12935
  %v12972 = vmul.f32 %v12810, %v12950
  %v12973 = vmul.f32 %v12812, %v12965
  %v12974 = vpack.c.bf16 %v12967, %v12966
  %v12975 = vpack.c.bf16 %v12969, %v12968
  %v12976 = vpack.c.bf16 %v12971, %v12970
  %v12977 = vpack.c.bf16 %v12973, %v12972
  %s12978 = scalar_lea.vmem %s6, 32
  %v12979 = vld [vmem:[%s12978] sm:$0xf]
  %v12980 = vld [vmem:[%s12978 + $0x4] sm:$0xf]
  %v12981 = vld [vmem:[%s12978 + $0x8] sm:$0xf]
  %v12982 = vld [vmem:[%s12978 + $0xc] sm:$0xf]
  %v12983 = vld [vmem:[%s12978 + $0x10] sm:$0xf]
  %v12984 = vld [vmem:[%s12978 + $0x14] sm:$0xf]
  %v12985 = vld [vmem:[%s12978 + $0x18] sm:$0xf]
  %v12986 = vld [vmem:[%s12978 + $0x1c] sm:$0xf]
  %v12987 = vperm.slane %v6553, 5
  %v12996 = vunpack.c.l.b16 %v12979
  %v12997 = vunpack.c.l.b16 %v12980
  %v12998 = vunpack.c.l.b16 %v12981
  %v12999 = vunpack.c.l.b16 %v12982
  %v13000 = vunpack.c.l.b16 %v12983
  %v13001 = vunpack.c.l.b16 %v12984
  %v13002 = vunpack.c.l.b16 %v12985
  %v13003 = vunpack.c.l.b16 %v12986
  %v13004 = vpack.c.b16 %v12997, %v12996
  %v13005 = vpack.c.b16 %v12999, %v12998
  %v13006 = vpack.c.b16 %v13001, %v13000
  %v13007 = vpack.c.b16 %v13003, %v13002
  %v13013 = vsel %vm6502, %v12974, 0
  %v13016 = vsel %vm6502, %v12975, 0
  %v13019 = vsel %vm6502, %v12976, 0
  %v13022 = vsel %vm6502, %v12977, 0
  %13024 = vmatpush.bf16.msra.mxu0 0
  %13025 = vmatpush.bf16.msra.mxu0 0
  %13026 = vmatpush.bf16.msra.mxu0 0
  %13027 = vmatpush.bf16.msra.mxu0 0
  %13028 = vmatpush.bf16.msra.mxu0 %v13007
  %13029 = vmatpush.bf16.msra.mxu0 %v13006
  %13030 = vmatpush.bf16.msra.mxu0 %v13005
  %13031 = vmatpush.bf16.msra.mxu0 %v13004
  %13032 = vmatmul.bf16.gmra.mxu0 %v13013
  %v13033 = vpop.f32.mrf.mxu0
  %v13034 = vadd.f32 %v12987, %v13033
  %v13035 = vpop.f32.mrf.mxu0
  %v13036 = vadd.f32 %v12987, %v13035
  %13037 = vmatmul.bf16.gmra.mxu0 %v13016
  %v13038 = vpop.f32.mrf.mxu0
  %v13039 = vadd.f32 %v12987, %v13038
  %v13040 = vpop.f32.mrf.mxu0
  %v13041 = vadd.f32 %v12987, %v13040
  %13042 = vmatmul.bf16.gmra.mxu0 %v13019
  %v13043 = vpop.f32.mrf.mxu0
  %v13044 = vadd.f32 %v12987, %v13043
  %v13045 = vpop.f32.mrf.mxu0
  %v13046 = vadd.f32 %v12987, %v13045
  %13047 = vmatmul.bf16.gmra.mxu0 %v13022
  %v13048 = vpop.f32.mrf.mxu0
  %v13049 = vadd.f32 %v12987, %v13048
  %v13050 = vpop.f32.mrf.mxu0
  %v13051 = vadd.f32 %v12987, %v13050
  %13052 = vdwg.mxu0
  %v13053 = vadd.f32 %v12547, %v13034
  %v13054 = vadd.f32 %v12548, %v13036
  %v13055 = vadd.f32 %v12549, %v13039
  %v13056 = vadd.f32 %v12550, %v13041
  %v13057 = vadd.f32 %v12551, %v13044
  %v13058 = vadd.f32 %v12552, %v13046
  %v13059 = vadd.f32 %v12553, %v13049
  %v13060 = vadd.f32 %v12554, %v13051
  %13061 = vst.msk [vmem:[%s7] sm:$0xff] %vm37, %v13053
  %13062 = vst.msk [vmem:[%s7 + $0x8] sm:$0xff] %vm37, %v13054
  %13063 = vst.msk [vmem:[%s7 + $0x10] sm:$0xff] %vm37, %v13055
  %13064 = vst.msk [vmem:[%s7 + $0x18] sm:$0xff] %vm37, %v13056
  %13065 = vst.msk [vmem:[%s7 + $0x20] sm:$0xff] %vm37, %v13057
  %13066 = vst.msk [vmem:[%s7 + $0x28] sm:$0xff] %vm37, %v13058
  %13067 = vst.msk [vmem:[%s7 + $0x30] sm:$0xff] %vm37, %v13059
  %13068 = vst.msk [vmem:[%s7 + $0x38] sm:$0xff] %vm37, %v13060
  // Predicated region
  $region30: #{tpu_custom_call.1} parent=0 // pred_check
    _
  $region31: #{tpu_custom_call.1} parent=0 // pred_check_branch
    %13070 = sbr.rel (0) target = $region33
  $region32: #{tpu_custom_call.1} parent=0 // pred_region
    _
  $region33: #{tpu_custom_call.1} parent=0 // pred_fallthru
    _
  // Predicated region
  $region34: #{tpu_custom_call.1} parent=0 // pred_check
    _
  $region35: #{tpu_custom_call.1} parent=0 // pred_check_branch
    %13072 = sbr.rel (0) target = $region37
  $region36: #{tpu_custom_call.1} parent=0 // pred_region
    _
  $region37: #{tpu_custom_call.1} parent=0 // pred_fallthru
    _

</llo_original>
